<compile_context>
chip_gen: v7x
topology: tpu7x:2x2x1
jax: 0.10.0
libtpu: 0.0.40
codegen_flags: <defaults>
</compile_context>

<pallas_src>
import functools
import math

import jax
import jax.numpy as jnp
from jax.experimental import pallas as pl
from jax.experimental.pallas import tpu as pltpu

VMEM_LIMIT = 32 * 1024 * 1024   # explicit, safe on v5e/v6e/v7x


def _round_up(x, m):
    return ((x + m - 1) // m) * m


def _pick_lane_tile(n, max_tile=1024):
    """Pick (n_pad, tile): largest lane tile <= max_tile that keeps >= 2 grid steps."""
    n = max(int(n), 256)
    for t in (2048, 1024, 512, 256, 128):
        if t > max_tile:
            continue
        n_pad = _round_up(n, t)
        if n_pad // t >= 2:
            return n_pad, t
    return _round_up(n, 128), 128


# -----------------------------------------------------------------------------
# Kernel 1: fused GFM stage (branch projections + GFM softmax fusion), (C, N) layout
# -----------------------------------------------------------------------------
def _gfm_fuse(rg, pF, vg, wr_ref, wp_ref, wv_ref, ball_ref, wgr_ref, wgp_ref, wgv_ref, bg_ref):
    cmid = wr_ref.shape[0]
    ball = ball_ref[...]
    br = ball[0 * cmid:1 * cmid, :]
    bp = ball[1 * cmid:2 * cmid, :]
    bv = ball[2 * cmid:3 * cmid, :]
    # branch projections: Linear + folded-BN + ReLU (stand-ins for conv stacks, see TODOs)
    r = jnp.maximum(jnp.dot(wr_ref[...], rg, preferred_element_type=jnp.float32) + br, 0.0)
    p = jnp.maximum(jnp.dot(wp_ref[...], pF, preferred_element_type=jnp.float32) + bp, 0.0)
    v = jnp.maximum(jnp.dot(wv_ref[...], vg, preferred_element_type=jnp.float32) + bv, 0.0)
    # GFM: sum of the three per-branch 3-dim logit linears (matches r_w + p_w + v_w)
    logits = (jnp.dot(wgr_ref[...], r, preferred_element_type=jnp.float32)
              + jnp.dot(wgp_ref[...], p, preferred_element_type=jnp.float32)
              + jnp.dot(wgv_ref[...], v, preferred_element_type=jnp.float32)
              + bg_ref[...])
    m = jnp.max(logits, axis=0, keepdims=True)
    e = jnp.exp(logits - m)
    w = e / jnp.sum(e, axis=0, keepdims=True)      # exact divide (3 rows, cheap)
    return r * w[0:1, :] + p * w[1:2, :] + v * w[2:3, :]


def _stage_kernel(rg_ref, pF_ref, vg_ref, wr_ref, wp_ref, wv_ref, ball_ref,
                  wgr_ref, wgp_ref, wgv_ref, bg_ref, o_ref):
    fuse = _gfm_fuse(rg_ref[...], pF_ref[...], vg_ref[...],
                     wr_ref, wp_ref, wv_ref, ball_ref, wgr_ref, wgp_ref, wgv_ref, bg_ref)
    o_ref[...] = fuse.astype(o_ref.dtype)


def _stage_final_kernel(rg_ref, pF_ref, vg_ref, wr_ref, wp_ref, wv_ref, ball_ref,
                        wgr_ref, wgp_ref, wgv_ref, bg_ref, wf_ref, bf_ref, o_ref):
    fuse = _gfm_fuse(rg_ref[...], pF_ref[...], vg_ref[...],
                     wr_ref, wp_ref, wv_ref, ball_ref, wgr_ref, wgp_ref, wgv_ref, bg_ref)
    # final classifier fused in (saves one HBM round trip + launch)
    y = jnp.dot(wf_ref[...], fuse, preferred_element_type=jnp.float32) + bf_ref[...]
    o_ref[...] = y.astype(o_ref.dtype)


def fused_gfm_stage(rg, pF, vg, prm, lane_tile, final_w=None, final_b=None):
    """rg/pF/vg: (cin_*, n_pad) bf16.  Returns fused point features (or class logits)."""
    cmid = prm["wp"].shape[0]
    n_pad = pF.shape[1]
    grid = (n_pad // lane_tile,)

    act_specs = [
        pl.BlockSpec((rg.shape[0], lane_tile), lambda i: (0, i)),
        pl.BlockSpec((pF.shape[0], lane_tile), lambda i: (0, i)),
        pl.BlockSpec((vg.shape[0], lane_tile), lambda i: (0, i)),
    ]
    weight_specs = [
        pl.BlockSpec(prm["wr"].shape, lambda i: (0, 0)),
        pl.BlockSpec(prm["wp"].shape, lambda i: (0, 0)),
        pl.BlockSpec(prm["wv"].shape, lambda i: (0, 0)),
        pl.BlockSpec((3 * cmid, 1), lambda i: (0, 0)),
        pl.BlockSpec((3, cmid), lambda i: (0, 0)),
        pl.BlockSpec((3, cmid), lambda i: (0, 0)),
        pl.BlockSpec((3, cmid), lambda i: (0, 0)),
        pl.BlockSpec((3, 1), lambda i: (0, 0)),
    ]
    args = [rg, pF, vg, prm["wr"], prm["wp"], prm["wv"], prm["ball"],
            prm["wgr"], prm["wgp"], prm["wgv"], prm["bg"]]

    if final_w is None:
        kern = _stage_kernel
        cout, odt = cmid, jnp.bfloat16
        extra_specs, extra_args = [], []
    else:
        kern = _stage_final_kernel
        cout, odt = final_w.shape[0], jnp.float32
        extra_specs = [pl.BlockSpec(final_w.shape, lambda i: (0, 0)),
                       pl.BlockSpec((cout, 1), lambda i: (0, 0))]
        extra_args = [final_w, final_b]

    return pl.pallas_call(
        kern,
        out_shape=jax.ShapeDtypeStruct((cout, n_pad), odt),
        grid_spec=pltpu.PrefetchScalarGridSpec(
            num_scalar_prefetch=0,
            grid=grid,
            in_specs=act_specs + weight_specs + extra_specs,
            out_specs=pl.BlockSpec((cout, lane_tile), lambda i: (0, i)),
        ),
        compiler_params=pltpu.CompilerParams(
            dimension_semantics=("parallel",), vmem_limit_bytes=VMEM_LIMIT),
    )(*args, *extra_args)


# -----------------------------------------------------------------------------
# Kernel 2: K-chunked scatter-mean via one-hot MXU segment-sum, merged voxel+range tables
#   out[:, b] = mean_{n: idx[n] == b} feats[:, n]   (0 where the bucket is empty)
# -----------------------------------------------------------------------------
def _scatter_mean_kernel(idx_ref, f_ref, o_ref, sum_sc, cnt_sc, *, vox_tiles):
    k = pl.program_id(1)

    @pl.when(k == 0)
    def _():
        sum_sc[...] = jnp.zeros_like(sum_sc)
        cnt_sc[...] = jnp.zeros_like(cnt_sc)

    out_tile = o_ref.shape[1]
    idx = idx_ref[...]                                   # (K_TILE, R) int32, -1 = padded
    if idx.shape[1] > 1:
        # column 0 targets the voxel region, column 1 the (offset) range region; an output
        # tile lies entirely in one region so pick the relevant column (regions disjoint).
        col = jnp.where(pl.program_id(0) < vox_tiles, idx[:, 0:1], idx[:, 1:2])
    else:
        col = idx[:, 0:1]

    base = pl.program_id(0) * out_tile
    lane_bucket = base + jax.lax.broadcasted_iota(jnp.int32, (1, out_tile), 1)
    hit = col == lane_bucket                             # (K_TILE, out_tile)
    oh = hit.astype(jnp.bfloat16)                        # 0/1 exact in bf16

    f = f_ref[...]                                       # (C, K_TILE) bf16
    sum_sc[...] += jnp.dot(f, oh, preferred_element_type=jnp.float32)
    ones_row = jnp.ones((1, f.shape[1]), jnp.bfloat16)   # exact integer counts via MXU
    cnt_sc[...] += jnp.dot(ones_row, oh, preferred_element_type=jnp.float32)

    @pl.when(k == pl.num_programs(1) - 1)
    def _():
        # exact mean divide (no approx reciprocal per correctness feedback)
        o_ref[...] = (sum_sc[...] / jnp.maximum(cnt_sc[...], 1.0)).astype(o_ref.dtype)


def scatter_mean_tables(feats_cn, idx_cols, row_counts, *, out_tile=256, k_tile_max=1024):
    """feats_cn: (C, n_pad) bf16.  idx_cols: (n_pad, R) int32 already offset into the
    concatenated output table, -1 marks padded points.  row_counts: per-table padded rows
    (each a multiple of out_tile).  Returns (C, sum(row_counts)) bf16."""
    c, n_pad = feats_cn.shape
    r = idx_cols.shape[1]
    total_rows = sum(row_counts)

    k_tile = min(k_tile_max, n_pad)
    while n_pad % k_tile:
        k_tile //= 2
    vox_tiles = row_counts[0] // out_tile
    grid = (total_rows // out_tile, n_pad // k_tile)     # point-chunk reduction axis last

    kern = functools.partial(_scatter_mean_kernel, vox_tiles=vox_tiles)
    return pl.pallas_call(
        kern,
        out_shape=jax.ShapeDtypeStruct((c, total_rows), jnp.bfloat16),
        grid_spec=pltpu.PrefetchScalarGridSpec(
            num_scalar_prefetch=0,
            grid=grid,
            in_specs=[
                pl.BlockSpec((k_tile, r), lambda o, k: (k, 0)),
                pl.BlockSpec((c, k_tile), lambda o, k: (0, k)),
            ],
            out_specs=pl.BlockSpec((c, out_tile), lambda o, k: (0, o)),
            scratch_shapes=[pltpu.VMEM((c, out_tile), jnp.float32),
                            pltpu.VMEM((1, out_tile), jnp.float32)],
        ),
        compiler_params=pltpu.CompilerParams(
            dimension_semantics=("parallel", "arbitrary"), vmem_limit_bytes=VMEM_LIMIT),
    )(idx_cols, feats_cn)


# -----------------------------------------------------------------------------
# Index glue (plain JAX)
# -----------------------------------------------------------------------------
def voxel_index(coords, vsize, grid_res):
    ijk = jnp.clip(jnp.floor(coords / vsize).astype(jnp.int32), 0, grid_res - 1)
    return ijk[:, 0] * grid_res * grid_res + ijk[:, 1] * grid_res + ijk[:, 2]


def pixel_index(px, py, H, W):
    ix = jnp.clip(jnp.floor(px * W).astype(jnp.int32), 0, W - 1)
    iy = jnp.clip(jnp.floor(py * H).astype(jnp.int32), 0, H - 1)
    return iy * W + ix


# -----------------------------------------------------------------------------
# Parameters (PyTorch nn.Linear-style init, W stored (out, in); eval-BN folded in)
# -----------------------------------------------------------------------------
def _uniform(key, shape, fan_in):
    bound = 1.0 / math.sqrt(fan_in)
    return jax.random.uniform(key, shape, jnp.float32, -bound, bound)


def linear_params(key, cin, cout):
    k1, k2 = jax.random.split(key)
    return _uniform(k1, (cout, cin), cin), _uniform(k2, (cout,), cin)


def fold_bn(w, b, eps=1e-5):
    # eval-mode BatchNorm1d folded into the preceding Linear.
    # Per weight_initialization(): gamma=1, beta=0, running_mean=0, running_var=1.
    cout = w.shape[0]
    gamma = jnp.ones((cout,), jnp.float32)
    beta = jnp.zeros((cout,), jnp.float32)
    mean = jnp.zeros((cout,), jnp.float32)
    var = jnp.ones((cout,), jnp.float32)
    scale = gamma * jax.lax.rsqrt(var + eps)
    return w * scale[:, None], (b - mean) * scale + beta


def stage_params(key, cin_r, cin_p, cin_v, cmid):
    kr, kp, kv, kg = jax.random.split(key, 4)
    wr, br = fold_bn(*linear_params(kr, cin_r, cmid))   # TODO(synk): range conv-block stand-in
    wp, bp = fold_bn(*linear_params(kp, cin_p, cmid))   # point_stem[k]
    wv, bv = fold_bn(*linear_params(kv, cin_v, cmid))   # TODO(synk): spnn voxel stage stand-in
    kgr, kgp, kgv = jax.random.split(kg, 3)
    wgr, bgr = linear_params(kgr, cmid, 3)               # GFM.range_branch
    wgp, bgp = linear_params(kgp, cmid, 3)               # GFM.point_branch
    wgv, bgv = linear_params(kgv, cmid, 3)               # GFM.voxel_branch
    return dict(
        wr=wr.astype(jnp.bfloat16), wp=wp.astype(jnp.bfloat16), wv=wv.astype(jnp.bfloat16),
        ball=jnp.concatenate([br, bp, bv]).reshape(3 * cmid, 1),
        wgr=wgr, wgp=wgp, wgv=wgv,
        bg=(bgr + bgp + bgv).reshape(3, 1),
    )


def init_params(key, cs, num_classes):
    ks = jax.random.split(key, 5)
    p = {
        "stage1": stage_params(ks[0], 2, 4, 4, cs[0]),            # Fuse 1 (stems)
        "stage2": stage_params(ks[1], cs[0], cs[0], cs[0], cs[4]),  # Fuse 2
        "stage3": stage_params(ks[2], cs[4], cs[4], cs[4], cs[6]),  # Fuse 3
        "stage4": stage_params(ks[3], cs[6], cs[6], cs[6], cs[8]),  # Fuse 4
    }
    wf, bf = linear_params(ks[4], cs[8], num_classes)              # final classifier
    ncls_pad = _round_up(max(num_classes, 8), 8)
    p["final_w"] = jnp.pad(wf, ((0, ncls_pad - num_classes), (0, 0)))
    p["final_b"] = jnp.pad(bf, (0, ncls_pad - num_classes)).reshape(ncls_pad, 1)
    return p


# -----------------------------------------------------------------------------
# RPVnet forward (eval mode: BN folded, dropout=identity)
# -----------------------------------------------------------------------------
def rpvnet_forward(params, lidar_F, lidar_C, image, py, px, *, vsize, grid_res, num_classes,
                   lane_tile_max=1024, out_tile=256):
    H, W = image.shape[-2:]
    n = lidar_F.shape[0]
    n_pad, lane_tile = _pick_lane_tile(n, lane_tile_max)
    pad = n_pad - n
    num_vox = grid_res ** 3
    num_pix = H * W
    num_vox_p = _round_up(num_vox, out_tile)
    num_pix_p = _round_up(num_pix, out_tile)

    vidx = voxel_index(lidar_C, vsize, grid_res)          # initial_voxelize index map
    pix = pixel_index(px, py, H, W)
    vidx_g = jnp.pad(vidx, (0, pad))                       # gathers: padded pts -> bucket 0
    pix_g = jnp.pad(pix, (0, pad))
    vidx_s = jnp.pad(vidx, (0, pad), constant_values=-1)   # scatters: padded pts excluded
    pix_s = jnp.pad(pix, (0, pad), constant_values=-1)
    idx_vox_only = vidx_s.reshape(n_pad, 1).astype(jnp.int32)
    idx_both = jnp.stack(
        [vidx_s, jnp.where(pix_s >= 0, pix_s + num_vox_p, -1)], axis=1).astype(jnp.int32)

    # (C, N) lane-dense bf16 layout throughout
    pF = jnp.pad(lidar_F, ((0, pad), (0, 0))).T.astype(jnp.bfloat16)          # (4, n_pad)
    r_tab = jnp.pad(image.reshape(image.shape[0], num_pix),
                    ((0, 0), (0, num_pix_p - num_pix))).astype(jnp.bfloat16)  # (2, pix_p)
    v_tab = scatter_mean_tables(pF, idx_vox_only, [num_vox_p], out_tile=out_tile)  # voxelize

    # ---- Fuse 1 (separate raw voxel / range tables) ----
    # TODO(synk): trilinear devoxelize / bilinear grid_sample -> nearest-neighbour gathers.
    vg = jnp.take(v_tab, vidx_g, axis=1, mode="clip")
    rg = jnp.take(r_tab, pix_g, axis=1, mode="clip")
    pF = fused_gfm_stage(rg, pF, vg, params["stage1"], lane_tile)
    tab = scatter_mean_tables(pF, idx_both, [num_vox_p, num_pix_p], out_tile=out_tile)

    # ---- Fuse 2..4 (merged [voxel | range] table) ----
    logits = None
    for name in ("stage2", "stage3", "stage4"):
        vg = jnp.take(tab, vidx_g, axis=1, mode="clip")
        rg = jnp.take(tab, pix_g + num_vox_p, axis=1, mode="clip")
        if name == "stage4":
            # final classifier fused into the last stage kernel; tables after it are dead
            logits = fused_gfm_stage(rg, pF, vg, params[name], lane_tile,
                                     final_w=params["final_w"], final_b=params["final_b"])
        else:
            pF = fused_gfm_stage(rg, pF, vg, params[name], lane_tile)
            tab = scatter_mean_tables(pF, idx_both, [num_vox_p, num_pix_p], out_tile=out_tile)
        # dropout (Block2, eval mode) == identity

    return logits[:num_classes, :n].T                      # (n, num_classes) f32


if __name__ == "__main__":
    key = jax.random.PRNGKey(0)
    cs = [8, 8, 16, 16, 32, 32, 16, 16, 8]     # (cs * cr).int() at toy scale
    num_classes = 5
    vsize = 0.05
    grid_res = 8                                # dense 8^3 voxel table at toy scale
    N, H, W = 200, 16, 16

    kF, kC, kI, kpx, kpy, kP = jax.random.split(key, 6)
    lidar_F = jax.random.normal(kF, (N, 4), jnp.float32)                         # point feats
    lidar_C = jax.random.uniform(kC, (N, 3), jnp.float32) * (grid_res * vsize)   # point coords
    image = jax.random.normal(kI, (2, H, W), jnp.float32)                        # range image
    px = jax.random.uniform(kpx, (N,), jnp.float32)                              # normalized u
    py = jax.random.uniform(kpy, (N,), jnp.float32)                              # normalized v

    params = init_params(kP, cs, num_classes)

    fwd = jax.jit(functools.partial(rpvnet_forward, vsize=vsize, grid_res=grid_res,
                                    num_classes=num_classes))
    out = fwd(params, lidar_F, lidar_C, image, py, px)
    out = jax.block_until_ready(out)
    assert out.shape == (N, num_classes)
    assert bool(jnp.all(jnp.isfinite(out)))
    print("KERNEL_OK")
</pallas_src>

<mosaic_0001>
module attributes {stable_mosaic.version = 11 : i64} {
  func.func @_scatter_mean_kernel(%arg0: i32, %arg1: i32, %arg2: memref<256x1xi32, #tpu.memory_space<vmem>>, %arg3: memref<4x256xbf16, #tpu.memory_space<vmem>>, %arg4: memref<4x256xbf16, #tpu.memory_space<vmem>>, %arg5: memref<4x256xf32, #tpu.memory_space<vmem>>, %arg6: memref<1x256xf32, #tpu.memory_space<vmem>>) attributes {dimension_semantics = [#tpu.dimension_semantics<parallel>, #tpu.dimension_semantics<arbitrary>], iteration_bounds = array<i64: 2, 1>, scalar_prefetch = 0 : i64, scratch_operands = 2 : i64, tpu.core_type = #tpu.core_type<tc>, window_params = [{transform_indices = @transform_0, window_bounds = array<i64: 256, 1>}, {transform_indices = @transform_1, window_bounds = array<i64: 4, 256>}, {transform_indices = @transform_2, window_bounds = array<i64: 4, 256>}]} {
    %c0_i32 = arith.constant 0 : i32
    %0 = arith.cmpi eq, %arg1, %c0_i32 : i32
    %1 = arith.extui %0 : i1 to i32
    %c0_i32_0 = arith.constant 0 : i32
    %2 = arith.cmpi ne, %1, %c0_i32_0 : i32
    scf.if %2 {
      %cst_16 = arith.constant 0.000000e+00 : f32
      %27 = vector.broadcast %cst_16 : f32 to vector<4x256xf32>
      %c0_17 = arith.constant 0 : index
      %c0_18 = arith.constant 0 : index
      %28 = vector.load %arg5[%c0_17, %c0_18] : memref<4x256xf32, #tpu.memory_space<vmem>>, vector<4x256xf32>
      tpu.vector_store %arg5[%c0_17, %c0_18], %27 {strides = array<i32>} : memref<4x256xf32, #tpu.memory_space<vmem>>, vector<4x256xf32>,
      %cst_19 = arith.constant 0.000000e+00 : f32
      %29 = vector.broadcast %cst_19 : f32 to vector<1x256xf32>
      %c0_20 = arith.constant 0 : index
      %c0_21 = arith.constant 0 : index
      %30 = vector.load %arg6[%c0_20, %c0_21] : memref<1x256xf32, #tpu.memory_space<vmem>>, vector<1x256xf32>
      tpu.vector_store %arg6[%c0_20, %c0_21], %29 {strides = array<i32>} : memref<1x256xf32, #tpu.memory_space<vmem>>, vector<1x256xf32>,
    } else {
    }
    %c0 = arith.constant 0 : index
    %c0_1 = arith.constant 0 : index
    %3 = vector.load %arg2[%c0, %c0_1] : memref<256x1xi32, #tpu.memory_space<vmem>>, vector<256x1xi32>
    %c256_i32 = arith.constant 256 : i32
    %4 = arith.muli %arg0, %c256_i32 : i32
    %5 = tpu.iota {dimensions = array<i32: 1>} : vector<1x256xi32>
    %6 = vector.broadcast %4 : i32 to vector<1x256xi32>
    %7 = arith.addi %6, %5 : vector<1x256xi32>
    %8 = vector.broadcast %3 : vector<256x1xi32> to vector<256x256xi32>
    %9 = vector.broadcast %7 : vector<1x256xi32> to vector<256x256xi32>
    %10 = arith.cmpi eq, %8, %9 : vector<256x256xi32>
    %11 = arith.extui %10 : vector<256x256xi1> to vector<256x256xi32>
    %12 = arith.sitofp %11 : vector<256x256xi32> to vector<256x256xf32>
    %13 = arith.truncf %12 : vector<256x256xf32> to vector<256x256xbf16>
    %c0_2 = arith.constant 0 : index
    %c0_3 = arith.constant 0 : index
    %14 = vector.load %arg3[%c0_2, %c0_3] : memref<4x256xbf16, #tpu.memory_space<vmem>>, vector<4x256xbf16>
    %c0_4 = arith.constant 0 : index
    %c0_5 = arith.constant 0 : index
    %15 = vector.load %arg5[%c0_4, %c0_5] : memref<4x256xf32, #tpu.memory_space<vmem>>, vector<4x256xf32>
    %cst = arith.constant dense<0.000000e+00> : vector<4x256xf32>
    %16 = tpu.matmul %14, %13, %cst {dimension_numbers = #tpu.dot_dimension_numbers<[1], [0], [0], [1], [0, 0, 1, 1], [], []>} : vector<4x256xbf16>, vector<256x256xbf16>, vector<4x256xf32> -> vector<4x256xf32>
    %17 = arith.addf %15, %16 : vector<4x256xf32>
    %c0_6 = arith.constant 0 : index
    %c0_7 = arith.constant 0 : index
    %18 = vector.load %arg5[%c0_6, %c0_7] : memref<4x256xf32, #tpu.memory_space<vmem>>, vector<4x256xf32>
    tpu.vector_store %arg5[%c0_6, %c0_7], %17 {strides = array<i32>} : memref<4x256xf32, #tpu.memory_space<vmem>>, vector<4x256xf32>,
    %cst_8 = arith.constant 1.000000e+00 : bf16
    %19 = vector.broadcast %cst_8 : bf16 to vector<1x256xbf16>
    %c0_9 = arith.constant 0 : index
    %c0_10 = arith.constant 0 : index
    %20 = vector.load %arg6[%c0_9, %c0_10] : memref<1x256xf32, #tpu.memory_space<vmem>>, vector<1x256xf32>
    %cst_11 = arith.constant dense<0.000000e+00> : vector<1x256xf32>
    %21 = tpu.matmul %19, %13, %cst_11 {dimension_numbers = #tpu.dot_dimension_numbers<[1], [0], [0], [1], [0, 0, 1, 1], [], []>} : vector<1x256xbf16>, vector<256x256xbf16>, vector<1x256xf32> -> vector<1x256xf32>
    %22 = arith.addf %20, %21 : vector<1x256xf32>
    %c0_12 = arith.constant 0 : index
    %c0_13 = arith.constant 0 : index
    %23 = vector.load %arg6[%c0_12, %c0_13] : memref<1x256xf32, #tpu.memory_space<vmem>>, vector<1x256xf32>
    tpu.vector_store %arg6[%c0_12, %c0_13], %22 {strides = array<i32>} : memref<1x256xf32, #tpu.memory_space<vmem>>, vector<1x256xf32>,
    %c0_i32_14 = arith.constant 0 : i32
    %24 = arith.cmpi eq, %arg1, %c0_i32_14 : i32
    %25 = arith.extui %24 : i1 to i32
    %c0_i32_15 = arith.constant 0 : i32
    %26 = arith.cmpi ne, %25, %c0_i32_15 : i32
    scf.if %26 {
      %c0_16 = arith.constant 0 : index
      %c0_17 = arith.constant 0 : index
      %27 = vector.load %arg5[%c0_16, %c0_17] : memref<4x256xf32, #tpu.memory_space<vmem>>, vector<4x256xf32>
      %c0_18 = arith.constant 0 : index
      %c0_19 = arith.constant 0 : index
      %28 = vector.load %arg6[%c0_18, %c0_19] : memref<1x256xf32, #tpu.memory_space<vmem>>, vector<1x256xf32>
      %cst_20 = arith.constant 1.000000e+00 : f32
      %29 = vector.broadcast %cst_20 : f32 to vector<1x256xf32>
      %30 = arith.maximumf %28, %29 : vector<1x256xf32>
      %31 = vector.broadcast %30 : vector<1x256xf32> to vector<4x256xf32>
      %32 = arith.divf %27, %31 : vector<4x256xf32>
      %33 = arith.truncf %32 : vector<4x256xf32> to vector<4x256xbf16>
      %c0_21 = arith.constant 0 : index
      %c0_22 = arith.constant 0 : index
      %34 = vector.load %arg4[%c0_21, %c0_22] : memref<4x256xbf16, #tpu.memory_space<vmem>>, vector<4x256xbf16>
      tpu.vector_store %arg4[%c0_21, %c0_22], %33 {strides = array<i32>} : memref<4x256xbf16, #tpu.memory_space<vmem>>, vector<4x256xbf16>,
    } else {
    }
    return
  }
  func.func @transform_0(%arg0: i32, %arg1: i32) -> (i32, i32) {
    %c0_i32 = arith.constant 0 : i32
    %c0_i32_0 = arith.constant 0 : i32
    return %arg1, %c0_i32 : i32, i32
  }
  func.func @transform_1(%arg0: i32, %arg1: i32) -> (i32, i32) {
    %c0_i32 = arith.constant 0 : i32
    %c0_i32_0 = arith.constant 0 : i32
    return %c0_i32, %arg1 : i32, i32
  }
  func.func @transform_2(%arg0: i32, %arg1: i32) -> (i32, i32) {
    %c0_i32 = arith.constant 0 : i32
    %c0_i32_0 = arith.constant 0 : i32
    return %c0_i32, %arg0 : i32, i32
  }
}

module attributes {stable_mosaic.version = 11 : i64} {
  func.func @_stage_kernel(%arg0: i32, %arg1: memref<2x128xbf16, #tpu.memory_space<vmem>>, %arg2: memref<4x128xbf16, #tpu.memory_space<vmem>>, %arg3: memref<4x128xbf16, #tpu.memory_space<vmem>>, %arg4: memref<8x2xbf16, #tpu.memory_space<vmem>>, %arg5: memref<8x4xbf16, #tpu.memory_space<vmem>>, %arg6: memref<8x4xbf16, #tpu.memory_space<vmem>>, %arg7: memref<24x1xf32, #tpu.memory_space<vmem>>, %arg8: memref<3x8xf32, #tpu.memory_space<vmem>>, %arg9: memref<3x8xf32, #tpu.memory_space<vmem>>, %arg10: memref<3x8xf32, #tpu.memory_space<vmem>>, %arg11: memref<3x1xf32, #tpu.memory_space<vmem>>, %arg12: memref<8x128xbf16, #tpu.memory_space<vmem>>) attributes {dimension_semantics = [#tpu.dimension_semantics<parallel>], iteration_bounds = array<i64: 2>, scalar_prefetch = 0 : i64, scratch_operands = 0 : i64, tpu.core_type = #tpu.core_type<tc>, window_params = [{transform_indices = @transform_0, window_bounds = array<i64: 2, 128>}, {transform_indices = @transform_1, window_bounds = array<i64: 4, 128>}, {transform_indices = @transform_2, window_bounds = array<i64: 4, 128>}, {pipeline_mode = #tpu.pipeline_mode<synchronous>, transform_indices = @transform_3, window_bounds = array<i64: 8, 2>}, {pipeline_mode = #tpu.pipeline_mode<synchronous>, transform_indices = @transform_4, window_bounds = array<i64: 8, 4>}, {pipeline_mode = #tpu.pipeline_mode<synchronous>, transform_indices = @transform_5, window_bounds = array<i64: 8, 4>}, {pipeline_mode = #tpu.pipeline_mode<synchronous>, transform_indices = @transform_6, window_bounds = array<i64: 24, 1>}, {pipeline_mode = #tpu.pipeline_mode<synchronous>, transform_indices = @transform_7, window_bounds = array<i64: 3, 8>}, {pipeline_mode = #tpu.pipeline_mode<synchronous>, transform_indices = @transform_8, window_bounds = array<i64: 3, 8>}, {pipeline_mode = #tpu.pipeline_mode<synchronous>, transform_indices = @transform_9, window_bounds = array<i64: 3, 8>}, {pipeline_mode = #tpu.pipeline_mode<synchronous>, transform_indices = @transform_10, window_bounds = array<i64: 3, 1>}, {transform_indices = @transform_11, window_bounds = array<i64: 8, 128>}]} {
    %c0 = arith.constant 0 : index
    %c0_0 = arith.constant 0 : index
    %0 = vector.load %arg1[%c0, %c0_0] : memref<2x128xbf16, #tpu.memory_space<vmem>>, vector<2x128xbf16>
    %c0_1 = arith.constant 0 : index
    %c0_2 = arith.constant 0 : index
    %1 = vector.load %arg2[%c0_1, %c0_2] : memref<4x128xbf16, #tpu.memory_space<vmem>>, vector<4x128xbf16>
    %c0_3 = arith.constant 0 : index
    %c0_4 = arith.constant 0 : index
    %2 = vector.load %arg3[%c0_3, %c0_4] : memref<4x128xbf16, #tpu.memory_space<vmem>>, vector<4x128xbf16>
    %c0_5 = arith.constant 0 : index
    %c0_6 = arith.constant 0 : index
    %3 = vector.load %arg7[%c0_5, %c0_6] : memref<24x1xf32, #tpu.memory_space<vmem>>, vector<24x1xf32>
    %4 = vector.extract_strided_slice %3 {offsets = [0, 0], sizes = [8, 1], strides = [1, 1]} : vector<24x1xf32> to vector<8x1xf32>
    %5 = vector.extract_strided_slice %3 {offsets = [8, 0], sizes = [8, 1], strides = [1, 1]} : vector<24x1xf32> to vector<8x1xf32>
    %6 = vector.extract_strided_slice %3 {offsets = [16, 0], sizes = [8, 1], strides = [1, 1]} : vector<24x1xf32> to vector<8x1xf32>
    %c0_7 = arith.constant 0 : index
    %c0_8 = arith.constant 0 : index
    %7 = vector.load %arg4[%c0_7, %c0_8] : memref<8x2xbf16, #tpu.memory_space<vmem>>, vector<8x2xbf16>
    %cst = arith.constant dense<0.000000e+00> : vector<8x128xf32>
    %8 = tpu.matmul %7, %0, %cst {dimension_numbers = #tpu.dot_dimension_numbers<[1], [0], [0], [1], [0, 0, 1, 1], [], []>} : vector<8x2xbf16>, vector<2x128xbf16>, vector<8x128xf32> -> vector<8x128xf32>
    %9 = vector.broadcast %4 : vector<8x1xf32> to vector<8x128xf32>
    %10 = arith.addf %8, %9 : vector<8x128xf32>
    %cst_9 = arith.constant 0.000000e+00 : f32
    %11 = vector.broadcast %cst_9 : f32 to vector<8x128xf32>
    %12 = arith.maximumf %10, %11 : vector<8x128xf32>
    %c0_10 = arith.constant 0 : index
    %c0_11 = arith.constant 0 : index
    %13 = vector.load %arg5[%c0_10, %c0_11] : memref<8x4xbf16, #tpu.memory_space<vmem>>, vector<8x4xbf16>
    %cst_12 = arith.constant dense<0.000000e+00> : vector<8x128xf32>
    %14 = tpu.matmul %13, %1, %cst_12 {dimension_numbers = #tpu.dot_dimension_numbers<[1], [0], [0], [1], [0, 0, 1, 1], [], []>} : vector<8x4xbf16>, vector<4x128xbf16>, vector<8x128xf32> -> vector<8x128xf32>
    %15 = vector.broadcast %5 : vector<8x1xf32> to vector<8x128xf32>
    %16 = arith.addf %14, %15 : vector<8x128xf32>
    %cst_13 = arith.constant 0.000000e+00 : f32
    %17 = vector.broadcast %cst_13 : f32 to vector<8x128xf32>
    %18 = arith.maximumf %16, %17 : vector<8x128xf32>
    %c0_14 = arith.constant 0 : index
    %c0_15 = arith.constant 0 : index
    %19 = vector.load %arg6[%c0_14, %c0_15] : memref<8x4xbf16, #tpu.memory_space<vmem>>, vector<8x4xbf16>
    %cst_16 = arith.constant dense<0.000000e+00> : vector<8x128xf32>
    %20 = tpu.matmul %19, %2, %cst_16 {dimension_numbers = #tpu.dot_dimension_numbers<[1], [0], [0], [1], [0, 0, 1, 1], [], []>} : vector<8x4xbf16>, vector<4x128xbf16>, vector<8x128xf32> -> vector<8x128xf32>
    %21 = vector.broadcast %6 : vector<8x1xf32> to vector<8x128xf32>
    %22 = arith.addf %20, %21 : vector<8x128xf32>
    %cst_17 = arith.constant 0.000000e+00 : f32
    %23 = vector.broadcast %cst_17 : f32 to vector<8x128xf32>
    %24 = arith.maximumf %22, %23 : vector<8x128xf32>
    %c0_18 = arith.constant 0 : index
    %c0_19 = arith.constant 0 : index
    %25 = vector.load %arg8[%c0_18, %c0_19] : memref<3x8xf32, #tpu.memory_space<vmem>>, vector<3x8xf32>
    %cst_20 = arith.constant dense<0.000000e+00> : vector<3x128xf32>
    %26 = tpu.matmul %25, %12, %cst_20 {dimension_numbers = #tpu.dot_dimension_numbers<[1], [0], [0], [1], [0, 0, 1, 1], [], []>} : vector<3x8xf32>, vector<8x128xf32>, vector<3x128xf32> -> vector<3x128xf32>
    %c0_21 = arith.constant 0 : index
    %c0_22 = arith.constant 0 : index
    %27 = vector.load %arg9[%c0_21, %c0_22] : memref<3x8xf32, #tpu.memory_space<vmem>>, vector<3x8xf32>
    %cst_23 = arith.constant dense<0.000000e+00> : vector<3x128xf32>
    %28 = tpu.matmul %27, %18, %cst_23 {dimension_numbers = #tpu.dot_dimension_numbers<[1], [0], [0], [1], [0, 0, 1, 1], [], []>} : vector<3x8xf32>, vector<8x128xf32>, vector<3x128xf32> -> vector<3x128xf32>
    %29 = arith.addf %26, %28 : vector<3x128xf32>
    %c0_24 = arith.constant 0 : index
    %c0_25 = arith.constant 0 : index
    %30 = vector.load %arg10[%c0_24, %c0_25] : memref<3x8xf32, #tpu.memory_space<vmem>>, vector<3x8xf32>
    %cst_26 = arith.constant dense<0.000000e+00> : vector<3x128xf32>
    %31 = tpu.matmul %30, %24, %cst_26 {dimension_numbers = #tpu.dot_dimension_numbers<[1], [0], [0], [1], [0, 0, 1, 1], [], []>} : vector<3x8xf32>, vector<8x128xf32>, vector<3x128xf32> -> vector<3x128xf32>
    %32 = arith.addf %29, %31 : vector<3x128xf32>
    %c0_27 = arith.constant 0 : index
    %c0_28 = arith.constant 0 : index
    %33 = vector.load %arg11[%c0_27, %c0_28] : memref<3x1xf32, #tpu.memory_space<vmem>>, vector<3x1xf32>
    %34 = vector.broadcast %33 : vector<3x1xf32> to vector<3x128xf32>
    %35 = arith.addf %32, %34 : vector<3x128xf32>
    %cst_29 = arith.constant dense<0xFF800000> : vector<128xf32>
    %36 = vector.multi_reduction <maximumf>, %35, %cst_29 [0] : vector<3x128xf32> to vector<128xf32>
    %37 = vector.shape_cast %36 : vector<128xf32> to vector<1x128xf32>
    %38 = vector.broadcast %37 : vector<1x128xf32> to vector<3x128xf32>
    %39 = arith.subf %35, %38 : vector<3x128xf32>
    %40 = math.exp %39 : vector<3x128xf32>
    %cst_30 = arith.constant dense<0.000000e+00> : vector<128xf32>
    %41 = vector.multi_reduction <add>, %40, %cst_30 [0] : vector<3x128xf32> to vector<128xf32>
    %42 = vector.shape_cast %41 : vector<128xf32> to vector<1x128xf32>
    %43 = vector.broadcast %42 : vector<1x128xf32> to vector<3x128xf32>
    %44 = arith.divf %40, %43 : vector<3x128xf32>
    %45 = vector.extract_strided_slice %44 {offsets = [0, 0], sizes = [1, 128], strides = [1, 1]} : vector<3x128xf32> to vector<1x128xf32>
    %46 = vector.broadcast %45 : vector<1x128xf32> to vector<8x128xf32>
    %47 = arith.mulf %12, %46 : vector<8x128xf32>
    %48 = vector.extract_strided_slice %44 {offsets = [1, 0], sizes = [1, 128], strides = [1, 1]} : vector<3x128xf32> to vector<1x128xf32>
    %49 = vector.broadcast %48 : vector<1x128xf32> to vector<8x128xf32>
    %50 = arith.mulf %18, %49 : vector<8x128xf32>
    %51 = arith.addf %47, %50 : vector<8x128xf32>
    %52 = vector.extract_strided_slice %44 {offsets = [2, 0], sizes = [1, 128], strides = [1, 1]} : vector<3x128xf32> to vector<1x128xf32>
    %53 = vector.broadcast %52 : vector<1x128xf32> to vector<8x128xf32>
    %54 = arith.mulf %24, %53 : vector<8x128xf32>
    %55 = arith.addf %51, %54 : vector<8x128xf32>
    %56 = arith.truncf %55 : vector<8x128xf32> to vector<8x128xbf16>
    %c0_31 = arith.constant 0 : index
    %c0_32 = arith.constant 0 : index
    %57 = vector.load %arg12[%c0_31, %c0_32] : memref<8x128xbf16, #tpu.memory_space<vmem>>, vector<8x128xbf16>
    tpu.vector_store %arg12[%c0_31, %c0_32], %56 {strides = array<i32>} : memref<8x128xbf16, #tpu.memory_space<vmem>>, vector<8x128xbf16>,
    return
  }
  func.func @transform_0(%arg0: i32) -> (i32, i32) {
    %c0_i32 = arith.constant 0 : i32
    %c0_i32_0 = arith.constant 0 : i32
    return %c0_i32, %arg0 : i32, i32
  }
  func.func @transform_1(%arg0: i32) -> (i32, i32) {
    %c0_i32 = arith.constant 0 : i32
    %c0_i32_0 = arith.constant 0 : i32
    return %c0_i32, %arg0 : i32, i32
  }
  func.func @transform_2(%arg0: i32) -> (i32, i32) {
    %c0_i32 = arith.constant 0 : i32
    %c0_i32_0 = arith.constant 0 : i32
    return %c0_i32, %arg0 : i32, i32
  }
  func.func @transform_3(%arg0: i32) -> (i32, i32) {
    %c0_i32 = arith.constant 0 : i32
    %c0_i32_0 = arith.constant 0 : i32
    %c0_i32_1 = arith.constant 0 : i32
    return %c0_i32, %c0_i32_0 : i32, i32
  }
  func.func @transform_4(%arg0: i32) -> (i32, i32) {
    %c0_i32 = arith.constant 0 : i32
    %c0_i32_0 = arith.constant 0 : i32
    %c0_i32_1 = arith.constant 0 : i32
    return %c0_i32, %c0_i32_0 : i32, i32
  }
  func.func @transform_5(%arg0: i32) -> (i32, i32) {
    %c0_i32 = arith.constant 0 : i32
    %c0_i32_0 = arith.constant 0 : i32
    %c0_i32_1 = arith.constant 0 : i32
    return %c0_i32, %c0_i32_0 : i32, i32
  }
  func.func @transform_6(%arg0: i32) -> (i32, i32) {
    %c0_i32 = arith.constant 0 : i32
    %c0_i32_0 = arith.constant 0 : i32
    %c0_i32_1 = arith.constant 0 : i32
    return %c0_i32, %c0_i32_0 : i32, i32
  }
  func.func @transform_7(%arg0: i32) -> (i32, i32) {
    %c0_i32 = arith.constant 0 : i32
    %c0_i32_0 = arith.constant 0 : i32
    %c0_i32_1 = arith.constant 0 : i32
    return %c0_i32, %c0_i32_0 : i32, i32
  }
  func.func @transform_8(%arg0: i32) -> (i32, i32) {
    %c0_i32 = arith.constant 0 : i32
    %c0_i32_0 = arith.constant 0 : i32
    %c0_i32_1 = arith.constant 0 : i32
    return %c0_i32, %c0_i32_0 : i32, i32
  }
  func.func @transform_9(%arg0: i32) -> (i32, i32) {
    %c0_i32 = arith.constant 0 : i32
    %c0_i32_0 = arith.constant 0 : i32
    %c0_i32_1 = arith.constant 0 : i32
    return %c0_i32, %c0_i32_0 : i32, i32
  }
  func.func @transform_10(%arg0: i32) -> (i32, i32) {
    %c0_i32 = arith.constant 0 : i32
    %c0_i32_0 = arith.constant 0 : i32
    %c0_i32_1 = arith.constant 0 : i32
    return %c0_i32, %c0_i32_0 : i32, i32
  }
  func.func @transform_11(%arg0: i32) -> (i32, i32) {
    %c0_i32 = arith.constant 0 : i32
    %c0_i32_0 = arith.constant 0 : i32
    return %c0_i32, %arg0 : i32, i32
  }
}

module attributes {stable_mosaic.version = 11 : i64} {
  func.func @_scatter_mean_kernel(%arg0: i32, %arg1: i32, %arg2: memref<256x2xi32, #tpu.memory_space<vmem>>, %arg3: memref<8x256xbf16, #tpu.memory_space<vmem>>, %arg4: memref<8x256xbf16, #tpu.memory_space<vmem>>, %arg5: memref<8x256xf32, #tpu.memory_space<vmem>>, %arg6: memref<1x256xf32, #tpu.memory_space<vmem>>) attributes {dimension_semantics = [#tpu.dimension_semantics<parallel>, #tpu.dimension_semantics<arbitrary>], iteration_bounds = array<i64: 3, 1>, scalar_prefetch = 0 : i64, scratch_operands = 2 : i64, tpu.core_type = #tpu.core_type<tc>, window_params = [{transform_indices = @transform_0, window_bounds = array<i64: 256, 2>}, {transform_indices = @transform_1, window_bounds = array<i64: 8, 256>}, {transform_indices = @transform_2, window_bounds = array<i64: 8, 256>}]} {
    %c0_i32 = arith.constant 0 : i32
    %0 = arith.cmpi eq, %arg1, %c0_i32 : i32
    %1 = arith.extui %0 : i1 to i32
    %c0_i32_0 = arith.constant 0 : i32
    %2 = arith.cmpi ne, %1, %c0_i32_0 : i32
    scf.if %2 {
      %cst_16 = arith.constant 0.000000e+00 : f32
      %31 = vector.broadcast %cst_16 : f32 to vector<8x256xf32>
      %c0_17 = arith.constant 0 : index
      %c0_18 = arith.constant 0 : index
      %32 = vector.load %arg5[%c0_17, %c0_18] : memref<8x256xf32, #tpu.memory_space<vmem>>, vector<8x256xf32>
      tpu.vector_store %arg5[%c0_17, %c0_18], %31 {strides = array<i32>} : memref<8x256xf32, #tpu.memory_space<vmem>>, vector<8x256xf32>,
      %cst_19 = arith.constant 0.000000e+00 : f32
      %33 = vector.broadcast %cst_19 : f32 to vector<1x256xf32>
      %c0_20 = arith.constant 0 : index
      %c0_21 = arith.constant 0 : index
      %34 = vector.load %arg6[%c0_20, %c0_21] : memref<1x256xf32, #tpu.memory_space<vmem>>, vector<1x256xf32>
      tpu.vector_store %arg6[%c0_20, %c0_21], %33 {strides = array<i32>} : memref<1x256xf32, #tpu.memory_space<vmem>>, vector<1x256xf32>,
    } else {
    }
    %c0 = arith.constant 0 : index
    %c0_1 = arith.constant 0 : index
    %3 = vector.load %arg2[%c0, %c0_1] : memref<256x2xi32, #tpu.memory_space<vmem>>, vector<256x2xi32>
    %c2_i32 = arith.constant 2 : i32
    %4 = arith.cmpi slt, %arg0, %c2_i32 : i32
    %5 = vector.extract_strided_slice %3 {offsets = [0, 0], sizes = [256, 1], strides = [1, 1]} : vector<256x2xi32> to vector<256x1xi32>
    %6 = vector.extract_strided_slice %3 {offsets = [0, 1], sizes = [256, 1], strides = [1, 1]} : vector<256x2xi32> to vector<256x1xi32>
    %7 = arith.select %4, %5, %6 : vector<256x1xi32>
    %c256_i32 = arith.constant 256 : i32
    %8 = arith.muli %arg0, %c256_i32 : i32
    %9 = tpu.iota {dimensions = array<i32: 1>} : vector<1x256xi32>
    %10 = vector.broadcast %8 : i32 to vector<1x256xi32>
    %11 = arith.addi %10, %9 : vector<1x256xi32>
    %12 = vector.broadcast %7 : vector<256x1xi32> to vector<256x256xi32>
    %13 = vector.broadcast %11 : vector<1x256xi32> to vector<256x256xi32>
    %14 = arith.cmpi eq, %12, %13 : vector<256x256xi32>
    %15 = arith.extui %14 : vector<256x256xi1> to vector<256x256xi32>
    %16 = arith.sitofp %15 : vector<256x256xi32> to vector<256x256xf32>
    %17 = arith.truncf %16 : vector<256x256xf32> to vector<256x256xbf16>
    %c0_2 = arith.constant 0 : index
    %c0_3 = arith.constant 0 : index
    %18 = vector.load %arg3[%c0_2, %c0_3] : memref<8x256xbf16, #tpu.memory_space<vmem>>, vector<8x256xbf16>
    %c0_4 = arith.constant 0 : index
    %c0_5 = arith.constant 0 : index
    %19 = vector.load %arg5[%c0_4, %c0_5] : memref<8x256xf32, #tpu.memory_space<vmem>>, vector<8x256xf32>
    %cst = arith.constant dense<0.000000e+00> : vector<8x256xf32>
    %20 = tpu.matmul %18, %17, %cst {dimension_numbers = #tpu.dot_dimension_numbers<[1], [0], [0], [1], [0, 0, 1, 1], [], []>} : vector<8x256xbf16>, vector<256x256xbf16>, vector<8x256xf32> -> vector<8x256xf32>
    %21 = arith.addf %19, %20 : vector<8x256xf32>
    %c0_6 = arith.constant 0 : index
    %c0_7 = arith.constant 0 : index
    %22 = vector.load %arg5[%c0_6, %c0_7] : memref<8x256xf32, #tpu.memory_space<vmem>>, vector<8x256xf32>
    tpu.vector_store %arg5[%c0_6, %c0_7], %21 {strides = array<i32>} : memref<8x256xf32, #tpu.memory_space<vmem>>, vector<8x256xf32>,
    %cst_8 = arith.constant 1.000000e+00 : bf16
    %23 = vector.broadcast %cst_8 : bf16 to vector<1x256xbf16>
    %c0_9 = arith.constant 0 : index
    %c0_10 = arith.constant 0 : index
    %24 = vector.load %arg6[%c0_9, %c0_10] : memref<1x256xf32, #tpu.memory_space<vmem>>, vector<1x256xf32>
    %cst_11 = arith.constant dense<0.000000e+00> : vector<1x256xf32>
    %25 = tpu.matmul %23, %17, %cst_11 {dimension_numbers = #tpu.dot_dimension_numbers<[1], [0], [0], [1], [0, 0, 1, 1], [], []>} : vector<1x256xbf16>, vector<256x256xbf16>, vector<1x256xf32> -> vector<1x256xf32>
    %26 = arith.addf %24, %25 : vector<1x256xf32>
    %c0_12 = arith.constant 0 : index
    %c0_13 = arith.constant 0 : index
    %27 = vector.load %arg6[%c0_12, %c0_13] : memref<1x256xf32, #tpu.memory_space<vmem>>, vector<1x256xf32>
    tpu.vector_store %arg6[%c0_12, %c0_13], %26 {strides = array<i32>} : memref<1x256xf32, #tpu.memory_space<vmem>>, vector<1x256xf32>,
    %c0_i32_14 = arith.constant 0 : i32
    %28 = arith.cmpi eq, %arg1, %c0_i32_14 : i32
    %29 = arith.extui %28 : i1 to i32
    %c0_i32_15 = arith.constant 0 : i32
    %30 = arith.cmpi ne, %29, %c0_i32_15 : i32
    scf.if %30 {
      %c0_16 = arith.constant 0 : index
      %c0_17 = arith.constant 0 : index
      %31 = vector.load %arg5[%c0_16, %c0_17] : memref<8x256xf32, #tpu.memory_space<vmem>>, vector<8x256xf32>
      %c0_18 = arith.constant 0 : index
      %c0_19 = arith.constant 0 : index
      %32 = vector.load %arg6[%c0_18, %c0_19] : memref<1x256xf32, #tpu.memory_space<vmem>>, vector<1x256xf32>
      %cst_20 = arith.constant 1.000000e+00 : f32
      %33 = vector.broadcast %cst_20 : f32 to vector<1x256xf32>
      %34 = arith.maximumf %32, %33 : vector<1x256xf32>
      %35 = vector.broadcast %34 : vector<1x256xf32> to vector<8x256xf32>
      %36 = arith.divf %31, %35 : vector<8x256xf32>
      %37 = arith.truncf %36 : vector<8x256xf32> to vector<8x256xbf16>
      %c0_21 = arith.constant 0 : index
      %c0_22 = arith.constant 0 : index
      %38 = vector.load %arg4[%c0_21, %c0_22] : memref<8x256xbf16, #tpu.memory_space<vmem>>, vector<8x256xbf16>
      tpu.vector_store %arg4[%c0_21, %c0_22], %37 {strides = array<i32>} : memref<8x256xbf16, #tpu.memory_space<vmem>>, vector<8x256xbf16>,
    } else {
    }
    return
  }
  func.func @transform_0(%arg0: i32, %arg1: i32) -> (i32, i32) {
    %c0_i32 = arith.constant 0 : i32
    %c0_i32_0 = arith.constant 0 : i32
    return %arg1, %c0_i32 : i32, i32
  }
  func.func @transform_1(%arg0: i32, %arg1: i32) -> (i32, i32) {
    %c0_i32 = arith.constant 0 : i32
    %c0_i32_0 = arith.constant 0 : i32
    return %c0_i32, %arg1 : i32, i32
  }
  func.func @transform_2(%arg0: i32, %arg1: i32) -> (i32, i32) {
    %c0_i32 = arith.constant 0 : i32
    %c0_i32_0 = arith.constant 0 : i32
    return %c0_i32, %arg0 : i32, i32
  }
}

module attributes {stable_mosaic.version = 11 : i64} {
  func.func @_stage_kernel(%arg0: i32, %arg1: memref<8x128xbf16, #tpu.memory_space<vmem>>, %arg2: memref<8x128xbf16, #tpu.memory_space<vmem>>, %arg3: memref<8x128xbf16, #tpu.memory_space<vmem>>, %arg4: memref<32x8xbf16, #tpu.memory_space<vmem>>, %arg5: memref<32x8xbf16, #tpu.memory_space<vmem>>, %arg6: memref<32x8xbf16, #tpu.memory_space<vmem>>, %arg7: memref<96x1xf32, #tpu.memory_space<vmem>>, %arg8: memref<3x32xf32, #tpu.memory_space<vmem>>, %arg9: memref<3x32xf32, #tpu.memory_space<vmem>>, %arg10: memref<3x32xf32, #tpu.memory_space<vmem>>, %arg11: memref<3x1xf32, #tpu.memory_space<vmem>>, %arg12: memref<32x128xbf16, #tpu.memory_space<vmem>>) attributes {dimension_semantics = [#tpu.dimension_semantics<parallel>], iteration_bounds = array<i64: 2>, scalar_prefetch = 0 : i64, scratch_operands = 0 : i64, tpu.core_type = #tpu.core_type<tc>, window_params = [{transform_indices = @transform_0, window_bounds = array<i64: 8, 128>}, {transform_indices = @transform_1, window_bounds = array<i64: 8, 128>}, {transform_indices = @transform_2, window_bounds = array<i64: 8, 128>}, {pipeline_mode = #tpu.pipeline_mode<synchronous>, transform_indices = @transform_3, window_bounds = array<i64: 32, 8>}, {pipeline_mode = #tpu.pipeline_mode<synchronous>, transform_indices = @transform_4, window_bounds = array<i64: 32, 8>}, {pipeline_mode = #tpu.pipeline_mode<synchronous>, transform_indices = @transform_5, window_bounds = array<i64: 32, 8>}, {pipeline_mode = #tpu.pipeline_mode<synchronous>, transform_indices = @transform_6, window_bounds = array<i64: 96, 1>}, {pipeline_mode = #tpu.pipeline_mode<synchronous>, transform_indices = @transform_7, window_bounds = array<i64: 3, 32>}, {pipeline_mode = #tpu.pipeline_mode<synchronous>, transform_indices = @transform_8, window_bounds = array<i64: 3, 32>}, {pipeline_mode = #tpu.pipeline_mode<synchronous>, transform_indices = @transform_9, window_bounds = array<i64: 3, 32>}, {pipeline_mode = #tpu.pipeline_mode<synchronous>, transform_indices = @transform_10, window_bounds = array<i64: 3, 1>}, {transform_indices = @transform_11, window_bounds = array<i64: 32, 128>}]} {
    %c0 = arith.constant 0 : index
    %c0_0 = arith.constant 0 : index
    %0 = vector.load %arg1[%c0, %c0_0] : memref<8x128xbf16, #tpu.memory_space<vmem>>, vector<8x128xbf16>
    %c0_1 = arith.constant 0 : index
    %c0_2 = arith.constant 0 : index
    %1 = vector.load %arg2[%c0_1, %c0_2] : memref<8x128xbf16, #tpu.memory_space<vmem>>, vector<8x128xbf16>
    %c0_3 = arith.constant 0 : index
    %c0_4 = arith.constant 0 : index
    %2 = vector.load %arg3[%c0_3, %c0_4] : memref<8x128xbf16, #tpu.memory_space<vmem>>, vector<8x128xbf16>
    %c0_5 = arith.constant 0 : index
    %c0_6 = arith.constant 0 : index
    %3 = vector.load %arg7[%c0_5, %c0_6] : memref<96x1xf32, #tpu.memory_space<vmem>>, vector<96x1xf32>
    %4 = vector.extract_strided_slice %3 {offsets = [0, 0], sizes = [32, 1], strides = [1, 1]} : vector<96x1xf32> to vector<32x1xf32>
    %5 = vector.extract_strided_slice %3 {offsets = [32, 0], sizes = [32, 1], strides = [1, 1]} : vector<96x1xf32> to vector<32x1xf32>
    %6 = vector.extract_strided_slice %3 {offsets = [64, 0], sizes = [32, 1], strides = [1, 1]} : vector<96x1xf32> to vector<32x1xf32>
    %c0_7 = arith.constant 0 : index
    %c0_8 = arith.constant 0 : index
    %7 = vector.load %arg4[%c0_7, %c0_8] : memref<32x8xbf16, #tpu.memory_space<vmem>>, vector<32x8xbf16>
    %cst = arith.constant dense<0.000000e+00> : vector<32x128xf32>
    %8 = tpu.matmul %7, %0, %cst {dimension_numbers = #tpu.dot_dimension_numbers<[1], [0], [0], [1], [0, 0, 1, 1], [], []>} : vector<32x8xbf16>, vector<8x128xbf16>, vector<32x128xf32> -> vector<32x128xf32>
    %9 = vector.broadcast %4 : vector<32x1xf32> to vector<32x128xf32>
    %10 = arith.addf %8, %9 : vector<32x128xf32>
    %cst_9 = arith.constant 0.000000e+00 : f32
    %11 = vector.broadcast %cst_9 : f32 to vector<32x128xf32>
    %12 = arith.maximumf %10, %11 : vector<32x128xf32>
    %c0_10 = arith.constant 0 : index
    %c0_11 = arith.constant 0 : index
    %13 = vector.load %arg5[%c0_10, %c0_11] : memref<32x8xbf16, #tpu.memory_space<vmem>>, vector<32x8xbf16>
    %cst_12 = arith.constant dense<0.000000e+00> : vector<32x128xf32>
    %14 = tpu.matmul %13, %1, %cst_12 {dimension_numbers = #tpu.dot_dimension_numbers<[1], [0], [0], [1], [0, 0, 1, 1], [], []>} : vector<32x8xbf16>, vector<8x128xbf16>, vector<32x128xf32> -> vector<32x128xf32>
    %15 = vector.broadcast %5 : vector<32x1xf32> to vector<32x128xf32>
    %16 = arith.addf %14, %15 : vector<32x128xf32>
    %cst_13 = arith.constant 0.000000e+00 : f32
    %17 = vector.broadcast %cst_13 : f32 to vector<32x128xf32>
    %18 = arith.maximumf %16, %17 : vector<32x128xf32>
    %c0_14 = arith.constant 0 : index
    %c0_15 = arith.constant 0 : index
    %19 = vector.load %arg6[%c0_14, %c0_15] : memref<32x8xbf16, #tpu.memory_space<vmem>>, vector<32x8xbf16>
    %cst_16 = arith.constant dense<0.000000e+00> : vector<32x128xf32>
    %20 = tpu.matmul %19, %2, %cst_16 {dimension_numbers = #tpu.dot_dimension_numbers<[1], [0], [0], [1], [0, 0, 1, 1], [], []>} : vector<32x8xbf16>, vector<8x128xbf16>, vector<32x128xf32> -> vector<32x128xf32>
    %21 = vector.broadcast %6 : vector<32x1xf32> to vector<32x128xf32>
    %22 = arith.addf %20, %21 : vector<32x128xf32>
    %cst_17 = arith.constant 0.000000e+00 : f32
    %23 = vector.broadcast %cst_17 : f32 to vector<32x128xf32>
    %24 = arith.maximumf %22, %23 : vector<32x128xf32>
    %c0_18 = arith.constant 0 : index
    %c0_19 = arith.constant 0 : index
    %25 = vector.load %arg8[%c0_18, %c0_19] : memref<3x32xf32, #tpu.memory_space<vmem>>, vector<3x32xf32>
    %cst_20 = arith.constant dense<0.000000e+00> : vector<3x128xf32>
    %26 = tpu.matmul %25, %12, %cst_20 {dimension_numbers = #tpu.dot_dimension_numbers<[1], [0], [0], [1], [0, 0, 1, 1], [], []>} : vector<3x32xf32>, vector<32x128xf32>, vector<3x128xf32> -> vector<3x128xf32>
    %c0_21 = arith.constant 0 : index
    %c0_22 = arith.constant 0 : index
    %27 = vector.load %arg9[%c0_21, %c0_22] : memref<3x32xf32, #tpu.memory_space<vmem>>, vector<3x32xf32>
    %cst_23 = arith.constant dense<0.000000e+00> : vector<3x128xf32>
    %28 = tpu.matmul %27, %18, %cst_23 {dimension_numbers = #tpu.dot_dimension_numbers<[1], [0], [0], [1], [0, 0, 1, 1], [], []>} : vector<3x32xf32>, vector<32x128xf32>, vector<3x128xf32> -> vector<3x128xf32>
    %29 = arith.addf %26, %28 : vector<3x128xf32>
    %c0_24 = arith.constant 0 : index
    %c0_25 = arith.constant 0 : index
    %30 = vector.load %arg10[%c0_24, %c0_25] : memref<3x32xf32, #tpu.memory_space<vmem>>, vector<3x32xf32>
    %cst_26 = arith.constant dense<0.000000e+00> : vector<3x128xf32>
    %31 = tpu.matmul %30, %24, %cst_26 {dimension_numbers = #tpu.dot_dimension_numbers<[1], [0], [0], [1], [0, 0, 1, 1], [], []>} : vector<3x32xf32>, vector<32x128xf32>, vector<3x128xf32> -> vector<3x128xf32>
    %32 = arith.addf %29, %31 : vector<3x128xf32>
    %c0_27 = arith.constant 0 : index
    %c0_28 = arith.constant 0 : index
    %33 = vector.load %arg11[%c0_27, %c0_28] : memref<3x1xf32, #tpu.memory_space<vmem>>, vector<3x1xf32>
    %34 = vector.broadcast %33 : vector<3x1xf32> to vector<3x128xf32>
    %35 = arith.addf %32, %34 : vector<3x128xf32>
    %cst_29 = arith.constant dense<0xFF800000> : vector<128xf32>
    %36 = vector.multi_reduction <maximumf>, %35, %cst_29 [0] : vector<3x128xf32> to vector<128xf32>
    %37 = vector.shape_cast %36 : vector<128xf32> to vector<1x128xf32>
    %38 = vector.broadcast %37 : vector<1x128xf32> to vector<3x128xf32>
    %39 = arith.subf %35, %38 : vector<3x128xf32>
    %40 = math.exp %39 : vector<3x128xf32>
    %cst_30 = arith.constant dense<0.000000e+00> : vector<128xf32>
    %41 = vector.multi_reduction <add>, %40, %cst_30 [0] : vector<3x128xf32> to vector<128xf32>
    %42 = vector.shape_cast %41 : vector<128xf32> to vector<1x128xf32>
    %43 = vector.broadcast %42 : vector<1x128xf32> to vector<3x128xf32>
    %44 = arith.divf %40, %43 : vector<3x128xf32>
    %45 = vector.extract_strided_slice %44 {offsets = [0, 0], sizes = [1, 128], strides = [1, 1]} : vector<3x128xf32> to vector<1x128xf32>
    %46 = vector.broadcast %45 : vector<1x128xf32> to vector<32x128xf32>
    %47 = arith.mulf %12, %46 : vector<32x128xf32>
    %48 = vector.extract_strided_slice %44 {offsets = [1, 0], sizes = [1, 128], strides = [1, 1]} : vector<3x128xf32> to vector<1x128xf32>
    %49 = vector.broadcast %48 : vector<1x128xf32> to vector<32x128xf32>
    %50 = arith.mulf %18, %49 : vector<32x128xf32>
    %51 = arith.addf %47, %50 : vector<32x128xf32>
    %52 = vector.extract_strided_slice %44 {offsets = [2, 0], sizes = [1, 128], strides = [1, 1]} : vector<3x128xf32> to vector<1x128xf32>
    %53 = vector.broadcast %52 : vector<1x128xf32> to vector<32x128xf32>
    %54 = arith.mulf %24, %53 : vector<32x128xf32>
    %55 = arith.addf %51, %54 : vector<32x128xf32>
    %56 = arith.truncf %55 : vector<32x128xf32> to vector<32x128xbf16>
    %c0_31 = arith.constant 0 : index
    %c0_32 = arith.constant 0 : index
    %57 = vector.load %arg12[%c0_31, %c0_32] : memref<32x128xbf16, #tpu.memory_space<vmem>>, vector<32x128xbf16>
    tpu.vector_store %arg12[%c0_31, %c0_32], %56 {strides = array<i32>} : memref<32x128xbf16, #tpu.memory_space<vmem>>, vector<32x128xbf16>,
    return
  }
  func.func @transform_0(%arg0: i32) -> (i32, i32) {
    %c0_i32 = arith.constant 0 : i32
    %c0_i32_0 = arith.constant 0 : i32
    return %c0_i32, %arg0 : i32, i32
  }
  func.func @transform_1(%arg0: i32) -> (i32, i32) {
    %c0_i32 = arith.constant 0 : i32
    %c0_i32_0 = arith.constant 0 : i32
    return %c0_i32, %arg0 : i32, i32
  }
  func.func @transform_2(%arg0: i32) -> (i32, i32) {
    %c0_i32 = arith.constant 0 : i32
    %c0_i32_0 = arith.constant 0 : i32
    return %c0_i32, %arg0 : i32, i32
  }
  func.func @transform_3(%arg0: i32) -> (i32, i32) {
    %c0_i32 = arith.constant 0 : i32
    %c0_i32_0 = arith.constant 0 : i32
    %c0_i32_1 = arith.constant 0 : i32
    return %c0_i32, %c0_i32_0 : i32, i32
  }
  func.func @transform_4(%arg0: i32) -> (i32, i32) {
    %c0_i32 = arith.constant 0 : i32
    %c0_i32_0 = arith.constant 0 : i32
    %c0_i32_1 = arith.constant 0 : i32
    return %c0_i32, %c0_i32_0 : i32, i32
  }
  func.func @transform_5(%arg0: i32) -> (i32, i32) {
    %c0_i32 = arith.constant 0 : i32
    %c0_i32_0 = arith.constant 0 : i32
    %c0_i32_1 = arith.constant 0 : i32
    return %c0_i32, %c0_i32_0 : i32, i32
  }
  func.func @transform_6(%arg0: i32) -> (i32, i32) {
    %c0_i32 = arith.constant 0 : i32
    %c0_i32_0 = arith.constant 0 : i32
    %c0_i32_1 = arith.constant 0 : i32
    return %c0_i32, %c0_i32_0 : i32, i32
  }
  func.func @transform_7(%arg0: i32) -> (i32, i32) {
    %c0_i32 = arith.constant 0 : i32
    %c0_i32_0 = arith.constant 0 : i32
    %c0_i32_1 = arith.constant 0 : i32
    return %c0_i32, %c0_i32_0 : i32, i32
  }
  func.func @transform_8(%arg0: i32) -> (i32, i32) {
    %c0_i32 = arith.constant 0 : i32
    %c0_i32_0 = arith.constant 0 : i32
    %c0_i32_1 = arith.constant 0 : i32
    return %c0_i32, %c0_i32_0 : i32, i32
  }
  func.func @transform_9(%arg0: i32) -> (i32, i32) {
    %c0_i32 = arith.constant 0 : i32
    %c0_i32_0 = arith.constant 0 : i32
    %c0_i32_1 = arith.constant 0 : i32
    return %c0_i32, %c0_i32_0 : i32, i32
  }
  func.func @transform_10(%arg0: i32) -> (i32, i32) {
    %c0_i32 = arith.constant 0 : i32
    %c0_i32_0 = arith.constant 0 : i32
    %c0_i32_1 = arith.constant 0 : i32
    return %c0_i32, %c0_i32_0 : i32, i32
  }
  func.func @transform_11(%arg0: i32) -> (i32, i32) {
    %c0_i32 = arith.constant 0 : i32
    %c0_i32_0 = arith.constant 0 : i32
    return %c0_i32, %arg0 : i32, i32
  }
}

module attributes {stable_mosaic.version = 11 : i64} {
  func.func @_scatter_mean_kernel(%arg0: i32, %arg1: i32, %arg2: memref<256x2xi32, #tpu.memory_space<vmem>>, %arg3: memref<32x256xbf16, #tpu.memory_space<vmem>>, %arg4: memref<32x256xbf16, #tpu.memory_space<vmem>>, %arg5: memref<32x256xf32, #tpu.memory_space<vmem>>, %arg6: memref<1x256xf32, #tpu.memory_space<vmem>>) attributes {dimension_semantics = [#tpu.dimension_semantics<parallel>, #tpu.dimension_semantics<arbitrary>], iteration_bounds = array<i64: 3, 1>, scalar_prefetch = 0 : i64, scratch_operands = 2 : i64, tpu.core_type = #tpu.core_type<tc>, window_params = [{transform_indices = @transform_0, window_bounds = array<i64: 256, 2>}, {transform_indices = @transform_1, window_bounds = array<i64: 32, 256>}, {transform_indices = @transform_2, window_bounds = array<i64: 32, 256>}]} {
    %c0_i32 = arith.constant 0 : i32
    %0 = arith.cmpi eq, %arg1, %c0_i32 : i32
    %1 = arith.extui %0 : i1 to i32
    %c0_i32_0 = arith.constant 0 : i32
    %2 = arith.cmpi ne, %1, %c0_i32_0 : i32
    scf.if %2 {
      %cst_16 = arith.constant 0.000000e+00 : f32
      %31 = vector.broadcast %cst_16 : f32 to vector<32x256xf32>
      %c0_17 = arith.constant 0 : index
      %c0_18 = arith.constant 0 : index
      %32 = vector.load %arg5[%c0_17, %c0_18] : memref<32x256xf32, #tpu.memory_space<vmem>>, vector<32x256xf32>
      tpu.vector_store %arg5[%c0_17, %c0_18], %31 {strides = array<i32>} : memref<32x256xf32, #tpu.memory_space<vmem>>, vector<32x256xf32>,
      %cst_19 = arith.constant 0.000000e+00 : f32
      %33 = vector.broadcast %cst_19 : f32 to vector<1x256xf32>
      %c0_20 = arith.constant 0 : index
      %c0_21 = arith.constant 0 : index
      %34 = vector.load %arg6[%c0_20, %c0_21] : memref<1x256xf32, #tpu.memory_space<vmem>>, vector<1x256xf32>
      tpu.vector_store %arg6[%c0_20, %c0_21], %33 {strides = array<i32>} : memref<1x256xf32, #tpu.memory_space<vmem>>, vector<1x256xf32>,
    } else {
    }
    %c0 = arith.constant 0 : index
    %c0_1 = arith.constant 0 : index
    %3 = vector.load %arg2[%c0, %c0_1] : memref<256x2xi32, #tpu.memory_space<vmem>>, vector<256x2xi32>
    %c2_i32 = arith.constant 2 : i32
    %4 = arith.cmpi slt, %arg0, %c2_i32 : i32
    %5 = vector.extract_strided_slice %3 {offsets = [0, 0], sizes = [256, 1], strides = [1, 1]} : vector<256x2xi32> to vector<256x1xi32>
    %6 = vector.extract_strided_slice %3 {offsets = [0, 1], sizes = [256, 1], strides = [1, 1]} : vector<256x2xi32> to vector<256x1xi32>
    %7 = arith.select %4, %5, %6 : vector<256x1xi32>
    %c256_i32 = arith.constant 256 : i32
    %8 = arith.muli %arg0, %c256_i32 : i32
    %9 = tpu.iota {dimensions = array<i32: 1>} : vector<1x256xi32>
    %10 = vector.broadcast %8 : i32 to vector<1x256xi32>
    %11 = arith.addi %10, %9 : vector<1x256xi32>
    %12 = vector.broadcast %7 : vector<256x1xi32> to vector<256x256xi32>
    %13 = vector.broadcast %11 : vector<1x256xi32> to vector<256x256xi32>
    %14 = arith.cmpi eq, %12, %13 : vector<256x256xi32>
    %15 = arith.extui %14 : vector<256x256xi1> to vector<256x256xi32>
    %16 = arith.sitofp %15 : vector<256x256xi32> to vector<256x256xf32>
    %17 = arith.truncf %16 : vector<256x256xf32> to vector<256x256xbf16>
    %c0_2 = arith.constant 0 : index
    %c0_3 = arith.constant 0 : index
    %18 = vector.load %arg3[%c0_2, %c0_3] : memref<32x256xbf16, #tpu.memory_space<vmem>>, vector<32x256xbf16>
    %c0_4 = arith.constant 0 : index
    %c0_5 = arith.constant 0 : index
    %19 = vector.load %arg5[%c0_4, %c0_5] : memref<32x256xf32, #tpu.memory_space<vmem>>, vector<32x256xf32>
    %cst = arith.constant dense<0.000000e+00> : vector<32x256xf32>
    %20 = tpu.matmul %18, %17, %cst {dimension_numbers = #tpu.dot_dimension_numbers<[1], [0], [0], [1], [0, 0, 1, 1], [], []>} : vector<32x256xbf16>, vector<256x256xbf16>, vector<32x256xf32> -> vector<32x256xf32>
    %21 = arith.addf %19, %20 : vector<32x256xf32>
    %c0_6 = arith.constant 0 : index
    %c0_7 = arith.constant 0 : index
    %22 = vector.load %arg5[%c0_6, %c0_7] : memref<32x256xf32, #tpu.memory_space<vmem>>, vector<32x256xf32>
    tpu.vector_store %arg5[%c0_6, %c0_7], %21 {strides = array<i32>} : memref<32x256xf32, #tpu.memory_space<vmem>>, vector<32x256xf32>,
    %cst_8 = arith.constant 1.000000e+00 : bf16
    %23 = vector.broadcast %cst_8 : bf16 to vector<1x256xbf16>
    %c0_9 = arith.constant 0 : index
    %c0_10 = arith.constant 0 : index
    %24 = vector.load %arg6[%c0_9, %c0_10] : memref<1x256xf32, #tpu.memory_space<vmem>>, vector<1x256xf32>
    %cst_11 = arith.constant dense<0.000000e+00> : vector<1x256xf32>
    %25 = tpu.matmul %23, %17, %cst_11 {dimension_numbers = #tpu.dot_dimension_numbers<[1], [0], [0], [1], [0, 0, 1, 1], [], []>} : vector<1x256xbf16>, vector<256x256xbf16>, vector<1x256xf32> -> vector<1x256xf32>
    %26 = arith.addf %24, %25 : vector<1x256xf32>
    %c0_12 = arith.constant 0 : index
    %c0_13 = arith.constant 0 : index
    %27 = vector.load %arg6[%c0_12, %c0_13] : memref<1x256xf32, #tpu.memory_space<vmem>>, vector<1x256xf32>
    tpu.vector_store %arg6[%c0_12, %c0_13], %26 {strides = array<i32>} : memref<1x256xf32, #tpu.memory_space<vmem>>, vector<1x256xf32>,
    %c0_i32_14 = arith.constant 0 : i32
    %28 = arith.cmpi eq, %arg1, %c0_i32_14 : i32
    %29 = arith.extui %28 : i1 to i32
    %c0_i32_15 = arith.constant 0 : i32
    %30 = arith.cmpi ne, %29, %c0_i32_15 : i32
    scf.if %30 {
      %c0_16 = arith.constant 0 : index
      %c0_17 = arith.constant 0 : index
      %31 = vector.load %arg5[%c0_16, %c0_17] : memref<32x256xf32, #tpu.memory_space<vmem>>, vector<32x256xf32>
      %c0_18 = arith.constant 0 : index
      %c0_19 = arith.constant 0 : index
      %32 = vector.load %arg6[%c0_18, %c0_19] : memref<1x256xf32, #tpu.memory_space<vmem>>, vector<1x256xf32>
      %cst_20 = arith.constant 1.000000e+00 : f32
      %33 = vector.broadcast %cst_20 : f32 to vector<1x256xf32>
      %34 = arith.maximumf %32, %33 : vector<1x256xf32>
      %35 = vector.broadcast %34 : vector<1x256xf32> to vector<32x256xf32>
      %36 = arith.divf %31, %35 : vector<32x256xf32>
      %37 = arith.truncf %36 : vector<32x256xf32> to vector<32x256xbf16>
      %c0_21 = arith.constant 0 : index
      %c0_22 = arith.constant 0 : index
      %38 = vector.load %arg4[%c0_21, %c0_22] : memref<32x256xbf16, #tpu.memory_space<vmem>>, vector<32x256xbf16>
      tpu.vector_store %arg4[%c0_21, %c0_22], %37 {strides = array<i32>} : memref<32x256xbf16, #tpu.memory_space<vmem>>, vector<32x256xbf16>,
    } else {
    }
    return
  }
  func.func @transform_0(%arg0: i32, %arg1: i32) -> (i32, i32) {
    %c0_i32 = arith.constant 0 : i32
    %c0_i32_0 = arith.constant 0 : i32
    return %arg1, %c0_i32 : i32, i32
  }
  func.func @transform_1(%arg0: i32, %arg1: i32) -> (i32, i32) {
    %c0_i32 = arith.constant 0 : i32
    %c0_i32_0 = arith.constant 0 : i32
    return %c0_i32, %arg1 : i32, i32
  }
  func.func @transform_2(%arg0: i32, %arg1: i32) -> (i32, i32) {
    %c0_i32 = arith.constant 0 : i32
    %c0_i32_0 = arith.constant 0 : i32
    return %c0_i32, %arg0 : i32, i32
  }
}

module attributes {stable_mosaic.version = 11 : i64} {
  func.func @_scatter_mean_kernel(%arg0: i32, %arg1: i32, %arg2: memref<256x2xi32, #tpu.memory_space<vmem>>, %arg3: memref<16x256xbf16, #tpu.memory_space<vmem>>, %arg4: memref<16x256xbf16, #tpu.memory_space<vmem>>, %arg5: memref<16x256xf32, #tpu.memory_space<vmem>>, %arg6: memref<1x256xf32, #tpu.memory_space<vmem>>) attributes {dimension_semantics = [#tpu.dimension_semantics<parallel>, #tpu.dimension_semantics<arbitrary>], iteration_bounds = array<i64: 3, 1>, scalar_prefetch = 0 : i64, scratch_operands = 2 : i64, tpu.core_type = #tpu.core_type<tc>, window_params = [{transform_indices = @transform_0, window_bounds = array<i64: 256, 2>}, {transform_indices = @transform_1, window_bounds = array<i64: 16, 256>}, {transform_indices = @transform_2, window_bounds = array<i64: 16, 256>}]} {
    %c0_i32 = arith.constant 0 : i32
    %0 = arith.cmpi eq, %arg1, %c0_i32 : i32
    %1 = arith.extui %0 : i1 to i32
    %c0_i32_0 = arith.constant 0 : i32
    %2 = arith.cmpi ne, %1, %c0_i32_0 : i32
    scf.if %2 {
      %cst_16 = arith.constant 0.000000e+00 : f32
      %31 = vector.broadcast %cst_16 : f32 to vector<16x256xf32>
      %c0_17 = arith.constant 0 : index
      %c0_18 = arith.constant 0 : index
      %32 = vector.load %arg5[%c0_17, %c0_18] : memref<16x256xf32, #tpu.memory_space<vmem>>, vector<16x256xf32>
      tpu.vector_store %arg5[%c0_17, %c0_18], %31 {strides = array<i32>} : memref<16x256xf32, #tpu.memory_space<vmem>>, vector<16x256xf32>,
      %cst_19 = arith.constant 0.000000e+00 : f32
      %33 = vector.broadcast %cst_19 : f32 to vector<1x256xf32>
      %c0_20 = arith.constant 0 : index
      %c0_21 = arith.constant 0 : index
      %34 = vector.load %arg6[%c0_20, %c0_21] : memref<1x256xf32, #tpu.memory_space<vmem>>, vector<1x256xf32>
      tpu.vector_store %arg6[%c0_20, %c0_21], %33 {strides = array<i32>} : memref<1x256xf32, #tpu.memory_space<vmem>>, vector<1x256xf32>,
    } else {
    }
    %c0 = arith.constant 0 : index
    %c0_1 = arith.constant 0 : index
    %3 = vector.load %arg2[%c0, %c0_1] : memref<256x2xi32, #tpu.memory_space<vmem>>, vector<256x2xi32>
    %c2_i32 = arith.constant 2 : i32
    %4 = arith.cmpi slt, %arg0, %c2_i32 : i32
    %5 = vector.extract_strided_slice %3 {offsets = [0, 0], sizes = [256, 1], strides = [1, 1]} : vector<256x2xi32> to vector<256x1xi32>
    %6 = vector.extract_strided_slice %3 {offsets = [0, 1], sizes = [256, 1], strides = [1, 1]} : vector<256x2xi32> to vector<256x1xi32>
    %7 = arith.select %4, %5, %6 : vector<256x1xi32>
    %c256_i32 = arith.constant 256 : i32
    %8 = arith.muli %arg0, %c256_i32 : i32
    %9 = tpu.iota {dimensions = array<i32: 1>} : vector<1x256xi32>
    %10 = vector.broadcast %8 : i32 to vector<1x256xi32>
    %11 = arith.addi %10, %9 : vector<1x256xi32>
    %12 = vector.broadcast %7 : vector<256x1xi32> to vector<256x256xi32>
    %13 = vector.broadcast %11 : vector<1x256xi32> to vector<256x256xi32>
    %14 = arith.cmpi eq, %12, %13 : vector<256x256xi32>
    %15 = arith.extui %14 : vector<256x256xi1> to vector<256x256xi32>
    %16 = arith.sitofp %15 : vector<256x256xi32> to vector<256x256xf32>
    %17 = arith.truncf %16 : vector<256x256xf32> to vector<256x256xbf16>
    %c0_2 = arith.constant 0 : index
    %c0_3 = arith.constant 0 : index
    %18 = vector.load %arg3[%c0_2, %c0_3] : memref<16x256xbf16, #tpu.memory_space<vmem>>, vector<16x256xbf16>
    %c0_4 = arith.constant 0 : index
    %c0_5 = arith.constant 0 : index
    %19 = vector.load %arg5[%c0_4, %c0_5] : memref<16x256xf32, #tpu.memory_space<vmem>>, vector<16x256xf32>
    %cst = arith.constant dense<0.000000e+00> : vector<16x256xf32>
    %20 = tpu.matmul %18, %17, %cst {dimension_numbers = #tpu.dot_dimension_numbers<[1], [0], [0], [1], [0, 0, 1, 1], [], []>} : vector<16x256xbf16>, vector<256x256xbf16>, vector<16x256xf32> -> vector<16x256xf32>
    %21 = arith.addf %19, %20 : vector<16x256xf32>
    %c0_6 = arith.constant 0 : index
    %c0_7 = arith.constant 0 : index
    %22 = vector.load %arg5[%c0_6, %c0_7] : memref<16x256xf32, #tpu.memory_space<vmem>>, vector<16x256xf32>
    tpu.vector_store %arg5[%c0_6, %c0_7], %21 {strides = array<i32>} : memref<16x256xf32, #tpu.memory_space<vmem>>, vector<16x256xf32>,
    %cst_8 = arith.constant 1.000000e+00 : bf16
    %23 = vector.broadcast %cst_8 : bf16 to vector<1x256xbf16>
    %c0_9 = arith.constant 0 : index
    %c0_10 = arith.constant 0 : index
    %24 = vector.load %arg6[%c0_9, %c0_10] : memref<1x256xf32, #tpu.memory_space<vmem>>, vector<1x256xf32>
    %cst_11 = arith.constant dense<0.000000e+00> : vector<1x256xf32>
    %25 = tpu.matmul %23, %17, %cst_11 {dimension_numbers = #tpu.dot_dimension_numbers<[1], [0], [0], [1], [0, 0, 1, 1], [], []>} : vector<1x256xbf16>, vector<256x256xbf16>, vector<1x256xf32> -> vector<1x256xf32>
    %26 = arith.addf %24, %25 : vector<1x256xf32>
    %c0_12 = arith.constant 0 : index
    %c0_13 = arith.constant 0 : index
    %27 = vector.load %arg6[%c0_12, %c0_13] : memref<1x256xf32, #tpu.memory_space<vmem>>, vector<1x256xf32>
    tpu.vector_store %arg6[%c0_12, %c0_13], %26 {strides = array<i32>} : memref<1x256xf32, #tpu.memory_space<vmem>>, vector<1x256xf32>,
    %c0_i32_14 = arith.constant 0 : i32
    %28 = arith.cmpi eq, %arg1, %c0_i32_14 : i32
    %29 = arith.extui %28 : i1 to i32
    %c0_i32_15 = arith.constant 0 : i32
    %30 = arith.cmpi ne, %29, %c0_i32_15 : i32
    scf.if %30 {
      %c0_16 = arith.constant 0 : index
      %c0_17 = arith.constant 0 : index
      %31 = vector.load %arg5[%c0_16, %c0_17] : memref<16x256xf32, #tpu.memory_space<vmem>>, vector<16x256xf32>
      %c0_18 = arith.constant 0 : index
      %c0_19 = arith.constant 0 : index
      %32 = vector.load %arg6[%c0_18, %c0_19] : memref<1x256xf32, #tpu.memory_space<vmem>>, vector<1x256xf32>
      %cst_20 = arith.constant 1.000000e+00 : f32
      %33 = vector.broadcast %cst_20 : f32 to vector<1x256xf32>
      %34 = arith.maximumf %32, %33 : vector<1x256xf32>
      %35 = vector.broadcast %34 : vector<1x256xf32> to vector<16x256xf32>
      %36 = arith.divf %31, %35 : vector<16x256xf32>
      %37 = arith.truncf %36 : vector<16x256xf32> to vector<16x256xbf16>
      %c0_21 = arith.constant 0 : index
      %c0_22 = arith.constant 0 : index
      %38 = vector.load %arg4[%c0_21, %c0_22] : memref<16x256xbf16, #tpu.memory_space<vmem>>, vector<16x256xbf16>
      tpu.vector_store %arg4[%c0_21, %c0_22], %37 {strides = array<i32>} : memref<16x256xbf16, #tpu.memory_space<vmem>>, vector<16x256xbf16>,
    } else {
    }
    return
  }
  func.func @transform_0(%arg0: i32, %arg1: i32) -> (i32, i32) {
    %c0_i32 = arith.constant 0 : i32
    %c0_i32_0 = arith.constant 0 : i32
    return %arg1, %c0_i32 : i32, i32
  }
  func.func @transform_1(%arg0: i32, %arg1: i32) -> (i32, i32) {
    %c0_i32 = arith.constant 0 : i32
    %c0_i32_0 = arith.constant 0 : i32
    return %c0_i32, %arg1 : i32, i32
  }
  func.func @transform_2(%arg0: i32, %arg1: i32) -> (i32, i32) {
    %c0_i32 = arith.constant 0 : i32
    %c0_i32_0 = arith.constant 0 : i32
    return %c0_i32, %arg0 : i32, i32
  }
}

module attributes {stable_mosaic.version = 11 : i64} {
  func.func @_stage_kernel(%arg0: i32, %arg1: memref<32x128xbf16, #tpu.memory_space<vmem>>, %arg2: memref<32x128xbf16, #tpu.memory_space<vmem>>, %arg3: memref<32x128xbf16, #tpu.memory_space<vmem>>, %arg4: memref<16x32xbf16, #tpu.memory_space<vmem>>, %arg5: memref<16x32xbf16, #tpu.memory_space<vmem>>, %arg6: memref<16x32xbf16, #tpu.memory_space<vmem>>, %arg7: memref<48x1xf32, #tpu.memory_space<vmem>>, %arg8: memref<3x16xf32, #tpu.memory_space<vmem>>, %arg9: memref<3x16xf32, #tpu.memory_space<vmem>>, %arg10: memref<3x16xf32, #tpu.memory_space<vmem>>, %arg11: memref<3x1xf32, #tpu.memory_space<vmem>>, %arg12: memref<16x128xbf16, #tpu.memory_space<vmem>>) attributes {dimension_semantics = [#tpu.dimension_semantics<parallel>], iteration_bounds = array<i64: 2>, scalar_prefetch = 0 : i64, scratch_operands = 0 : i64, tpu.core_type = #tpu.core_type<tc>, window_params = [{transform_indices = @transform_0, window_bounds = array<i64: 32, 128>}, {transform_indices = @transform_1, window_bounds = array<i64: 32, 128>}, {transform_indices = @transform_2, window_bounds = array<i64: 32, 128>}, {pipeline_mode = #tpu.pipeline_mode<synchronous>, transform_indices = @transform_3, window_bounds = array<i64: 16, 32>}, {pipeline_mode = #tpu.pipeline_mode<synchronous>, transform_indices = @transform_4, window_bounds = array<i64: 16, 32>}, {pipeline_mode = #tpu.pipeline_mode<synchronous>, transform_indices = @transform_5, window_bounds = array<i64: 16, 32>}, {pipeline_mode = #tpu.pipeline_mode<synchronous>, transform_indices = @transform_6, window_bounds = array<i64: 48, 1>}, {pipeline_mode = #tpu.pipeline_mode<synchronous>, transform_indices = @transform_7, window_bounds = array<i64: 3, 16>}, {pipeline_mode = #tpu.pipeline_mode<synchronous>, transform_indices = @transform_8, window_bounds = array<i64: 3, 16>}, {pipeline_mode = #tpu.pipeline_mode<synchronous>, transform_indices = @transform_9, window_bounds = array<i64: 3, 16>}, {pipeline_mode = #tpu.pipeline_mode<synchronous>, transform_indices = @transform_10, window_bounds = array<i64: 3, 1>}, {transform_indices = @transform_11, window_bounds = array<i64: 16, 128>}]} {
    %c0 = arith.constant 0 : index
    %c0_0 = arith.constant 0 : index
    %0 = vector.load %arg1[%c0, %c0_0] : memref<32x128xbf16, #tpu.memory_space<vmem>>, vector<32x128xbf16>
    %c0_1 = arith.constant 0 : index
    %c0_2 = arith.constant 0 : index
    %1 = vector.load %arg2[%c0_1, %c0_2] : memref<32x128xbf16, #tpu.memory_space<vmem>>, vector<32x128xbf16>
    %c0_3 = arith.constant 0 : index
    %c0_4 = arith.constant 0 : index
    %2 = vector.load %arg3[%c0_3, %c0_4] : memref<32x128xbf16, #tpu.memory_space<vmem>>, vector<32x128xbf16>
    %c0_5 = arith.constant 0 : index
    %c0_6 = arith.constant 0 : index
    %3 = vector.load %arg7[%c0_5, %c0_6] : memref<48x1xf32, #tpu.memory_space<vmem>>, vector<48x1xf32>
    %4 = vector.extract_strided_slice %3 {offsets = [0, 0], sizes = [16, 1], strides = [1, 1]} : vector<48x1xf32> to vector<16x1xf32>
    %5 = vector.extract_strided_slice %3 {offsets = [16, 0], sizes = [16, 1], strides = [1, 1]} : vector<48x1xf32> to vector<16x1xf32>
    %6 = vector.extract_strided_slice %3 {offsets = [32, 0], sizes = [16, 1], strides = [1, 1]} : vector<48x1xf32> to vector<16x1xf32>
    %c0_7 = arith.constant 0 : index
    %c0_8 = arith.constant 0 : index
    %7 = vector.load %arg4[%c0_7, %c0_8] : memref<16x32xbf16, #tpu.memory_space<vmem>>, vector<16x32xbf16>
    %cst = arith.constant dense<0.000000e+00> : vector<16x128xf32>
    %8 = tpu.matmul %7, %0, %cst {dimension_numbers = #tpu.dot_dimension_numbers<[1], [0], [0], [1], [0, 0, 1, 1], [], []>} : vector<16x32xbf16>, vector<32x128xbf16>, vector<16x128xf32> -> vector<16x128xf32>
    %9 = vector.broadcast %4 : vector<16x1xf32> to vector<16x128xf32>
    %10 = arith.addf %8, %9 : vector<16x128xf32>
    %cst_9 = arith.constant 0.000000e+00 : f32
    %11 = vector.broadcast %cst_9 : f32 to vector<16x128xf32>
    %12 = arith.maximumf %10, %11 : vector<16x128xf32>
    %c0_10 = arith.constant 0 : index
    %c0_11 = arith.constant 0 : index
    %13 = vector.load %arg5[%c0_10, %c0_11] : memref<16x32xbf16, #tpu.memory_space<vmem>>, vector<16x32xbf16>
    %cst_12 = arith.constant dense<0.000000e+00> : vector<16x128xf32>
    %14 = tpu.matmul %13, %1, %cst_12 {dimension_numbers = #tpu.dot_dimension_numbers<[1], [0], [0], [1], [0, 0, 1, 1], [], []>} : vector<16x32xbf16>, vector<32x128xbf16>, vector<16x128xf32> -> vector<16x128xf32>
    %15 = vector.broadcast %5 : vector<16x1xf32> to vector<16x128xf32>
    %16 = arith.addf %14, %15 : vector<16x128xf32>
    %cst_13 = arith.constant 0.000000e+00 : f32
    %17 = vector.broadcast %cst_13 : f32 to vector<16x128xf32>
    %18 = arith.maximumf %16, %17 : vector<16x128xf32>
    %c0_14 = arith.constant 0 : index
    %c0_15 = arith.constant 0 : index
    %19 = vector.load %arg6[%c0_14, %c0_15] : memref<16x32xbf16, #tpu.memory_space<vmem>>, vector<16x32xbf16>
    %cst_16 = arith.constant dense<0.000000e+00> : vector<16x128xf32>
    %20 = tpu.matmul %19, %2, %cst_16 {dimension_numbers = #tpu.dot_dimension_numbers<[1], [0], [0], [1], [0, 0, 1, 1], [], []>} : vector<16x32xbf16>, vector<32x128xbf16>, vector<16x128xf32> -> vector<16x128xf32>
    %21 = vector.broadcast %6 : vector<16x1xf32> to vector<16x128xf32>
    %22 = arith.addf %20, %21 : vector<16x128xf32>
    %cst_17 = arith.constant 0.000000e+00 : f32
    %23 = vector.broadcast %cst_17 : f32 to vector<16x128xf32>
    %24 = arith.maximumf %22, %23 : vector<16x128xf32>
    %c0_18 = arith.constant 0 : index
    %c0_19 = arith.constant 0 : index
    %25 = vector.load %arg8[%c0_18, %c0_19] : memref<3x16xf32, #tpu.memory_space<vmem>>, vector<3x16xf32>
    %cst_20 = arith.constant dense<0.000000e+00> : vector<3x128xf32>
    %26 = tpu.matmul %25, %12, %cst_20 {dimension_numbers = #tpu.dot_dimension_numbers<[1], [0], [0], [1], [0, 0, 1, 1], [], []>} : vector<3x16xf32>, vector<16x128xf32>, vector<3x128xf32> -> vector<3x128xf32>
    %c0_21 = arith.constant 0 : index
    %c0_22 = arith.constant 0 : index
    %27 = vector.load %arg9[%c0_21, %c0_22] : memref<3x16xf32, #tpu.memory_space<vmem>>, vector<3x16xf32>
    %cst_23 = arith.constant dense<0.000000e+00> : vector<3x128xf32>
    %28 = tpu.matmul %27, %18, %cst_23 {dimension_numbers = #tpu.dot_dimension_numbers<[1], [0], [0], [1], [0, 0, 1, 1], [], []>} : vector<3x16xf32>, vector<16x128xf32>, vector<3x128xf32> -> vector<3x128xf32>
    %29 = arith.addf %26, %28 : vector<3x128xf32>
    %c0_24 = arith.constant 0 : index
    %c0_25 = arith.constant 0 : index
    %30 = vector.load %arg10[%c0_24, %c0_25] : memref<3x16xf32, #tpu.memory_space<vmem>>, vector<3x16xf32>
    %cst_26 = arith.constant dense<0.000000e+00> : vector<3x128xf32>
    %31 = tpu.matmul %30, %24, %cst_26 {dimension_numbers = #tpu.dot_dimension_numbers<[1], [0], [0], [1], [0, 0, 1, 1], [], []>} : vector<3x16xf32>, vector<16x128xf32>, vector<3x128xf32> -> vector<3x128xf32>
    %32 = arith.addf %29, %31 : vector<3x128xf32>
    %c0_27 = arith.constant 0 : index
    %c0_28 = arith.constant 0 : index
    %33 = vector.load %arg11[%c0_27, %c0_28] : memref<3x1xf32, #tpu.memory_space<vmem>>, vector<3x1xf32>
    %34 = vector.broadcast %33 : vector<3x1xf32> to vector<3x128xf32>
    %35 = arith.addf %32, %34 : vector<3x128xf32>
    %cst_29 = arith.constant dense<0xFF800000> : vector<128xf32>
    %36 = vector.multi_reduction <maximumf>, %35, %cst_29 [0] : vector<3x128xf32> to vector<128xf32>
    %37 = vector.shape_cast %36 : vector<128xf32> to vector<1x128xf32>
    %38 = vector.broadcast %37 : vector<1x128xf32> to vector<3x128xf32>
    %39 = arith.subf %35, %38 : vector<3x128xf32>
    %40 = math.exp %39 : vector<3x128xf32>
    %cst_30 = arith.constant dense<0.000000e+00> : vector<128xf32>
    %41 = vector.multi_reduction <add>, %40, %cst_30 [0] : vector<3x128xf32> to vector<128xf32>
    %42 = vector.shape_cast %41 : vector<128xf32> to vector<1x128xf32>
    %43 = vector.broadcast %42 : vector<1x128xf32> to vector<3x128xf32>
    %44 = arith.divf %40, %43 : vector<3x128xf32>
    %45 = vector.extract_strided_slice %44 {offsets = [0, 0], sizes = [1, 128], strides = [1, 1]} : vector<3x128xf32> to vector<1x128xf32>
    %46 = vector.broadcast %45 : vector<1x128xf32> to vector<16x128xf32>
    %47 = arith.mulf %12, %46 : vector<16x128xf32>
    %48 = vector.extract_strided_slice %44 {offsets = [1, 0], sizes = [1, 128], strides = [1, 1]} : vector<3x128xf32> to vector<1x128xf32>
    %49 = vector.broadcast %48 : vector<1x128xf32> to vector<16x128xf32>
    %50 = arith.mulf %18, %49 : vector<16x128xf32>
    %51 = arith.addf %47, %50 : vector<16x128xf32>
    %52 = vector.extract_strided_slice %44 {offsets = [2, 0], sizes = [1, 128], strides = [1, 1]} : vector<3x128xf32> to vector<1x128xf32>
    %53 = vector.broadcast %52 : vector<1x128xf32> to vector<16x128xf32>
    %54 = arith.mulf %24, %53 : vector<16x128xf32>
    %55 = arith.addf %51, %54 : vector<16x128xf32>
    %56 = arith.truncf %55 : vector<16x128xf32> to vector<16x128xbf16>
    %c0_31 = arith.constant 0 : index
    %c0_32 = arith.constant 0 : index
    %57 = vector.load %arg12[%c0_31, %c0_32] : memref<16x128xbf16, #tpu.memory_space<vmem>>, vector<16x128xbf16>
    tpu.vector_store %arg12[%c0_31, %c0_32], %56 {strides = array<i32>} : memref<16x128xbf16, #tpu.memory_space<vmem>>, vector<16x128xbf16>,
    return
  }
  func.func @transform_0(%arg0: i32) -> (i32, i32) {
    %c0_i32 = arith.constant 0 : i32
    %c0_i32_0 = arith.constant 0 : i32
    return %c0_i32, %arg0 : i32, i32
  }
  func.func @transform_1(%arg0: i32) -> (i32, i32) {
    %c0_i32 = arith.constant 0 : i32
    %c0_i32_0 = arith.constant 0 : i32
    return %c0_i32, %arg0 : i32, i32
  }
  func.func @transform_2(%arg0: i32) -> (i32, i32) {
    %c0_i32 = arith.constant 0 : i32
    %c0_i32_0 = arith.constant 0 : i32
    return %c0_i32, %arg0 : i32, i32
  }
  func.func @transform_3(%arg0: i32) -> (i32, i32) {
    %c0_i32 = arith.constant 0 : i32
    %c0_i32_0 = arith.constant 0 : i32
    %c0_i32_1 = arith.constant 0 : i32
    return %c0_i32, %c0_i32_0 : i32, i32
  }
  func.func @transform_4(%arg0: i32) -> (i32, i32) {
    %c0_i32 = arith.constant 0 : i32
    %c0_i32_0 = arith.constant 0 : i32
    %c0_i32_1 = arith.constant 0 : i32
    return %c0_i32, %c0_i32_0 : i32, i32
  }
  func.func @transform_5(%arg0: i32) -> (i32, i32) {
    %c0_i32 = arith.constant 0 : i32
    %c0_i32_0 = arith.constant 0 : i32
    %c0_i32_1 = arith.constant 0 : i32
    return %c0_i32, %c0_i32_0 : i32, i32
  }
  func.func @transform_6(%arg0: i32) -> (i32, i32) {
    %c0_i32 = arith.constant 0 : i32
    %c0_i32_0 = arith.constant 0 : i32
    %c0_i32_1 = arith.constant 0 : i32
    return %c0_i32, %c0_i32_0 : i32, i32
  }
  func.func @transform_7(%arg0: i32) -> (i32, i32) {
    %c0_i32 = arith.constant 0 : i32
    %c0_i32_0 = arith.constant 0 : i32
    %c0_i32_1 = arith.constant 0 : i32
    return %c0_i32, %c0_i32_0 : i32, i32
  }
  func.func @transform_8(%arg0: i32) -> (i32, i32) {
    %c0_i32 = arith.constant 0 : i32
    %c0_i32_0 = arith.constant 0 : i32
    %c0_i32_1 = arith.constant 0 : i32
    return %c0_i32, %c0_i32_0 : i32, i32
  }
  func.func @transform_9(%arg0: i32) -> (i32, i32) {
    %c0_i32 = arith.constant 0 : i32
    %c0_i32_0 = arith.constant 0 : i32
    %c0_i32_1 = arith.constant 0 : i32
    return %c0_i32, %c0_i32_0 : i32, i32
  }
  func.func @transform_10(%arg0: i32) -> (i32, i32) {
    %c0_i32 = arith.constant 0 : i32
    %c0_i32_0 = arith.constant 0 : i32
    %c0_i32_1 = arith.constant 0 : i32
    return %c0_i32, %c0_i32_0 : i32, i32
  }
  func.func @transform_11(%arg0: i32) -> (i32, i32) {
    %c0_i32 = arith.constant 0 : i32
    %c0_i32_0 = arith.constant 0 : i32
    return %c0_i32, %arg0 : i32, i32
  }
}

module attributes {stable_mosaic.version = 11 : i64} {
  func.func @_stage_final_kernel(%arg0: i32, %arg1: memref<16x128xbf16, #tpu.memory_space<vmem>>, %arg2: memref<16x128xbf16, #tpu.memory_space<vmem>>, %arg3: memref<16x128xbf16, #tpu.memory_space<vmem>>, %arg4: memref<8x16xbf16, #tpu.memory_space<vmem>>, %arg5: memref<8x16xbf16, #tpu.memory_space<vmem>>, %arg6: memref<8x16xbf16, #tpu.memory_space<vmem>>, %arg7: memref<24x1xf32, #tpu.memory_space<vmem>>, %arg8: memref<3x8xf32, #tpu.memory_space<vmem>>, %arg9: memref<3x8xf32, #tpu.memory_space<vmem>>, %arg10: memref<3x8xf32, #tpu.memory_space<vmem>>, %arg11: memref<3x1xf32, #tpu.memory_space<vmem>>, %arg12: memref<8x8xf32, #tpu.memory_space<vmem>>, %arg13: memref<8x1xf32, #tpu.memory_space<vmem>>, %arg14: memref<8x128xf32, #tpu.memory_space<vmem>>) attributes {dimension_semantics = [#tpu.dimension_semantics<parallel>], iteration_bounds = array<i64: 2>, scalar_prefetch = 0 : i64, scratch_operands = 0 : i64, tpu.core_type = #tpu.core_type<tc>, window_params = [{transform_indices = @transform_0, window_bounds = array<i64: 16, 128>}, {transform_indices = @transform_1, window_bounds = array<i64: 16, 128>}, {transform_indices = @transform_2, window_bounds = array<i64: 16, 128>}, {pipeline_mode = #tpu.pipeline_mode<synchronous>, transform_indices = @transform_3, window_bounds = array<i64: 8, 16>}, {pipeline_mode = #tpu.pipeline_mode<synchronous>, transform_indices = @transform_4, window_bounds = array<i64: 8, 16>}, {pipeline_mode = #tpu.pipeline_mode<synchronous>, transform_indices = @transform_5, window_bounds = array<i64: 8, 16>}, {pipeline_mode = #tpu.pipeline_mode<synchronous>, transform_indices = @transform_6, window_bounds = array<i64: 24, 1>}, {pipeline_mode = #tpu.pipeline_mode<synchronous>, transform_indices = @transform_7, window_bounds = array<i64: 3, 8>}, {pipeline_mode = #tpu.pipeline_mode<synchronous>, transform_indices = @transform_8, window_bounds = array<i64: 3, 8>}, {pipeline_mode = #tpu.pipeline_mode<synchronous>, transform_indices = @transform_9, window_bounds = array<i64: 3, 8>}, {pipeline_mode = #tpu.pipeline_mode<synchronous>, transform_indices = @transform_10, window_bounds = array<i64: 3, 1>}, {pipeline_mode = #tpu.pipeline_mode<synchronous>, transform_indices = @transform_11, window_bounds = array<i64: 8, 8>}, {pipeline_mode = #tpu.pipeline_mode<synchronous>, transform_indices = @transform_12, window_bounds = array<i64: 8, 1>}, {transform_indices = @transform_13, window_bounds = array<i64: 8, 128>}]} {
    %c0 = arith.constant 0 : index
    %c0_0 = arith.constant 0 : index
    %0 = vector.load %arg1[%c0, %c0_0] : memref<16x128xbf16, #tpu.memory_space<vmem>>, vector<16x128xbf16>
    %c0_1 = arith.constant 0 : index
    %c0_2 = arith.constant 0 : index
    %1 = vector.load %arg2[%c0_1, %c0_2] : memref<16x128xbf16, #tpu.memory_space<vmem>>, vector<16x128xbf16>
    %c0_3 = arith.constant 0 : index
    %c0_4 = arith.constant 0 : index
    %2 = vector.load %arg3[%c0_3, %c0_4] : memref<16x128xbf16, #tpu.memory_space<vmem>>, vector<16x128xbf16>
    %c0_5 = arith.constant 0 : index
    %c0_6 = arith.constant 0 : index
    %3 = vector.load %arg7[%c0_5, %c0_6] : memref<24x1xf32, #tpu.memory_space<vmem>>, vector<24x1xf32>
    %4 = vector.extract_strided_slice %3 {offsets = [0, 0], sizes = [8, 1], strides = [1, 1]} : vector<24x1xf32> to vector<8x1xf32>
    %5 = vector.extract_strided_slice %3 {offsets = [8, 0], sizes = [8, 1], strides = [1, 1]} : vector<24x1xf32> to vector<8x1xf32>
    %6 = vector.extract_strided_slice %3 {offsets = [16, 0], sizes = [8, 1], strides = [1, 1]} : vector<24x1xf32> to vector<8x1xf32>
    %c0_7 = arith.constant 0 : index
    %c0_8 = arith.constant 0 : index
    %7 = vector.load %arg4[%c0_7, %c0_8] : memref<8x16xbf16, #tpu.memory_space<vmem>>, vector<8x16xbf16>
    %cst = arith.constant dense<0.000000e+00> : vector<8x128xf32>
    %8 = tpu.matmul %7, %0, %cst {dimension_numbers = #tpu.dot_dimension_numbers<[1], [0], [0], [1], [0, 0, 1, 1], [], []>} : vector<8x16xbf16>, vector<16x128xbf16>, vector<8x128xf32> -> vector<8x128xf32>
    %9 = vector.broadcast %4 : vector<8x1xf32> to vector<8x128xf32>
    %10 = arith.addf %8, %9 : vector<8x128xf32>
    %cst_9 = arith.constant 0.000000e+00 : f32
    %11 = vector.broadcast %cst_9 : f32 to vector<8x128xf32>
    %12 = arith.maximumf %10, %11 : vector<8x128xf32>
    %c0_10 = arith.constant 0 : index
    %c0_11 = arith.constant 0 : index
    %13 = vector.load %arg5[%c0_10, %c0_11] : memref<8x16xbf16, #tpu.memory_space<vmem>>, vector<8x16xbf16>
    %cst_12 = arith.constant dense<0.000000e+00> : vector<8x128xf32>
    %14 = tpu.matmul %13, %1, %cst_12 {dimension_numbers = #tpu.dot_dimension_numbers<[1], [0], [0], [1], [0, 0, 1, 1], [], []>} : vector<8x16xbf16>, vector<16x128xbf16>, vector<8x128xf32> -> vector<8x128xf32>
    %15 = vector.broadcast %5 : vector<8x1xf32> to vector<8x128xf32>
    %16 = arith.addf %14, %15 : vector<8x128xf32>
    %cst_13 = arith.constant 0.000000e+00 : f32
    %17 = vector.broadcast %cst_13 : f32 to vector<8x128xf32>
    %18 = arith.maximumf %16, %17 : vector<8x128xf32>
    %c0_14 = arith.constant 0 : index
    %c0_15 = arith.constant 0 : index
    %19 = vector.load %arg6[%c0_14, %c0_15] : memref<8x16xbf16, #tpu.memory_space<vmem>>, vector<8x16xbf16>
    %cst_16 = arith.constant dense<0.000000e+00> : vector<8x128xf32>
    %20 = tpu.matmul %19, %2, %cst_16 {dimension_numbers = #tpu.dot_dimension_numbers<[1], [0], [0], [1], [0, 0, 1, 1], [], []>} : vector<8x16xbf16>, vector<16x128xbf16>, vector<8x128xf32> -> vector<8x128xf32>
    %21 = vector.broadcast %6 : vector<8x1xf32> to vector<8x128xf32>
    %22 = arith.addf %20, %21 : vector<8x128xf32>
    %cst_17 = arith.constant 0.000000e+00 : f32
    %23 = vector.broadcast %cst_17 : f32 to vector<8x128xf32>
    %24 = arith.maximumf %22, %23 : vector<8x128xf32>
    %c0_18 = arith.constant 0 : index
    %c0_19 = arith.constant 0 : index
    %25 = vector.load %arg8[%c0_18, %c0_19] : memref<3x8xf32, #tpu.memory_space<vmem>>, vector<3x8xf32>
    %cst_20 = arith.constant dense<0.000000e+00> : vector<3x128xf32>
    %26 = tpu.matmul %25, %12, %cst_20 {dimension_numbers = #tpu.dot_dimension_numbers<[1], [0], [0], [1], [0, 0, 1, 1], [], []>} : vector<3x8xf32>, vector<8x128xf32>, vector<3x128xf32> -> vector<3x128xf32>
    %c0_21 = arith.constant 0 : index
    %c0_22 = arith.constant 0 : index
    %27 = vector.load %arg9[%c0_21, %c0_22] : memref<3x8xf32, #tpu.memory_space<vmem>>, vector<3x8xf32>
    %cst_23 = arith.constant dense<0.000000e+00> : vector<3x128xf32>
    %28 = tpu.matmul %27, %18, %cst_23 {dimension_numbers = #tpu.dot_dimension_numbers<[1], [0], [0], [1], [0, 0, 1, 1], [], []>} : vector<3x8xf32>, vector<8x128xf32>, vector<3x128xf32> -> vector<3x128xf32>
    %29 = arith.addf %26, %28 : vector<3x128xf32>
    %c0_24 = arith.constant 0 : index
    %c0_25 = arith.constant 0 : index
    %30 = vector.load %arg10[%c0_24, %c0_25] : memref<3x8xf32, #tpu.memory_space<vmem>>, vector<3x8xf32>
    %cst_26 = arith.constant dense<0.000000e+00> : vector<3x128xf32>
    %31 = tpu.matmul %30, %24, %cst_26 {dimension_numbers = #tpu.dot_dimension_numbers<[1], [0], [0], [1], [0, 0, 1, 1], [], []>} : vector<3x8xf32>, vector<8x128xf32>, vector<3x128xf32> -> vector<3x128xf32>
    %32 = arith.addf %29, %31 : vector<3x128xf32>
    %c0_27 = arith.constant 0 : index
    %c0_28 = arith.constant 0 : index
    %33 = vector.load %arg11[%c0_27, %c0_28] : memref<3x1xf32, #tpu.memory_space<vmem>>, vector<3x1xf32>
    %34 = vector.broadcast %33 : vector<3x1xf32> to vector<3x128xf32>
    %35 = arith.addf %32, %34 : vector<3x128xf32>
    %cst_29 = arith.constant dense<0xFF800000> : vector<128xf32>
    %36 = vector.multi_reduction <maximumf>, %35, %cst_29 [0] : vector<3x128xf32> to vector<128xf32>
    %37 = vector.shape_cast %36 : vector<128xf32> to vector<1x128xf32>
    %38 = vector.broadcast %37 : vector<1x128xf32> to vector<3x128xf32>
    %39 = arith.subf %35, %38 : vector<3x128xf32>
    %40 = math.exp %39 : vector<3x128xf32>
    %cst_30 = arith.constant dense<0.000000e+00> : vector<128xf32>
    %41 = vector.multi_reduction <add>, %40, %cst_30 [0] : vector<3x128xf32> to vector<128xf32>
    %42 = vector.shape_cast %41 : vector<128xf32> to vector<1x128xf32>
    %43 = vector.broadcast %42 : vector<1x128xf32> to vector<3x128xf32>
    %44 = arith.divf %40, %43 : vector<3x128xf32>
    %45 = vector.extract_strided_slice %44 {offsets = [0, 0], sizes = [1, 128], strides = [1, 1]} : vector<3x128xf32> to vector<1x128xf32>
    %46 = vector.broadcast %45 : vector<1x128xf32> to vector<8x128xf32>
    %47 = arith.mulf %12, %46 : vector<8x128xf32>
    %48 = vector.extract_strided_slice %44 {offsets = [1, 0], sizes = [1, 128], strides = [1, 1]} : vector<3x128xf32> to vector<1x128xf32>
    %49 = vector.broadcast %48 : vector<1x128xf32> to vector<8x128xf32>
    %50 = arith.mulf %18, %49 : vector<8x128xf32>
    %51 = arith.addf %47, %50 : vector<8x128xf32>
    %52 = vector.extract_strided_slice %44 {offsets = [2, 0], sizes = [1, 128], strides = [1, 1]} : vector<3x128xf32> to vector<1x128xf32>
    %53 = vector.broadcast %52 : vector<1x128xf32> to vector<8x128xf32>
    %54 = arith.mulf %24, %53 : vector<8x128xf32>
    %55 = arith.addf %51, %54 : vector<8x128xf32>
    %c0_31 = arith.constant 0 : index
    %c0_32 = arith.constant 0 : index
    %56 = vector.load %arg12[%c0_31, %c0_32] : memref<8x8xf32, #tpu.memory_space<vmem>>, vector<8x8xf32>
    %cst_33 = arith.constant dense<0.000000e+00> : vector<8x128xf32>
    %57 = tpu.matmul %56, %55, %cst_33 {dimension_numbers = #tpu.dot_dimension_numbers<[1], [0], [0], [1], [0, 0, 1, 1], [], []>} : vector<8x8xf32>, vector<8x128xf32>, vector<8x128xf32> -> vector<8x128xf32>
    %c0_34 = arith.constant 0 : index
    %c0_35 = arith.constant 0 : index
    %58 = vector.load %arg13[%c0_34, %c0_35] : memref<8x1xf32, #tpu.memory_space<vmem>>, vector<8x1xf32>
    %59 = vector.broadcast %58 : vector<8x1xf32> to vector<8x128xf32>
    %60 = arith.addf %57, %59 : vector<8x128xf32>
    %c0_36 = arith.constant 0 : index
    %c0_37 = arith.constant 0 : index
    %61 = vector.load %arg14[%c0_36, %c0_37] : memref<8x128xf32, #tpu.memory_space<vmem>>, vector<8x128xf32>
    tpu.vector_store %arg14[%c0_36, %c0_37], %60 {strides = array<i32>} : memref<8x128xf32, #tpu.memory_space<vmem>>, vector<8x128xf32>,
    return
  }
  func.func @transform_0(%arg0: i32) -> (i32, i32) {
    %c0_i32 = arith.constant 0 : i32
    %c0_i32_0 = arith.constant 0 : i32
    return %c0_i32, %arg0 : i32, i32
  }
  func.func @transform_1(%arg0: i32) -> (i32, i32) {
    %c0_i32 = arith.constant 0 : i32
    %c0_i32_0 = arith.constant 0 : i32
    return %c0_i32, %arg0 : i32, i32
  }
  func.func @transform_2(%arg0: i32) -> (i32, i32) {
    %c0_i32 = arith.constant 0 : i32
    %c0_i32_0 = arith.constant 0 : i32
    return %c0_i32, %arg0 : i32, i32
  }
  func.func @transform_3(%arg0: i32) -> (i32, i32) {
    %c0_i32 = arith.constant 0 : i32
    %c0_i32_0 = arith.constant 0 : i32
    %c0_i32_1 = arith.constant 0 : i32
    return %c0_i32, %c0_i32_0 : i32, i32
  }
  func.func @transform_4(%arg0: i32) -> (i32, i32) {
    %c0_i32 = arith.constant 0 : i32
    %c0_i32_0 = arith.constant 0 : i32
    %c0_i32_1 = arith.constant 0 : i32
    return %c0_i32, %c0_i32_0 : i32, i32
  }
  func.func @transform_5(%arg0: i32) -> (i32, i32) {
    %c0_i32 = arith.constant 0 : i32
    %c0_i32_0 = arith.constant 0 : i32
    %c0_i32_1 = arith.constant 0 : i32
    return %c0_i32, %c0_i32_0 : i32, i32
  }
  func.func @transform_6(%arg0: i32) -> (i32, i32) {
    %c0_i32 = arith.constant 0 : i32
    %c0_i32_0 = arith.constant 0 : i32
    %c0_i32_1 = arith.constant 0 : i32
    return %c0_i32, %c0_i32_0 : i32, i32
  }
  func.func @transform_7(%arg0: i32) -> (i32, i32) {
    %c0_i32 = arith.constant 0 : i32
    %c0_i32_0 = arith.constant 0 : i32
    %c0_i32_1 = arith.constant 0 : i32
    return %c0_i32, %c0_i32_0 : i32, i32
  }
  func.func @transform_8(%arg0: i32) -> (i32, i32) {
    %c0_i32 = arith.constant 0 : i32
    %c0_i32_0 = arith.constant 0 : i32
    %c0_i32_1 = arith.constant 0 : i32
    return %c0_i32, %c0_i32_0 : i32, i32
  }
  func.func @transform_9(%arg0: i32) -> (i32, i32) {
    %c0_i32 = arith.constant 0 : i32
    %c0_i32_0 = arith.constant 0 : i32
    %c0_i32_1 = arith.constant 0 : i32
    return %c0_i32, %c0_i32_0 : i32, i32
  }
  func.func @transform_10(%arg0: i32) -> (i32, i32) {
    %c0_i32 = arith.constant 0 : i32
    %c0_i32_0 = arith.constant 0 : i32
    %c0_i32_1 = arith.constant 0 : i32
    return %c0_i32, %c0_i32_0 : i32, i32
  }
  func.func @transform_11(%arg0: i32) -> (i32, i32) {
    %c0_i32 = arith.constant 0 : i32
    %c0_i32_0 = arith.constant 0 : i32
    %c0_i32_1 = arith.constant 0 : i32
    return %c0_i32, %c0_i32_0 : i32, i32
  }
  func.func @transform_12(%arg0: i32) -> (i32, i32) {
    %c0_i32 = arith.constant 0 : i32
    %c0_i32_0 = arith.constant 0 : i32
    %c0_i32_1 = arith.constant 0 : i32
    return %c0_i32, %c0_i32_0 : i32, i32
  }
  func.func @transform_13(%arg0: i32) -> (i32, i32) {
    %c0_i32 = arith.constant 0 : i32
    %c0_i32_0 = arith.constant 0 : i32
    return %c0_i32, %arg0 : i32, i32
  }
}

</mosaic_0001>

<llo_original>
// kernel: rpvnet_forward.8
$region0: #{rpvnet_forward.8}
  #allocation0 [shape = 'u32[]', space=smem, size = 0x4, offset = 0x4, fixed_abs, tag = 'smem constant byte address 0x4 - core index']
  #allocation1 [shape = 'u32[144,128]{1,0:T(1,128)}', space=vmem, size = 0x12000, scoped, tag = 'internal scratch']
  #allocation2 [shape = 'f32[4,256]{1,0:T(4,128)}', space=vmem, size = 0x1000, scoped, tag = 'scratch operand']
  #allocation3 [shape = 'f32[1,256]{1,0:T(1,128)}', space=vmem, size = 0x400, scoped, tag = 'scratch operand']
  %s0 = inlined_call_operand.vmem [shape: s32[256,1], index: 0, kind: input, shape index: {}]
  %s1 = inlined_call_operand.vmem [shape: bf16[4,256], index: 1, kind: input, shape index: {}]
  %s2 = inlined_call_operand.vmem [shape: bf16[4,512], index: 2, kind: output, shape index: {}]
  %s3 = sld [smem:[#allocation0]]
  $region49: #{rpvnet_forward.8} parent=0
    _
  %s5 = ssub.s32 1, %s3
  %s6 = scalar_select 0, %s5, %s3
  loop: start=0, step=1, limit=4
  $region2: #{rpvnet_forward.8} parent=0 // loop_pre_header
    _
  $region3: #{rpvnet_forward.8} parent=0 // loop_header
    %s8 = sphi 0, %s12
    %p9 = scmp.ge.s32.totalorder %s8, 4
    %s15 = sphi 0, %s27
    %s16 = sphi 0, %s23
    %s17 = sphi 0, %s15
    %s18 = sphi 0, %s16
    %s19 = sphi 0, %s17
    %s20 = sphi 0, %s18
    %s30 = sphi 0, %s32
    %s33 = sphi 0, %s30
    %s34 = sphi 0, %s33
    %s50 = sphi 0, %s34
    %s56 = sphi 0, %s58
    %s59 = sphi 0, %s56
    %s60 = sphi 0, %s59
    %s76 = sphi 0, %s60
    %s82 = sphi 0, %s84
    %s85 = sphi 0, %s82
    %s86 = sphi 0, %s85
    %s102 = sphi 0, %s86
  $region4: #{rpvnet_forward.8} parent=0 // loop_header_branch
    %11 = sbr.rel (%p9) target = $region8
  $region5: #{rpvnet_forward.8} parent=0 // loop_body
    %s13 = ssub.s32 %s8, 1
    %s14 = ssub.s32 %s8, 2
    %s21 = sadd.s32 1, %s16
    %p22 = scmp.ge.s32.totalorder %s21, 1
    %s23 = scalar_select %p22, 0, %s21
    %s24 = sadd.s32 1, %s15
    %s25 = scalar_select %p22, %s24, %s15
    %p26 = scmp.ge.s32.totalorder %s25, 2
    %s27 = scalar_select %p26, 0, %s25
    %s28 = ssub.s32 %s16, %s23
    %p29 = scmp.eq.s32.totalorder %s28, 0
    %s31 = sadd.s32 %s30, 1
    %s32 = scalar_select %p29, %s30, %s31
    %p35 = pneg %p29
    %p36 = scmp.eq.s32.totalorder %s8, 1
    %p37 = por %p35, %p36
    %p38 = scmp.ne.s32.totalorder %s30, %s33
    %p39 = scmp.eq.s32.totalorder %s8, 0
    %p40 = por %p38, %p39
    %p41 = scmp.ne.s32.totalorder %s30, %s33
    %p42 = scmp.eq.s32.totalorder %s13, 1
    %p43 = por %p41, %p42
    %p44 = scmp.ne.s32.totalorder %s33, %s34
    %p45 = scmp.eq.s32.totalorder %s13, 0
    %p46 = por %p44, %p45
    %p47 = scmp.ne.s32.totalorder %s33, %s34
    %p48 = scmp.eq.s32.totalorder %s14, 1
    %p49 = por %p47, %p48
    %p51 = scmp.ne.s32.totalorder %s34, %s50
    %p52 = scmp.eq.s32.totalorder %s14, 0
    %p53 = por %p51, %p52
    %s54 = ssub.s32 %s16, %s23
    %p55 = scmp.eq.s32.totalorder %s54, 0
    %s57 = sadd.s32 %s56, 1
    %s58 = scalar_select %p55, %s56, %s57
    %p61 = pneg %p55
    %p62 = scmp.eq.s32.totalorder %s8, 1
    %p63 = por %p61, %p62
    %p64 = scmp.ne.s32.totalorder %s56, %s59
    %p65 = scmp.eq.s32.totalorder %s8, 0
    %p66 = por %p64, %p65
    %p67 = scmp.ne.s32.totalorder %s56, %s59
    %p68 = scmp.eq.s32.totalorder %s13, 1
    %p69 = por %p67, %p68
    %p70 = scmp.ne.s32.totalorder %s59, %s60
    %p71 = scmp.eq.s32.totalorder %s13, 0
    %p72 = por %p70, %p71
    %p73 = scmp.ne.s32.totalorder %s59, %s60
    %p74 = scmp.eq.s32.totalorder %s14, 1
    %p75 = por %p73, %p74
    %p77 = scmp.ne.s32.totalorder %s60, %s76
    %p78 = scmp.eq.s32.totalorder %s14, 0
    %p79 = por %p77, %p78
    %s80 = ssub.s32 %s15, %s27
    %p81 = scmp.eq.s32.totalorder %s80, 0
    %s83 = sadd.s32 %s82, 1
    %s84 = scalar_select %p81, %s82, %s83
    %p87 = pneg %p81
    %p88 = scmp.eq.s32.totalorder %s8, 1
    %p89 = por %p87, %p88
    %p90 = scmp.ne.s32.totalorder %s82, %s85
    %p91 = scmp.eq.s32.totalorder %s8, 0
    %p92 = por %p90, %p91
    %p93 = scmp.ne.s32.totalorder %s82, %s85
    %p94 = scmp.eq.s32.totalorder %s13, 1
    %p95 = por %p93, %p94
    %p96 = scmp.ne.s32.totalorder %s85, %s86
    %p97 = scmp.eq.s32.totalorder %s13, 0
    %p98 = por %p96, %p97
    %p99 = scmp.ne.s32.totalorder %s85, %s86
    %p100 = scmp.eq.s32.totalorder %s14, 1
    %p101 = por %p99, %p100
    %p103 = scmp.ne.s32.totalorder %s86, %s102
    %p104 = scmp.eq.s32.totalorder %s14, 0
    %p105 = por %p103, %p104
    %p106 = scmp.le.s32.totalorder 1, %s8
    %p107 = scmp.lt.s32.totalorder %s8, 3
    %p108 = pnand %p106, %p107
    %p109 = pneg %p108
    // Predicated region
    $region9: #{rpvnet_forward.8} parent=5 // pred_check
      _
    $region10: #{rpvnet_forward.8} parent=5 // pred_check_branch
      %111 = sbr.rel (%p108) target = $region12
    $region11: #{rpvnet_forward.8} parent=5 // pred_region
      %s112 = ssub.s32 %s8, 1
      // Predicated region
      $region13: #{rpvnet_forward.8} parent=11 // pred_check
        %p113 = pneg %p46
      $region14: #{rpvnet_forward.8} parent=11 // pred_check_branch
        %115 = sbr.rel (%p113) target = $region16
      $region15: #{rpvnet_forward.8} parent=11 // pred_region
        %s116 = smul.u32 32, %s18
        %p117 = scmp.lt.s32.totalorder %s116, 31
        %s118 = scalar_select %p117, %s116, 31
        %s119 = smul.addr %s118, 8
        %s120 = scalar_lea.vmem %s0, %s119
        %s121 = smul.u32 32, %s18
      $region16: #{rpvnet_forward.8} parent=11 // pred_fallthru
        _
      // Predicated region
      $region17: #{rpvnet_forward.8} parent=11 // pred_check
        %p122 = pneg %p72
      $region18: #{rpvnet_forward.8} parent=11 // pred_check_branch
        %124 = sbr.rel (%p122) target = $region20
      $region19: #{rpvnet_forward.8} parent=11 // pred_region
        %s125 = smul.u32 2, %s18
        %p126 = scmp.lt.s32.totalorder %s125, 1
        %s127 = scalar_select %p126, %s125, 1
        %s128 = smul.addr %s127, 2
        %s129 = scalar_lea.vmem %s1, %s128
        %s130 = smul.u32 2, %s18
      $region20: #{rpvnet_forward.8} parent=11 // pred_fallthru
        _
    $region12: #{rpvnet_forward.8} parent=5 // pred_fallthru
      _
    %p131 = scmp.lt.s32.totalorder %s8, 2
    // Predicated region
    $region21: #{rpvnet_forward.8} parent=5 // pred_check
      %p132 = pneg %p131
    $region22: #{rpvnet_forward.8} parent=5 // pred_check_branch
      %134 = sbr.rel (%p132) target = $region24
    $region23: #{rpvnet_forward.8} parent=5 // pred_region
      _
    $region24: #{rpvnet_forward.8} parent=5 // pred_fallthru
      _
    %p135 = scmp.le.s32.totalorder 1, %s8
    %p136 = scmp.lt.s32.totalorder %s8, 3
    %p137 = pnand %p135, %p136
    %p138 = pneg %p137
    // Predicated region
    $region25: #{rpvnet_forward.8} parent=5 // pred_check
      _
    $region26: #{rpvnet_forward.8} parent=5 // pred_check_branch
      %140 = sbr.rel (%p137) target = $region28
    $region27: #{rpvnet_forward.8} parent=5 // pred_region
      %s141 = ssub.s32 %s8, 1
      %s142 = smul.u32 32, %s18
      %p143 = scmp.lt.s32.totalorder %s142, 31
      %s144 = scalar_select %p143, %s142, 31
      %s145 = smul.addr %s144, 8
      %s146 = scalar_lea.vmem %s0, %s145
      %p147 = pneg %p46
      %p148 = pneg %p43
      %s149 = smul.u32 2, %s18
      %p150 = scmp.lt.s32.totalorder %s149, 1
      %s151 = scalar_select %p150, %s149, 1
      %s152 = smul.addr %s151, 2
      %s153 = scalar_lea.vmem %s1, %s152
      %p154 = pneg %p72
      %p155 = pneg %p69
      %p156 = pneg %p98
      %p157 = pneg %p95
      %s158 = smul.u32 2, %s17
      %p159 = scmp.lt.s32.totalorder %s158, 3
      %s160 = scalar_select %p159, %s158, 3
      %s161 = smul.addr %s160, 2
      %s162 = scalar_lea.vmem %s2, %s161
      %s163 = smul.u32 32, %s18
      %p164 = scmp.lt.s32.totalorder %s163, 31
      %s165 = scalar_select %p164, %s163, 31
      %s166 = smul.addr %s165, 8
      %s167 = scalar_lea.vmem %s0, %s166
      %s168 = smul.u32 32, %s18
      %s169 = smul.u32 2, %s18
      %p170 = scmp.lt.s32.totalorder %s169, 1
      %s171 = scalar_select %p170, %s169, 1
      %s172 = smul.addr %s171, 2
      %s173 = scalar_lea.vmem %s1, %s172
      %s174 = smul.u32 2, %s18
      %s175 = smul.u32 2, %s17
      %p176 = scmp.lt.s32.totalorder %s175, 3
      %s177 = scalar_select %p176, %s175, 3
      %s178 = smul.addr %s177, 2
      %s179 = scalar_lea.vmem %s2, %s178
      %s180 = smul.u32 2, %s17
      %p182 = scmp.eq.s32.totalorder %s18, 0
      // Predicated region
      $region29: #{rpvnet_forward.8} parent=27 // pred_check
        %p183 = pneg %p182
      $region30: #{rpvnet_forward.8} parent=27 // pred_check_branch
        %185 = sbr.rel (%p183) target = $region32
      $region31: #{rpvnet_forward.8} parent=27 // pred_region
        %186 = vst [vmem:[#allocation2] sm:$0xff] 0.0
        %v187 = vlaneseq
        %vm188 = vcmp.ge.s32.totalorder %v187, 0
        %vm189 = vcmp.lt.s32.totalorder %v187, 256
        %vm190 = vmand %vm188, %vm189
        %191 = vst.msk [vmem:[#allocation3] sm:$0x3] %vm190, 0.0
      $region32: #{rpvnet_forward.8} parent=27 // pred_fallthru
        _
      %v192 = vld [vmem:[%s167] sm:$0xff]
      %v193 = vld [vmem:[%s167 + $0x8] sm:$0xff]
      %v194 = vld [vmem:[%s167 + $0x10] sm:$0xff]
      %v195 = vld [vmem:[%s167 + $0x18] sm:$0xff]
      %v196 = vld [vmem:[%s167 + $0x20] sm:$0xff]
      %v197 = vld [vmem:[%s167 + $0x28] sm:$0xff]
      %v198 = vld [vmem:[%s167 + $0x30] sm:$0xff]
      %v199 = vld [vmem:[%s167 + $0x38] sm:$0xff]
      %v200 = vld [vmem:[%s167 + $0x40] sm:$0xff]
      %v201 = vld [vmem:[%s167 + $0x48] sm:$0xff]
      %v202 = vld [vmem:[%s167 + $0x50] sm:$0xff]
      %v203 = vld [vmem:[%s167 + $0x58] sm:$0xff]
      %v204 = vld [vmem:[%s167 + $0x60] sm:$0xff]
      %v205 = vld [vmem:[%s167 + $0x68] sm:$0xff]
      %v206 = vld [vmem:[%s167 + $0x70] sm:$0xff]
      %v207 = vld [vmem:[%s167 + $0x78] sm:$0xff]
      %v208 = vld [vmem:[%s167 + $0x80] sm:$0xff]
      %v209 = vld [vmem:[%s167 + $0x88] sm:$0xff]
      %v210 = vld [vmem:[%s167 + $0x90] sm:$0xff]
      %v211 = vld [vmem:[%s167 + $0x98] sm:$0xff]
      %v212 = vld [vmem:[%s167 + $0xa0] sm:$0xff]
      %v213 = vld [vmem:[%s167 + $0xa8] sm:$0xff]
      %v214 = vld [vmem:[%s167 + $0xb0] sm:$0xff]
      %v215 = vld [vmem:[%s167 + $0xb8] sm:$0xff]
      %v216 = vld [vmem:[%s167 + $0xc0] sm:$0xff]
      %v217 = vld [vmem:[%s167 + $0xc8] sm:$0xff]
      %v218 = vld [vmem:[%s167 + $0xd0] sm:$0xff]
      %v219 = vld [vmem:[%s167 + $0xd8] sm:$0xff]
      %v220 = vld [vmem:[%s167 + $0xe0] sm:$0xff]
      %v221 = vld [vmem:[%s167 + $0xe8] sm:$0xff]
      %v222 = vld [vmem:[%s167 + $0xf0] sm:$0xff]
      %v223 = vld [vmem:[%s167 + $0xf8] sm:$0xff]
      %s224 = smul.u32 %s17, 256
      %v225 = vlaneseq
      %v226 = vand.u32 %v225, 127
      %v227 = vadd.s32 %v226, 128
      %v228 = vstv %s224
      %v229 = vadd.s32 %v228, %v226
      %v230 = vadd.s32 %v228, %v227
      %231 = vset.pattern.permute.xlu0 0
      %232 = vperm.xlu0 %231, %v192
      %v233 = vpop.permute.xlu0 %232
      %234 = vset.pattern.permute.xlu0 0
      %235 = vperm.xlu0 %234, %v193
      %v236 = vpop.permute.xlu0 %235
      %237 = vset.pattern.permute.xlu0 0
      %238 = vperm.xlu0 %237, %v194
      %v239 = vpop.permute.xlu0 %238
      %240 = vset.pattern.permute.xlu0 0
      %241 = vperm.xlu0 %240, %v195
      %v242 = vpop.permute.xlu0 %241
      %243 = vset.pattern.permute.xlu0 0
      %244 = vperm.xlu0 %243, %v196
      %v245 = vpop.permute.xlu0 %244
      %246 = vset.pattern.permute.xlu0 0
      %247 = vperm.xlu0 %246, %v197
      %v248 = vpop.permute.xlu0 %247
      %249 = vset.pattern.permute.xlu0 0
      %250 = vperm.xlu0 %249, %v198
      %v251 = vpop.permute.xlu0 %250
      %252 = vset.pattern.permute.xlu0 0
      %253 = vperm.xlu0 %252, %v199
      %v254 = vpop.permute.xlu0 %253
      %255 = vset.pattern.permute.xlu0 0
      %256 = vperm.xlu0 %255, %v200
      %v257 = vpop.permute.xlu0 %256
      %258 = vset.pattern.permute.xlu0 0
      %259 = vperm.xlu0 %258, %v201
      %v260 = vpop.permute.xlu0 %259
      %261 = vset.pattern.permute.xlu0 0
      %262 = vperm.xlu0 %261, %v202
      %v263 = vpop.permute.xlu0 %262
      %264 = vset.pattern.permute.xlu0 0
      %265 = vperm.xlu0 %264, %v203
      %v266 = vpop.permute.xlu0 %265
      %267 = vset.pattern.permute.xlu0 0
      %268 = vperm.xlu0 %267, %v204
      %v269 = vpop.permute.xlu0 %268
      %270 = vset.pattern.permute.xlu0 0
      %271 = vperm.xlu0 %270, %v205
      %v272 = vpop.permute.xlu0 %271
      %273 = vset.pattern.permute.xlu0 0
      %274 = vperm.xlu0 %273, %v206
      %v275 = vpop.permute.xlu0 %274
      %276 = vset.pattern.permute.xlu0 0
      %277 = vperm.xlu0 %276, %v207
      %v278 = vpop.permute.xlu0 %277
      %279 = vset.pattern.permute.xlu0 0
      %280 = vperm.xlu0 %279, %v208
      %v281 = vpop.permute.xlu0 %280
      %282 = vset.pattern.permute.xlu0 0
      %283 = vperm.xlu0 %282, %v209
      %v284 = vpop.permute.xlu0 %283
      %285 = vset.pattern.permute.xlu0 0
      %286 = vperm.xlu0 %285, %v210
      %v287 = vpop.permute.xlu0 %286
      %288 = vset.pattern.permute.xlu0 0
      %289 = vperm.xlu0 %288, %v211
      %v290 = vpop.permute.xlu0 %289
      %291 = vset.pattern.permute.xlu0 0
      %292 = vperm.xlu0 %291, %v212
      %v293 = vpop.permute.xlu0 %292
      %294 = vset.pattern.permute.xlu0 0
      %295 = vperm.xlu0 %294, %v213
      %v296 = vpop.permute.xlu0 %295
      %297 = vset.pattern.permute.xlu0 0
      %298 = vperm.xlu0 %297, %v214
      %v299 = vpop.permute.xlu0 %298
      %300 = vset.pattern.permute.xlu0 0
      %301 = vperm.xlu0 %300, %v215
      %v302 = vpop.permute.xlu0 %301
      %303 = vset.pattern.permute.xlu0 0
      %304 = vperm.xlu0 %303, %v216
      %v305 = vpop.permute.xlu0 %304
      %306 = vset.pattern.permute.xlu0 0
      %307 = vperm.xlu0 %306, %v217
      %v308 = vpop.permute.xlu0 %307
      %309 = vset.pattern.permute.xlu0 0
      %310 = vperm.xlu0 %309, %v218
      %v311 = vpop.permute.xlu0 %310
      %312 = vset.pattern.permute.xlu0 0
      %313 = vperm.xlu0 %312, %v219
      %v314 = vpop.permute.xlu0 %313
      %315 = vset.pattern.permute.xlu0 0
      %316 = vperm.xlu0 %315, %v220
      %v317 = vpop.permute.xlu0 %316
      %318 = vset.pattern.permute.xlu0 0
      %319 = vperm.xlu0 %318, %v221
      %v320 = vpop.permute.xlu0 %319
      %321 = vset.pattern.permute.xlu0 0
      %322 = vperm.xlu0 %321, %v222
      %v323 = vpop.permute.xlu0 %322
      %324 = vset.pattern.permute.xlu0 0
      %325 = vperm.xlu0 %324, %v223
      %v326 = vpop.permute.xlu0 %325
      %vm327 = vcmp.eq.s32.totalorder %v233, %v229
      %vm328 = vcmp.eq.s32.totalorder %v233, %v230
      %vm329 = vcmp.eq.s32.totalorder %v236, %v229
      %vm330 = vcmp.eq.s32.totalorder %v236, %v230
      %vm331 = vcmp.eq.s32.totalorder %v239, %v229
      %vm332 = vcmp.eq.s32.totalorder %v239, %v230
      %vm333 = vcmp.eq.s32.totalorder %v242, %v229
      %vm334 = vcmp.eq.s32.totalorder %v242, %v230
      %vm335 = vcmp.eq.s32.totalorder %v245, %v229
      %vm336 = vcmp.eq.s32.totalorder %v245, %v230
      %vm337 = vcmp.eq.s32.totalorder %v248, %v229
      %vm338 = vcmp.eq.s32.totalorder %v248, %v230
      %vm339 = vcmp.eq.s32.totalorder %v251, %v229
      %vm340 = vcmp.eq.s32.totalorder %v251, %v230
      %vm341 = vcmp.eq.s32.totalorder %v254, %v229
      %vm342 = vcmp.eq.s32.totalorder %v254, %v230
      %vm343 = vcmp.eq.s32.totalorder %v257, %v229
      %vm344 = vcmp.eq.s32.totalorder %v257, %v230
      %vm345 = vcmp.eq.s32.totalorder %v260, %v229
      %vm346 = vcmp.eq.s32.totalorder %v260, %v230
      %vm347 = vcmp.eq.s32.totalorder %v263, %v229
      %vm348 = vcmp.eq.s32.totalorder %v263, %v230
      %vm349 = vcmp.eq.s32.totalorder %v266, %v229
      %vm350 = vcmp.eq.s32.totalorder %v266, %v230
      %vm351 = vcmp.eq.s32.totalorder %v269, %v229
      %vm352 = vcmp.eq.s32.totalorder %v269, %v230
      %vm353 = vcmp.eq.s32.totalorder %v272, %v229
      %vm354 = vcmp.eq.s32.totalorder %v272, %v230
      %vm355 = vcmp.eq.s32.totalorder %v275, %v229
      %vm356 = vcmp.eq.s32.totalorder %v275, %v230
      %vm357 = vcmp.eq.s32.totalorder %v278, %v229
      %vm358 = vcmp.eq.s32.totalorder %v278, %v230
      %vm359 = vcmp.eq.s32.totalorder %v281, %v229
      %vm360 = vcmp.eq.s32.totalorder %v281, %v230
      %vm361 = vcmp.eq.s32.totalorder %v284, %v229
      %vm362 = vcmp.eq.s32.totalorder %v284, %v230
      %vm363 = vcmp.eq.s32.totalorder %v287, %v229
      %vm364 = vcmp.eq.s32.totalorder %v287, %v230
      %vm365 = vcmp.eq.s32.totalorder %v290, %v229
      %vm366 = vcmp.eq.s32.totalorder %v290, %v230
      %vm367 = vcmp.eq.s32.totalorder %v293, %v229
      %vm368 = vcmp.eq.s32.totalorder %v293, %v230
      %vm369 = vcmp.eq.s32.totalorder %v296, %v229
      %vm370 = vcmp.eq.s32.totalorder %v296, %v230
      %vm371 = vcmp.eq.s32.totalorder %v299, %v229
      %vm372 = vcmp.eq.s32.totalorder %v299, %v230
      %vm373 = vcmp.eq.s32.totalorder %v302, %v229
      %vm374 = vcmp.eq.s32.totalorder %v302, %v230
      %vm375 = vcmp.eq.s32.totalorder %v305, %v229
      %vm376 = vcmp.eq.s32.totalorder %v305, %v230
      %vm377 = vcmp.eq.s32.totalorder %v308, %v229
      %vm378 = vcmp.eq.s32.totalorder %v308, %v230
      %vm379 = vcmp.eq.s32.totalorder %v311, %v229
      %vm380 = vcmp.eq.s32.totalorder %v311, %v230
      %vm381 = vcmp.eq.s32.totalorder %v314, %v229
      %vm382 = vcmp.eq.s32.totalorder %v314, %v230
      %vm383 = vcmp.eq.s32.totalorder %v317, %v229
      %vm384 = vcmp.eq.s32.totalorder %v317, %v230
      %vm385 = vcmp.eq.s32.totalorder %v320, %v229
      %vm386 = vcmp.eq.s32.totalorder %v320, %v230
      %vm387 = vcmp.eq.s32.totalorder %v323, %v229
      %vm388 = vcmp.eq.s32.totalorder %v323, %v230
      %vm389 = vcmp.eq.s32.totalorder %v326, %v229
      %vm390 = vcmp.eq.s32.totalorder %v326, %v230
      %v391 = vsel %vm327, 1, 0
      %v392 = vsel %vm328, 1, 0
      %v393 = vsel %vm329, 1, 0
      %v394 = vsel %vm330, 1, 0
      %v395 = vsel %vm331, 1, 0
      %v396 = vsel %vm332, 1, 0
      %v397 = vsel %vm333, 1, 0
      %v398 = vsel %vm334, 1, 0
      %v399 = vsel %vm335, 1, 0
      %v400 = vsel %vm336, 1, 0
      %v401 = vsel %vm337, 1, 0
      %v402 = vsel %vm338, 1, 0
      %v403 = vsel %vm339, 1, 0
      %v404 = vsel %vm340, 1, 0
      %v405 = vsel %vm341, 1, 0
      %v406 = vsel %vm342, 1, 0
      %v407 = vsel %vm343, 1, 0
      %v408 = vsel %vm344, 1, 0
      %v409 = vsel %vm345, 1, 0
      %v410 = vsel %vm346, 1, 0
      %v411 = vsel %vm347, 1, 0
      %v412 = vsel %vm348, 1, 0
      %v413 = vsel %vm349, 1, 0
      %v414 = vsel %vm350, 1, 0
      %v415 = vsel %vm351, 1, 0
      %v416 = vsel %vm352, 1, 0
      %v417 = vsel %vm353, 1, 0
      %v418 = vsel %vm354, 1, 0
      %v419 = vsel %vm355, 1, 0
      %v420 = vsel %vm356, 1, 0
      %v421 = vsel %vm357, 1, 0
      %v422 = vsel %vm358, 1, 0
      %v423 = vsel %vm359, 1, 0
      %v424 = vsel %vm360, 1, 0
      %v425 = vsel %vm361, 1, 0
      %v426 = vsel %vm362, 1, 0
      %v427 = vsel %vm363, 1, 0
      %v428 = vsel %vm364, 1, 0
      %v429 = vsel %vm365, 1, 0
      %v430 = vsel %vm366, 1, 0
      %v431 = vsel %vm367, 1, 0
      %v432 = vsel %vm368, 1, 0
      %v433 = vsel %vm369, 1, 0
      %v434 = vsel %vm370, 1, 0
      %v435 = vsel %vm371, 1, 0
      %v436 = vsel %vm372, 1, 0
      %v437 = vsel %vm373, 1, 0
      %v438 = vsel %vm374, 1, 0
      %v439 = vsel %vm375, 1, 0
      %v440 = vsel %vm376, 1, 0
      %v441 = vsel %vm377, 1, 0
      %v442 = vsel %vm378, 1, 0
      %v443 = vsel %vm379, 1, 0
      %v444 = vsel %vm380, 1, 0
      %v445 = vsel %vm381, 1, 0
      %v446 = vsel %vm382, 1, 0
      %v447 = vsel %vm383, 1, 0
      %v448 = vsel %vm384, 1, 0
      %v449 = vsel %vm385, 1, 0
      %v450 = vsel %vm386, 1, 0
      %v451 = vsel %vm387, 1, 0
      %v452 = vsel %vm388, 1, 0
      %v453 = vsel %vm389, 1, 0
      %v454 = vsel %vm390, 1, 0
      %v455 = vcvt.s32.f32 %v391
      %v456 = vcvt.s32.f32 %v392
      %v457 = vcvt.s32.f32 %v393
      %v458 = vcvt.s32.f32 %v394
      %v459 = vcvt.s32.f32 %v395
      %v460 = vcvt.s32.f32 %v396
      %v461 = vcvt.s32.f32 %v397
      %v462 = vcvt.s32.f32 %v398
      %v463 = vcvt.s32.f32 %v399
      %v464 = vcvt.s32.f32 %v400
      %v465 = vcvt.s32.f32 %v401
      %v466 = vcvt.s32.f32 %v402
      %v467 = vcvt.s32.f32 %v403
      %v468 = vcvt.s32.f32 %v404
      %v469 = vcvt.s32.f32 %v405
      %v470 = vcvt.s32.f32 %v406
      %v471 = vcvt.s32.f32 %v407
      %v472 = vcvt.s32.f32 %v408
      %v473 = vcvt.s32.f32 %v409
      %v474 = vcvt.s32.f32 %v410
      %v475 = vcvt.s32.f32 %v411
      %v476 = vcvt.s32.f32 %v412
      %v477 = vcvt.s32.f32 %v413
      %v478 = vcvt.s32.f32 %v414
      %v479 = vcvt.s32.f32 %v415
      %v480 = vcvt.s32.f32 %v416
      %v481 = vcvt.s32.f32 %v417
      %v482 = vcvt.s32.f32 %v418
      %v483 = vcvt.s32.f32 %v419
      %v484 = vcvt.s32.f32 %v420
      %v485 = vcvt.s32.f32 %v421
      %v486 = vcvt.s32.f32 %v422
      %v487 = vcvt.s32.f32 %v423
      %v488 = vcvt.s32.f32 %v424
      %v489 = vcvt.s32.f32 %v425
      %v490 = vcvt.s32.f32 %v426
      %v491 = vcvt.s32.f32 %v427
      %v492 = vcvt.s32.f32 %v428
      %v493 = vcvt.s32.f32 %v429
      %v494 = vcvt.s32.f32 %v430
      %v495 = vcvt.s32.f32 %v431
      %v496 = vcvt.s32.f32 %v432
      %v497 = vcvt.s32.f32 %v433
      %v498 = vcvt.s32.f32 %v434
      %v499 = vcvt.s32.f32 %v435
      %v500 = vcvt.s32.f32 %v436
      %v501 = vcvt.s32.f32 %v437
      %v502 = vcvt.s32.f32 %v438
      %v503 = vcvt.s32.f32 %v439
      %v504 = vcvt.s32.f32 %v440
      %v505 = vcvt.s32.f32 %v441
      %v506 = vcvt.s32.f32 %v442
      %v507 = vcvt.s32.f32 %v443
      %v508 = vcvt.s32.f32 %v444
      %v509 = vcvt.s32.f32 %v445
      %v510 = vcvt.s32.f32 %v446
      %v511 = vcvt.s32.f32 %v447
      %v512 = vcvt.s32.f32 %v448
      %v513 = vcvt.s32.f32 %v449
      %v514 = vcvt.s32.f32 %v450
      %v515 = vcvt.s32.f32 %v451
      %v516 = vcvt.s32.f32 %v452
      %v517 = vcvt.s32.f32 %v453
      %v518 = vcvt.s32.f32 %v454
      %v519 = vpack.c.bf16 %v457, %v455
      %v520 = vpack.c.bf16 %v458, %v456
      %v521 = vpack.c.bf16 %v461, %v459
      %v522 = vpack.c.bf16 %v462, %v460
      %v523 = vpack.c.bf16 %v465, %v463
      %v524 = vpack.c.bf16 %v466, %v464
      %v525 = vpack.c.bf16 %v469, %v467
      %v526 = vpack.c.bf16 %v470, %v468
      %v527 = vpack.c.bf16 %v473, %v471
      %v528 = vpack.c.bf16 %v474, %v472
      %v529 = vpack.c.bf16 %v477, %v475
      %v530 = vpack.c.bf16 %v478, %v476
      %v531 = vpack.c.bf16 %v481, %v479
      %v532 = vpack.c.bf16 %v482, %v480
      %v533 = vpack.c.bf16 %v485, %v483
      %v534 = vpack.c.bf16 %v486, %v484
      %v535 = vpack.c.bf16 %v489, %v487
      %v536 = vpack.c.bf16 %v490, %v488
      %v537 = vpack.c.bf16 %v493, %v491
      %v538 = vpack.c.bf16 %v494, %v492
      %v539 = vpack.c.bf16 %v497, %v495
      %v540 = vpack.c.bf16 %v498, %v496
      %v541 = vpack.c.bf16 %v501, %v499
      %v542 = vpack.c.bf16 %v502, %v500
      %v543 = vpack.c.bf16 %v505, %v503
      %v544 = vpack.c.bf16 %v506, %v504
      %v545 = vpack.c.bf16 %v509, %v507
      %v546 = vpack.c.bf16 %v510, %v508
      %v547 = vpack.c.bf16 %v513, %v511
      %v548 = vpack.c.bf16 %v514, %v512
      %v549 = vpack.c.bf16 %v517, %v515
      %v550 = vpack.c.bf16 %v518, %v516
      %v551 = vld [vmem:[%s173] sm:$0xf]
      %v552 = vld [vmem:[#allocation2] sm:$0xff]
      %v555 = vunpack.c.l.s4 1983009808
      %v556 = vunpack.c.0.s8 %v555
      %v557 = vlaneseq
      %v558 = vshrl.u32 %v557, 7
      %v559 = vsub.s32 %v556, %v558
      %v560 = vrot.slane %v551, %v559
      %v561 = vcombine.high %v560, %v560
      %564 = vmatprep.subr.bf16.mxu0 %v520
      %565 = vmatpush1.bf16.msra.mxu0 %v519
      %566 = vmatprep.subr.bf16.mxu0 %v522
      %567 = vmatpush1.bf16.msra.mxu0 %v521
      %568 = vmatprep.subr.bf16.mxu0 %v524
      %569 = vmatpush1.bf16.msra.mxu0 %v523
      %570 = vmatprep.subr.bf16.mxu0 %v526
      %571 = vmatpush1.bf16.msra.mxu0 %v525
      %572 = vmatprep.subr.bf16.mxu0 %v528
      %573 = vmatpush1.bf16.msra.mxu0 %v527
      %574 = vmatprep.subr.bf16.mxu0 %v530
      %575 = vmatpush1.bf16.msra.mxu0 %v529
      %576 = vmatprep.subr.bf16.mxu0 %v532
      %577 = vmatpush1.bf16.msra.mxu0 %v531
      %578 = vmatprep.subr.bf16.mxu0 %v534
      %579 = vmatpush1.bf16.msra.mxu0 %v533
      %580 = vmatprep.subr.bf16.mxu0 %v536
      %581 = vmatpush1.bf16.msra.mxu0 %v535
      %582 = vmatprep.subr.bf16.mxu0 %v538
      %583 = vmatpush1.bf16.msra.mxu0 %v537
      %584 = vmatprep.subr.bf16.mxu0 %v540
      %585 = vmatpush1.bf16.msra.mxu0 %v539
      %586 = vmatprep.subr.bf16.mxu0 %v542
      %587 = vmatpush1.bf16.msra.mxu0 %v541
      %588 = vmatprep.subr.bf16.mxu0 %v544
      %589 = vmatpush1.bf16.msra.mxu0 %v543
      %590 = vmatprep.subr.bf16.mxu0 %v546
      %591 = vmatpush1.bf16.msra.mxu0 %v545
      %592 = vmatprep.subr.bf16.mxu0 %v548
      %593 = vmatpush1.bf16.msra.mxu0 %v547
      %594 = vmatprep.subr.bf16.mxu0 %v550
      %595 = vmatpush1.bf16.msra.mxu0 %v549
      %596 = vmatprep.mubr.bf16.mxu0 %v561
      %597 = vmatmul.mubr.bf16.gmra.mrb[0].mxu0 %v560
      %v598 = vpop.f32.mrb[0].mxu0
      %v599 = vadd.f32 0.0, %v598
      %v600 = vpop.f32.mrb[0].mxu0
      %v601 = vadd.f32 0.0, %v600
      %v602 = vpop.f32.mrb[0].mxu0
      %v603 = vpop.f32.mrb[0].mxu0
      %604 = vdwg.mxu0
      %v607 = vcombine.low %v599, %v601
      %v609 = vadd.f32 %v552, %v607
      %610 = vst [vmem:[#allocation2] sm:$0xff] %v609
      %v611 = vld [vmem:[#allocation3] sm:$0x3]
      %612 = vmatprep.subr.bf16.mxu0 %v520
      %613 = vmatpush1.bf16.msra.mxu0 %v519
      %614 = vmatprep.subr.bf16.mxu0 %v522
      %615 = vmatpush1.bf16.msra.mxu0 %v521
      %616 = vmatprep.subr.bf16.mxu0 %v524
      %617 = vmatpush1.bf16.msra.mxu0 %v523
      %618 = vmatprep.subr.bf16.mxu0 %v526
      %619 = vmatpush1.bf16.msra.mxu0 %v525
      %620 = vmatprep.subr.bf16.mxu0 %v528
      %621 = vmatpush1.bf16.msra.mxu0 %v527
      %622 = vmatprep.subr.bf16.mxu0 %v530
      %623 = vmatpush1.bf16.msra.mxu0 %v529
      %624 = vmatprep.subr.bf16.mxu0 %v532
      %625 = vmatpush1.bf16.msra.mxu0 %v531
      %626 = vmatprep.subr.bf16.mxu0 %v534
      %627 = vmatpush1.bf16.msra.mxu0 %v533
      %628 = vmatprep.subr.bf16.mxu0 %v536
      %629 = vmatpush1.bf16.msra.mxu0 %v535
      %630 = vmatprep.subr.bf16.mxu0 %v538
      %631 = vmatpush1.bf16.msra.mxu0 %v537
      %632 = vmatprep.subr.bf16.mxu0 %v540
      %633 = vmatpush1.bf16.msra.mxu0 %v539
      %634 = vmatprep.subr.bf16.mxu0 %v542
      %635 = vmatpush1.bf16.msra.mxu0 %v541
      %636 = vmatprep.subr.bf16.mxu0 %v544
      %637 = vmatpush1.bf16.msra.mxu0 %v543
      %638 = vmatprep.subr.bf16.mxu0 %v546
      %639 = vmatpush1.bf16.msra.mxu0 %v545
      %640 = vmatprep.subr.bf16.mxu0 %v548
      %641 = vmatpush1.bf16.msra.mxu0 %v547
      %642 = vmatprep.subr.bf16.mxu0 %v550
      %643 = vmatpush1.bf16.msra.mxu0 %v549
      %644 = vmatprep.mubr.bf16.mxu0 1065369472
      %645 = vmatmul.mubr.bf16.gmra.mrb[0].mxu0 1065369472
      %v646 = vpop.f32.mrb[0].mxu0
      %v647 = vadd.f32 0.0, %v646
      %v648 = vpop.f32.mrb[0].mxu0
      %v649 = vadd.f32 0.0, %v648
      %v650 = vpop.f32.mrb[0].mxu0
      %v651 = vpop.f32.mrb[0].mxu0
      %652 = vdwg.mxu0
      %v655 = vcombine.low %v647, %v649
      %v657 = vunpack.c.l.s4 1966171168
      %v658 = vunpack.c.0.s8 %v657
      %v659 = vlaneseq
      %v660 = vshrl.u32 %v659, 7
      %v661 = vsub.s32 %v658, %v660
      %v662 = vrot.slane %v655, %v661
      %v664 = vunpack.c.l.s4 1966171168
      %v665 = vunpack.c.0.s8 %v664
      %v666 = vlaneseq
      %v667 = vshrl.u32 %v666, 7
      %v668 = vsub.s32 %v665, %v667
      %v669 = vrot.slane %v662, %v668
      %v671 = vadd.f32 %v611, %v669
      %v672 = vlaneseq
      %vm673 = vcmp.ge.s32.totalorder %v672, 0
      %vm674 = vcmp.lt.s32.totalorder %v672, 256
      %vm675 = vmand %vm673, %vm674
      %676 = vst.msk [vmem:[#allocation3] sm:$0x3] %vm675, %v671
      // Predicated region
      $region33: #{rpvnet_forward.8} parent=27 // pred_check
        %p677 = pneg %p182
      $region34: #{rpvnet_forward.8} parent=27 // pred_check_branch
        %679 = sbr.rel (%p677) target = $region36
      $region35: #{rpvnet_forward.8} parent=27 // pred_region
        %v680 = vld [vmem:[#allocation2] sm:$0xff]
        %v681 = vld [vmem:[#allocation3] sm:$0x3]
        %v682 = vmax.f32 %v681, 1.0
        %v684 = vlaneseq
        %v685 = vshrl.u32 %v684, 7
        %v686 = vsub.s32 0, %v685
        %v687 = vrot.slane %v682, %v686
        %v688 = vlaneseq
        %v689 = vshrl.u32 %v688, 7
        %v690 = vsub.s32 1, %v689
        %v691 = vrot.slane %v682, %v690
        %v692 = vcombine.low %v687, %v691
        %v694 = vrcp.pop %v692
        %v695 = vmul.f32 %v680, %v694
        %v697 = vcombine.high %v695, %v695
        %v699 = vpack.c.bf16 %v695, %v695
        %v700 = vpack.c.bf16 %v697, %v697
        %v703 = vcombine.low %v699, %v700
        %v705 = vunpack.c.l.s4 1983009808
        %v706 = vunpack.c.0.s8 %v705
        %v707 = vlaneseq
        %v708 = vshrl.u32 %v707, 7
        %v709 = vsub.s32 %v706, %v708
        %v710 = vrot.slane %v703, %v709
        %712 = vst [vmem:[%s179] sm:$0xf] %v710
      $region36: #{rpvnet_forward.8} parent=27 // pred_fallthru
        _
      %s713 = smul.u32 2, %s17
      %p714 = scmp.lt.s32.totalorder %s713, 3
      %s715 = scalar_select %p714, %s713, 3
      %s716 = smul.addr %s715, 2
      %s717 = scalar_lea.vmem %s2, %s716
      // Predicated region
      $region37: #{rpvnet_forward.8} parent=27 // pred_check
        %p718 = pneg %p95
      $region38: #{rpvnet_forward.8} parent=27 // pred_check_branch
        %720 = sbr.rel (%p718) target = $region40
      $region39: #{rpvnet_forward.8} parent=27 // pred_region
        %s721 = smul.u32 2, %s17
      $region40: #{rpvnet_forward.8} parent=27 // pred_fallthru
        _
    $region28: #{rpvnet_forward.8} parent=5 // pred_fallthru
      _
    %p722 = scmp.le.s32.totalorder 2, %s8
    // Predicated region
    $region41: #{rpvnet_forward.8} parent=5 // pred_check
      %p723 = pneg %p722
    $region42: #{rpvnet_forward.8} parent=5 // pred_check_branch
      %725 = sbr.rel (%p723) target = $region44
    $region43: #{rpvnet_forward.8} parent=5 // pred_region
      %s726 = ssub.s32 %s8, 2
      // Predicated region
      $region45: #{rpvnet_forward.8} parent=43 // pred_check
        %p727 = pneg %p101
      $region46: #{rpvnet_forward.8} parent=43 // pred_check_branch
        %729 = sbr.rel (%p727) target = $region48
      $region47: #{rpvnet_forward.8} parent=43 // pred_region
        %s730 = smul.u32 2, %s19
        %p731 = scmp.lt.s32.totalorder %s730, 3
        %s732 = scalar_select %p731, %s730, 3
        %s733 = smul.addr %s732, 2
        %s734 = scalar_lea.vmem %s2, %s733
      $region48: #{rpvnet_forward.8} parent=43 // pred_fallthru
        _
    $region44: #{rpvnet_forward.8} parent=5 // pred_fallthru
      _
  $region6: #{rpvnet_forward.8} parent=0 // loop_footer
    %s12 = sadd.s32 1, %s8
  $region7: #{rpvnet_forward.8} parent=0 // loop_footer_branch
    %7 = sbr.rel target = $region3
  $region8: #{rpvnet_forward.8} parent=0 // loop_exit
    _

// kernel: rpvnet_forward.9
$region0: #{rpvnet_forward.9}
  #allocation0 [shape = 'u32[]', space=smem, size = 0x4, offset = 0x4, fixed_abs, tag = 'smem constant byte address 0x4 - core index']
  #allocation1 [shape = 'u32[144,128]{1,0:T(1,128)}', space=vmem, size = 0x12000, scoped, tag = 'internal scratch']
  %s0 = inlined_call_operand.vmem [shape: bf16[2,256], index: 0, kind: input, shape index: {}]
  %s1 = inlined_call_operand.vmem [shape: bf16[4,256], index: 1, kind: input, shape index: {}]
  %s2 = inlined_call_operand.vmem [shape: bf16[4,256], index: 2, kind: input, shape index: {}]
  %s3 = inlined_call_operand.vmem [shape: bf16[8,2], index: 3, kind: input, shape index: {}]
  %s4 = inlined_call_operand.vmem [shape: bf16[8,4], index: 4, kind: input, shape index: {}]
  %s5 = inlined_call_operand.vmem [shape: bf16[8,4], index: 5, kind: input, shape index: {}]
  %s6 = inlined_call_operand.vmem [shape: f32[24,1], index: 6, kind: input, shape index: {}]
  %s7 = inlined_call_operand.vmem [shape: f32[3,8], index: 7, kind: input, shape index: {}]
  %s8 = inlined_call_operand.vmem [shape: f32[3,8], index: 8, kind: input, shape index: {}]
  %s9 = inlined_call_operand.vmem [shape: f32[3,8], index: 9, kind: input, shape index: {}]
  %s10 = inlined_call_operand.vmem [shape: f32[3,1], index: 10, kind: input, shape index: {}]
  %s11 = inlined_call_operand.vmem [shape: bf16[8,256], index: 11, kind: output, shape index: {}]
  %s12 = sld [smem:[#allocation0]]
  $region77: #{rpvnet_forward.9} parent=0
    _
  %s14 = ssub.s32 1, %s12
  %s15 = scalar_select 0, %s14, %s12
  loop: start=0, step=1, limit=4
  $region2: #{rpvnet_forward.9} parent=0 // loop_pre_header
    _
  $region3: #{rpvnet_forward.9} parent=0 // loop_header
    %s17 = sphi 0, %s21
    %p18 = scmp.ge.s32.totalorder %s17, 4
    %s27 = sphi 0, %s29
    %s30 = sphi 0, %s27
    %s31 = sphi 0, %s30
    %s47 = sphi 0, %s31
    %s53 = sphi 0, %s55
    %s56 = sphi 0, %s53
    %s57 = sphi 0, %s56
    %s73 = sphi 0, %s57
    %s79 = sphi 0, %s81
    %s82 = sphi 0, %s79
    %s83 = sphi 0, %s82
    %s99 = sphi 0, %s83
    %s103 = sphi 0, %s103
    %s105 = sphi 0, %s103
    %s106 = sphi 0, %s105
    %s120 = sphi 0, %s106
    %s124 = sphi 0, %s124
    %s126 = sphi 0, %s124
    %s127 = sphi 0, %s126
    %s141 = sphi 0, %s127
    %s145 = sphi 0, %s145
    %s147 = sphi 0, %s145
    %s148 = sphi 0, %s147
    %s162 = sphi 0, %s148
    %s166 = sphi 0, %s166
    %s168 = sphi 0, %s166
    %s169 = sphi 0, %s168
    %s183 = sphi 0, %s169
    %s187 = sphi 0, %s187
    %s189 = sphi 0, %s187
    %s190 = sphi 0, %s189
    %s204 = sphi 0, %s190
    %s208 = sphi 0, %s208
    %s210 = sphi 0, %s208
    %s211 = sphi 0, %s210
    %s225 = sphi 0, %s211
    %s229 = sphi 0, %s229
    %s231 = sphi 0, %s229
    %s232 = sphi 0, %s231
    %s246 = sphi 0, %s232
    %s250 = sphi 0, %s250
    %s252 = sphi 0, %s250
    %s253 = sphi 0, %s252
    %s267 = sphi 0, %s253
    %s273 = sphi 0, %s275
    %s276 = sphi 0, %s273
    %s277 = sphi 0, %s276
    %s293 = sphi 0, %s277
  $region4: #{rpvnet_forward.9} parent=0 // loop_header_branch
    %20 = sbr.rel (%p18) target = $region8
  $region5: #{rpvnet_forward.9} parent=0 // loop_body
    %s22 = ssub.s32 %s17, 1
    %s23 = ssub.s32 %s17, 2
    %s24 = sadd.s32 %s17, 1
    %s25 = ssub.s32 %s17, %s24
    %p26 = scmp.eq.s32.totalorder %s25, 0
    %s28 = sadd.s32 %s27, 1
    %s29 = scalar_select %p26, %s27, %s28
    %p32 = pneg %p26
    %p33 = scmp.eq.s32.totalorder %s17, 1
    %p34 = por %p32, %p33
    %p35 = scmp.ne.s32.totalorder %s27, %s30
    %p36 = scmp.eq.s32.totalorder %s17, 0
    %p37 = por %p35, %p36
    %p38 = scmp.ne.s32.totalorder %s27, %s30
    %p39 = scmp.eq.s32.totalorder %s22, 1
    %p40 = por %p38, %p39
    %p41 = scmp.ne.s32.totalorder %s30, %s31
    %p42 = scmp.eq.s32.totalorder %s22, 0
    %p43 = por %p41, %p42
    %p44 = scmp.ne.s32.totalorder %s30, %s31
    %p45 = scmp.eq.s32.totalorder %s23, 1
    %p46 = por %p44, %p45
    %p48 = scmp.ne.s32.totalorder %s31, %s47
    %p49 = scmp.eq.s32.totalorder %s23, 0
    %p50 = por %p48, %p49
    %s51 = ssub.s32 %s17, %s24
    %p52 = scmp.eq.s32.totalorder %s51, 0
    %s54 = sadd.s32 %s53, 1
    %s55 = scalar_select %p52, %s53, %s54
    %p58 = pneg %p52
    %p59 = scmp.eq.s32.totalorder %s17, 1
    %p60 = por %p58, %p59
    %p61 = scmp.ne.s32.totalorder %s53, %s56
    %p62 = scmp.eq.s32.totalorder %s17, 0
    %p63 = por %p61, %p62
    %p64 = scmp.ne.s32.totalorder %s53, %s56
    %p65 = scmp.eq.s32.totalorder %s22, 1
    %p66 = por %p64, %p65
    %p67 = scmp.ne.s32.totalorder %s56, %s57
    %p68 = scmp.eq.s32.totalorder %s22, 0
    %p69 = por %p67, %p68
    %p70 = scmp.ne.s32.totalorder %s56, %s57
    %p71 = scmp.eq.s32.totalorder %s23, 1
    %p72 = por %p70, %p71
    %p74 = scmp.ne.s32.totalorder %s57, %s73
    %p75 = scmp.eq.s32.totalorder %s23, 0
    %p76 = por %p74, %p75
    %s77 = ssub.s32 %s17, %s24
    %p78 = scmp.eq.s32.totalorder %s77, 0
    %s80 = sadd.s32 %s79, 1
    %s81 = scalar_select %p78, %s79, %s80
    %p84 = pneg %p78
    %p85 = scmp.eq.s32.totalorder %s17, 1
    %p86 = por %p84, %p85
    %p87 = scmp.ne.s32.totalorder %s79, %s82
    %p88 = scmp.eq.s32.totalorder %s17, 0
    %p89 = por %p87, %p88
    %p90 = scmp.ne.s32.totalorder %s79, %s82
    %p91 = scmp.eq.s32.totalorder %s22, 1
    %p92 = por %p90, %p91
    %p93 = scmp.ne.s32.totalorder %s82, %s83
    %p94 = scmp.eq.s32.totalorder %s22, 0
    %p95 = por %p93, %p94
    %p96 = scmp.ne.s32.totalorder %s82, %s83
    %p97 = scmp.eq.s32.totalorder %s23, 1
    %p98 = por %p96, %p97
    %p100 = scmp.ne.s32.totalorder %s83, %s99
    %p101 = scmp.eq.s32.totalorder %s23, 0
    %p102 = por %p100, %p101
    %s104 = sadd.s32 %s103, 1
    %p107 = scmp.eq.s32.totalorder %s17, 1
    %p108 = scmp.ne.s32.totalorder %s103, %s105
    %p109 = scmp.eq.s32.totalorder %s17, 0
    %p110 = por %p108, %p109
    %p111 = scmp.ne.s32.totalorder %s103, %s105
    %p112 = scmp.eq.s32.totalorder %s22, 1
    %p113 = por %p111, %p112
    %p114 = scmp.ne.s32.totalorder %s105, %s106
    %p115 = scmp.eq.s32.totalorder %s22, 0
    %p116 = por %p114, %p115
    %p117 = scmp.ne.s32.totalorder %s105, %s106
    %p118 = scmp.eq.s32.totalorder %s23, 1
    %p119 = por %p117, %p118
    %p121 = scmp.ne.s32.totalorder %s106, %s120
    %p122 = scmp.eq.s32.totalorder %s23, 0
    %p123 = por %p121, %p122
    %s125 = sadd.s32 %s124, 1
    %p128 = scmp.eq.s32.totalorder %s17, 1
    %p129 = scmp.ne.s32.totalorder %s124, %s126
    %p130 = scmp.eq.s32.totalorder %s17, 0
    %p131 = por %p129, %p130
    %p132 = scmp.ne.s32.totalorder %s124, %s126
    %p133 = scmp.eq.s32.totalorder %s22, 1
    %p134 = por %p132, %p133
    %p135 = scmp.ne.s32.totalorder %s126, %s127
    %p136 = scmp.eq.s32.totalorder %s22, 0
    %p137 = por %p135, %p136
    %p138 = scmp.ne.s32.totalorder %s126, %s127
    %p139 = scmp.eq.s32.totalorder %s23, 1
    %p140 = por %p138, %p139
    %p142 = scmp.ne.s32.totalorder %s127, %s141
    %p143 = scmp.eq.s32.totalorder %s23, 0
    %p144 = por %p142, %p143
    %s146 = sadd.s32 %s145, 1
    %p149 = scmp.eq.s32.totalorder %s17, 1
    %p150 = scmp.ne.s32.totalorder %s145, %s147
    %p151 = scmp.eq.s32.totalorder %s17, 0
    %p152 = por %p150, %p151
    %p153 = scmp.ne.s32.totalorder %s145, %s147
    %p154 = scmp.eq.s32.totalorder %s22, 1
    %p155 = por %p153, %p154
    %p156 = scmp.ne.s32.totalorder %s147, %s148
    %p157 = scmp.eq.s32.totalorder %s22, 0
    %p158 = por %p156, %p157
    %p159 = scmp.ne.s32.totalorder %s147, %s148
    %p160 = scmp.eq.s32.totalorder %s23, 1
    %p161 = por %p159, %p160
    %p163 = scmp.ne.s32.totalorder %s148, %s162
    %p164 = scmp.eq.s32.totalorder %s23, 0
    %p165 = por %p163, %p164
    %s167 = sadd.s32 %s166, 1
    %p170 = scmp.eq.s32.totalorder %s17, 1
    %p171 = scmp.ne.s32.totalorder %s166, %s168
    %p172 = scmp.eq.s32.totalorder %s17, 0
    %p173 = por %p171, %p172
    %p174 = scmp.ne.s32.totalorder %s166, %s168
    %p175 = scmp.eq.s32.totalorder %s22, 1
    %p176 = por %p174, %p175
    %p177 = scmp.ne.s32.totalorder %s168, %s169
    %p178 = scmp.eq.s32.totalorder %s22, 0
    %p179 = por %p177, %p178
    %p180 = scmp.ne.s32.totalorder %s168, %s169
    %p181 = scmp.eq.s32.totalorder %s23, 1
    %p182 = por %p180, %p181
    %p184 = scmp.ne.s32.totalorder %s169, %s183
    %p185 = scmp.eq.s32.totalorder %s23, 0
    %p186 = por %p184, %p185
    %s188 = sadd.s32 %s187, 1
    %p191 = scmp.eq.s32.totalorder %s17, 1
    %p192 = scmp.ne.s32.totalorder %s187, %s189
    %p193 = scmp.eq.s32.totalorder %s17, 0
    %p194 = por %p192, %p193
    %p195 = scmp.ne.s32.totalorder %s187, %s189
    %p196 = scmp.eq.s32.totalorder %s22, 1
    %p197 = por %p195, %p196
    %p198 = scmp.ne.s32.totalorder %s189, %s190
    %p199 = scmp.eq.s32.totalorder %s22, 0
    %p200 = por %p198, %p199
    %p201 = scmp.ne.s32.totalorder %s189, %s190
    %p202 = scmp.eq.s32.totalorder %s23, 1
    %p203 = por %p201, %p202
    %p205 = scmp.ne.s32.totalorder %s190, %s204
    %p206 = scmp.eq.s32.totalorder %s23, 0
    %p207 = por %p205, %p206
    %s209 = sadd.s32 %s208, 1
    %p212 = scmp.eq.s32.totalorder %s17, 1
    %p213 = scmp.ne.s32.totalorder %s208, %s210
    %p214 = scmp.eq.s32.totalorder %s17, 0
    %p215 = por %p213, %p214
    %p216 = scmp.ne.s32.totalorder %s208, %s210
    %p217 = scmp.eq.s32.totalorder %s22, 1
    %p218 = por %p216, %p217
    %p219 = scmp.ne.s32.totalorder %s210, %s211
    %p220 = scmp.eq.s32.totalorder %s22, 0
    %p221 = por %p219, %p220
    %p222 = scmp.ne.s32.totalorder %s210, %s211
    %p223 = scmp.eq.s32.totalorder %s23, 1
    %p224 = por %p222, %p223
    %p226 = scmp.ne.s32.totalorder %s211, %s225
    %p227 = scmp.eq.s32.totalorder %s23, 0
    %p228 = por %p226, %p227
    %s230 = sadd.s32 %s229, 1
    %p233 = scmp.eq.s32.totalorder %s17, 1
    %p234 = scmp.ne.s32.totalorder %s229, %s231
    %p235 = scmp.eq.s32.totalorder %s17, 0
    %p236 = por %p234, %p235
    %p237 = scmp.ne.s32.totalorder %s229, %s231
    %p238 = scmp.eq.s32.totalorder %s22, 1
    %p239 = por %p237, %p238
    %p240 = scmp.ne.s32.totalorder %s231, %s232
    %p241 = scmp.eq.s32.totalorder %s22, 0
    %p242 = por %p240, %p241
    %p243 = scmp.ne.s32.totalorder %s231, %s232
    %p244 = scmp.eq.s32.totalorder %s23, 1
    %p245 = por %p243, %p244
    %p247 = scmp.ne.s32.totalorder %s232, %s246
    %p248 = scmp.eq.s32.totalorder %s23, 0
    %p249 = por %p247, %p248
    %s251 = sadd.s32 %s250, 1
    %p254 = scmp.eq.s32.totalorder %s17, 1
    %p255 = scmp.ne.s32.totalorder %s250, %s252
    %p256 = scmp.eq.s32.totalorder %s17, 0
    %p257 = por %p255, %p256
    %p258 = scmp.ne.s32.totalorder %s250, %s252
    %p259 = scmp.eq.s32.totalorder %s22, 1
    %p260 = por %p258, %p259
    %p261 = scmp.ne.s32.totalorder %s252, %s253
    %p262 = scmp.eq.s32.totalorder %s22, 0
    %p263 = por %p261, %p262
    %p264 = scmp.ne.s32.totalorder %s252, %s253
    %p265 = scmp.eq.s32.totalorder %s23, 1
    %p266 = por %p264, %p265
    %p268 = scmp.ne.s32.totalorder %s253, %s267
    %p269 = scmp.eq.s32.totalorder %s23, 0
    %p270 = por %p268, %p269
    %s271 = ssub.s32 %s17, %s24
    %p272 = scmp.eq.s32.totalorder %s271, 0
    %s274 = sadd.s32 %s273, 1
    %s275 = scalar_select %p272, %s273, %s274
    %p278 = pneg %p272
    %p279 = scmp.eq.s32.totalorder %s17, 1
    %p280 = por %p278, %p279
    %p281 = scmp.ne.s32.totalorder %s273, %s276
    %p282 = scmp.eq.s32.totalorder %s17, 0
    %p283 = por %p281, %p282
    %p284 = scmp.ne.s32.totalorder %s273, %s276
    %p285 = scmp.eq.s32.totalorder %s22, 1
    %p286 = por %p284, %p285
    %p287 = scmp.ne.s32.totalorder %s276, %s277
    %p288 = scmp.eq.s32.totalorder %s22, 0
    %p289 = por %p287, %p288
    %p290 = scmp.ne.s32.totalorder %s276, %s277
    %p291 = scmp.eq.s32.totalorder %s23, 1
    %p292 = por %p290, %p291
    %p294 = scmp.ne.s32.totalorder %s277, %s293
    %p295 = scmp.eq.s32.totalorder %s23, 0
    %p296 = por %p294, %p295
    %p297 = scmp.le.s32.totalorder 1, %s17
    %p298 = scmp.lt.s32.totalorder %s17, 3
    %p299 = pnand %p297, %p298
    %p300 = pneg %p299
    // Predicated region
    $region9: #{rpvnet_forward.9} parent=5 // pred_check
      _
    $region10: #{rpvnet_forward.9} parent=5 // pred_check_branch
      %302 = sbr.rel (%p299) target = $region12
    $region11: #{rpvnet_forward.9} parent=5 // pred_region
      %s303 = ssub.s32 %s17, 1
      // Predicated region
      $region13: #{rpvnet_forward.9} parent=11 // pred_check
        %p304 = pneg %p116
      $region14: #{rpvnet_forward.9} parent=11 // pred_check_branch
        %306 = sbr.rel (%p304) target = $region16
      $region15: #{rpvnet_forward.9} parent=11 // pred_region
        _
      $region16: #{rpvnet_forward.9} parent=11 // pred_fallthru
        _
      // Predicated region
      $region17: #{rpvnet_forward.9} parent=11 // pred_check
        %p307 = pneg %p137
      $region18: #{rpvnet_forward.9} parent=11 // pred_check_branch
        %309 = sbr.rel (%p307) target = $region20
      $region19: #{rpvnet_forward.9} parent=11 // pred_region
        _
      $region20: #{rpvnet_forward.9} parent=11 // pred_fallthru
        _
      // Predicated region
      $region21: #{rpvnet_forward.9} parent=11 // pred_check
        %p310 = pneg %p158
      $region22: #{rpvnet_forward.9} parent=11 // pred_check_branch
        %312 = sbr.rel (%p310) target = $region24
      $region23: #{rpvnet_forward.9} parent=11 // pred_region
        _
      $region24: #{rpvnet_forward.9} parent=11 // pred_fallthru
        _
      // Predicated region
      $region25: #{rpvnet_forward.9} parent=11 // pred_check
        %p313 = pneg %p179
      $region26: #{rpvnet_forward.9} parent=11 // pred_check_branch
        %315 = sbr.rel (%p313) target = $region28
      $region27: #{rpvnet_forward.9} parent=11 // pred_region
        _
      $region28: #{rpvnet_forward.9} parent=11 // pred_fallthru
        _
      // Predicated region
      $region29: #{rpvnet_forward.9} parent=11 // pred_check
        %p316 = pneg %p200
      $region30: #{rpvnet_forward.9} parent=11 // pred_check_branch
        %318 = sbr.rel (%p316) target = $region32
      $region31: #{rpvnet_forward.9} parent=11 // pred_region
        _
      $region32: #{rpvnet_forward.9} parent=11 // pred_fallthru
        _
      // Predicated region
      $region33: #{rpvnet_forward.9} parent=11 // pred_check
        %p319 = pneg %p221
      $region34: #{rpvnet_forward.9} parent=11 // pred_check_branch
        %321 = sbr.rel (%p319) target = $region36
      $region35: #{rpvnet_forward.9} parent=11 // pred_region
        _
      $region36: #{rpvnet_forward.9} parent=11 // pred_fallthru
        _
      // Predicated region
      $region37: #{rpvnet_forward.9} parent=11 // pred_check
        %p322 = pneg %p242
      $region38: #{rpvnet_forward.9} parent=11 // pred_check_branch
        %324 = sbr.rel (%p322) target = $region40
      $region39: #{rpvnet_forward.9} parent=11 // pred_region
        _
      $region40: #{rpvnet_forward.9} parent=11 // pred_fallthru
        _
      // Predicated region
      $region41: #{rpvnet_forward.9} parent=11 // pred_check
        %p325 = pneg %p263
      $region42: #{rpvnet_forward.9} parent=11 // pred_check_branch
        %327 = sbr.rel (%p325) target = $region44
      $region43: #{rpvnet_forward.9} parent=11 // pred_region
        _
      $region44: #{rpvnet_forward.9} parent=11 // pred_fallthru
        _
    $region12: #{rpvnet_forward.9} parent=5 // pred_fallthru
      _
    %p328 = scmp.lt.s32.totalorder %s17, 2
    // Predicated region
    $region45: #{rpvnet_forward.9} parent=5 // pred_check
      %p329 = pneg %p328
    $region46: #{rpvnet_forward.9} parent=5 // pred_check_branch
      %331 = sbr.rel (%p329) target = $region48
    $region47: #{rpvnet_forward.9} parent=5 // pred_region
      // Predicated region
      $region49: #{rpvnet_forward.9} parent=47 // pred_check
        %p332 = pneg %p37
      $region50: #{rpvnet_forward.9} parent=47 // pred_check_branch
        %334 = sbr.rel (%p332) target = $region52
      $region51: #{rpvnet_forward.9} parent=47 // pred_region
        %p335 = scmp.lt.s32.totalorder %s17, 1
        %s336 = scalar_select %p335, %s17, 1
        %s337 = scalar_lea.vmem %s0, %s336
      $region52: #{rpvnet_forward.9} parent=47 // pred_fallthru
        _
      // Predicated region
      $region53: #{rpvnet_forward.9} parent=47 // pred_check
        %p338 = pneg %p63
      $region54: #{rpvnet_forward.9} parent=47 // pred_check_branch
        %340 = sbr.rel (%p338) target = $region56
      $region55: #{rpvnet_forward.9} parent=47 // pred_region
        %p341 = scmp.lt.s32.totalorder %s17, 1
        %s342 = scalar_select %p341, %s17, 1
        %s343 = smul.addr %s342, 2
        %s344 = scalar_lea.vmem %s1, %s343
      $region56: #{rpvnet_forward.9} parent=47 // pred_fallthru
        _
      // Predicated region
      $region57: #{rpvnet_forward.9} parent=47 // pred_check
        %p345 = pneg %p89
      $region58: #{rpvnet_forward.9} parent=47 // pred_check_branch
        %347 = sbr.rel (%p345) target = $region60
      $region59: #{rpvnet_forward.9} parent=47 // pred_region
        %p348 = scmp.lt.s32.totalorder %s17, 1
        %s349 = scalar_select %p348, %s17, 1
        %s350 = smul.addr %s349, 2
        %s351 = scalar_lea.vmem %s2, %s350
      $region60: #{rpvnet_forward.9} parent=47 // pred_fallthru
        _
    $region48: #{rpvnet_forward.9} parent=5 // pred_fallthru
      _
    %p352 = scmp.le.s32.totalorder 1, %s17
    %p353 = scmp.lt.s32.totalorder %s17, 3
    %p354 = pnand %p352, %p353
    %p355 = pneg %p354
    // Predicated region
    $region61: #{rpvnet_forward.9} parent=5 // pred_check
      _
    $region62: #{rpvnet_forward.9} parent=5 // pred_check_branch
      %357 = sbr.rel (%p354) target = $region64
    $region63: #{rpvnet_forward.9} parent=5 // pred_region
      %s358 = ssub.s32 %s17, 1
      %p359 = scmp.lt.s32.totalorder %s22, 1
      %s360 = scalar_select %p359, %s22, 1
      %s361 = scalar_lea.vmem %s0, %s360
      %p362 = pneg %p43
      %p363 = pneg %p40
      %p364 = scmp.lt.s32.totalorder %s22, 1
      %s365 = scalar_select %p364, %s22, 1
      %s366 = smul.addr %s365, 2
      %s367 = scalar_lea.vmem %s1, %s366
      %p368 = pneg %p69
      %p369 = pneg %p66
      %p370 = scmp.lt.s32.totalorder %s22, 1
      %s371 = scalar_select %p370, %s22, 1
      %s372 = smul.addr %s371, 2
      %s373 = scalar_lea.vmem %s2, %s372
      %p374 = pneg %p95
      %p375 = pneg %p92
      %p376 = pneg %p116
      %p377 = pneg %p113
      %p378 = pneg %p137
      %p379 = pneg %p134
      %p380 = pneg %p158
      %p381 = pneg %p155
      %p382 = pneg %p179
      %p383 = pneg %p176
      %p384 = pneg %p200
      %p385 = pneg %p197
      %p386 = pneg %p221
      %p387 = pneg %p218
      %p388 = pneg %p242
      %p389 = pneg %p239
      %p390 = pneg %p263
      %p391 = pneg %p260
      %p392 = pneg %p289
      %p393 = pneg %p286
      %p394 = scmp.lt.s32.totalorder %s22, 1
      %s395 = scalar_select %p394, %s22, 1
      %s396 = smul.addr %s395, 4
      %s397 = scalar_lea.vmem %s11, %s396
      %p398 = scmp.lt.s32.totalorder %s22, 1
      %s399 = scalar_select %p398, %s22, 1
      %s400 = scalar_lea.vmem %s0, %s399
      %p401 = scmp.lt.s32.totalorder %s22, 1
      %s402 = scalar_select %p401, %s22, 1
      %s403 = smul.addr %s402, 2
      %s404 = scalar_lea.vmem %s1, %s403
      %p405 = scmp.lt.s32.totalorder %s22, 1
      %s406 = scalar_select %p405, %s22, 1
      %s407 = smul.addr %s406, 2
      %s408 = scalar_lea.vmem %s2, %s407
      %p409 = scmp.lt.s32.totalorder %s22, 1
      %s410 = scalar_select %p409, %s22, 1
      %s411 = smul.addr %s410, 4
      %s412 = scalar_lea.vmem %s11, %s411
      %v414 = vld [vmem:[%s400] sm:$0x1]
      %v415 = vld [vmem:[%s404] sm:$0x3]
      %v416 = vld [vmem:[%s408] sm:$0x3]
      %v417 = vld [vmem:[%s6] sm:$0xff]
      %v418 = vld [vmem:[%s6 + $0x8] sm:$0xff]
      %v419 = vld [vmem:[%s6 + $0x10] sm:$0xff]
      %v420 = vld [vmem:[%s3] sm:$0xf]
      %422 = vset.pattern.permute.xlu0 0
      %423 = vperm.xlu0 %422, %v417
      %v424 = vpop.permute.xlu0 %423
      %vm426 = vcmask 15360
      %v428 = vsel %vm426, %v420, 0
      %vm430 = vcmask 1040384
      %v432 = vsel %vm430, %v414, 0
      %434 = vmatprep.subr.bf16.mxu0 0
      %435 = vmatpush1.bf16.msra.mxu0 %v432
      %436 = vmatprep.subr.bf16.mxu0 0
      %437 = vmatpush1.bf16.msra.mxu0 0
      %438 = vmatprep.subr.bf16.mxu0 0
      %439 = vmatpush1.bf16.msra.mxu0 0
      %440 = vmatprep.subr.bf16.mxu0 0
      %441 = vmatpush1.bf16.msra.mxu0 0
      %442 = vmatprep.subr.bf16.mxu0 0
      %443 = vmatpush1.bf16.msra.mxu0 0
      %444 = vmatprep.subr.bf16.mxu0 0
      %445 = vmatpush1.bf16.msra.mxu0 0
      %446 = vmatprep.subr.bf16.mxu0 0
      %447 = vmatpush1.bf16.msra.mxu0 0
      %448 = vmatprep.subr.bf16.mxu0 0
      %449 = vmatpush1.bf16.msra.mxu0 0
      %450 = vmatprep.subr.bf16.mxu0 0
      %451 = vmatpush1.bf16.msra.mxu0 0
      %452 = vmatprep.subr.bf16.mxu0 0
      %453 = vmatpush1.bf16.msra.mxu0 0
      %454 = vmatprep.subr.bf16.mxu0 0
      %455 = vmatpush1.bf16.msra.mxu0 0
      %456 = vmatprep.subr.bf16.mxu0 0
      %457 = vmatpush1.bf16.msra.mxu0 0
      %458 = vmatprep.subr.bf16.mxu0 0
      %459 = vmatpush1.bf16.msra.mxu0 0
      %460 = vmatprep.subr.bf16.mxu0 0
      %461 = vmatpush1.bf16.msra.mxu0 0
      %462 = vmatprep.subr.bf16.mxu0 0
      %463 = vmatpush1.bf16.msra.mxu0 0
      %464 = vmatprep.subr.bf16.mxu0 0
      %465 = vmatpush1.bf16.msra.mxu0 0
      %466 = vmatprep.mubr.bf16.mxu0 0
      %467 = vmatmul.mubr.bf16.gmra.mrb[0].mxu0 %v428
      %v468 = vpop.f32.mrb[0].mxu0
      %v469 = vadd.f32 %v424, %v468
      %v470 = vpop.f32.mrb[0].mxu0
      %v471 = vpop.f32.mrb[0].mxu0
      %v472 = vpop.f32.mrb[0].mxu0
      %473 = vdwg.mxu0
      %v474 = vmax.f32 %v469, 0.0
      %v475 = vld [vmem:[%s4] sm:$0xf]
      %477 = vset.pattern.permute.xlu0 0
      %478 = vperm.xlu0 %477, %v418
      %v479 = vpop.permute.xlu0 %478
      %vm481 = vcmask 31744
      %v483 = vsel %vm481, %v475, 0
      %vm485 = vcmask 1041408
      %v487 = vsel %vm485, %v415, 0
      %489 = vmatprep.subr.bf16.mxu0 0
      %490 = vmatpush1.bf16.msra.mxu0 %v487
      %491 = vmatprep.subr.bf16.mxu0 0
      %492 = vmatpush1.bf16.msra.mxu0 0
      %493 = vmatprep.subr.bf16.mxu0 0
      %494 = vmatpush1.bf16.msra.mxu0 0
      %495 = vmatprep.subr.bf16.mxu0 0
      %496 = vmatpush1.bf16.msra.mxu0 0
      %497 = vmatprep.subr.bf16.mxu0 0
      %498 = vmatpush1.bf16.msra.mxu0 0
      %499 = vmatprep.subr.bf16.mxu0 0
      %500 = vmatpush1.bf16.msra.mxu0 0
      %501 = vmatprep.subr.bf16.mxu0 0
      %502 = vmatpush1.bf16.msra.mxu0 0
      %503 = vmatprep.subr.bf16.mxu0 0
      %504 = vmatpush1.bf16.msra.mxu0 0
      %505 = vmatprep.subr.bf16.mxu0 0
      %506 = vmatpush1.bf16.msra.mxu0 0
      %507 = vmatprep.subr.bf16.mxu0 0
      %508 = vmatpush1.bf16.msra.mxu0 0
      %509 = vmatprep.subr.bf16.mxu0 0
      %510 = vmatpush1.bf16.msra.mxu0 0
      %511 = vmatprep.subr.bf16.mxu0 0
      %512 = vmatpush1.bf16.msra.mxu0 0
      %513 = vmatprep.subr.bf16.mxu0 0
      %514 = vmatpush1.bf16.msra.mxu0 0
      %515 = vmatprep.subr.bf16.mxu0 0
      %516 = vmatpush1.bf16.msra.mxu0 0
      %517 = vmatprep.subr.bf16.mxu0 0
      %518 = vmatpush1.bf16.msra.mxu0 0
      %519 = vmatprep.subr.bf16.mxu0 0
      %520 = vmatpush1.bf16.msra.mxu0 0
      %521 = vmatprep.mubr.bf16.mxu0 0
      %522 = vmatmul.mubr.bf16.gmra.mrb[0].mxu0 %v483
      %v523 = vpop.f32.mrb[0].mxu0
      %v524 = vadd.f32 %v479, %v523
      %v525 = vpop.f32.mrb[0].mxu0
      %v526 = vpop.f32.mrb[0].mxu0
      %v527 = vpop.f32.mrb[0].mxu0
      %528 = vdwg.mxu0
      %v529 = vmax.f32 %v524, 0.0
      %v530 = vld [vmem:[%s5] sm:$0xf]
      %532 = vset.pattern.permute.xlu0 0
      %533 = vperm.xlu0 %532, %v419
      %v534 = vpop.permute.xlu0 %533
      %v537 = vsel %vm481, %v530, 0
      %v540 = vsel %vm485, %v416, 0
      %542 = vmatprep.subr.bf16.mxu0 0
      %543 = vmatpush1.bf16.msra.mxu0 %v540
      %544 = vmatprep.subr.bf16.mxu0 0
      %545 = vmatpush1.bf16.msra.mxu0 0
      %546 = vmatprep.subr.bf16.mxu0 0
      %547 = vmatpush1.bf16.msra.mxu0 0
      %548 = vmatprep.subr.bf16.mxu0 0
      %549 = vmatpush1.bf16.msra.mxu0 0
      %550 = vmatprep.subr.bf16.mxu0 0
      %551 = vmatpush1.bf16.msra.mxu0 0
      %552 = vmatprep.subr.bf16.mxu0 0
      %553 = vmatpush1.bf16.msra.mxu0 0
      %554 = vmatprep.subr.bf16.mxu0 0
      %555 = vmatpush1.bf16.msra.mxu0 0
      %556 = vmatprep.subr.bf16.mxu0 0
      %557 = vmatpush1.bf16.msra.mxu0 0
      %558 = vmatprep.subr.bf16.mxu0 0
      %559 = vmatpush1.bf16.msra.mxu0 0
      %560 = vmatprep.subr.bf16.mxu0 0
      %561 = vmatpush1.bf16.msra.mxu0 0
      %562 = vmatprep.subr.bf16.mxu0 0
      %563 = vmatpush1.bf16.msra.mxu0 0
      %564 = vmatprep.subr.bf16.mxu0 0
      %565 = vmatpush1.bf16.msra.mxu0 0
      %566 = vmatprep.subr.bf16.mxu0 0
      %567 = vmatpush1.bf16.msra.mxu0 0
      %568 = vmatprep.subr.bf16.mxu0 0
      %569 = vmatpush1.bf16.msra.mxu0 0
      %570 = vmatprep.subr.bf16.mxu0 0
      %571 = vmatpush1.bf16.msra.mxu0 0
      %572 = vmatprep.subr.bf16.mxu0 0
      %573 = vmatpush1.bf16.msra.mxu0 0
      %574 = vmatprep.mubr.bf16.mxu0 0
      %575 = vmatmul.mubr.bf16.gmra.mrb[0].mxu0 %v537
      %v576 = vpop.f32.mrb[0].mxu0
      %v577 = vadd.f32 %v534, %v576
      %v578 = vpop.f32.mrb[0].mxu0
      %v579 = vpop.f32.mrb[0].mxu0
      %v580 = vpop.f32.mrb[0].mxu0
      %581 = vdwg.mxu0
      %v582 = vmax.f32 %v577, 0.0
      %v583 = vld [vmem:[%s7] sm:$0x7]
      %v584 = vld [vmem:[%s8] sm:$0x7]
      %vm585 = vcmask 64512
      %v587 = vsel %vm585, %v584, 0
      %589 = vmatprep.subr.mxu0 0.0
      %590 = vmatpush1.msra.mxu0 %v529
      %591 = vmatprep.subr.mxu0 0.0
      %592 = vmatpush1.msra.mxu0 0.0
      %593 = vmatprep.subr.mxu0 0.0
      %594 = vmatpush1.msra.mxu0 0.0
      %595 = vmatprep.subr.mxu0 0.0
      %596 = vmatpush1.msra.mxu0 0.0
      %597 = vmatprep.subr.mxu0 0.0
      %598 = vmatpush1.msra.mxu0 0.0
      %599 = vmatprep.subr.mxu0 0.0
      %600 = vmatpush1.msra.mxu0 0.0
      %601 = vmatprep.subr.mxu0 0.0
      %602 = vmatpush1.msra.mxu0 0.0
      %603 = vmatprep.subr.mxu0 0.0
      %604 = vmatpush1.msra.mxu0 0.0
      %605 = vmatprep.subr.mxu0 0.0
      %606 = vmatpush1.msra.mxu0 0.0
      %607 = vmatprep.subr.mxu0 0.0
      %608 = vmatpush1.msra.mxu0 0.0
      %609 = vmatprep.subr.mxu0 0.0
      %610 = vmatpush1.msra.mxu0 0.0
      %611 = vmatprep.subr.mxu0 0.0
      %612 = vmatpush1.msra.mxu0 0.0
      %613 = vmatprep.subr.mxu0 0.0
      %614 = vmatpush1.msra.mxu0 0.0
      %615 = vmatprep.subr.mxu0 0.0
      %616 = vmatpush1.msra.mxu0 0.0
      %617 = vmatprep.subr.mxu0 0.0
      %618 = vmatpush1.msra.mxu0 0.0
      %619 = vmatprep.subr.mxu0 0.0
      %620 = vmatpush1.msra.mxu0 0.0
      %621 = vmatprep.subr.mxu0 0.0
      %622 = vmatpush1.msra.mxu0 0.0
      %623 = vmatprep.subr.mxu0 0.0
      %624 = vmatpush1.msra.mxu0 0.0
      %625 = vmatprep.subr.mxu0 0.0
      %626 = vmatpush1.msra.mxu0 0.0
      %627 = vmatprep.subr.mxu0 0.0
      %628 = vmatpush1.msra.mxu0 0.0
      %629 = vmatprep.subr.mxu0 0.0
      %630 = vmatpush1.msra.mxu0 0.0
      %631 = vmatprep.subr.mxu0 0.0
      %632 = vmatpush1.msra.mxu0 0.0
      %633 = vmatprep.subr.mxu0 0.0
      %634 = vmatpush1.msra.mxu0 0.0
      %635 = vmatprep.subr.mxu0 0.0
      %636 = vmatpush1.msra.mxu0 0.0
      %637 = vmatprep.subr.mxu0 0.0
      %638 = vmatpush1.msra.mxu0 0.0
      %639 = vmatprep.subr.mxu0 0.0
      %640 = vmatpush1.msra.mxu0 0.0
      %641 = vmatprep.subr.mxu0 0.0
      %642 = vmatpush1.msra.mxu0 0.0
      %643 = vmatprep.subr.mxu0 0.0
      %644 = vmatpush1.msra.mxu0 0.0
      %645 = vmatprep.subr.mxu0 0.0
      %646 = vmatpush1.msra.mxu0 0.0
      %647 = vmatprep.subr.mxu0 0.0
      %648 = vmatpush1.msra.mxu0 0.0
      %649 = vmatprep.subr.mxu0 0.0
      %650 = vmatpush1.msra.mxu0 0.0
      %651 = vmatprep.subr.mxu0 0.0
      %652 = vmatpush1.msra.mxu0 0.0
      %653 = vmatprep.mubr.f32.mxu0 0.0
      %654 = vmatmul.mubr.f32.gmra.mrb[0].mxu0 %v587
      %v655 = vpop.f32.mrb[0].mxu0
      %v656 = vadd.f32 0.0, %v655
      %v657 = vpop.f32.mrb[0].mxu0
      %658 = vdwg.mxu0
      %v660 = vsel %vm585, %v583, 0
      %662 = vmatprep.subr.mxu0 0.0
      %663 = vmatpush1.msra.mxu0 %v474
      %664 = vmatprep.subr.mxu0 0.0
      %665 = vmatpush1.msra.mxu0 0.0
      %666 = vmatprep.subr.mxu0 0.0
      %667 = vmatpush1.msra.mxu0 0.0
      %668 = vmatprep.subr.mxu0 0.0
      %669 = vmatpush1.msra.mxu0 0.0
      %670 = vmatprep.subr.mxu0 0.0
      %671 = vmatpush1.msra.mxu0 0.0
      %672 = vmatprep.subr.mxu0 0.0
      %673 = vmatpush1.msra.mxu0 0.0
      %674 = vmatprep.subr.mxu0 0.0
      %675 = vmatpush1.msra.mxu0 0.0
      %676 = vmatprep.subr.mxu0 0.0
      %677 = vmatpush1.msra.mxu0 0.0
      %678 = vmatprep.subr.mxu0 0.0
      %679 = vmatpush1.msra.mxu0 0.0
      %680 = vmatprep.subr.mxu0 0.0
      %681 = vmatpush1.msra.mxu0 0.0
      %682 = vmatprep.subr.mxu0 0.0
      %683 = vmatpush1.msra.mxu0 0.0
      %684 = vmatprep.subr.mxu0 0.0
      %685 = vmatpush1.msra.mxu0 0.0
      %686 = vmatprep.subr.mxu0 0.0
      %687 = vmatpush1.msra.mxu0 0.0
      %688 = vmatprep.subr.mxu0 0.0
      %689 = vmatpush1.msra.mxu0 0.0
      %690 = vmatprep.subr.mxu0 0.0
      %691 = vmatpush1.msra.mxu0 0.0
      %692 = vmatprep.subr.mxu0 0.0
      %693 = vmatpush1.msra.mxu0 0.0
      %694 = vmatprep.subr.mxu0 0.0
      %695 = vmatpush1.msra.mxu0 0.0
      %696 = vmatprep.subr.mxu0 0.0
      %697 = vmatpush1.msra.mxu0 0.0
      %698 = vmatprep.subr.mxu0 0.0
      %699 = vmatpush1.msra.mxu0 0.0
      %700 = vmatprep.subr.mxu0 0.0
      %701 = vmatpush1.msra.mxu0 0.0
      %702 = vmatprep.subr.mxu0 0.0
      %703 = vmatpush1.msra.mxu0 0.0
      %704 = vmatprep.subr.mxu0 0.0
      %705 = vmatpush1.msra.mxu0 0.0
      %706 = vmatprep.subr.mxu0 0.0
      %707 = vmatpush1.msra.mxu0 0.0
      %708 = vmatprep.subr.mxu0 0.0
      %709 = vmatpush1.msra.mxu0 0.0
      %710 = vmatprep.subr.mxu0 0.0
      %711 = vmatpush1.msra.mxu0 0.0
      %712 = vmatprep.subr.mxu0 0.0
      %713 = vmatpush1.msra.mxu0 0.0
      %714 = vmatprep.subr.mxu0 0.0
      %715 = vmatpush1.msra.mxu0 0.0
      %716 = vmatprep.subr.mxu0 0.0
      %717 = vmatpush1.msra.mxu0 0.0
      %718 = vmatprep.subr.mxu0 0.0
      %719 = vmatpush1.msra.mxu0 0.0
      %720 = vmatprep.subr.mxu0 0.0
      %721 = vmatpush1.msra.mxu0 0.0
      %722 = vmatprep.subr.mxu0 0.0
      %723 = vmatpush1.msra.mxu0 0.0
      %724 = vmatprep.subr.mxu0 0.0
      %725 = vmatpush1.msra.mxu0 0.0
      %726 = vmatprep.mubr.f32.mxu0 0.0
      %727 = vmatmul.mubr.f32.gmra.mrb[0].mxu0 %v660
      %v728 = vpop.f32.mrb[0].mxu0
      %v729 = vadd.f32 %v656, %v728
      %v730 = vpop.f32.mrb[0].mxu0
      %731 = vdwg.mxu0
      %v732 = vld [vmem:[%s9] sm:$0x7]
      %v734 = vsel %vm585, %v732, 0
      %736 = vmatprep.subr.mxu0 0.0
      %737 = vmatpush1.msra.mxu0 %v582
      %738 = vmatprep.subr.mxu0 0.0
      %739 = vmatpush1.msra.mxu0 0.0
      %740 = vmatprep.subr.mxu0 0.0
      %741 = vmatpush1.msra.mxu0 0.0
      %742 = vmatprep.subr.mxu0 0.0
      %743 = vmatpush1.msra.mxu0 0.0
      %744 = vmatprep.subr.mxu0 0.0
      %745 = vmatpush1.msra.mxu0 0.0
      %746 = vmatprep.subr.mxu0 0.0
      %747 = vmatpush1.msra.mxu0 0.0
      %748 = vmatprep.subr.mxu0 0.0
      %749 = vmatpush1.msra.mxu0 0.0
      %750 = vmatprep.subr.mxu0 0.0
      %751 = vmatpush1.msra.mxu0 0.0
      %752 = vmatprep.subr.mxu0 0.0
      %753 = vmatpush1.msra.mxu0 0.0
      %754 = vmatprep.subr.mxu0 0.0
      %755 = vmatpush1.msra.mxu0 0.0
      %756 = vmatprep.subr.mxu0 0.0
      %757 = vmatpush1.msra.mxu0 0.0
      %758 = vmatprep.subr.mxu0 0.0
      %759 = vmatpush1.msra.mxu0 0.0
      %760 = vmatprep.subr.mxu0 0.0
      %761 = vmatpush1.msra.mxu0 0.0
      %762 = vmatprep.subr.mxu0 0.0
      %763 = vmatpush1.msra.mxu0 0.0
      %764 = vmatprep.subr.mxu0 0.0
      %765 = vmatpush1.msra.mxu0 0.0
      %766 = vmatprep.subr.mxu0 0.0
      %767 = vmatpush1.msra.mxu0 0.0
      %768 = vmatprep.subr.mxu0 0.0
      %769 = vmatpush1.msra.mxu0 0.0
      %770 = vmatprep.subr.mxu0 0.0
      %771 = vmatpush1.msra.mxu0 0.0
      %772 = vmatprep.subr.mxu0 0.0
      %773 = vmatpush1.msra.mxu0 0.0
      %774 = vmatprep.subr.mxu0 0.0
      %775 = vmatpush1.msra.mxu0 0.0
      %776 = vmatprep.subr.mxu0 0.0
      %777 = vmatpush1.msra.mxu0 0.0
      %778 = vmatprep.subr.mxu0 0.0
      %779 = vmatpush1.msra.mxu0 0.0
      %780 = vmatprep.subr.mxu0 0.0
      %781 = vmatpush1.msra.mxu0 0.0
      %782 = vmatprep.subr.mxu0 0.0
      %783 = vmatpush1.msra.mxu0 0.0
      %784 = vmatprep.subr.mxu0 0.0
      %785 = vmatpush1.msra.mxu0 0.0
      %786 = vmatprep.subr.mxu0 0.0
      %787 = vmatpush1.msra.mxu0 0.0
      %788 = vmatprep.subr.mxu0 0.0
      %789 = vmatpush1.msra.mxu0 0.0
      %790 = vmatprep.subr.mxu0 0.0
      %791 = vmatpush1.msra.mxu0 0.0
      %792 = vmatprep.subr.mxu0 0.0
      %793 = vmatpush1.msra.mxu0 0.0
      %794 = vmatprep.subr.mxu0 0.0
      %795 = vmatpush1.msra.mxu0 0.0
      %796 = vmatprep.subr.mxu0 0.0
      %797 = vmatpush1.msra.mxu0 0.0
      %798 = vmatprep.subr.mxu0 0.0
      %799 = vmatpush1.msra.mxu0 0.0
      %800 = vmatprep.mubr.f32.mxu0 0.0
      %801 = vmatmul.mubr.f32.gmra.mrb[0].mxu0 %v734
      %v802 = vpop.f32.mrb[0].mxu0
      %v803 = vadd.f32 0.0, %v802
      %v804 = vpop.f32.mrb[0].mxu0
      %805 = vdwg.mxu0
      %v806 = vadd.f32 %v729, %v803
      %v807 = vld [vmem:[%s10] sm:$0x7]
      %809 = vset.pattern.permute.xlu0 0
      %810 = vperm.xlu0 %809, %v807
      %v811 = vpop.permute.xlu0 %810
      %v813 = vadd.f32 %v806, %v811
      %vm814 = vcmask 1042432
      %v815 = vsel %vm814, %v813, -inf
      %v816 = vrot.slane %v815, 4
      %v817 = vmax.f32 %v815, %v816
      %v818 = vrot.slane %v817, 2
      %v819 = vmax.f32 %v817, %v818
      %v820 = vrot.slane %v819, 1
      %v821 = vmax.f32 %v819, %v820
      %v822 = vsub.f32 %v813, %v821
      %v823 = vmul.f32 %v822, 1.442695
      %v824 = vpow.pop %v823
      %v825 = vsel %vm814, %v824, 0.0
      %v826 = vrot.slane %v825, 4
      %v827 = vadd.f32 %v825, %v826
      %v828 = vrot.slane %v827, 2
      %v829 = vadd.f32 %v827, %v828
      %v830 = vrot.slane %v829, 1
      %v831 = vadd.f32 %v829, %v830
      %v832 = vrcp.pop %v831
      %v833 = vmul.f32 %v824, %v832
      %v834 = vlaneseq
      %v835 = vshrl.u32 %v834, 7
      %v836 = vsub.s32 0, %v835
      %v837 = vrot.slane %v833, %v836
      %v838 = vmul.f32 %v474, %v837
      %v839 = vlaneseq
      %v840 = vshrl.u32 %v839, 7
      %v841 = vsub.s32 1, %v840
      %v842 = vrot.slane %v833, %v841
      %v843 = vmul.f32 %v529, %v842
      %v844 = vadd.f32 %v838, %v843
      %v845 = vlaneseq
      %v846 = vshrl.u32 %v845, 7
      %v847 = vsub.s32 2, %v846
      %v848 = vrot.slane %v833, %v847
      %v849 = vmul.f32 %v582, %v848
      %v850 = vadd.f32 %v844, %v849
      %v851 = vpack.c.bf16 %v850, %v850
      %852 = vst [vmem:[%s412] sm:$0xf] %v851
      %p853 = scmp.lt.s32.totalorder %s22, 1
      %s854 = scalar_select %p853, %s22, 1
      %s855 = smul.addr %s854, 4
      %s856 = scalar_lea.vmem %s11, %s855
      // Predicated region
      $region65: #{rpvnet_forward.9} parent=63 // pred_check
        %p857 = pneg %p286
      $region66: #{rpvnet_forward.9} parent=63 // pred_check_branch
        %859 = sbr.rel (%p857) target = $region68
      $region67: #{rpvnet_forward.9} parent=63 // pred_region
        _
      $region68: #{rpvnet_forward.9} parent=63 // pred_fallthru
        _
    $region64: #{rpvnet_forward.9} parent=5 // pred_fallthru
      _
    %p860 = scmp.le.s32.totalorder 2, %s17
    // Predicated region
    $region69: #{rpvnet_forward.9} parent=5 // pred_check
      %p861 = pneg %p860
    $region70: #{rpvnet_forward.9} parent=5 // pred_check_branch
      %863 = sbr.rel (%p861) target = $region72
    $region71: #{rpvnet_forward.9} parent=5 // pred_region
      %s864 = ssub.s32 %s17, 2
      // Predicated region
      $region73: #{rpvnet_forward.9} parent=71 // pred_check
        %p865 = pneg %p292
      $region74: #{rpvnet_forward.9} parent=71 // pred_check_branch
        %867 = sbr.rel (%p865) target = $region76
      $region75: #{rpvnet_forward.9} parent=71 // pred_region
        %p868 = scmp.lt.s32.totalorder %s23, 1
        %s869 = scalar_select %p868, %s23, 1
        %s870 = smul.addr %s869, 4
        %s871 = scalar_lea.vmem %s11, %s870
      $region76: #{rpvnet_forward.9} parent=71 // pred_fallthru
        _
    $region72: #{rpvnet_forward.9} parent=5 // pred_fallthru
      _
  $region6: #{rpvnet_forward.9} parent=0 // loop_footer
    %s21 = sadd.s32 1, %s17
  $region7: #{rpvnet_forward.9} parent=0 // loop_footer_branch
    %16 = sbr.rel target = $region3
  $region8: #{rpvnet_forward.9} parent=0 // loop_exit
    _

// kernel: rpvnet_forward.10
$region0: #{rpvnet_forward.10}
  #allocation0 [shape = 'u32[]', space=smem, size = 0x4, offset = 0x4, fixed_abs, tag = 'smem constant byte address 0x4 - core index']
  #allocation1 [shape = 'u32[144,128]{1,0:T(1,128)}', space=vmem, size = 0x12000, scoped, tag = 'internal scratch']
  #allocation2 [shape = 'f32[8,256]{1,0:T(8,128)}', space=vmem, size = 0x2000, scoped, tag = 'scratch operand']
  #allocation3 [shape = 'f32[1,256]{1,0:T(1,128)}', space=vmem, size = 0x400, scoped, tag = 'scratch operand']
  %s0 = inlined_call_operand.vmem [shape: s32[256,2], index: 0, kind: input, shape index: {}]
  %s1 = inlined_call_operand.vmem [shape: bf16[8,256], index: 1, kind: input, shape index: {}]
  %s2 = inlined_call_operand.vmem [shape: bf16[8,768], index: 2, kind: output, shape index: {}]
  %s3 = sld [smem:[#allocation0]]
  $region49: #{rpvnet_forward.10} parent=0
    _
  %s5 = ssub.s32 1, %s3
  %s6 = scalar_select 0, %s5, %s3
  loop: start=0, step=1, limit=5
  $region2: #{rpvnet_forward.10} parent=0 // loop_pre_header
    _
  $region3: #{rpvnet_forward.10} parent=0 // loop_header
    %s8 = sphi 0, %s12
    %p9 = scmp.ge.s32.totalorder %s8, 5
    %s15 = sphi 0, %s27
    %s16 = sphi 0, %s23
    %s17 = sphi 0, %s15
    %s18 = sphi 0, %s16
    %s19 = sphi 0, %s17
    %s20 = sphi 0, %s18
    %s30 = sphi 0, %s32
    %s33 = sphi 0, %s30
    %s34 = sphi 0, %s33
    %s50 = sphi 0, %s34
    %s56 = sphi 0, %s58
    %s59 = sphi 0, %s56
    %s60 = sphi 0, %s59
    %s76 = sphi 0, %s60
    %s82 = sphi 0, %s84
    %s85 = sphi 0, %s82
    %s86 = sphi 0, %s85
    %s102 = sphi 0, %s86
  $region4: #{rpvnet_forward.10} parent=0 // loop_header_branch
    %11 = sbr.rel (%p9) target = $region8
  $region5: #{rpvnet_forward.10} parent=0 // loop_body
    %s13 = ssub.s32 %s8, 1
    %s14 = ssub.s32 %s8, 2
    %s21 = sadd.s32 1, %s16
    %p22 = scmp.ge.s32.totalorder %s21, 1
    %s23 = scalar_select %p22, 0, %s21
    %s24 = sadd.s32 1, %s15
    %s25 = scalar_select %p22, %s24, %s15
    %p26 = scmp.ge.s32.totalorder %s25, 3
    %s27 = scalar_select %p26, 0, %s25
    %s28 = ssub.s32 %s16, %s23
    %p29 = scmp.eq.s32.totalorder %s28, 0
    %s31 = sadd.s32 %s30, 1
    %s32 = scalar_select %p29, %s30, %s31
    %p35 = pneg %p29
    %p36 = scmp.eq.s32.totalorder %s8, 2
    %p37 = por %p35, %p36
    %p38 = scmp.ne.s32.totalorder %s30, %s33
    %p39 = scmp.eq.s32.totalorder %s8, 0
    %p40 = por %p38, %p39
    %p41 = scmp.ne.s32.totalorder %s30, %s33
    %p42 = scmp.eq.s32.totalorder %s13, 2
    %p43 = por %p41, %p42
    %p44 = scmp.ne.s32.totalorder %s33, %s34
    %p45 = scmp.eq.s32.totalorder %s13, 0
    %p46 = por %p44, %p45
    %p47 = scmp.ne.s32.totalorder %s33, %s34
    %p48 = scmp.eq.s32.totalorder %s14, 2
    %p49 = por %p47, %p48
    %p51 = scmp.ne.s32.totalorder %s34, %s50
    %p52 = scmp.eq.s32.totalorder %s14, 0
    %p53 = por %p51, %p52
    %s54 = ssub.s32 %s16, %s23
    %p55 = scmp.eq.s32.totalorder %s54, 0
    %s57 = sadd.s32 %s56, 1
    %s58 = scalar_select %p55, %s56, %s57
    %p61 = pneg %p55
    %p62 = scmp.eq.s32.totalorder %s8, 2
    %p63 = por %p61, %p62
    %p64 = scmp.ne.s32.totalorder %s56, %s59
    %p65 = scmp.eq.s32.totalorder %s8, 0
    %p66 = por %p64, %p65
    %p67 = scmp.ne.s32.totalorder %s56, %s59
    %p68 = scmp.eq.s32.totalorder %s13, 2
    %p69 = por %p67, %p68
    %p70 = scmp.ne.s32.totalorder %s59, %s60
    %p71 = scmp.eq.s32.totalorder %s13, 0
    %p72 = por %p70, %p71
    %p73 = scmp.ne.s32.totalorder %s59, %s60
    %p74 = scmp.eq.s32.totalorder %s14, 2
    %p75 = por %p73, %p74
    %p77 = scmp.ne.s32.totalorder %s60, %s76
    %p78 = scmp.eq.s32.totalorder %s14, 0
    %p79 = por %p77, %p78
    %s80 = ssub.s32 %s15, %s27
    %p81 = scmp.eq.s32.totalorder %s80, 0
    %s83 = sadd.s32 %s82, 1
    %s84 = scalar_select %p81, %s82, %s83
    %p87 = pneg %p81
    %p88 = scmp.eq.s32.totalorder %s8, 2
    %p89 = por %p87, %p88
    %p90 = scmp.ne.s32.totalorder %s82, %s85
    %p91 = scmp.eq.s32.totalorder %s8, 0
    %p92 = por %p90, %p91
    %p93 = scmp.ne.s32.totalorder %s82, %s85
    %p94 = scmp.eq.s32.totalorder %s13, 2
    %p95 = por %p93, %p94
    %p96 = scmp.ne.s32.totalorder %s85, %s86
    %p97 = scmp.eq.s32.totalorder %s13, 0
    %p98 = por %p96, %p97
    %p99 = scmp.ne.s32.totalorder %s85, %s86
    %p100 = scmp.eq.s32.totalorder %s14, 2
    %p101 = por %p99, %p100
    %p103 = scmp.ne.s32.totalorder %s86, %s102
    %p104 = scmp.eq.s32.totalorder %s14, 0
    %p105 = por %p103, %p104
    %p106 = scmp.le.s32.totalorder 1, %s8
    %p107 = scmp.lt.s32.totalorder %s8, 4
    %p108 = pnand %p106, %p107
    %p109 = pneg %p108
    // Predicated region
    $region9: #{rpvnet_forward.10} parent=5 // pred_check
      _
    $region10: #{rpvnet_forward.10} parent=5 // pred_check_branch
      %111 = sbr.rel (%p108) target = $region12
    $region11: #{rpvnet_forward.10} parent=5 // pred_region
      %s112 = ssub.s32 %s8, 1
      // Predicated region
      $region13: #{rpvnet_forward.10} parent=11 // pred_check
        %p113 = pneg %p46
      $region14: #{rpvnet_forward.10} parent=11 // pred_check_branch
        %115 = sbr.rel (%p113) target = $region16
      $region15: #{rpvnet_forward.10} parent=11 // pred_region
        %s116 = smul.u32 32, %s18
        %p117 = scmp.lt.s32.totalorder %s116, 31
        %s118 = scalar_select %p117, %s116, 31
        %s119 = smul.addr %s118, 8
        %s120 = scalar_lea.vmem %s0, %s119
        %s121 = smul.u32 32, %s18
      $region16: #{rpvnet_forward.10} parent=11 // pred_fallthru
        _
      // Predicated region
      $region17: #{rpvnet_forward.10} parent=11 // pred_check
        %p122 = pneg %p72
      $region18: #{rpvnet_forward.10} parent=11 // pred_check_branch
        %124 = sbr.rel (%p122) target = $region20
      $region19: #{rpvnet_forward.10} parent=11 // pred_region
        %s125 = smul.u32 2, %s18
        %p126 = scmp.lt.s32.totalorder %s125, 1
        %s127 = scalar_select %p126, %s125, 1
        %s128 = smul.addr %s127, 4
        %s129 = scalar_lea.vmem %s1, %s128
        %s130 = smul.u32 2, %s18
      $region20: #{rpvnet_forward.10} parent=11 // pred_fallthru
        _
    $region12: #{rpvnet_forward.10} parent=5 // pred_fallthru
      _
    %p131 = scmp.lt.s32.totalorder %s8, 3
    // Predicated region
    $region21: #{rpvnet_forward.10} parent=5 // pred_check
      %p132 = pneg %p131
    $region22: #{rpvnet_forward.10} parent=5 // pred_check_branch
      %134 = sbr.rel (%p132) target = $region24
    $region23: #{rpvnet_forward.10} parent=5 // pred_region
      _
    $region24: #{rpvnet_forward.10} parent=5 // pred_fallthru
      _
    %p135 = scmp.le.s32.totalorder 1, %s8
    %p136 = scmp.lt.s32.totalorder %s8, 4
    %p137 = pnand %p135, %p136
    %p138 = pneg %p137
    // Predicated region
    $region25: #{rpvnet_forward.10} parent=5 // pred_check
      _
    $region26: #{rpvnet_forward.10} parent=5 // pred_check_branch
      %140 = sbr.rel (%p137) target = $region28
    $region27: #{rpvnet_forward.10} parent=5 // pred_region
      %s141 = ssub.s32 %s8, 1
      %s142 = smul.u32 32, %s18
      %p143 = scmp.lt.s32.totalorder %s142, 31
      %s144 = scalar_select %p143, %s142, 31
      %s145 = smul.addr %s144, 8
      %s146 = scalar_lea.vmem %s0, %s145
      %p147 = pneg %p46
      %p148 = pneg %p43
      %s149 = smul.u32 2, %s18
      %p150 = scmp.lt.s32.totalorder %s149, 1
      %s151 = scalar_select %p150, %s149, 1
      %s152 = smul.addr %s151, 4
      %s153 = scalar_lea.vmem %s1, %s152
      %p154 = pneg %p72
      %p155 = pneg %p69
      %p156 = pneg %p98
      %p157 = pneg %p95
      %s158 = smul.u32 2, %s17
      %p159 = scmp.lt.s32.totalorder %s158, 5
      %s160 = scalar_select %p159, %s158, 5
      %s161 = smul.addr %s160, 4
      %s162 = scalar_lea.vmem %s2, %s161
      %s163 = smul.u32 32, %s18
      %p164 = scmp.lt.s32.totalorder %s163, 31
      %s165 = scalar_select %p164, %s163, 31
      %s166 = smul.addr %s165, 8
      %s167 = scalar_lea.vmem %s0, %s166
      %s168 = smul.u32 32, %s18
      %s169 = smul.u32 2, %s18
      %p170 = scmp.lt.s32.totalorder %s169, 1
      %s171 = scalar_select %p170, %s169, 1
      %s172 = smul.addr %s171, 4
      %s173 = scalar_lea.vmem %s1, %s172
      %s174 = smul.u32 2, %s18
      %s175 = smul.u32 2, %s17
      %p176 = scmp.lt.s32.totalorder %s175, 5
      %s177 = scalar_select %p176, %s175, 5
      %s178 = smul.addr %s177, 4
      %s179 = scalar_lea.vmem %s2, %s178
      %s180 = smul.u32 2, %s17
      %p182 = scmp.eq.s32.totalorder %s18, 0
      // Predicated region
      $region29: #{rpvnet_forward.10} parent=27 // pred_check
        %p183 = pneg %p182
      $region30: #{rpvnet_forward.10} parent=27 // pred_check_branch
        %185 = sbr.rel (%p183) target = $region32
      $region31: #{rpvnet_forward.10} parent=27 // pred_region
        %186 = vst [vmem:[#allocation2] sm:$0xff] 0.0
        %187 = vst [vmem:[#allocation2 + $0x8] sm:$0xff] 0.0
        %v188 = vlaneseq
        %vm189 = vcmp.ge.s32.totalorder %v188, 0
        %vm190 = vcmp.lt.s32.totalorder %v188, 256
        %vm191 = vmand %vm189, %vm190
        %192 = vst.msk [vmem:[#allocation3] sm:$0x3] %vm191, 0.0
      $region32: #{rpvnet_forward.10} parent=27 // pred_fallthru
        _
      %v193 = vld [vmem:[%s167] sm:$0xff]
      %v194 = vld [vmem:[%s167 + $0x8] sm:$0xff]
      %v195 = vld [vmem:[%s167 + $0x10] sm:$0xff]
      %v196 = vld [vmem:[%s167 + $0x18] sm:$0xff]
      %v197 = vld [vmem:[%s167 + $0x20] sm:$0xff]
      %v198 = vld [vmem:[%s167 + $0x28] sm:$0xff]
      %v199 = vld [vmem:[%s167 + $0x30] sm:$0xff]
      %v200 = vld [vmem:[%s167 + $0x38] sm:$0xff]
      %v201 = vld [vmem:[%s167 + $0x40] sm:$0xff]
      %v202 = vld [vmem:[%s167 + $0x48] sm:$0xff]
      %v203 = vld [vmem:[%s167 + $0x50] sm:$0xff]
      %v204 = vld [vmem:[%s167 + $0x58] sm:$0xff]
      %v205 = vld [vmem:[%s167 + $0x60] sm:$0xff]
      %v206 = vld [vmem:[%s167 + $0x68] sm:$0xff]
      %v207 = vld [vmem:[%s167 + $0x70] sm:$0xff]
      %v208 = vld [vmem:[%s167 + $0x78] sm:$0xff]
      %v209 = vld [vmem:[%s167 + $0x80] sm:$0xff]
      %v210 = vld [vmem:[%s167 + $0x88] sm:$0xff]
      %v211 = vld [vmem:[%s167 + $0x90] sm:$0xff]
      %v212 = vld [vmem:[%s167 + $0x98] sm:$0xff]
      %v213 = vld [vmem:[%s167 + $0xa0] sm:$0xff]
      %v214 = vld [vmem:[%s167 + $0xa8] sm:$0xff]
      %v215 = vld [vmem:[%s167 + $0xb0] sm:$0xff]
      %v216 = vld [vmem:[%s167 + $0xb8] sm:$0xff]
      %v217 = vld [vmem:[%s167 + $0xc0] sm:$0xff]
      %v218 = vld [vmem:[%s167 + $0xc8] sm:$0xff]
      %v219 = vld [vmem:[%s167 + $0xd0] sm:$0xff]
      %v220 = vld [vmem:[%s167 + $0xd8] sm:$0xff]
      %v221 = vld [vmem:[%s167 + $0xe0] sm:$0xff]
      %v222 = vld [vmem:[%s167 + $0xe8] sm:$0xff]
      %v223 = vld [vmem:[%s167 + $0xf0] sm:$0xff]
      %v224 = vld [vmem:[%s167 + $0xf8] sm:$0xff]
      %p225 = scmp.lt.s32.totalorder %s17, 2
      %s226 = scalar_select %p225, 1, 0
      %v227 = vstv %s226
      %vm228 = vcmp.eq.s32.totalorder %v227, 1
      %229 = vrot.lane.b32.xlu0 %v193, 127
      %v230 = vpop.permute.xlu0 %229
      %231 = vrot.lane.b32.xlu0 %v194, 127
      %v232 = vpop.permute.xlu0 %231
      %233 = vrot.lane.b32.xlu0 %v195, 127
      %v234 = vpop.permute.xlu0 %233
      %235 = vrot.lane.b32.xlu0 %v196, 127
      %v236 = vpop.permute.xlu0 %235
      %237 = vrot.lane.b32.xlu0 %v197, 127
      %v238 = vpop.permute.xlu0 %237
      %239 = vrot.lane.b32.xlu0 %v198, 127
      %v240 = vpop.permute.xlu0 %239
      %241 = vrot.lane.b32.xlu0 %v199, 127
      %v242 = vpop.permute.xlu0 %241
      %243 = vrot.lane.b32.xlu0 %v200, 127
      %v244 = vpop.permute.xlu0 %243
      %245 = vrot.lane.b32.xlu0 %v201, 127
      %v246 = vpop.permute.xlu0 %245
      %247 = vrot.lane.b32.xlu0 %v202, 127
      %v248 = vpop.permute.xlu0 %247
      %249 = vrot.lane.b32.xlu0 %v203, 127
      %v250 = vpop.permute.xlu0 %249
      %251 = vrot.lane.b32.xlu0 %v204, 127
      %v252 = vpop.permute.xlu0 %251
      %253 = vrot.lane.b32.xlu0 %v205, 127
      %v254 = vpop.permute.xlu0 %253
      %255 = vrot.lane.b32.xlu0 %v206, 127
      %v256 = vpop.permute.xlu0 %255
      %257 = vrot.lane.b32.xlu0 %v207, 127
      %v258 = vpop.permute.xlu0 %257
      %259 = vrot.lane.b32.xlu0 %v208, 127
      %v260 = vpop.permute.xlu0 %259
      %261 = vrot.lane.b32.xlu0 %v209, 127
      %v262 = vpop.permute.xlu0 %261
      %263 = vrot.lane.b32.xlu0 %v210, 127
      %v264 = vpop.permute.xlu0 %263
      %265 = vrot.lane.b32.xlu0 %v211, 127
      %v266 = vpop.permute.xlu0 %265
      %267 = vrot.lane.b32.xlu0 %v212, 127
      %v268 = vpop.permute.xlu0 %267
      %269 = vrot.lane.b32.xlu0 %v213, 127
      %v270 = vpop.permute.xlu0 %269
      %271 = vrot.lane.b32.xlu0 %v214, 127
      %v272 = vpop.permute.xlu0 %271
      %273 = vrot.lane.b32.xlu0 %v215, 127
      %v274 = vpop.permute.xlu0 %273
      %275 = vrot.lane.b32.xlu0 %v216, 127
      %v276 = vpop.permute.xlu0 %275
      %277 = vrot.lane.b32.xlu0 %v217, 127
      %v278 = vpop.permute.xlu0 %277
      %279 = vrot.lane.b32.xlu0 %v218, 127
      %v280 = vpop.permute.xlu0 %279
      %281 = vrot.lane.b32.xlu0 %v219, 127
      %v282 = vpop.permute.xlu0 %281
      %283 = vrot.lane.b32.xlu0 %v220, 127
      %v284 = vpop.permute.xlu0 %283
      %285 = vrot.lane.b32.xlu0 %v221, 127
      %v286 = vpop.permute.xlu0 %285
      %287 = vrot.lane.b32.xlu0 %v222, 127
      %v288 = vpop.permute.xlu0 %287
      %289 = vrot.lane.b32.xlu0 %v223, 127
      %v290 = vpop.permute.xlu0 %289
      %291 = vrot.lane.b32.xlu0 %v224, 127
      %v292 = vpop.permute.xlu0 %291
      %v293 = vsel %vm228, %v193, %v230
      %v294 = vsel %vm228, %v194, %v232
      %v295 = vsel %vm228, %v195, %v234
      %v296 = vsel %vm228, %v196, %v236
      %v297 = vsel %vm228, %v197, %v238
      %v298 = vsel %vm228, %v198, %v240
      %v299 = vsel %vm228, %v199, %v242
      %v300 = vsel %vm228, %v200, %v244
      %v301 = vsel %vm228, %v201, %v246
      %v302 = vsel %vm228, %v202, %v248
      %v303 = vsel %vm228, %v203, %v250
      %v304 = vsel %vm228, %v204, %v252
      %v305 = vsel %vm228, %v205, %v254
      %v306 = vsel %vm228, %v206, %v256
      %v307 = vsel %vm228, %v207, %v258
      %v308 = vsel %vm228, %v208, %v260
      %v309 = vsel %vm228, %v209, %v262
      %v310 = vsel %vm228, %v210, %v264
      %v311 = vsel %vm228, %v211, %v266
      %v312 = vsel %vm228, %v212, %v268
      %v313 = vsel %vm228, %v213, %v270
      %v314 = vsel %vm228, %v214, %v272
      %v315 = vsel %vm228, %v215, %v274
      %v316 = vsel %vm228, %v216, %v276
      %v317 = vsel %vm228, %v217, %v278
      %v318 = vsel %vm228, %v218, %v280
      %v319 = vsel %vm228, %v219, %v282
      %v320 = vsel %vm228, %v220, %v284
      %v321 = vsel %vm228, %v221, %v286
      %v322 = vsel %vm228, %v222, %v288
      %v323 = vsel %vm228, %v223, %v290
      %v324 = vsel %vm228, %v224, %v292
      %s325 = smul.u32 %s17, 256
      %v326 = vlaneseq
      %v327 = vand.u32 %v326, 127
      %v328 = vadd.s32 %v327, 128
      %v329 = vstv %s325
      %v330 = vadd.s32 %v329, %v327
      %v331 = vadd.s32 %v329, %v328
      %332 = vset.pattern.permute.xlu0 0
      %333 = vperm.xlu0 %332, %v293
      %v334 = vpop.permute.xlu0 %333
      %335 = vset.pattern.permute.xlu0 0
      %336 = vperm.xlu0 %335, %v294
      %v337 = vpop.permute.xlu0 %336
      %338 = vset.pattern.permute.xlu0 0
      %339 = vperm.xlu0 %338, %v295
      %v340 = vpop.permute.xlu0 %339
      %341 = vset.pattern.permute.xlu0 0
      %342 = vperm.xlu0 %341, %v296
      %v343 = vpop.permute.xlu0 %342
      %344 = vset.pattern.permute.xlu0 0
      %345 = vperm.xlu0 %344, %v297
      %v346 = vpop.permute.xlu0 %345
      %347 = vset.pattern.permute.xlu0 0
      %348 = vperm.xlu0 %347, %v298
      %v349 = vpop.permute.xlu0 %348
      %350 = vset.pattern.permute.xlu0 0
      %351 = vperm.xlu0 %350, %v299
      %v352 = vpop.permute.xlu0 %351
      %353 = vset.pattern.permute.xlu0 0
      %354 = vperm.xlu0 %353, %v300
      %v355 = vpop.permute.xlu0 %354
      %356 = vset.pattern.permute.xlu0 0
      %357 = vperm.xlu0 %356, %v301
      %v358 = vpop.permute.xlu0 %357
      %359 = vset.pattern.permute.xlu0 0
      %360 = vperm.xlu0 %359, %v302
      %v361 = vpop.permute.xlu0 %360
      %362 = vset.pattern.permute.xlu0 0
      %363 = vperm.xlu0 %362, %v303
      %v364 = vpop.permute.xlu0 %363
      %365 = vset.pattern.permute.xlu0 0
      %366 = vperm.xlu0 %365, %v304
      %v367 = vpop.permute.xlu0 %366
      %368 = vset.pattern.permute.xlu0 0
      %369 = vperm.xlu0 %368, %v305
      %v370 = vpop.permute.xlu0 %369
      %371 = vset.pattern.permute.xlu0 0
      %372 = vperm.xlu0 %371, %v306
      %v373 = vpop.permute.xlu0 %372
      %374 = vset.pattern.permute.xlu0 0
      %375 = vperm.xlu0 %374, %v307
      %v376 = vpop.permute.xlu0 %375
      %377 = vset.pattern.permute.xlu0 0
      %378 = vperm.xlu0 %377, %v308
      %v379 = vpop.permute.xlu0 %378
      %380 = vset.pattern.permute.xlu0 0
      %381 = vperm.xlu0 %380, %v309
      %v382 = vpop.permute.xlu0 %381
      %383 = vset.pattern.permute.xlu0 0
      %384 = vperm.xlu0 %383, %v310
      %v385 = vpop.permute.xlu0 %384
      %386 = vset.pattern.permute.xlu0 0
      %387 = vperm.xlu0 %386, %v311
      %v388 = vpop.permute.xlu0 %387
      %389 = vset.pattern.permute.xlu0 0
      %390 = vperm.xlu0 %389, %v312
      %v391 = vpop.permute.xlu0 %390
      %392 = vset.pattern.permute.xlu0 0
      %393 = vperm.xlu0 %392, %v313
      %v394 = vpop.permute.xlu0 %393
      %395 = vset.pattern.permute.xlu0 0
      %396 = vperm.xlu0 %395, %v314
      %v397 = vpop.permute.xlu0 %396
      %398 = vset.pattern.permute.xlu0 0
      %399 = vperm.xlu0 %398, %v315
      %v400 = vpop.permute.xlu0 %399
      %401 = vset.pattern.permute.xlu0 0
      %402 = vperm.xlu0 %401, %v316
      %v403 = vpop.permute.xlu0 %402
      %404 = vset.pattern.permute.xlu0 0
      %405 = vperm.xlu0 %404, %v317
      %v406 = vpop.permute.xlu0 %405
      %407 = vset.pattern.permute.xlu0 0
      %408 = vperm.xlu0 %407, %v318
      %v409 = vpop.permute.xlu0 %408
      %410 = vset.pattern.permute.xlu0 0
      %411 = vperm.xlu0 %410, %v319
      %v412 = vpop.permute.xlu0 %411
      %413 = vset.pattern.permute.xlu0 0
      %414 = vperm.xlu0 %413, %v320
      %v415 = vpop.permute.xlu0 %414
      %416 = vset.pattern.permute.xlu0 0
      %417 = vperm.xlu0 %416, %v321
      %v418 = vpop.permute.xlu0 %417
      %419 = vset.pattern.permute.xlu0 0
      %420 = vperm.xlu0 %419, %v322
      %v421 = vpop.permute.xlu0 %420
      %422 = vset.pattern.permute.xlu0 0
      %423 = vperm.xlu0 %422, %v323
      %v424 = vpop.permute.xlu0 %423
      %425 = vset.pattern.permute.xlu0 0
      %426 = vperm.xlu0 %425, %v324
      %v427 = vpop.permute.xlu0 %426
      %vm428 = vcmp.eq.s32.totalorder %v334, %v330
      %vm429 = vcmp.eq.s32.totalorder %v334, %v331
      %vm430 = vcmp.eq.s32.totalorder %v337, %v330
      %vm431 = vcmp.eq.s32.totalorder %v337, %v331
      %vm432 = vcmp.eq.s32.totalorder %v340, %v330
      %vm433 = vcmp.eq.s32.totalorder %v340, %v331
      %vm434 = vcmp.eq.s32.totalorder %v343, %v330
      %vm435 = vcmp.eq.s32.totalorder %v343, %v331
      %vm436 = vcmp.eq.s32.totalorder %v346, %v330
      %vm437 = vcmp.eq.s32.totalorder %v346, %v331
      %vm438 = vcmp.eq.s32.totalorder %v349, %v330
      %vm439 = vcmp.eq.s32.totalorder %v349, %v331
      %vm440 = vcmp.eq.s32.totalorder %v352, %v330
      %vm441 = vcmp.eq.s32.totalorder %v352, %v331
      %vm442 = vcmp.eq.s32.totalorder %v355, %v330
      %vm443 = vcmp.eq.s32.totalorder %v355, %v331
      %vm444 = vcmp.eq.s32.totalorder %v358, %v330
      %vm445 = vcmp.eq.s32.totalorder %v358, %v331
      %vm446 = vcmp.eq.s32.totalorder %v361, %v330
      %vm447 = vcmp.eq.s32.totalorder %v361, %v331
      %vm448 = vcmp.eq.s32.totalorder %v364, %v330
      %vm449 = vcmp.eq.s32.totalorder %v364, %v331
      %vm450 = vcmp.eq.s32.totalorder %v367, %v330
      %vm451 = vcmp.eq.s32.totalorder %v367, %v331
      %vm452 = vcmp.eq.s32.totalorder %v370, %v330
      %vm453 = vcmp.eq.s32.totalorder %v370, %v331
      %vm454 = vcmp.eq.s32.totalorder %v373, %v330
      %vm455 = vcmp.eq.s32.totalorder %v373, %v331
      %vm456 = vcmp.eq.s32.totalorder %v376, %v330
      %vm457 = vcmp.eq.s32.totalorder %v376, %v331
      %vm458 = vcmp.eq.s32.totalorder %v379, %v330
      %vm459 = vcmp.eq.s32.totalorder %v379, %v331
      %vm460 = vcmp.eq.s32.totalorder %v382, %v330
      %vm461 = vcmp.eq.s32.totalorder %v382, %v331
      %vm462 = vcmp.eq.s32.totalorder %v385, %v330
      %vm463 = vcmp.eq.s32.totalorder %v385, %v331
      %vm464 = vcmp.eq.s32.totalorder %v388, %v330
      %vm465 = vcmp.eq.s32.totalorder %v388, %v331
      %vm466 = vcmp.eq.s32.totalorder %v391, %v330
      %vm467 = vcmp.eq.s32.totalorder %v391, %v331
      %vm468 = vcmp.eq.s32.totalorder %v394, %v330
      %vm469 = vcmp.eq.s32.totalorder %v394, %v331
      %vm470 = vcmp.eq.s32.totalorder %v397, %v330
      %vm471 = vcmp.eq.s32.totalorder %v397, %v331
      %vm472 = vcmp.eq.s32.totalorder %v400, %v330
      %vm473 = vcmp.eq.s32.totalorder %v400, %v331
      %vm474 = vcmp.eq.s32.totalorder %v403, %v330
      %vm475 = vcmp.eq.s32.totalorder %v403, %v331
      %vm476 = vcmp.eq.s32.totalorder %v406, %v330
      %vm477 = vcmp.eq.s32.totalorder %v406, %v331
      %vm478 = vcmp.eq.s32.totalorder %v409, %v330
      %vm479 = vcmp.eq.s32.totalorder %v409, %v331
      %vm480 = vcmp.eq.s32.totalorder %v412, %v330
      %vm481 = vcmp.eq.s32.totalorder %v412, %v331
      %vm482 = vcmp.eq.s32.totalorder %v415, %v330
      %vm483 = vcmp.eq.s32.totalorder %v415, %v331
      %vm484 = vcmp.eq.s32.totalorder %v418, %v330
      %vm485 = vcmp.eq.s32.totalorder %v418, %v331
      %vm486 = vcmp.eq.s32.totalorder %v421, %v330
      %vm487 = vcmp.eq.s32.totalorder %v421, %v331
      %vm488 = vcmp.eq.s32.totalorder %v424, %v330
      %vm489 = vcmp.eq.s32.totalorder %v424, %v331
      %vm490 = vcmp.eq.s32.totalorder %v427, %v330
      %vm491 = vcmp.eq.s32.totalorder %v427, %v331
      %v492 = vsel %vm428, 1, 0
      %v493 = vsel %vm429, 1, 0
      %v494 = vsel %vm430, 1, 0
      %v495 = vsel %vm431, 1, 0
      %v496 = vsel %vm432, 1, 0
      %v497 = vsel %vm433, 1, 0
      %v498 = vsel %vm434, 1, 0
      %v499 = vsel %vm435, 1, 0
      %v500 = vsel %vm436, 1, 0
      %v501 = vsel %vm437, 1, 0
      %v502 = vsel %vm438, 1, 0
      %v503 = vsel %vm439, 1, 0
      %v504 = vsel %vm440, 1, 0
      %v505 = vsel %vm441, 1, 0
      %v506 = vsel %vm442, 1, 0
      %v507 = vsel %vm443, 1, 0
      %v508 = vsel %vm444, 1, 0
      %v509 = vsel %vm445, 1, 0
      %v510 = vsel %vm446, 1, 0
      %v511 = vsel %vm447, 1, 0
      %v512 = vsel %vm448, 1, 0
      %v513 = vsel %vm449, 1, 0
      %v514 = vsel %vm450, 1, 0
      %v515 = vsel %vm451, 1, 0
      %v516 = vsel %vm452, 1, 0
      %v517 = vsel %vm453, 1, 0
      %v518 = vsel %vm454, 1, 0
      %v519 = vsel %vm455, 1, 0
      %v520 = vsel %vm456, 1, 0
      %v521 = vsel %vm457, 1, 0
      %v522 = vsel %vm458, 1, 0
      %v523 = vsel %vm459, 1, 0
      %v524 = vsel %vm460, 1, 0
      %v525 = vsel %vm461, 1, 0
      %v526 = vsel %vm462, 1, 0
      %v527 = vsel %vm463, 1, 0
      %v528 = vsel %vm464, 1, 0
      %v529 = vsel %vm465, 1, 0
      %v530 = vsel %vm466, 1, 0
      %v531 = vsel %vm467, 1, 0
      %v532 = vsel %vm468, 1, 0
      %v533 = vsel %vm469, 1, 0
      %v534 = vsel %vm470, 1, 0
      %v535 = vsel %vm471, 1, 0
      %v536 = vsel %vm472, 1, 0
      %v537 = vsel %vm473, 1, 0
      %v538 = vsel %vm474, 1, 0
      %v539 = vsel %vm475, 1, 0
      %v540 = vsel %vm476, 1, 0
      %v541 = vsel %vm477, 1, 0
      %v542 = vsel %vm478, 1, 0
      %v543 = vsel %vm479, 1, 0
      %v544 = vsel %vm480, 1, 0
      %v545 = vsel %vm481, 1, 0
      %v546 = vsel %vm482, 1, 0
      %v547 = vsel %vm483, 1, 0
      %v548 = vsel %vm484, 1, 0
      %v549 = vsel %vm485, 1, 0
      %v550 = vsel %vm486, 1, 0
      %v551 = vsel %vm487, 1, 0
      %v552 = vsel %vm488, 1, 0
      %v553 = vsel %vm489, 1, 0
      %v554 = vsel %vm490, 1, 0
      %v555 = vsel %vm491, 1, 0
      %v556 = vcvt.s32.f32 %v492
      %v557 = vcvt.s32.f32 %v493
      %v558 = vcvt.s32.f32 %v494
      %v559 = vcvt.s32.f32 %v495
      %v560 = vcvt.s32.f32 %v496
      %v561 = vcvt.s32.f32 %v497
      %v562 = vcvt.s32.f32 %v498
      %v563 = vcvt.s32.f32 %v499
      %v564 = vcvt.s32.f32 %v500
      %v565 = vcvt.s32.f32 %v501
      %v566 = vcvt.s32.f32 %v502
      %v567 = vcvt.s32.f32 %v503
      %v568 = vcvt.s32.f32 %v504
      %v569 = vcvt.s32.f32 %v505
      %v570 = vcvt.s32.f32 %v506
      %v571 = vcvt.s32.f32 %v507
      %v572 = vcvt.s32.f32 %v508
      %v573 = vcvt.s32.f32 %v509
      %v574 = vcvt.s32.f32 %v510
      %v575 = vcvt.s32.f32 %v511
      %v576 = vcvt.s32.f32 %v512
      %v577 = vcvt.s32.f32 %v513
      %v578 = vcvt.s32.f32 %v514
      %v579 = vcvt.s32.f32 %v515
      %v580 = vcvt.s32.f32 %v516
      %v581 = vcvt.s32.f32 %v517
      %v582 = vcvt.s32.f32 %v518
      %v583 = vcvt.s32.f32 %v519
      %v584 = vcvt.s32.f32 %v520
      %v585 = vcvt.s32.f32 %v521
      %v586 = vcvt.s32.f32 %v522
      %v587 = vcvt.s32.f32 %v523
      %v588 = vcvt.s32.f32 %v524
      %v589 = vcvt.s32.f32 %v525
      %v590 = vcvt.s32.f32 %v526
      %v591 = vcvt.s32.f32 %v527
      %v592 = vcvt.s32.f32 %v528
      %v593 = vcvt.s32.f32 %v529
      %v594 = vcvt.s32.f32 %v530
      %v595 = vcvt.s32.f32 %v531
      %v596 = vcvt.s32.f32 %v532
      %v597 = vcvt.s32.f32 %v533
      %v598 = vcvt.s32.f32 %v534
      %v599 = vcvt.s32.f32 %v535
      %v600 = vcvt.s32.f32 %v536
      %v601 = vcvt.s32.f32 %v537
      %v602 = vcvt.s32.f32 %v538
      %v603 = vcvt.s32.f32 %v539
      %v604 = vcvt.s32.f32 %v540
      %v605 = vcvt.s32.f32 %v541
      %v606 = vcvt.s32.f32 %v542
      %v607 = vcvt.s32.f32 %v543
      %v608 = vcvt.s32.f32 %v544
      %v609 = vcvt.s32.f32 %v545
      %v610 = vcvt.s32.f32 %v546
      %v611 = vcvt.s32.f32 %v547
      %v612 = vcvt.s32.f32 %v548
      %v613 = vcvt.s32.f32 %v549
      %v614 = vcvt.s32.f32 %v550
      %v615 = vcvt.s32.f32 %v551
      %v616 = vcvt.s32.f32 %v552
      %v617 = vcvt.s32.f32 %v553
      %v618 = vcvt.s32.f32 %v554
      %v619 = vcvt.s32.f32 %v555
      %v620 = vpack.c.bf16 %v558, %v556
      %v621 = vpack.c.bf16 %v559, %v557
      %v622 = vpack.c.bf16 %v562, %v560
      %v623 = vpack.c.bf16 %v563, %v561
      %v624 = vpack.c.bf16 %v566, %v564
      %v625 = vpack.c.bf16 %v567, %v565
      %v626 = vpack.c.bf16 %v570, %v568
      %v627 = vpack.c.bf16 %v571, %v569
      %v628 = vpack.c.bf16 %v574, %v572
      %v629 = vpack.c.bf16 %v575, %v573
      %v630 = vpack.c.bf16 %v578, %v576
      %v631 = vpack.c.bf16 %v579, %v577
      %v632 = vpack.c.bf16 %v582, %v580
      %v633 = vpack.c.bf16 %v583, %v581
      %v634 = vpack.c.bf16 %v586, %v584
      %v635 = vpack.c.bf16 %v587, %v585
      %v636 = vpack.c.bf16 %v590, %v588
      %v637 = vpack.c.bf16 %v591, %v589
      %v638 = vpack.c.bf16 %v594, %v592
      %v639 = vpack.c.bf16 %v595, %v593
      %v640 = vpack.c.bf16 %v598, %v596
      %v641 = vpack.c.bf16 %v599, %v597
      %v642 = vpack.c.bf16 %v602, %v600
      %v643 = vpack.c.bf16 %v603, %v601
      %v644 = vpack.c.bf16 %v606, %v604
      %v645 = vpack.c.bf16 %v607, %v605
      %v646 = vpack.c.bf16 %v610, %v608
      %v647 = vpack.c.bf16 %v611, %v609
      %v648 = vpack.c.bf16 %v614, %v612
      %v649 = vpack.c.bf16 %v615, %v613
      %v650 = vpack.c.bf16 %v618, %v616
      %v651 = vpack.c.bf16 %v619, %v617
      %v652 = vld [vmem:[%s173] sm:$0xff]
      %v653 = vld [vmem:[#allocation2] sm:$0xff]
      %v654 = vld [vmem:[#allocation2 + $0x8] sm:$0xff]
      %v656 = vunpack.c.l.b16 %v652
      %v657 = vunpack.c.h.b16 %v652
      %v658 = vpack.c.b16 %v656, %v656
      %v659 = vpack.c.b16 %v657, %v657
      %662 = vmatprep.subr.bf16.mxu0 %v621
      %663 = vmatpush1.bf16.msra.mxu0 %v620
      %664 = vmatprep.subr.bf16.mxu0 %v623
      %665 = vmatpush1.bf16.msra.mxu0 %v622
      %666 = vmatprep.subr.bf16.mxu0 %v625
      %667 = vmatpush1.bf16.msra.mxu0 %v624
      %668 = vmatprep.subr.bf16.mxu0 %v627
      %669 = vmatpush1.bf16.msra.mxu0 %v626
      %670 = vmatprep.subr.bf16.mxu0 %v629
      %671 = vmatpush1.bf16.msra.mxu0 %v628
      %672 = vmatprep.subr.bf16.mxu0 %v631
      %673 = vmatpush1.bf16.msra.mxu0 %v630
      %674 = vmatprep.subr.bf16.mxu0 %v633
      %675 = vmatpush1.bf16.msra.mxu0 %v632
      %676 = vmatprep.subr.bf16.mxu0 %v635
      %677 = vmatpush1.bf16.msra.mxu0 %v634
      %678 = vmatprep.subr.bf16.mxu0 %v637
      %679 = vmatpush1.bf16.msra.mxu0 %v636
      %680 = vmatprep.subr.bf16.mxu0 %v639
      %681 = vmatpush1.bf16.msra.mxu0 %v638
      %682 = vmatprep.subr.bf16.mxu0 %v641
      %683 = vmatpush1.bf16.msra.mxu0 %v640
      %684 = vmatprep.subr.bf16.mxu0 %v643
      %685 = vmatpush1.bf16.msra.mxu0 %v642
      %686 = vmatprep.subr.bf16.mxu0 %v645
      %687 = vmatpush1.bf16.msra.mxu0 %v644
      %688 = vmatprep.subr.bf16.mxu0 %v647
      %689 = vmatpush1.bf16.msra.mxu0 %v646
      %690 = vmatprep.subr.bf16.mxu0 %v649
      %691 = vmatpush1.bf16.msra.mxu0 %v648
      %692 = vmatprep.subr.bf16.mxu0 %v651
      %693 = vmatpush1.bf16.msra.mxu0 %v650
      %694 = vmatprep.mubr.bf16.mxu0 %v659
      %695 = vmatmul.mubr.bf16.gmra.mrb[0].mxu0 %v658
      %v696 = vpop.f32.mrb[0].mxu0
      %v697 = vadd.f32 0.0, %v696
      %v698 = vpop.f32.mrb[0].mxu0
      %v699 = vadd.f32 0.0, %v698
      %v700 = vpop.f32.mrb[0].mxu0
      %v701 = vpop.f32.mrb[0].mxu0
      %702 = vdwg.mxu0
      %v703 = vadd.f32 %v653, %v697
      %v704 = vadd.f32 %v654, %v699
      %705 = vst [vmem:[#allocation2] sm:$0xff] %v703
      %706 = vst [vmem:[#allocation2 + $0x8] sm:$0xff] %v704
      %v707 = vld [vmem:[#allocation3] sm:$0x3]
      %708 = vmatprep.subr.bf16.mxu0 %v621
      %709 = vmatpush1.bf16.msra.mxu0 %v620
      %710 = vmatprep.subr.bf16.mxu0 %v623
      %711 = vmatpush1.bf16.msra.mxu0 %v622
      %712 = vmatprep.subr.bf16.mxu0 %v625
      %713 = vmatpush1.bf16.msra.mxu0 %v624
      %714 = vmatprep.subr.bf16.mxu0 %v627
      %715 = vmatpush1.bf16.msra.mxu0 %v626
      %716 = vmatprep.subr.bf16.mxu0 %v629
      %717 = vmatpush1.bf16.msra.mxu0 %v628
      %718 = vmatprep.subr.bf16.mxu0 %v631
      %719 = vmatpush1.bf16.msra.mxu0 %v630
      %720 = vmatprep.subr.bf16.mxu0 %v633
      %721 = vmatpush1.bf16.msra.mxu0 %v632
      %722 = vmatprep.subr.bf16.mxu0 %v635
      %723 = vmatpush1.bf16.msra.mxu0 %v634
      %724 = vmatprep.subr.bf16.mxu0 %v637
      %725 = vmatpush1.bf16.msra.mxu0 %v636
      %726 = vmatprep.subr.bf16.mxu0 %v639
      %727 = vmatpush1.bf16.msra.mxu0 %v638
      %728 = vmatprep.subr.bf16.mxu0 %v641
      %729 = vmatpush1.bf16.msra.mxu0 %v640
      %730 = vmatprep.subr.bf16.mxu0 %v643
      %731 = vmatpush1.bf16.msra.mxu0 %v642
      %732 = vmatprep.subr.bf16.mxu0 %v645
      %733 = vmatpush1.bf16.msra.mxu0 %v644
      %734 = vmatprep.subr.bf16.mxu0 %v647
      %735 = vmatpush1.bf16.msra.mxu0 %v646
      %736 = vmatprep.subr.bf16.mxu0 %v649
      %737 = vmatpush1.bf16.msra.mxu0 %v648
      %738 = vmatprep.subr.bf16.mxu0 %v651
      %739 = vmatpush1.bf16.msra.mxu0 %v650
      %740 = vmatprep.mubr.bf16.mxu0 1065369472
      %741 = vmatmul.mubr.bf16.gmra.mrb[0].mxu0 1065369472
      %v742 = vpop.f32.mrb[0].mxu0
      %v743 = vadd.f32 0.0, %v742
      %v744 = vpop.f32.mrb[0].mxu0
      %v745 = vadd.f32 0.0, %v744
      %v746 = vpop.f32.mrb[0].mxu0
      %v747 = vpop.f32.mrb[0].mxu0
      %748 = vdwg.mxu0
      %v751 = vcombine.low %v743, %v745
      %v753 = vunpack.c.l.s4 1966171168
      %v754 = vunpack.c.0.s8 %v753
      %v755 = vlaneseq
      %v756 = vshrl.u32 %v755, 7
      %v757 = vsub.s32 %v754, %v756
      %v758 = vrot.slane %v751, %v757
      %v760 = vunpack.c.l.s4 1966171168
      %v761 = vunpack.c.0.s8 %v760
      %v762 = vlaneseq
      %v763 = vshrl.u32 %v762, 7
      %v764 = vsub.s32 %v761, %v763
      %v765 = vrot.slane %v758, %v764
      %v767 = vadd.f32 %v707, %v765
      %v768 = vlaneseq
      %vm769 = vcmp.ge.s32.totalorder %v768, 0
      %vm770 = vcmp.lt.s32.totalorder %v768, 256
      %vm771 = vmand %vm769, %vm770
      %772 = vst.msk [vmem:[#allocation3] sm:$0x3] %vm771, %v767
      // Predicated region
      $region33: #{rpvnet_forward.10} parent=27 // pred_check
        %p773 = pneg %p182
      $region34: #{rpvnet_forward.10} parent=27 // pred_check_branch
        %775 = sbr.rel (%p773) target = $region36
      $region35: #{rpvnet_forward.10} parent=27 // pred_region
        %v776 = vld [vmem:[#allocation2] sm:$0xff]
        %v777 = vld [vmem:[#allocation2 + $0x8] sm:$0xff]
        %v778 = vld [vmem:[#allocation3] sm:$0x3]
        %v779 = vmax.f32 %v778, 1.0
        %v781 = vlaneseq
        %v782 = vshrl.u32 %v781, 7
        %v783 = vsub.s32 0, %v782
        %v784 = vrot.slane %v779, %v783
        %v785 = vlaneseq
        %v786 = vshrl.u32 %v785, 7
        %v787 = vsub.s32 1, %v786
        %v788 = vrot.slane %v779, %v787
        %v791 = vrcp.pop %v784
        %v792 = vmul.f32 %v776, %v791
        %v793 = vrcp.pop %v788
        %v794 = vmul.f32 %v777, %v793
        %v795 = vpack.c.bf16 %v792, %v792
        %v796 = vpack.c.bf16 %v794, %v794
        %v799 = vunpack.c.l.b16 %v795
        %v800 = vunpack.c.l.b16 %v796
        %v801 = vpack.c.b16 %v800, %v799
        %803 = vst [vmem:[%s179] sm:$0xff] %v801
      $region36: #{rpvnet_forward.10} parent=27 // pred_fallthru
        _
      %s804 = smul.u32 2, %s17
      %p805 = scmp.lt.s32.totalorder %s804, 5
      %s806 = scalar_select %p805, %s804, 5
      %s807 = smul.addr %s806, 4
      %s808 = scalar_lea.vmem %s2, %s807
      // Predicated region
      $region37: #{rpvnet_forward.10} parent=27 // pred_check
        %p809 = pneg %p95
      $region38: #{rpvnet_forward.10} parent=27 // pred_check_branch
        %811 = sbr.rel (%p809) target = $region40
      $region39: #{rpvnet_forward.10} parent=27 // pred_region
        %s812 = smul.u32 2, %s17
      $region40: #{rpvnet_forward.10} parent=27 // pred_fallthru
        _
    $region28: #{rpvnet_forward.10} parent=5 // pred_fallthru
      _
    %p813 = scmp.le.s32.totalorder 2, %s8
    // Predicated region
    $region41: #{rpvnet_forward.10} parent=5 // pred_check
      %p814 = pneg %p813
    $region42: #{rpvnet_forward.10} parent=5 // pred_check_branch
      %816 = sbr.rel (%p814) target = $region44
    $region43: #{rpvnet_forward.10} parent=5 // pred_region
      %s817 = ssub.s32 %s8, 2
      // Predicated region
      $region45: #{rpvnet_forward.10} parent=43 // pred_check
        %p818 = pneg %p101
      $region46: #{rpvnet_forward.10} parent=43 // pred_check_branch
        %820 = sbr.rel (%p818) target = $region48
      $region47: #{rpvnet_forward.10} parent=43 // pred_region
        %s821 = smul.u32 2, %s19
        %p822 = scmp.lt.s32.totalorder %s821, 5
        %s823 = scalar_select %p822, %s821, 5
        %s824 = smul.addr %s823, 4
        %s825 = scalar_lea.vmem %s2, %s824
      $region48: #{rpvnet_forward.10} parent=43 // pred_fallthru
        _
    $region44: #{rpvnet_forward.10} parent=5 // pred_fallthru
      _
  $region6: #{rpvnet_forward.10} parent=0 // loop_footer
    %s12 = sadd.s32 1, %s8
  $region7: #{rpvnet_forward.10} parent=0 // loop_footer_branch
    %7 = sbr.rel target = $region3
  $region8: #{rpvnet_forward.10} parent=0 // loop_exit
    _

// kernel: rpvnet_forward.11
$region0: #{rpvnet_forward.11}
  #allocation0 [shape = 'u32[]', space=smem, size = 0x4, offset = 0x4, fixed_abs, tag = 'smem constant byte address 0x4 - core index']
  #allocation1 [shape = 'u32[144,128]{1,0:T(1,128)}', space=vmem, size = 0x12000, scoped, tag = 'internal scratch']
  %s0 = inlined_call_operand.vmem [shape: bf16[8,256], index: 0, kind: input, shape index: {}]
  %s1 = inlined_call_operand.vmem [shape: bf16[8,256], index: 1, kind: input, shape index: {}]
  %s2 = inlined_call_operand.vmem [shape: bf16[8,256], index: 2, kind: input, shape index: {}]
  %s3 = inlined_call_operand.vmem [shape: bf16[32,8], index: 3, kind: input, shape index: {}]
  %s4 = inlined_call_operand.vmem [shape: bf16[32,8], index: 4, kind: input, shape index: {}]
  %s5 = inlined_call_operand.vmem [shape: bf16[32,8], index: 5, kind: input, shape index: {}]
  %s6 = inlined_call_operand.vmem [shape: f32[96,1], index: 6, kind: input, shape index: {}]
  %s7 = inlined_call_operand.vmem [shape: f32[3,32], index: 7, kind: input, shape index: {}]
  %s8 = inlined_call_operand.vmem [shape: f32[3,32], index: 8, kind: input, shape index: {}]
  %s9 = inlined_call_operand.vmem [shape: f32[3,32], index: 9, kind: input, shape index: {}]
  %s10 = inlined_call_operand.vmem [shape: f32[3,1], index: 10, kind: input, shape index: {}]
  %s11 = inlined_call_operand.vmem [shape: bf16[32,256], index: 11, kind: output, shape index: {}]
  %s12 = sld [smem:[#allocation0]]
  $region114: #{rpvnet_forward.11} parent=0
    _
  %s14 = ssub.s32 1, %s12
  %s15 = scalar_select 0, %s14, %s12
  $region1: #{rpvnet_forward.11} parent=0
    #allocation2 [shape = 'u8[16384]{0}', space=vmem, size = 0x4000, scoped, tag = 'output window, operand 0']
    loop: start=0, step=1, limit=4
    $region2: #{rpvnet_forward.11} parent=1 // loop_pre_header
      _
    $region3: #{rpvnet_forward.11} parent=1 // loop_header
      %s17 = sphi 0, %s21
      %p18 = scmp.ge.s32.totalorder %s17, 4
      %s27 = sphi 0, %s29
      %s30 = sphi 0, %s27
      %s31 = sphi 0, %s30
      %s47 = sphi 0, %s31
      %s53 = sphi 0, %s55
      %s56 = sphi 0, %s53
      %s57 = sphi 0, %s56
      %s73 = sphi 0, %s57
      %s79 = sphi 0, %s81
      %s82 = sphi 0, %s79
      %s83 = sphi 0, %s82
      %s99 = sphi 0, %s83
      %s103 = sphi 0, %s103
      %s105 = sphi 0, %s103
      %s106 = sphi 0, %s105
      %s120 = sphi 0, %s106
      %s124 = sphi 0, %s124
      %s126 = sphi 0, %s124
      %s127 = sphi 0, %s126
      %s141 = sphi 0, %s127
      %s145 = sphi 0, %s145
      %s147 = sphi 0, %s145
      %s148 = sphi 0, %s147
      %s162 = sphi 0, %s148
      %s166 = sphi 0, %s166
      %s168 = sphi 0, %s166
      %s169 = sphi 0, %s168
      %s183 = sphi 0, %s169
      %s187 = sphi 0, %s187
      %s189 = sphi 0, %s187
      %s190 = sphi 0, %s189
      %s204 = sphi 0, %s190
      %s208 = sphi 0, %s208
      %s210 = sphi 0, %s208
      %s211 = sphi 0, %s210
      %s225 = sphi 0, %s211
      %s229 = sphi 0, %s229
      %s231 = sphi 0, %s229
      %s232 = sphi 0, %s231
      %s246 = sphi 0, %s232
      %s250 = sphi 0, %s250
      %s252 = sphi 0, %s250
      %s253 = sphi 0, %s252
      %s267 = sphi 0, %s253
      %s273 = sphi 0, %s275
      %s276 = sphi 0, %s273
      %s277 = sphi 0, %s276
      %s293 = sphi 0, %s277
    $region4: #{rpvnet_forward.11} parent=1 // loop_header_branch
      %20 = sbr.rel (%p18) target = $region8
    $region5: #{rpvnet_forward.11} parent=1 // loop_body
      %s22 = ssub.s32 %s17, 1
      %s23 = ssub.s32 %s17, 2
      %s24 = sadd.s32 %s17, 1
      %s25 = ssub.s32 %s17, %s24
      %p26 = scmp.eq.s32.totalorder %s25, 0
      %s28 = sadd.s32 %s27, 1
      %s29 = scalar_select %p26, %s27, %s28
      %p32 = pneg %p26
      %p33 = scmp.eq.s32.totalorder %s17, 1
      %p34 = por %p32, %p33
      %p35 = scmp.ne.s32.totalorder %s27, %s30
      %p36 = scmp.eq.s32.totalorder %s17, 0
      %p37 = por %p35, %p36
      %p38 = scmp.ne.s32.totalorder %s27, %s30
      %p39 = scmp.eq.s32.totalorder %s22, 1
      %p40 = por %p38, %p39
      %p41 = scmp.ne.s32.totalorder %s30, %s31
      %p42 = scmp.eq.s32.totalorder %s22, 0
      %p43 = por %p41, %p42
      %p44 = scmp.ne.s32.totalorder %s30, %s31
      %p45 = scmp.eq.s32.totalorder %s23, 1
      %p46 = por %p44, %p45
      %p48 = scmp.ne.s32.totalorder %s31, %s47
      %p49 = scmp.eq.s32.totalorder %s23, 0
      %p50 = por %p48, %p49
      %s51 = ssub.s32 %s17, %s24
      %p52 = scmp.eq.s32.totalorder %s51, 0
      %s54 = sadd.s32 %s53, 1
      %s55 = scalar_select %p52, %s53, %s54
      %p58 = pneg %p52
      %p59 = scmp.eq.s32.totalorder %s17, 1
      %p60 = por %p58, %p59
      %p61 = scmp.ne.s32.totalorder %s53, %s56
      %p62 = scmp.eq.s32.totalorder %s17, 0
      %p63 = por %p61, %p62
      %p64 = scmp.ne.s32.totalorder %s53, %s56
      %p65 = scmp.eq.s32.totalorder %s22, 1
      %p66 = por %p64, %p65
      %p67 = scmp.ne.s32.totalorder %s56, %s57
      %p68 = scmp.eq.s32.totalorder %s22, 0
      %p69 = por %p67, %p68
      %p70 = scmp.ne.s32.totalorder %s56, %s57
      %p71 = scmp.eq.s32.totalorder %s23, 1
      %p72 = por %p70, %p71
      %p74 = scmp.ne.s32.totalorder %s57, %s73
      %p75 = scmp.eq.s32.totalorder %s23, 0
      %p76 = por %p74, %p75
      %s77 = ssub.s32 %s17, %s24
      %p78 = scmp.eq.s32.totalorder %s77, 0
      %s80 = sadd.s32 %s79, 1
      %s81 = scalar_select %p78, %s79, %s80
      %p84 = pneg %p78
      %p85 = scmp.eq.s32.totalorder %s17, 1
      %p86 = por %p84, %p85
      %p87 = scmp.ne.s32.totalorder %s79, %s82
      %p88 = scmp.eq.s32.totalorder %s17, 0
      %p89 = por %p87, %p88
      %p90 = scmp.ne.s32.totalorder %s79, %s82
      %p91 = scmp.eq.s32.totalorder %s22, 1
      %p92 = por %p90, %p91
      %p93 = scmp.ne.s32.totalorder %s82, %s83
      %p94 = scmp.eq.s32.totalorder %s22, 0
      %p95 = por %p93, %p94
      %p96 = scmp.ne.s32.totalorder %s82, %s83
      %p97 = scmp.eq.s32.totalorder %s23, 1
      %p98 = por %p96, %p97
      %p100 = scmp.ne.s32.totalorder %s83, %s99
      %p101 = scmp.eq.s32.totalorder %s23, 0
      %p102 = por %p100, %p101
      %s104 = sadd.s32 %s103, 1
      %p107 = scmp.eq.s32.totalorder %s17, 1
      %p108 = scmp.ne.s32.totalorder %s103, %s105
      %p109 = scmp.eq.s32.totalorder %s17, 0
      %p110 = por %p108, %p109
      %p111 = scmp.ne.s32.totalorder %s103, %s105
      %p112 = scmp.eq.s32.totalorder %s22, 1
      %p113 = por %p111, %p112
      %p114 = scmp.ne.s32.totalorder %s105, %s106
      %p115 = scmp.eq.s32.totalorder %s22, 0
      %p116 = por %p114, %p115
      %p117 = scmp.ne.s32.totalorder %s105, %s106
      %p118 = scmp.eq.s32.totalorder %s23, 1
      %p119 = por %p117, %p118
      %p121 = scmp.ne.s32.totalorder %s106, %s120
      %p122 = scmp.eq.s32.totalorder %s23, 0
      %p123 = por %p121, %p122
      %s125 = sadd.s32 %s124, 1
      %p128 = scmp.eq.s32.totalorder %s17, 1
      %p129 = scmp.ne.s32.totalorder %s124, %s126
      %p130 = scmp.eq.s32.totalorder %s17, 0
      %p131 = por %p129, %p130
      %p132 = scmp.ne.s32.totalorder %s124, %s126
      %p133 = scmp.eq.s32.totalorder %s22, 1
      %p134 = por %p132, %p133
      %p135 = scmp.ne.s32.totalorder %s126, %s127
      %p136 = scmp.eq.s32.totalorder %s22, 0
      %p137 = por %p135, %p136
      %p138 = scmp.ne.s32.totalorder %s126, %s127
      %p139 = scmp.eq.s32.totalorder %s23, 1
      %p140 = por %p138, %p139
      %p142 = scmp.ne.s32.totalorder %s127, %s141
      %p143 = scmp.eq.s32.totalorder %s23, 0
      %p144 = por %p142, %p143
      %s146 = sadd.s32 %s145, 1
      %p149 = scmp.eq.s32.totalorder %s17, 1
      %p150 = scmp.ne.s32.totalorder %s145, %s147
      %p151 = scmp.eq.s32.totalorder %s17, 0
      %p152 = por %p150, %p151
      %p153 = scmp.ne.s32.totalorder %s145, %s147
      %p154 = scmp.eq.s32.totalorder %s22, 1
      %p155 = por %p153, %p154
      %p156 = scmp.ne.s32.totalorder %s147, %s148
      %p157 = scmp.eq.s32.totalorder %s22, 0
      %p158 = por %p156, %p157
      %p159 = scmp.ne.s32.totalorder %s147, %s148
      %p160 = scmp.eq.s32.totalorder %s23, 1
      %p161 = por %p159, %p160
      %p163 = scmp.ne.s32.totalorder %s148, %s162
      %p164 = scmp.eq.s32.totalorder %s23, 0
      %p165 = por %p163, %p164
      %s167 = sadd.s32 %s166, 1
      %p170 = scmp.eq.s32.totalorder %s17, 1
      %p171 = scmp.ne.s32.totalorder %s166, %s168
      %p172 = scmp.eq.s32.totalorder %s17, 0
      %p173 = por %p171, %p172
      %p174 = scmp.ne.s32.totalorder %s166, %s168
      %p175 = scmp.eq.s32.totalorder %s22, 1
      %p176 = por %p174, %p175
      %p177 = scmp.ne.s32.totalorder %s168, %s169
      %p178 = scmp.eq.s32.totalorder %s22, 0
      %p179 = por %p177, %p178
      %p180 = scmp.ne.s32.totalorder %s168, %s169
      %p181 = scmp.eq.s32.totalorder %s23, 1
      %p182 = por %p180, %p181
      %p184 = scmp.ne.s32.totalorder %s169, %s183
      %p185 = scmp.eq.s32.totalorder %s23, 0
      %p186 = por %p184, %p185
      %s188 = sadd.s32 %s187, 1
      %p191 = scmp.eq.s32.totalorder %s17, 1
      %p192 = scmp.ne.s32.totalorder %s187, %s189
      %p193 = scmp.eq.s32.totalorder %s17, 0
      %p194 = por %p192, %p193
      %p195 = scmp.ne.s32.totalorder %s187, %s189
      %p196 = scmp.eq.s32.totalorder %s22, 1
      %p197 = por %p195, %p196
      %p198 = scmp.ne.s32.totalorder %s189, %s190
      %p199 = scmp.eq.s32.totalorder %s22, 0
      %p200 = por %p198, %p199
      %p201 = scmp.ne.s32.totalorder %s189, %s190
      %p202 = scmp.eq.s32.totalorder %s23, 1
      %p203 = por %p201, %p202
      %p205 = scmp.ne.s32.totalorder %s190, %s204
      %p206 = scmp.eq.s32.totalorder %s23, 0
      %p207 = por %p205, %p206
      %s209 = sadd.s32 %s208, 1
      %p212 = scmp.eq.s32.totalorder %s17, 1
      %p213 = scmp.ne.s32.totalorder %s208, %s210
      %p214 = scmp.eq.s32.totalorder %s17, 0
      %p215 = por %p213, %p214
      %p216 = scmp.ne.s32.totalorder %s208, %s210
      %p217 = scmp.eq.s32.totalorder %s22, 1
      %p218 = por %p216, %p217
      %p219 = scmp.ne.s32.totalorder %s210, %s211
      %p220 = scmp.eq.s32.totalorder %s22, 0
      %p221 = por %p219, %p220
      %p222 = scmp.ne.s32.totalorder %s210, %s211
      %p223 = scmp.eq.s32.totalorder %s23, 1
      %p224 = por %p222, %p223
      %p226 = scmp.ne.s32.totalorder %s211, %s225
      %p227 = scmp.eq.s32.totalorder %s23, 0
      %p228 = por %p226, %p227
      %s230 = sadd.s32 %s229, 1
      %p233 = scmp.eq.s32.totalorder %s17, 1
      %p234 = scmp.ne.s32.totalorder %s229, %s231
      %p235 = scmp.eq.s32.totalorder %s17, 0
      %p236 = por %p234, %p235
      %p237 = scmp.ne.s32.totalorder %s229, %s231
      %p238 = scmp.eq.s32.totalorder %s22, 1
      %p239 = por %p237, %p238
      %p240 = scmp.ne.s32.totalorder %s231, %s232
      %p241 = scmp.eq.s32.totalorder %s22, 0
      %p242 = por %p240, %p241
      %p243 = scmp.ne.s32.totalorder %s231, %s232
      %p244 = scmp.eq.s32.totalorder %s23, 1
      %p245 = por %p243, %p244
      %p247 = scmp.ne.s32.totalorder %s232, %s246
      %p248 = scmp.eq.s32.totalorder %s23, 0
      %p249 = por %p247, %p248
      %s251 = sadd.s32 %s250, 1
      %p254 = scmp.eq.s32.totalorder %s17, 1
      %p255 = scmp.ne.s32.totalorder %s250, %s252
      %p256 = scmp.eq.s32.totalorder %s17, 0
      %p257 = por %p255, %p256
      %p258 = scmp.ne.s32.totalorder %s250, %s252
      %p259 = scmp.eq.s32.totalorder %s22, 1
      %p260 = por %p258, %p259
      %p261 = scmp.ne.s32.totalorder %s252, %s253
      %p262 = scmp.eq.s32.totalorder %s22, 0
      %p263 = por %p261, %p262
      %p264 = scmp.ne.s32.totalorder %s252, %s253
      %p265 = scmp.eq.s32.totalorder %s23, 1
      %p266 = por %p264, %p265
      %p268 = scmp.ne.s32.totalorder %s253, %s267
      %p269 = scmp.eq.s32.totalorder %s23, 0
      %p270 = por %p268, %p269
      %s271 = ssub.s32 %s17, %s24
      %p272 = scmp.eq.s32.totalorder %s271, 0
      %s274 = sadd.s32 %s273, 1
      %s275 = scalar_select %p272, %s273, %s274
      %p278 = pneg %p272
      %p279 = scmp.eq.s32.totalorder %s17, 1
      %p280 = por %p278, %p279
      %p281 = scmp.ne.s32.totalorder %s273, %s276
      %p282 = scmp.eq.s32.totalorder %s17, 0
      %p283 = por %p281, %p282
      %p284 = scmp.ne.s32.totalorder %s273, %s276
      %p285 = scmp.eq.s32.totalorder %s22, 1
      %p286 = por %p284, %p285
      %p287 = scmp.ne.s32.totalorder %s276, %s277
      %p288 = scmp.eq.s32.totalorder %s22, 0
      %p289 = por %p287, %p288
      %p290 = scmp.ne.s32.totalorder %s276, %s277
      %p291 = scmp.eq.s32.totalorder %s23, 1
      %p292 = por %p290, %p291
      %p294 = scmp.ne.s32.totalorder %s277, %s293
      %p295 = scmp.eq.s32.totalorder %s23, 0
      %p296 = por %p294, %p295
      %p297 = scmp.le.s32.totalorder 1, %s17
      %p298 = scmp.lt.s32.totalorder %s17, 3
      %p299 = pnand %p297, %p298
      %p300 = pneg %p299
      // Predicated region
      $region9: #{rpvnet_forward.11} parent=5 // pred_check
        _
      $region10: #{rpvnet_forward.11} parent=5 // pred_check_branch
        %302 = sbr.rel (%p299) target = $region12
      $region11: #{rpvnet_forward.11} parent=5 // pred_region
        %s303 = ssub.s32 %s17, 1
        // Predicated region
        $region13: #{rpvnet_forward.11} parent=11 // pred_check
          %p304 = pneg %p116
        $region14: #{rpvnet_forward.11} parent=11 // pred_check_branch
          %306 = sbr.rel (%p304) target = $region16
        $region15: #{rpvnet_forward.11} parent=11 // pred_region
          _
        $region16: #{rpvnet_forward.11} parent=11 // pred_fallthru
          _
        // Predicated region
        $region17: #{rpvnet_forward.11} parent=11 // pred_check
          %p307 = pneg %p137
        $region18: #{rpvnet_forward.11} parent=11 // pred_check_branch
          %309 = sbr.rel (%p307) target = $region20
        $region19: #{rpvnet_forward.11} parent=11 // pred_region
          _
        $region20: #{rpvnet_forward.11} parent=11 // pred_fallthru
          _
        // Predicated region
        $region21: #{rpvnet_forward.11} parent=11 // pred_check
          %p310 = pneg %p158
        $region22: #{rpvnet_forward.11} parent=11 // pred_check_branch
          %312 = sbr.rel (%p310) target = $region24
        $region23: #{rpvnet_forward.11} parent=11 // pred_region
          _
        $region24: #{rpvnet_forward.11} parent=11 // pred_fallthru
          _
        // Predicated region
        $region25: #{rpvnet_forward.11} parent=11 // pred_check
          %p313 = pneg %p179
        $region26: #{rpvnet_forward.11} parent=11 // pred_check_branch
          %315 = sbr.rel (%p313) target = $region28
        $region27: #{rpvnet_forward.11} parent=11 // pred_region
          _
        $region28: #{rpvnet_forward.11} parent=11 // pred_fallthru
          _
        // Predicated region
        $region29: #{rpvnet_forward.11} parent=11 // pred_check
          %p316 = pneg %p200
        $region30: #{rpvnet_forward.11} parent=11 // pred_check_branch
          %318 = sbr.rel (%p316) target = $region32
        $region31: #{rpvnet_forward.11} parent=11 // pred_region
          _
        $region32: #{rpvnet_forward.11} parent=11 // pred_fallthru
          _
        // Predicated region
        $region33: #{rpvnet_forward.11} parent=11 // pred_check
          %p319 = pneg %p221
        $region34: #{rpvnet_forward.11} parent=11 // pred_check_branch
          %321 = sbr.rel (%p319) target = $region36
        $region35: #{rpvnet_forward.11} parent=11 // pred_region
          _
        $region36: #{rpvnet_forward.11} parent=11 // pred_fallthru
          _
        // Predicated region
        $region37: #{rpvnet_forward.11} parent=11 // pred_check
          %p322 = pneg %p242
        $region38: #{rpvnet_forward.11} parent=11 // pred_check_branch
          %324 = sbr.rel (%p322) target = $region40
        $region39: #{rpvnet_forward.11} parent=11 // pred_region
          _
        $region40: #{rpvnet_forward.11} parent=11 // pred_fallthru
          _
        // Predicated region
        $region41: #{rpvnet_forward.11} parent=11 // pred_check
          %p325 = pneg %p263
        $region42: #{rpvnet_forward.11} parent=11 // pred_check_branch
          %327 = sbr.rel (%p325) target = $region44
        $region43: #{rpvnet_forward.11} parent=11 // pred_region
          _
        $region44: #{rpvnet_forward.11} parent=11 // pred_fallthru
          _
      $region12: #{rpvnet_forward.11} parent=5 // pred_fallthru
        _
      %p328 = scmp.lt.s32.totalorder %s17, 2
      // Predicated region
      $region45: #{rpvnet_forward.11} parent=5 // pred_check
        %p329 = pneg %p328
      $region46: #{rpvnet_forward.11} parent=5 // pred_check_branch
        %331 = sbr.rel (%p329) target = $region48
      $region47: #{rpvnet_forward.11} parent=5 // pred_region
        // Predicated region
        $region49: #{rpvnet_forward.11} parent=47 // pred_check
          %p332 = pneg %p37
        $region50: #{rpvnet_forward.11} parent=47 // pred_check_branch
          %334 = sbr.rel (%p332) target = $region52
        $region51: #{rpvnet_forward.11} parent=47 // pred_region
          %p335 = scmp.lt.s32.totalorder %s17, 1
          %s336 = scalar_select %p335, %s17, 1
          %s337 = smul.addr %s336, 4
          %s338 = scalar_lea.vmem %s0, %s337
        $region52: #{rpvnet_forward.11} parent=47 // pred_fallthru
          _
        // Predicated region
        $region53: #{rpvnet_forward.11} parent=47 // pred_check
          %p339 = pneg %p63
        $region54: #{rpvnet_forward.11} parent=47 // pred_check_branch
          %341 = sbr.rel (%p339) target = $region56
        $region55: #{rpvnet_forward.11} parent=47 // pred_region
          %p342 = scmp.lt.s32.totalorder %s17, 1
          %s343 = scalar_select %p342, %s17, 1
          %s344 = smul.addr %s343, 4
          %s345 = scalar_lea.vmem %s1, %s344
        $region56: #{rpvnet_forward.11} parent=47 // pred_fallthru
          _
        // Predicated region
        $region57: #{rpvnet_forward.11} parent=47 // pred_check
          %p346 = pneg %p89
        $region58: #{rpvnet_forward.11} parent=47 // pred_check_branch
          %348 = sbr.rel (%p346) target = $region60
        $region59: #{rpvnet_forward.11} parent=47 // pred_region
          %p349 = scmp.lt.s32.totalorder %s17, 1
          %s350 = scalar_select %p349, %s17, 1
          %s351 = smul.addr %s350, 4
          %s352 = scalar_lea.vmem %s2, %s351
        $region60: #{rpvnet_forward.11} parent=47 // pred_fallthru
          _
      $region48: #{rpvnet_forward.11} parent=5 // pred_fallthru
        _
      %p353 = scmp.le.s32.totalorder 1, %s17
      %p354 = scmp.lt.s32.totalorder %s17, 3
      %p355 = pnand %p353, %p354
      %p356 = pneg %p355
      // Predicated region
      $region61: #{rpvnet_forward.11} parent=5 // pred_check
        _
      $region62: #{rpvnet_forward.11} parent=5 // pred_check_branch
        %358 = sbr.rel (%p355) target = $region64
      $region63: #{rpvnet_forward.11} parent=5 // pred_region
        %s359 = ssub.s32 %s17, 1
        %p360 = scmp.lt.s32.totalorder %s22, 1
        %s361 = scalar_select %p360, %s22, 1
        %s362 = smul.addr %s361, 4
        %s363 = scalar_lea.vmem %s0, %s362
        %p364 = pneg %p43
        %p365 = pneg %p40
        %p366 = scmp.lt.s32.totalorder %s22, 1
        %s367 = scalar_select %p366, %s22, 1
        %s368 = smul.addr %s367, 4
        %s369 = scalar_lea.vmem %s1, %s368
        %p370 = pneg %p69
        %p371 = pneg %p66
        %p372 = scmp.lt.s32.totalorder %s22, 1
        %s373 = scalar_select %p372, %s22, 1
        %s374 = smul.addr %s373, 4
        %s375 = scalar_lea.vmem %s2, %s374
        %p376 = pneg %p95
        %p377 = pneg %p92
        %p378 = pneg %p116
        %p379 = pneg %p113
        %p380 = pneg %p137
        %p381 = pneg %p134
        %p382 = pneg %p158
        %p383 = pneg %p155
        %p384 = pneg %p179
        %p385 = pneg %p176
        %p386 = pneg %p200
        %p387 = pneg %p197
        %p388 = pneg %p221
        %p389 = pneg %p218
        %p390 = pneg %p242
        %p391 = pneg %p239
        %p392 = pneg %p263
        %p393 = pneg %p260
        %p394 = pneg %p289
        %p395 = pneg %p286
        %s396 = sand.u32 %s276, 1
        %s397 = sand.u32 %s276, 1
        %s398 = smul.addr %s397, 16
        %s399 = scalar_lea.vmem [#allocation2], %s398
        %p400 = scmp.lt.s32.totalorder %s22, 1
        %s401 = scalar_select %p400, %s22, 1
        %s402 = smul.addr %s401, 4
        %s403 = scalar_lea.vmem %s0, %s402
        %p404 = scmp.lt.s32.totalorder %s22, 1
        %s405 = scalar_select %p404, %s22, 1
        %s406 = smul.addr %s405, 4
        %s407 = scalar_lea.vmem %s1, %s406
        %p408 = scmp.lt.s32.totalorder %s22, 1
        %s409 = scalar_select %p408, %s22, 1
        %s410 = smul.addr %s409, 4
        %s411 = scalar_lea.vmem %s2, %s410
        %v413 = vld [vmem:[%s403] sm:$0xf]
        %v414 = vld [vmem:[%s407] sm:$0xf]
        %v415 = vld [vmem:[%s411] sm:$0xf]
        %v416 = vld [vmem:[%s6] sm:$0xff]
        %v417 = vld [vmem:[%s6 + $0x8] sm:$0xff]
        %v418 = vld [vmem:[%s6 + $0x10] sm:$0xff]
        %v419 = vld [vmem:[%s6 + $0x18] sm:$0xff]
        %v420 = vld [vmem:[%s6 + $0x20] sm:$0xff]
        %v421 = vld [vmem:[%s6 + $0x28] sm:$0xff]
        %v422 = vld [vmem:[%s6 + $0x30] sm:$0xff]
        %v423 = vld [vmem:[%s6 + $0x38] sm:$0xff]
        %v424 = vld [vmem:[%s6 + $0x40] sm:$0xff]
        %v425 = vld [vmem:[%s6 + $0x48] sm:$0xff]
        %v426 = vld [vmem:[%s6 + $0x50] sm:$0xff]
        %v427 = vld [vmem:[%s6 + $0x58] sm:$0xff]
        %v428 = vld [vmem:[%s3] sm:$0xf]
        %v429 = vld [vmem:[%s3 + $0x4] sm:$0xf]
        %v430 = vld [vmem:[%s3 + $0x8] sm:$0xf]
        %v431 = vld [vmem:[%s3 + $0xc] sm:$0xf]
        %433 = vset.pattern.permute.xlu0 0
        %434 = vperm.xlu0 %433, %v416
        %v435 = vpop.permute.xlu0 %434
        %438 = vset.pattern.permute.xlu0 0
        %439 = vperm.xlu0 %438, %v417
        %v440 = vpop.permute.xlu0 %439
        %443 = vset.pattern.permute.xlu0 0
        %444 = vperm.xlu0 %443, %v418
        %v445 = vpop.permute.xlu0 %444
        %448 = vset.pattern.permute.xlu0 0
        %449 = vperm.xlu0 %448, %v419
        %v450 = vpop.permute.xlu0 %449
        %v456 = vunpack.c.l.b16 %v428
        %v457 = vunpack.c.l.b16 %v429
        %v458 = vunpack.c.l.b16 %v430
        %v459 = vunpack.c.l.b16 %v431
        %v460 = vpack.c.b16 %v457, %v456
        %v461 = vpack.c.b16 %v459, %v458
        %vm462 = vcmask 64512
        %v464 = vsel %vm462, %v460, 0
        %v467 = vsel %vm462, %v461, 0
        %vm469 = vcmask 1043456
        %v471 = vsel %vm469, %v413, 0
        %473 = vmatprep.subr.bf16.mxu0 0
        %474 = vmatpush1.bf16.msra.mxu0 %v471
        %475 = vmatprep.subr.bf16.mxu0 0
        %476 = vmatpush1.bf16.msra.mxu0 0
        %477 = vmatprep.subr.bf16.mxu0 0
        %478 = vmatpush1.bf16.msra.mxu0 0
        %479 = vmatprep.subr.bf16.mxu0 0
        %480 = vmatpush1.bf16.msra.mxu0 0
        %481 = vmatprep.subr.bf16.mxu0 0
        %482 = vmatpush1.bf16.msra.mxu0 0
        %483 = vmatprep.subr.bf16.mxu0 0
        %484 = vmatpush1.bf16.msra.mxu0 0
        %485 = vmatprep.subr.bf16.mxu0 0
        %486 = vmatpush1.bf16.msra.mxu0 0
        %487 = vmatprep.subr.bf16.mxu0 0
        %488 = vmatpush1.bf16.msra.mxu0 0
        %489 = vmatprep.subr.bf16.mxu0 0
        %490 = vmatpush1.bf16.msra.mxu0 0
        %491 = vmatprep.subr.bf16.mxu0 0
        %492 = vmatpush1.bf16.msra.mxu0 0
        %493 = vmatprep.subr.bf16.mxu0 0
        %494 = vmatpush1.bf16.msra.mxu0 0
        %495 = vmatprep.subr.bf16.mxu0 0
        %496 = vmatpush1.bf16.msra.mxu0 0
        %497 = vmatprep.subr.bf16.mxu0 0
        %498 = vmatpush1.bf16.msra.mxu0 0
        %499 = vmatprep.subr.bf16.mxu0 0
        %500 = vmatpush1.bf16.msra.mxu0 0
        %501 = vmatprep.subr.bf16.mxu0 0
        %502 = vmatpush1.bf16.msra.mxu0 0
        %503 = vmatprep.subr.bf16.mxu0 0
        %504 = vmatpush1.bf16.msra.mxu0 0
        %505 = vmatprep.mubr.bf16.mxu0 0
        %506 = vmatmul.mubr.bf16.gmra.mrb[0].mxu0 %v464
        %v507 = vpop.f32.mrb[0].mxu0
        %v508 = vadd.f32 %v435, %v507
        %v509 = vpop.f32.mrb[0].mxu0
        %v510 = vpop.f32.mrb[0].mxu0
        %v511 = vadd.f32 %v440, %v510
        %v512 = vpop.f32.mrb[0].mxu0
        %513 = vmatprep.mubr.bf16.mxu0 0
        %514 = vmatmul.mubr.bf16.gmra.mrb[0].mxu0 %v467
        %v515 = vpop.f32.mrb[0].mxu0
        %v516 = vadd.f32 %v445, %v515
        %v517 = vpop.f32.mrb[0].mxu0
        %v518 = vpop.f32.mrb[0].mxu0
        %v519 = vadd.f32 %v450, %v518
        %v520 = vpop.f32.mrb[0].mxu0
        %521 = vdwg.mxu0
        %v522 = vmax.f32 %v508, 0.0
        %v523 = vmax.f32 %v511, 0.0
        %v524 = vmax.f32 %v516, 0.0
        %v525 = vmax.f32 %v519, 0.0
        %v526 = vld [vmem:[%s4] sm:$0xf]
        %v527 = vld [vmem:[%s4 + $0x4] sm:$0xf]
        %v528 = vld [vmem:[%s4 + $0x8] sm:$0xf]
        %v529 = vld [vmem:[%s4 + $0xc] sm:$0xf]
        %531 = vset.pattern.permute.xlu0 0
        %532 = vperm.xlu0 %531, %v420
        %v533 = vpop.permute.xlu0 %532
        %536 = vset.pattern.permute.xlu0 0
        %537 = vperm.xlu0 %536, %v421
        %v538 = vpop.permute.xlu0 %537
        %541 = vset.pattern.permute.xlu0 0
        %542 = vperm.xlu0 %541, %v422
        %v543 = vpop.permute.xlu0 %542
        %546 = vset.pattern.permute.xlu0 0
        %547 = vperm.xlu0 %546, %v423
        %v548 = vpop.permute.xlu0 %547
        %v554 = vunpack.c.l.b16 %v526
        %v555 = vunpack.c.l.b16 %v527
        %v556 = vunpack.c.l.b16 %v528
        %v557 = vunpack.c.l.b16 %v529
        %v558 = vpack.c.b16 %v555, %v554
        %v559 = vpack.c.b16 %v557, %v556
        %v561 = vsel %vm462, %v558, 0
        %v564 = vsel %vm462, %v559, 0
        %v567 = vsel %vm469, %v414, 0
        %569 = vmatprep.subr.bf16.mxu0 0
        %570 = vmatpush1.bf16.msra.mxu0 %v567
        %571 = vmatprep.subr.bf16.mxu0 0
        %572 = vmatpush1.bf16.msra.mxu0 0
        %573 = vmatprep.subr.bf16.mxu0 0
        %574 = vmatpush1.bf16.msra.mxu0 0
        %575 = vmatprep.subr.bf16.mxu0 0
        %576 = vmatpush1.bf16.msra.mxu0 0
        %577 = vmatprep.subr.bf16.mxu0 0
        %578 = vmatpush1.bf16.msra.mxu0 0
        %579 = vmatprep.subr.bf16.mxu0 0
        %580 = vmatpush1.bf16.msra.mxu0 0
        %581 = vmatprep.subr.bf16.mxu0 0
        %582 = vmatpush1.bf16.msra.mxu0 0
        %583 = vmatprep.subr.bf16.mxu0 0
        %584 = vmatpush1.bf16.msra.mxu0 0
        %585 = vmatprep.subr.bf16.mxu0 0
        %586 = vmatpush1.bf16.msra.mxu0 0
        %587 = vmatprep.subr.bf16.mxu0 0
        %588 = vmatpush1.bf16.msra.mxu0 0
        %589 = vmatprep.subr.bf16.mxu0 0
        %590 = vmatpush1.bf16.msra.mxu0 0
        %591 = vmatprep.subr.bf16.mxu0 0
        %592 = vmatpush1.bf16.msra.mxu0 0
        %593 = vmatprep.subr.bf16.mxu0 0
        %594 = vmatpush1.bf16.msra.mxu0 0
        %595 = vmatprep.subr.bf16.mxu0 0
        %596 = vmatpush1.bf16.msra.mxu0 0
        %597 = vmatprep.subr.bf16.mxu0 0
        %598 = vmatpush1.bf16.msra.mxu0 0
        %599 = vmatprep.subr.bf16.mxu0 0
        %600 = vmatpush1.bf16.msra.mxu0 0
        %601 = vmatprep.mubr.bf16.mxu0 0
        %602 = vmatmul.mubr.bf16.gmra.mrb[0].mxu0 %v561
        %v603 = vpop.f32.mrb[0].mxu0
        %v604 = vadd.f32 %v533, %v603
        %v605 = vpop.f32.mrb[0].mxu0
        %v606 = vpop.f32.mrb[0].mxu0
        %v607 = vadd.f32 %v538, %v606
        %v608 = vpop.f32.mrb[0].mxu0
        %609 = vmatprep.mubr.bf16.mxu0 0
        %610 = vmatmul.mubr.bf16.gmra.mrb[0].mxu0 %v564
        %v611 = vpop.f32.mrb[0].mxu0
        %v612 = vadd.f32 %v543, %v611
        %v613 = vpop.f32.mrb[0].mxu0
        %v614 = vpop.f32.mrb[0].mxu0
        %v615 = vadd.f32 %v548, %v614
        %v616 = vpop.f32.mrb[0].mxu0
        %617 = vdwg.mxu0
        %v618 = vmax.f32 %v604, 0.0
        %v619 = vmax.f32 %v607, 0.0
        %v620 = vmax.f32 %v612, 0.0
        %v621 = vmax.f32 %v615, 0.0
        %v622 = vld [vmem:[%s5] sm:$0xf]
        %v623 = vld [vmem:[%s5 + $0x4] sm:$0xf]
        %v624 = vld [vmem:[%s5 + $0x8] sm:$0xf]
        %v625 = vld [vmem:[%s5 + $0xc] sm:$0xf]
        %627 = vset.pattern.permute.xlu0 0
        %628 = vperm.xlu0 %627, %v424
        %v629 = vpop.permute.xlu0 %628
        %632 = vset.pattern.permute.xlu0 0
        %633 = vperm.xlu0 %632, %v425
        %v634 = vpop.permute.xlu0 %633
        %637 = vset.pattern.permute.xlu0 0
        %638 = vperm.xlu0 %637, %v426
        %v639 = vpop.permute.xlu0 %638
        %642 = vset.pattern.permute.xlu0 0
        %643 = vperm.xlu0 %642, %v427
        %v644 = vpop.permute.xlu0 %643
        %v650 = vunpack.c.l.b16 %v622
        %v651 = vunpack.c.l.b16 %v623
        %v652 = vunpack.c.l.b16 %v624
        %v653 = vunpack.c.l.b16 %v625
        %v654 = vpack.c.b16 %v651, %v650
        %v655 = vpack.c.b16 %v653, %v652
        %v657 = vsel %vm462, %v654, 0
        %v660 = vsel %vm462, %v655, 0
        %v663 = vsel %vm469, %v415, 0
        %665 = vmatprep.subr.bf16.mxu0 0
        %666 = vmatpush1.bf16.msra.mxu0 %v663
        %667 = vmatprep.subr.bf16.mxu0 0
        %668 = vmatpush1.bf16.msra.mxu0 0
        %669 = vmatprep.subr.bf16.mxu0 0
        %670 = vmatpush1.bf16.msra.mxu0 0
        %671 = vmatprep.subr.bf16.mxu0 0
        %672 = vmatpush1.bf16.msra.mxu0 0
        %673 = vmatprep.subr.bf16.mxu0 0
        %674 = vmatpush1.bf16.msra.mxu0 0
        %675 = vmatprep.subr.bf16.mxu0 0
        %676 = vmatpush1.bf16.msra.mxu0 0
        %677 = vmatprep.subr.bf16.mxu0 0
        %678 = vmatpush1.bf16.msra.mxu0 0
        %679 = vmatprep.subr.bf16.mxu0 0
        %680 = vmatpush1.bf16.msra.mxu0 0
        %681 = vmatprep.subr.bf16.mxu0 0
        %682 = vmatpush1.bf16.msra.mxu0 0
        %683 = vmatprep.subr.bf16.mxu0 0
        %684 = vmatpush1.bf16.msra.mxu0 0
        %685 = vmatprep.subr.bf16.mxu0 0
        %686 = vmatpush1.bf16.msra.mxu0 0
        %687 = vmatprep.subr.bf16.mxu0 0
        %688 = vmatpush1.bf16.msra.mxu0 0
        %689 = vmatprep.subr.bf16.mxu0 0
        %690 = vmatpush1.bf16.msra.mxu0 0
        %691 = vmatprep.subr.bf16.mxu0 0
        %692 = vmatpush1.bf16.msra.mxu0 0
        %693 = vmatprep.subr.bf16.mxu0 0
        %694 = vmatpush1.bf16.msra.mxu0 0
        %695 = vmatprep.subr.bf16.mxu0 0
        %696 = vmatpush1.bf16.msra.mxu0 0
        %697 = vmatprep.mubr.bf16.mxu0 0
        %698 = vmatmul.mubr.bf16.gmra.mrb[0].mxu0 %v657
        %v699 = vpop.f32.mrb[0].mxu0
        %v700 = vadd.f32 %v629, %v699
        %v701 = vpop.f32.mrb[0].mxu0
        %v702 = vpop.f32.mrb[0].mxu0
        %v703 = vadd.f32 %v634, %v702
        %v704 = vpop.f32.mrb[0].mxu0
        %705 = vmatprep.mubr.bf16.mxu0 0
        %706 = vmatmul.mubr.bf16.gmra.mrb[0].mxu0 %v660
        %v707 = vpop.f32.mrb[0].mxu0
        %v708 = vadd.f32 %v639, %v707
        %v709 = vpop.f32.mrb[0].mxu0
        %v710 = vpop.f32.mrb[0].mxu0
        %v711 = vadd.f32 %v644, %v710
        %v712 = vpop.f32.mrb[0].mxu0
        %713 = vdwg.mxu0
        %v714 = vmax.f32 %v700, 0.0
        %v715 = vmax.f32 %v703, 0.0
        %v716 = vmax.f32 %v708, 0.0
        %v717 = vmax.f32 %v711, 0.0
        %v718 = vld [vmem:[%s7] sm:$0x7]
        %v719 = vld [vmem:[%s8] sm:$0x7]
        %vm720 = vcmask 261120
        %v722 = vsel %vm720, %v719, 0
        %724 = vmatprep.subr.mxu0 0.0
        %725 = vmatpush1.msra.mxu0 %v618
        %726 = vmatprep.subr.mxu0 0.0
        %727 = vmatpush1.msra.mxu0 %v619
        %728 = vmatprep.subr.mxu0 0.0
        %729 = vmatpush1.msra.mxu0 %v620
        %730 = vmatprep.subr.mxu0 0.0
        %731 = vmatpush1.msra.mxu0 %v621
        %732 = vmatprep.subr.mxu0 0.0
        %733 = vmatpush1.msra.mxu0 0.0
        %734 = vmatprep.subr.mxu0 0.0
        %735 = vmatpush1.msra.mxu0 0.0
        %736 = vmatprep.subr.mxu0 0.0
        %737 = vmatpush1.msra.mxu0 0.0
        %738 = vmatprep.subr.mxu0 0.0
        %739 = vmatpush1.msra.mxu0 0.0
        %740 = vmatprep.subr.mxu0 0.0
        %741 = vmatpush1.msra.mxu0 0.0
        %742 = vmatprep.subr.mxu0 0.0
        %743 = vmatpush1.msra.mxu0 0.0
        %744 = vmatprep.subr.mxu0 0.0
        %745 = vmatpush1.msra.mxu0 0.0
        %746 = vmatprep.subr.mxu0 0.0
        %747 = vmatpush1.msra.mxu0 0.0
        %748 = vmatprep.subr.mxu0 0.0
        %749 = vmatpush1.msra.mxu0 0.0
        %750 = vmatprep.subr.mxu0 0.0
        %751 = vmatpush1.msra.mxu0 0.0
        %752 = vmatprep.subr.mxu0 0.0
        %753 = vmatpush1.msra.mxu0 0.0
        %754 = vmatprep.subr.mxu0 0.0
        %755 = vmatpush1.msra.mxu0 0.0
        %756 = vmatprep.subr.mxu0 0.0
        %757 = vmatpush1.msra.mxu0 0.0
        %758 = vmatprep.subr.mxu0 0.0
        %759 = vmatpush1.msra.mxu0 0.0
        %760 = vmatprep.subr.mxu0 0.0
        %761 = vmatpush1.msra.mxu0 0.0
        %762 = vmatprep.subr.mxu0 0.0
        %763 = vmatpush1.msra.mxu0 0.0
        %764 = vmatprep.subr.mxu0 0.0
        %765 = vmatpush1.msra.mxu0 0.0
        %766 = vmatprep.subr.mxu0 0.0
        %767 = vmatpush1.msra.mxu0 0.0
        %768 = vmatprep.subr.mxu0 0.0
        %769 = vmatpush1.msra.mxu0 0.0
        %770 = vmatprep.subr.mxu0 0.0
        %771 = vmatpush1.msra.mxu0 0.0
        %772 = vmatprep.subr.mxu0 0.0
        %773 = vmatpush1.msra.mxu0 0.0
        %774 = vmatprep.subr.mxu0 0.0
        %775 = vmatpush1.msra.mxu0 0.0
        %776 = vmatprep.subr.mxu0 0.0
        %777 = vmatpush1.msra.mxu0 0.0
        %778 = vmatprep.subr.mxu0 0.0
        %779 = vmatpush1.msra.mxu0 0.0
        %780 = vmatprep.subr.mxu0 0.0
        %781 = vmatpush1.msra.mxu0 0.0
        %782 = vmatprep.subr.mxu0 0.0
        %783 = vmatpush1.msra.mxu0 0.0
        %784 = vmatprep.subr.mxu0 0.0
        %785 = vmatpush1.msra.mxu0 0.0
        %786 = vmatprep.subr.mxu0 0.0
        %787 = vmatpush1.msra.mxu0 0.0
        %788 = vmatprep.mubr.f32.mxu0 0.0
        %789 = vmatmul.mubr.f32.gmra.mrb[0].mxu0 %v722
        %v790 = vpop.f32.mrb[0].mxu0
        %v791 = vadd.f32 0.0, %v790
        %v792 = vpop.f32.mrb[0].mxu0
        %793 = vdwg.mxu0
        %v795 = vsel %vm720, %v718, 0
        %797 = vmatprep.subr.mxu0 0.0
        %798 = vmatpush1.msra.mxu0 %v522
        %799 = vmatprep.subr.mxu0 0.0
        %800 = vmatpush1.msra.mxu0 %v523
        %801 = vmatprep.subr.mxu0 0.0
        %802 = vmatpush1.msra.mxu0 %v524
        %803 = vmatprep.subr.mxu0 0.0
        %804 = vmatpush1.msra.mxu0 %v525
        %805 = vmatprep.subr.mxu0 0.0
        %806 = vmatpush1.msra.mxu0 0.0
        %807 = vmatprep.subr.mxu0 0.0
        %808 = vmatpush1.msra.mxu0 0.0
        %809 = vmatprep.subr.mxu0 0.0
        %810 = vmatpush1.msra.mxu0 0.0
        %811 = vmatprep.subr.mxu0 0.0
        %812 = vmatpush1.msra.mxu0 0.0
        %813 = vmatprep.subr.mxu0 0.0
        %814 = vmatpush1.msra.mxu0 0.0
        %815 = vmatprep.subr.mxu0 0.0
        %816 = vmatpush1.msra.mxu0 0.0
        %817 = vmatprep.subr.mxu0 0.0
        %818 = vmatpush1.msra.mxu0 0.0
        %819 = vmatprep.subr.mxu0 0.0
        %820 = vmatpush1.msra.mxu0 0.0
        %821 = vmatprep.subr.mxu0 0.0
        %822 = vmatpush1.msra.mxu0 0.0
        %823 = vmatprep.subr.mxu0 0.0
        %824 = vmatpush1.msra.mxu0 0.0
        %825 = vmatprep.subr.mxu0 0.0
        %826 = vmatpush1.msra.mxu0 0.0
        %827 = vmatprep.subr.mxu0 0.0
        %828 = vmatpush1.msra.mxu0 0.0
        %829 = vmatprep.subr.mxu0 0.0
        %830 = vmatpush1.msra.mxu0 0.0
        %831 = vmatprep.subr.mxu0 0.0
        %832 = vmatpush1.msra.mxu0 0.0
        %833 = vmatprep.subr.mxu0 0.0
        %834 = vmatpush1.msra.mxu0 0.0
        %835 = vmatprep.subr.mxu0 0.0
        %836 = vmatpush1.msra.mxu0 0.0
        %837 = vmatprep.subr.mxu0 0.0
        %838 = vmatpush1.msra.mxu0 0.0
        %839 = vmatprep.subr.mxu0 0.0
        %840 = vmatpush1.msra.mxu0 0.0
        %841 = vmatprep.subr.mxu0 0.0
        %842 = vmatpush1.msra.mxu0 0.0
        %843 = vmatprep.subr.mxu0 0.0
        %844 = vmatpush1.msra.mxu0 0.0
        %845 = vmatprep.subr.mxu0 0.0
        %846 = vmatpush1.msra.mxu0 0.0
        %847 = vmatprep.subr.mxu0 0.0
        %848 = vmatpush1.msra.mxu0 0.0
        %849 = vmatprep.subr.mxu0 0.0
        %850 = vmatpush1.msra.mxu0 0.0
        %851 = vmatprep.subr.mxu0 0.0
        %852 = vmatpush1.msra.mxu0 0.0
        %853 = vmatprep.subr.mxu0 0.0
        %854 = vmatpush1.msra.mxu0 0.0
        %855 = vmatprep.subr.mxu0 0.0
        %856 = vmatpush1.msra.mxu0 0.0
        %857 = vmatprep.subr.mxu0 0.0
        %858 = vmatpush1.msra.mxu0 0.0
        %859 = vmatprep.subr.mxu0 0.0
        %860 = vmatpush1.msra.mxu0 0.0
        %861 = vmatprep.mubr.f32.mxu0 0.0
        %862 = vmatmul.mubr.f32.gmra.mrb[0].mxu0 %v795
        %v863 = vpop.f32.mrb[0].mxu0
        %v864 = vadd.f32 %v791, %v863
        %v865 = vpop.f32.mrb[0].mxu0
        %866 = vdwg.mxu0
        %v867 = vld [vmem:[%s9] sm:$0x7]
        %v869 = vsel %vm720, %v867, 0
        %871 = vmatprep.subr.mxu0 0.0
        %872 = vmatpush1.msra.mxu0 %v714
        %873 = vmatprep.subr.mxu0 0.0
        %874 = vmatpush1.msra.mxu0 %v715
        %875 = vmatprep.subr.mxu0 0.0
        %876 = vmatpush1.msra.mxu0 %v716
        %877 = vmatprep.subr.mxu0 0.0
        %878 = vmatpush1.msra.mxu0 %v717
        %879 = vmatprep.subr.mxu0 0.0
        %880 = vmatpush1.msra.mxu0 0.0
        %881 = vmatprep.subr.mxu0 0.0
        %882 = vmatpush1.msra.mxu0 0.0
        %883 = vmatprep.subr.mxu0 0.0
        %884 = vmatpush1.msra.mxu0 0.0
        %885 = vmatprep.subr.mxu0 0.0
        %886 = vmatpush1.msra.mxu0 0.0
        %887 = vmatprep.subr.mxu0 0.0
        %888 = vmatpush1.msra.mxu0 0.0
        %889 = vmatprep.subr.mxu0 0.0
        %890 = vmatpush1.msra.mxu0 0.0
        %891 = vmatprep.subr.mxu0 0.0
        %892 = vmatpush1.msra.mxu0 0.0
        %893 = vmatprep.subr.mxu0 0.0
        %894 = vmatpush1.msra.mxu0 0.0
        %895 = vmatprep.subr.mxu0 0.0
        %896 = vmatpush1.msra.mxu0 0.0
        %897 = vmatprep.subr.mxu0 0.0
        %898 = vmatpush1.msra.mxu0 0.0
        %899 = vmatprep.subr.mxu0 0.0
        %900 = vmatpush1.msra.mxu0 0.0
        %901 = vmatprep.subr.mxu0 0.0
        %902 = vmatpush1.msra.mxu0 0.0
        %903 = vmatprep.subr.mxu0 0.0
        %904 = vmatpush1.msra.mxu0 0.0
        %905 = vmatprep.subr.mxu0 0.0
        %906 = vmatpush1.msra.mxu0 0.0
        %907 = vmatprep.subr.mxu0 0.0
        %908 = vmatpush1.msra.mxu0 0.0
        %909 = vmatprep.subr.mxu0 0.0
        %910 = vmatpush1.msra.mxu0 0.0
        %911 = vmatprep.subr.mxu0 0.0
        %912 = vmatpush1.msra.mxu0 0.0
        %913 = vmatprep.subr.mxu0 0.0
        %914 = vmatpush1.msra.mxu0 0.0
        %915 = vmatprep.subr.mxu0 0.0
        %916 = vmatpush1.msra.mxu0 0.0
        %917 = vmatprep.subr.mxu0 0.0
        %918 = vmatpush1.msra.mxu0 0.0
        %919 = vmatprep.subr.mxu0 0.0
        %920 = vmatpush1.msra.mxu0 0.0
        %921 = vmatprep.subr.mxu0 0.0
        %922 = vmatpush1.msra.mxu0 0.0
        %923 = vmatprep.subr.mxu0 0.0
        %924 = vmatpush1.msra.mxu0 0.0
        %925 = vmatprep.subr.mxu0 0.0
        %926 = vmatpush1.msra.mxu0 0.0
        %927 = vmatprep.subr.mxu0 0.0
        %928 = vmatpush1.msra.mxu0 0.0
        %929 = vmatprep.subr.mxu0 0.0
        %930 = vmatpush1.msra.mxu0 0.0
        %931 = vmatprep.subr.mxu0 0.0
        %932 = vmatpush1.msra.mxu0 0.0
        %933 = vmatprep.subr.mxu0 0.0
        %934 = vmatpush1.msra.mxu0 0.0
        %935 = vmatprep.mubr.f32.mxu0 0.0
        %936 = vmatmul.mubr.f32.gmra.mrb[0].mxu0 %v869
        %v937 = vpop.f32.mrb[0].mxu0
        %v938 = vadd.f32 0.0, %v937
        %v939 = vpop.f32.mrb[0].mxu0
        %940 = vdwg.mxu0
        %v941 = vadd.f32 %v864, %v938
        %v942 = vld [vmem:[%s10] sm:$0x7]
        %944 = vset.pattern.permute.xlu0 0
        %945 = vperm.xlu0 %944, %v942
        %v946 = vpop.permute.xlu0 %945
        %v948 = vadd.f32 %v941, %v946
        %vm949 = vcmask 1042432
        %v950 = vsel %vm949, %v948, -inf
        %v951 = vrot.slane %v950, 4
        %v952 = vmax.f32 %v950, %v951
        %v953 = vrot.slane %v952, 2
        %v954 = vmax.f32 %v952, %v953
        %v955 = vrot.slane %v954, 1
        %v956 = vmax.f32 %v954, %v955
        %v957 = vsub.f32 %v948, %v956
        %v958 = vmul.f32 %v957, 1.442695
        %v959 = vpow.pop %v958
        %v960 = vsel %vm949, %v959, 0.0
        %v961 = vrot.slane %v960, 4
        %v962 = vadd.f32 %v960, %v961
        %v963 = vrot.slane %v962, 2
        %v964 = vadd.f32 %v962, %v963
        %v965 = vrot.slane %v964, 1
        %v966 = vadd.f32 %v964, %v965
        %v967 = vrcp.pop %v966
        %v968 = vmul.f32 %v959, %v967
        %v969 = vlaneseq
        %v970 = vshrl.u32 %v969, 7
        %v971 = vsub.s32 0, %v970
        %v972 = vrot.slane %v968, %v971
        %v973 = vmul.f32 %v522, %v972
        %v974 = vmul.f32 %v523, %v972
        %v975 = vmul.f32 %v524, %v972
        %v976 = vmul.f32 %v525, %v972
        %v977 = vlaneseq
        %v978 = vshrl.u32 %v977, 7
        %v979 = vsub.s32 1, %v978
        %v980 = vrot.slane %v968, %v979
        %v981 = vmul.f32 %v618, %v980
        %v982 = vmul.f32 %v619, %v980
        %v983 = vmul.f32 %v620, %v980
        %v984 = vmul.f32 %v621, %v980
        %v985 = vadd.f32 %v973, %v981
        %v986 = vadd.f32 %v974, %v982
        %v987 = vadd.f32 %v975, %v983
        %v988 = vadd.f32 %v976, %v984
        %v989 = vlaneseq
        %v990 = vshrl.u32 %v989, 7
        %v991 = vsub.s32 2, %v990
        %v992 = vrot.slane %v968, %v991
        %v993 = vmul.f32 %v714, %v992
        %v994 = vmul.f32 %v715, %v992
        %v995 = vmul.f32 %v716, %v992
        %v996 = vmul.f32 %v717, %v992
        %v997 = vadd.f32 %v985, %v993
        %v998 = vadd.f32 %v986, %v994
        %v999 = vadd.f32 %v987, %v995
        %v1000 = vadd.f32 %v988, %v996
        %v1001 = vpack.c.bf16 %v998, %v997
        %v1002 = vpack.c.bf16 %v1000, %v999
        %v1005 = vunpack.c.l.b16 %v1001
        %v1006 = vunpack.c.h.b16 %v1001
        %v1007 = vunpack.c.l.b16 %v1002
        %v1008 = vunpack.c.h.b16 %v1002
        %v1009 = vpack.c.b16 %v1005, %v1005
        %v1010 = vpack.c.b16 %v1006, %v1006
        %v1011 = vpack.c.b16 %v1007, %v1007
        %v1012 = vpack.c.b16 %v1008, %v1008
        %1017 = vst [vmem:[%s399] sm:$0xf] %v1009
        %1018 = vst [vmem:[%s399 + $0x4] sm:$0xf] %v1010
        %1019 = vst [vmem:[%s399 + $0x8] sm:$0xf] %v1011
        %1020 = vst [vmem:[%s399 + $0xc] sm:$0xf] %v1012
        %s1021 = sand.u32 %s276, 1
        %s1022 = sand.u32 %s276, 1
        %s1023 = smul.addr %s1022, 16
        %s1024 = scalar_lea.vmem [#allocation2], %s1023
        // Predicated region
        $region65: #{rpvnet_forward.11} parent=63 // pred_check
          %p1025 = pneg %p286
        $region66: #{rpvnet_forward.11} parent=63 // pred_check_branch
          %1027 = sbr.rel (%p1025) target = $region68
        $region67: #{rpvnet_forward.11} parent=63 // pred_region
          %s1028 = smul.addr %s22, 4
          %s1029 = scalar_lea.vmem %s11, %s1028
          // Predicated region
          $region69: #{rpvnet_forward.11} parent=67 // pred_check
            _
          $region70: #{rpvnet_forward.11} parent=67 // pred_check_branch
            %1031 = sbr.rel (0) target = $region72
          $region71: #{rpvnet_forward.11} parent=67 // pred_region
            // Predicated region
            $region73: #{rpvnet_forward.11} parent=71 // pred_check
              _
            $region74: #{rpvnet_forward.11} parent=71 // pred_check_branch
              %1033 = sbr.rel target = $region76
            $region75: #{rpvnet_forward.11} parent=71 // pred_region
              // Predicated region
              $region88: #{rpvnet_forward.11} parent=75 // pred_check
                _
              $region89: #{rpvnet_forward.11} parent=75 // pred_check_branch
                %1054 = sbr.rel (0) target = $region91
              $region90: #{rpvnet_forward.11} parent=75 // pred_region
                loop: start=0, step=1, limit=1
                $region92: #{rpvnet_forward.11} parent=90 // loop_pre_header
                  _
                $region93: #{rpvnet_forward.11} parent=90 // loop_header
                  %s1056 = sphi 0, %s1060
                  %p1057 = scmp.ge.s32.totalorder %s1056, 1
                  %s1061 = sphi %s1024, %s1024
                  %s1062 = sphi %s1029, %s1029
                $region94: #{rpvnet_forward.11} parent=90 // loop_header_branch
                  %1059 = sbr.rel (%p1057) target = $region98
                $region95: #{rpvnet_forward.11} parent=90 // loop_body
                  _
                $region96: #{rpvnet_forward.11} parent=90 // loop_footer
                  %s1060 = sadd.s32 1, %s1056
                $region97: #{rpvnet_forward.11} parent=90 // loop_footer_branch
                  %1055 = sbr.rel target = $region93
                $region98: #{rpvnet_forward.11} parent=90 // loop_exit
                  _
                loop: start=0, step=1, limit=1
                $region99: #{rpvnet_forward.11} parent=90 // loop_pre_header
                  _
                $region100: #{rpvnet_forward.11} parent=90 // loop_header
                  %s1065 = sphi 0, %s1069
                  %p1066 = scmp.ge.s32.totalorder %s1065, 1
                  %s1070 = sphi %s1024, %s1024
                  %s1071 = sphi %s1029, %s1029
                $region101: #{rpvnet_forward.11} parent=90 // loop_header_branch
                  %1068 = sbr.rel (%p1066) target = $region105
                $region102: #{rpvnet_forward.11} parent=90 // loop_body
                  %v1072 = vld [vmem:[%s1070] sm:$0xf]
                  %1073 = vst [vmem:[%s1071] sm:$0xf] %v1072
                  %v1074 = vld [vmem:[%s1070 + $0x4] sm:$0xf]
                  %1075 = vst [vmem:[%s1071 + $0x8] sm:$0xf] %v1074
                  %v1076 = vld [vmem:[%s1070 + $0x8] sm:$0xf]
                  %1077 = vst [vmem:[%s1071 + $0x10] sm:$0xf] %v1076
                  %v1078 = vld [vmem:[%s1070 + $0xc] sm:$0xf]
                  %1079 = vst [vmem:[%s1071 + $0x18] sm:$0xf] %v1078
                $region103: #{rpvnet_forward.11} parent=90 // loop_footer
                  %s1069 = sadd.s32 1, %s1065
                $region104: #{rpvnet_forward.11} parent=90 // loop_footer_branch
                  %1064 = sbr.rel target = $region100
                $region105: #{rpvnet_forward.11} parent=90 // loop_exit
                  _
              $region91: #{rpvnet_forward.11} parent=75 // pred_fallthru
                _
            $region76: #{rpvnet_forward.11} parent=71 // pred_fallthru
              _
            // Predicated region
            $region77: #{rpvnet_forward.11} parent=71 // pred_check
              _
            $region78: #{rpvnet_forward.11} parent=71 // pred_check_branch
              %1035 = sbr.rel (0) target = $region80
            $region79: #{rpvnet_forward.11} parent=71 // pred_region
              loop: start=0, step=1, limit=1
              $region81: #{rpvnet_forward.11} parent=79 // loop_pre_header
                _
              $region82: #{rpvnet_forward.11} parent=79 // loop_header
                %s1038 = sphi 0, %s1042
                %p1039 = scmp.ge.s32.totalorder %s1038, 1
                %s1043 = sphi %s1024, %s1024
                %s1044 = sphi %s1029, %s1029
              $region83: #{rpvnet_forward.11} parent=79 // loop_header_branch
                %1041 = sbr.rel (%p1039) target = $region87
              $region84: #{rpvnet_forward.11} parent=79 // loop_body
                %v1045 = vld [vmem:[%s1043] sm:$0xf]
                %1046 = vst [vmem:[%s1044] sm:$0xf] %v1045
                %v1047 = vld [vmem:[%s1043 + $0x4] sm:$0xf]
                %1048 = vst [vmem:[%s1044 + $0x8] sm:$0xf] %v1047
                %v1049 = vld [vmem:[%s1043 + $0x8] sm:$0xf]
                %1050 = vst [vmem:[%s1044 + $0x10] sm:$0xf] %v1049
                %v1051 = vld [vmem:[%s1043 + $0xc] sm:$0xf]
                %1052 = vst [vmem:[%s1044 + $0x18] sm:$0xf] %v1051
              $region85: #{rpvnet_forward.11} parent=79 // loop_footer
                %s1042 = sadd.s32 1, %s1038
              $region86: #{rpvnet_forward.11} parent=79 // loop_footer_branch
                %1037 = sbr.rel target = $region82
              $region87: #{rpvnet_forward.11} parent=79 // loop_exit
                _
            $region80: #{rpvnet_forward.11} parent=71 // pred_fallthru
              _
          $region72: #{rpvnet_forward.11} parent=67 // pred_fallthru
            _
          %1080 = vnop
        $region68: #{rpvnet_forward.11} parent=63 // pred_fallthru
          _
      $region64: #{rpvnet_forward.11} parent=5 // pred_fallthru
        _
      %p1081 = scmp.le.s32.totalorder 2, %s17
      // Predicated region
      $region106: #{rpvnet_forward.11} parent=5 // pred_check
        %p1082 = pneg %p1081
      $region107: #{rpvnet_forward.11} parent=5 // pred_check_branch
        %1084 = sbr.rel (%p1082) target = $region109
      $region108: #{rpvnet_forward.11} parent=5 // pred_region
        %s1085 = ssub.s32 %s17, 2
        // Predicated region
        $region110: #{rpvnet_forward.11} parent=108 // pred_check
          %p1086 = pneg %p292
        $region111: #{rpvnet_forward.11} parent=108 // pred_check_branch
          %1088 = sbr.rel (%p1086) target = $region113
        $region112: #{rpvnet_forward.11} parent=108 // pred_region
          %s1089 = sand.u32 %s277, 1
          %s1090 = sand.u32 %s277, 1
          %s1091 = smul.addr %s1090, 16
          %s1092 = scalar_lea.vmem [#allocation2], %s1091
        $region113: #{rpvnet_forward.11} parent=108 // pred_fallthru
          _
      $region109: #{rpvnet_forward.11} parent=5 // pred_fallthru
        _
    $region6: #{rpvnet_forward.11} parent=1 // loop_footer
      %s21 = sadd.s32 1, %s17
    $region7: #{rpvnet_forward.11} parent=1 // loop_footer_branch
      %16 = sbr.rel target = $region3
    $region8: #{rpvnet_forward.11} parent=1 // loop_exit
      _

// kernel: rpvnet_forward.12
$region0: #{rpvnet_forward.12}
  #allocation0 [shape = 'u32[]', space=smem, size = 0x4, offset = 0x4, fixed_abs, tag = 'smem constant byte address 0x4 - core index']
  #allocation1 [shape = 'u32[144,128]{1,0:T(1,128)}', space=vmem, size = 0x12000, scoped, tag = 'internal scratch']
  #allocation2 [shape = 'f32[32,256]{1,0:T(8,128)}', space=vmem, size = 0x8000, scoped, tag = 'scratch operand']
  #allocation3 [shape = 'f32[1,256]{1,0:T(1,128)}', space=vmem, size = 0x400, scoped, tag = 'scratch operand']
  %s0 = inlined_call_operand.vmem [shape: s32[256,2], index: 0, kind: input, shape index: {}]
  %s1 = inlined_call_operand.vmem [shape: bf16[32,256], index: 1, kind: input, shape index: {}]
  %s2 = inlined_call_operand.vmem [shape: bf16[32,768], index: 2, kind: output, shape index: {}]
  %s3 = sld [smem:[#allocation0]]
  $region83: #{rpvnet_forward.12} parent=0
    _
  %s5 = ssub.s32 1, %s3
  %s6 = scalar_select 0, %s5, %s3
  $region1: #{rpvnet_forward.12} parent=0
    #allocation4 [shape = 'u8[32768]{0}', space=vmem, size = 0x8000, scoped, tag = 'output window, operand 0']
    loop: start=0, step=1, limit=5
    $region2: #{rpvnet_forward.12} parent=1 // loop_pre_header
      _
    $region3: #{rpvnet_forward.12} parent=1 // loop_header
      %s8 = sphi 0, %s12
      %p9 = scmp.ge.s32.totalorder %s8, 5
      %s15 = sphi 0, %s27
      %s16 = sphi 0, %s23
      %s17 = sphi 0, %s15
      %s18 = sphi 0, %s16
      %s19 = sphi 0, %s17
      %s20 = sphi 0, %s18
      %s30 = sphi 0, %s32
      %s33 = sphi 0, %s30
      %s34 = sphi 0, %s33
      %s50 = sphi 0, %s34
      %s56 = sphi 0, %s58
      %s59 = sphi 0, %s56
      %s60 = sphi 0, %s59
      %s76 = sphi 0, %s60
      %s82 = sphi 0, %s84
      %s85 = sphi 0, %s82
      %s86 = sphi 0, %s85
      %s102 = sphi 0, %s86
    $region4: #{rpvnet_forward.12} parent=1 // loop_header_branch
      %11 = sbr.rel (%p9) target = $region8
    $region5: #{rpvnet_forward.12} parent=1 // loop_body
      %s13 = ssub.s32 %s8, 1
      %s14 = ssub.s32 %s8, 2
      %s21 = sadd.s32 1, %s16
      %p22 = scmp.ge.s32.totalorder %s21, 1
      %s23 = scalar_select %p22, 0, %s21
      %s24 = sadd.s32 1, %s15
      %s25 = scalar_select %p22, %s24, %s15
      %p26 = scmp.ge.s32.totalorder %s25, 3
      %s27 = scalar_select %p26, 0, %s25
      %s28 = ssub.s32 %s16, %s23
      %p29 = scmp.eq.s32.totalorder %s28, 0
      %s31 = sadd.s32 %s30, 1
      %s32 = scalar_select %p29, %s30, %s31
      %p35 = pneg %p29
      %p36 = scmp.eq.s32.totalorder %s8, 2
      %p37 = por %p35, %p36
      %p38 = scmp.ne.s32.totalorder %s30, %s33
      %p39 = scmp.eq.s32.totalorder %s8, 0
      %p40 = por %p38, %p39
      %p41 = scmp.ne.s32.totalorder %s30, %s33
      %p42 = scmp.eq.s32.totalorder %s13, 2
      %p43 = por %p41, %p42
      %p44 = scmp.ne.s32.totalorder %s33, %s34
      %p45 = scmp.eq.s32.totalorder %s13, 0
      %p46 = por %p44, %p45
      %p47 = scmp.ne.s32.totalorder %s33, %s34
      %p48 = scmp.eq.s32.totalorder %s14, 2
      %p49 = por %p47, %p48
      %p51 = scmp.ne.s32.totalorder %s34, %s50
      %p52 = scmp.eq.s32.totalorder %s14, 0
      %p53 = por %p51, %p52
      %s54 = ssub.s32 %s16, %s23
      %p55 = scmp.eq.s32.totalorder %s54, 0
      %s57 = sadd.s32 %s56, 1
      %s58 = scalar_select %p55, %s56, %s57
      %p61 = pneg %p55
      %p62 = scmp.eq.s32.totalorder %s8, 2
      %p63 = por %p61, %p62
      %p64 = scmp.ne.s32.totalorder %s56, %s59
      %p65 = scmp.eq.s32.totalorder %s8, 0
      %p66 = por %p64, %p65
      %p67 = scmp.ne.s32.totalorder %s56, %s59
      %p68 = scmp.eq.s32.totalorder %s13, 2
      %p69 = por %p67, %p68
      %p70 = scmp.ne.s32.totalorder %s59, %s60
      %p71 = scmp.eq.s32.totalorder %s13, 0
      %p72 = por %p70, %p71
      %p73 = scmp.ne.s32.totalorder %s59, %s60
      %p74 = scmp.eq.s32.totalorder %s14, 2
      %p75 = por %p73, %p74
      %p77 = scmp.ne.s32.totalorder %s60, %s76
      %p78 = scmp.eq.s32.totalorder %s14, 0
      %p79 = por %p77, %p78
      %s80 = ssub.s32 %s15, %s27
      %p81 = scmp.eq.s32.totalorder %s80, 0
      %s83 = sadd.s32 %s82, 1
      %s84 = scalar_select %p81, %s82, %s83
      %p87 = pneg %p81
      %p88 = scmp.eq.s32.totalorder %s8, 2
      %p89 = por %p87, %p88
      %p90 = scmp.ne.s32.totalorder %s82, %s85
      %p91 = scmp.eq.s32.totalorder %s8, 0
      %p92 = por %p90, %p91
      %p93 = scmp.ne.s32.totalorder %s82, %s85
      %p94 = scmp.eq.s32.totalorder %s13, 2
      %p95 = por %p93, %p94
      %p96 = scmp.ne.s32.totalorder %s85, %s86
      %p97 = scmp.eq.s32.totalorder %s13, 0
      %p98 = por %p96, %p97
      %p99 = scmp.ne.s32.totalorder %s85, %s86
      %p100 = scmp.eq.s32.totalorder %s14, 2
      %p101 = por %p99, %p100
      %p103 = scmp.ne.s32.totalorder %s86, %s102
      %p104 = scmp.eq.s32.totalorder %s14, 0
      %p105 = por %p103, %p104
      %p106 = scmp.le.s32.totalorder 1, %s8
      %p107 = scmp.lt.s32.totalorder %s8, 4
      %p108 = pnand %p106, %p107
      %p109 = pneg %p108
      // Predicated region
      $region9: #{rpvnet_forward.12} parent=5 // pred_check
        _
      $region10: #{rpvnet_forward.12} parent=5 // pred_check_branch
        %111 = sbr.rel (%p108) target = $region12
      $region11: #{rpvnet_forward.12} parent=5 // pred_region
        %s112 = ssub.s32 %s8, 1
        // Predicated region
        $region13: #{rpvnet_forward.12} parent=11 // pred_check
          %p113 = pneg %p46
        $region14: #{rpvnet_forward.12} parent=11 // pred_check_branch
          %115 = sbr.rel (%p113) target = $region16
        $region15: #{rpvnet_forward.12} parent=11 // pred_region
          %s116 = smul.u32 32, %s18
          %p117 = scmp.lt.s32.totalorder %s116, 31
          %s118 = scalar_select %p117, %s116, 31
          %s119 = smul.addr %s118, 8
          %s120 = scalar_lea.vmem %s0, %s119
          %s121 = smul.u32 32, %s18
        $region16: #{rpvnet_forward.12} parent=11 // pred_fallthru
          _
        // Predicated region
        $region17: #{rpvnet_forward.12} parent=11 // pred_check
          %p122 = pneg %p72
        $region18: #{rpvnet_forward.12} parent=11 // pred_check_branch
          %124 = sbr.rel (%p122) target = $region20
        $region19: #{rpvnet_forward.12} parent=11 // pred_region
          %s125 = smul.u32 2, %s18
          %p126 = scmp.lt.s32.totalorder %s125, 1
          %s127 = scalar_select %p126, %s125, 1
          %s128 = smul.addr %s127, 4
          %s129 = scalar_lea.vmem %s1, %s128
          %s130 = smul.u32 2, %s18
        $region20: #{rpvnet_forward.12} parent=11 // pred_fallthru
          _
      $region12: #{rpvnet_forward.12} parent=5 // pred_fallthru
        _
      %p131 = scmp.lt.s32.totalorder %s8, 3
      // Predicated region
      $region21: #{rpvnet_forward.12} parent=5 // pred_check
        %p132 = pneg %p131
      $region22: #{rpvnet_forward.12} parent=5 // pred_check_branch
        %134 = sbr.rel (%p132) target = $region24
      $region23: #{rpvnet_forward.12} parent=5 // pred_region
        _
      $region24: #{rpvnet_forward.12} parent=5 // pred_fallthru
        _
      %p135 = scmp.le.s32.totalorder 1, %s8
      %p136 = scmp.lt.s32.totalorder %s8, 4
      %p137 = pnand %p135, %p136
      %p138 = pneg %p137
      // Predicated region
      $region25: #{rpvnet_forward.12} parent=5 // pred_check
        _
      $region26: #{rpvnet_forward.12} parent=5 // pred_check_branch
        %140 = sbr.rel (%p137) target = $region28
      $region27: #{rpvnet_forward.12} parent=5 // pred_region
        %s141 = ssub.s32 %s8, 1
        %s142 = smul.u32 32, %s18
        %p143 = scmp.lt.s32.totalorder %s142, 31
        %s144 = scalar_select %p143, %s142, 31
        %s145 = smul.addr %s144, 8
        %s146 = scalar_lea.vmem %s0, %s145
        %p147 = pneg %p46
        %p148 = pneg %p43
        %s149 = smul.u32 2, %s18
        %p150 = scmp.lt.s32.totalorder %s149, 1
        %s151 = scalar_select %p150, %s149, 1
        %s152 = smul.addr %s151, 4
        %s153 = scalar_lea.vmem %s1, %s152
        %p154 = pneg %p72
        %p155 = pneg %p69
        %p156 = pneg %p98
        %p157 = pneg %p95
        %s158 = sand.u32 %s85, 1
        %s159 = sand.u32 %s85, 1
        %s160 = smul.addr %s159, 32
        %s161 = scalar_lea.vmem [#allocation4], %s160
        %s162 = smul.u32 32, %s18
        %p163 = scmp.lt.s32.totalorder %s162, 31
        %s164 = scalar_select %p163, %s162, 31
        %s165 = smul.addr %s164, 8
        %s166 = scalar_lea.vmem %s0, %s165
        %s167 = smul.u32 32, %s18
        %s168 = smul.u32 2, %s18
        %p169 = scmp.lt.s32.totalorder %s168, 1
        %s170 = scalar_select %p169, %s168, 1
        %s171 = smul.addr %s170, 4
        %s172 = scalar_lea.vmem %s1, %s171
        %s173 = smul.u32 2, %s18
        %s174 = smul.u32 2, %s17
        %p176 = scmp.eq.s32.totalorder %s18, 0
        // Predicated region
        $region29: #{rpvnet_forward.12} parent=27 // pred_check
          %p177 = pneg %p176
        $region30: #{rpvnet_forward.12} parent=27 // pred_check_branch
          %179 = sbr.rel (%p177) target = $region32
        $region31: #{rpvnet_forward.12} parent=27 // pred_region
          %180 = vst [vmem:[#allocation2] sm:$0xff] 0.0
          %181 = vst [vmem:[#allocation2 + $0x8] sm:$0xff] 0.0
          %182 = vst [vmem:[#allocation2 + $0x10] sm:$0xff] 0.0
          %183 = vst [vmem:[#allocation2 + $0x18] sm:$0xff] 0.0
          %184 = vst [vmem:[#allocation2 + $0x20] sm:$0xff] 0.0
          %185 = vst [vmem:[#allocation2 + $0x28] sm:$0xff] 0.0
          %186 = vst [vmem:[#allocation2 + $0x30] sm:$0xff] 0.0
          %187 = vst [vmem:[#allocation2 + $0x38] sm:$0xff] 0.0
          %v188 = vlaneseq
          %vm189 = vcmp.ge.s32.totalorder %v188, 0
          %vm190 = vcmp.lt.s32.totalorder %v188, 256
          %vm191 = vmand %vm189, %vm190
          %192 = vst.msk [vmem:[#allocation3] sm:$0x3] %vm191, 0.0
        $region32: #{rpvnet_forward.12} parent=27 // pred_fallthru
          _
        %v193 = vld [vmem:[%s166] sm:$0xff]
        %v194 = vld [vmem:[%s166 + $0x8] sm:$0xff]
        %v195 = vld [vmem:[%s166 + $0x10] sm:$0xff]
        %v196 = vld [vmem:[%s166 + $0x18] sm:$0xff]
        %v197 = vld [vmem:[%s166 + $0x20] sm:$0xff]
        %v198 = vld [vmem:[%s166 + $0x28] sm:$0xff]
        %v199 = vld [vmem:[%s166 + $0x30] sm:$0xff]
        %v200 = vld [vmem:[%s166 + $0x38] sm:$0xff]
        %v201 = vld [vmem:[%s166 + $0x40] sm:$0xff]
        %v202 = vld [vmem:[%s166 + $0x48] sm:$0xff]
        %v203 = vld [vmem:[%s166 + $0x50] sm:$0xff]
        %v204 = vld [vmem:[%s166 + $0x58] sm:$0xff]
        %v205 = vld [vmem:[%s166 + $0x60] sm:$0xff]
        %v206 = vld [vmem:[%s166 + $0x68] sm:$0xff]
        %v207 = vld [vmem:[%s166 + $0x70] sm:$0xff]
        %v208 = vld [vmem:[%s166 + $0x78] sm:$0xff]
        %v209 = vld [vmem:[%s166 + $0x80] sm:$0xff]
        %v210 = vld [vmem:[%s166 + $0x88] sm:$0xff]
        %v211 = vld [vmem:[%s166 + $0x90] sm:$0xff]
        %v212 = vld [vmem:[%s166 + $0x98] sm:$0xff]
        %v213 = vld [vmem:[%s166 + $0xa0] sm:$0xff]
        %v214 = vld [vmem:[%s166 + $0xa8] sm:$0xff]
        %v215 = vld [vmem:[%s166 + $0xb0] sm:$0xff]
        %v216 = vld [vmem:[%s166 + $0xb8] sm:$0xff]
        %v217 = vld [vmem:[%s166 + $0xc0] sm:$0xff]
        %v218 = vld [vmem:[%s166 + $0xc8] sm:$0xff]
        %v219 = vld [vmem:[%s166 + $0xd0] sm:$0xff]
        %v220 = vld [vmem:[%s166 + $0xd8] sm:$0xff]
        %v221 = vld [vmem:[%s166 + $0xe0] sm:$0xff]
        %v222 = vld [vmem:[%s166 + $0xe8] sm:$0xff]
        %v223 = vld [vmem:[%s166 + $0xf0] sm:$0xff]
        %v224 = vld [vmem:[%s166 + $0xf8] sm:$0xff]
        %p225 = scmp.lt.s32.totalorder %s17, 2
        %s226 = scalar_select %p225, 1, 0
        %v227 = vstv %s226
        %vm228 = vcmp.eq.s32.totalorder %v227, 1
        %229 = vrot.lane.b32.xlu0 %v193, 127
        %v230 = vpop.permute.xlu0 %229
        %231 = vrot.lane.b32.xlu0 %v194, 127
        %v232 = vpop.permute.xlu0 %231
        %233 = vrot.lane.b32.xlu0 %v195, 127
        %v234 = vpop.permute.xlu0 %233
        %235 = vrot.lane.b32.xlu0 %v196, 127
        %v236 = vpop.permute.xlu0 %235
        %237 = vrot.lane.b32.xlu0 %v197, 127
        %v238 = vpop.permute.xlu0 %237
        %239 = vrot.lane.b32.xlu0 %v198, 127
        %v240 = vpop.permute.xlu0 %239
        %241 = vrot.lane.b32.xlu0 %v199, 127
        %v242 = vpop.permute.xlu0 %241
        %243 = vrot.lane.b32.xlu0 %v200, 127
        %v244 = vpop.permute.xlu0 %243
        %245 = vrot.lane.b32.xlu0 %v201, 127
        %v246 = vpop.permute.xlu0 %245
        %247 = vrot.lane.b32.xlu0 %v202, 127
        %v248 = vpop.permute.xlu0 %247
        %249 = vrot.lane.b32.xlu0 %v203, 127
        %v250 = vpop.permute.xlu0 %249
        %251 = vrot.lane.b32.xlu0 %v204, 127
        %v252 = vpop.permute.xlu0 %251
        %253 = vrot.lane.b32.xlu0 %v205, 127
        %v254 = vpop.permute.xlu0 %253
        %255 = vrot.lane.b32.xlu0 %v206, 127
        %v256 = vpop.permute.xlu0 %255
        %257 = vrot.lane.b32.xlu0 %v207, 127
        %v258 = vpop.permute.xlu0 %257
        %259 = vrot.lane.b32.xlu0 %v208, 127
        %v260 = vpop.permute.xlu0 %259
        %261 = vrot.lane.b32.xlu0 %v209, 127
        %v262 = vpop.permute.xlu0 %261
        %263 = vrot.lane.b32.xlu0 %v210, 127
        %v264 = vpop.permute.xlu0 %263
        %265 = vrot.lane.b32.xlu0 %v211, 127
        %v266 = vpop.permute.xlu0 %265
        %267 = vrot.lane.b32.xlu0 %v212, 127
        %v268 = vpop.permute.xlu0 %267
        %269 = vrot.lane.b32.xlu0 %v213, 127
        %v270 = vpop.permute.xlu0 %269
        %271 = vrot.lane.b32.xlu0 %v214, 127
        %v272 = vpop.permute.xlu0 %271
        %273 = vrot.lane.b32.xlu0 %v215, 127
        %v274 = vpop.permute.xlu0 %273
        %275 = vrot.lane.b32.xlu0 %v216, 127
        %v276 = vpop.permute.xlu0 %275
        %277 = vrot.lane.b32.xlu0 %v217, 127
        %v278 = vpop.permute.xlu0 %277
        %279 = vrot.lane.b32.xlu0 %v218, 127
        %v280 = vpop.permute.xlu0 %279
        %281 = vrot.lane.b32.xlu0 %v219, 127
        %v282 = vpop.permute.xlu0 %281
        %283 = vrot.lane.b32.xlu0 %v220, 127
        %v284 = vpop.permute.xlu0 %283
        %285 = vrot.lane.b32.xlu0 %v221, 127
        %v286 = vpop.permute.xlu0 %285
        %287 = vrot.lane.b32.xlu0 %v222, 127
        %v288 = vpop.permute.xlu0 %287
        %289 = vrot.lane.b32.xlu0 %v223, 127
        %v290 = vpop.permute.xlu0 %289
        %291 = vrot.lane.b32.xlu0 %v224, 127
        %v292 = vpop.permute.xlu0 %291
        %v293 = vsel %vm228, %v193, %v230
        %v294 = vsel %vm228, %v194, %v232
        %v295 = vsel %vm228, %v195, %v234
        %v296 = vsel %vm228, %v196, %v236
        %v297 = vsel %vm228, %v197, %v238
        %v298 = vsel %vm228, %v198, %v240
        %v299 = vsel %vm228, %v199, %v242
        %v300 = vsel %vm228, %v200, %v244
        %v301 = vsel %vm228, %v201, %v246
        %v302 = vsel %vm228, %v202, %v248
        %v303 = vsel %vm228, %v203, %v250
        %v304 = vsel %vm228, %v204, %v252
        %v305 = vsel %vm228, %v205, %v254
        %v306 = vsel %vm228, %v206, %v256
        %v307 = vsel %vm228, %v207, %v258
        %v308 = vsel %vm228, %v208, %v260
        %v309 = vsel %vm228, %v209, %v262
        %v310 = vsel %vm228, %v210, %v264
        %v311 = vsel %vm228, %v211, %v266
        %v312 = vsel %vm228, %v212, %v268
        %v313 = vsel %vm228, %v213, %v270
        %v314 = vsel %vm228, %v214, %v272
        %v315 = vsel %vm228, %v215, %v274
        %v316 = vsel %vm228, %v216, %v276
        %v317 = vsel %vm228, %v217, %v278
        %v318 = vsel %vm228, %v218, %v280
        %v319 = vsel %vm228, %v219, %v282
        %v320 = vsel %vm228, %v220, %v284
        %v321 = vsel %vm228, %v221, %v286
        %v322 = vsel %vm228, %v222, %v288
        %v323 = vsel %vm228, %v223, %v290
        %v324 = vsel %vm228, %v224, %v292
        %s325 = smul.u32 %s17, 256
        %v326 = vlaneseq
        %v327 = vand.u32 %v326, 127
        %v328 = vadd.s32 %v327, 128
        %v329 = vstv %s325
        %v330 = vadd.s32 %v329, %v327
        %v331 = vadd.s32 %v329, %v328
        %332 = vset.pattern.permute.xlu0 0
        %333 = vperm.xlu0 %332, %v293
        %v334 = vpop.permute.xlu0 %333
        %335 = vset.pattern.permute.xlu0 0
        %336 = vperm.xlu0 %335, %v294
        %v337 = vpop.permute.xlu0 %336
        %338 = vset.pattern.permute.xlu0 0
        %339 = vperm.xlu0 %338, %v295
        %v340 = vpop.permute.xlu0 %339
        %341 = vset.pattern.permute.xlu0 0
        %342 = vperm.xlu0 %341, %v296
        %v343 = vpop.permute.xlu0 %342
        %344 = vset.pattern.permute.xlu0 0
        %345 = vperm.xlu0 %344, %v297
        %v346 = vpop.permute.xlu0 %345
        %347 = vset.pattern.permute.xlu0 0
        %348 = vperm.xlu0 %347, %v298
        %v349 = vpop.permute.xlu0 %348
        %350 = vset.pattern.permute.xlu0 0
        %351 = vperm.xlu0 %350, %v299
        %v352 = vpop.permute.xlu0 %351
        %353 = vset.pattern.permute.xlu0 0
        %354 = vperm.xlu0 %353, %v300
        %v355 = vpop.permute.xlu0 %354
        %356 = vset.pattern.permute.xlu0 0
        %357 = vperm.xlu0 %356, %v301
        %v358 = vpop.permute.xlu0 %357
        %359 = vset.pattern.permute.xlu0 0
        %360 = vperm.xlu0 %359, %v302
        %v361 = vpop.permute.xlu0 %360
        %362 = vset.pattern.permute.xlu0 0
        %363 = vperm.xlu0 %362, %v303
        %v364 = vpop.permute.xlu0 %363
        %365 = vset.pattern.permute.xlu0 0
        %366 = vperm.xlu0 %365, %v304
        %v367 = vpop.permute.xlu0 %366
        %368 = vset.pattern.permute.xlu0 0
        %369 = vperm.xlu0 %368, %v305
        %v370 = vpop.permute.xlu0 %369
        %371 = vset.pattern.permute.xlu0 0
        %372 = vperm.xlu0 %371, %v306
        %v373 = vpop.permute.xlu0 %372
        %374 = vset.pattern.permute.xlu0 0
        %375 = vperm.xlu0 %374, %v307
        %v376 = vpop.permute.xlu0 %375
        %377 = vset.pattern.permute.xlu0 0
        %378 = vperm.xlu0 %377, %v308
        %v379 = vpop.permute.xlu0 %378
        %380 = vset.pattern.permute.xlu0 0
        %381 = vperm.xlu0 %380, %v309
        %v382 = vpop.permute.xlu0 %381
        %383 = vset.pattern.permute.xlu0 0
        %384 = vperm.xlu0 %383, %v310
        %v385 = vpop.permute.xlu0 %384
        %386 = vset.pattern.permute.xlu0 0
        %387 = vperm.xlu0 %386, %v311
        %v388 = vpop.permute.xlu0 %387
        %389 = vset.pattern.permute.xlu0 0
        %390 = vperm.xlu0 %389, %v312
        %v391 = vpop.permute.xlu0 %390
        %392 = vset.pattern.permute.xlu0 0
        %393 = vperm.xlu0 %392, %v313
        %v394 = vpop.permute.xlu0 %393
        %395 = vset.pattern.permute.xlu0 0
        %396 = vperm.xlu0 %395, %v314
        %v397 = vpop.permute.xlu0 %396
        %398 = vset.pattern.permute.xlu0 0
        %399 = vperm.xlu0 %398, %v315
        %v400 = vpop.permute.xlu0 %399
        %401 = vset.pattern.permute.xlu0 0
        %402 = vperm.xlu0 %401, %v316
        %v403 = vpop.permute.xlu0 %402
        %404 = vset.pattern.permute.xlu0 0
        %405 = vperm.xlu0 %404, %v317
        %v406 = vpop.permute.xlu0 %405
        %407 = vset.pattern.permute.xlu0 0
        %408 = vperm.xlu0 %407, %v318
        %v409 = vpop.permute.xlu0 %408
        %410 = vset.pattern.permute.xlu0 0
        %411 = vperm.xlu0 %410, %v319
        %v412 = vpop.permute.xlu0 %411
        %413 = vset.pattern.permute.xlu0 0
        %414 = vperm.xlu0 %413, %v320
        %v415 = vpop.permute.xlu0 %414
        %416 = vset.pattern.permute.xlu0 0
        %417 = vperm.xlu0 %416, %v321
        %v418 = vpop.permute.xlu0 %417
        %419 = vset.pattern.permute.xlu0 0
        %420 = vperm.xlu0 %419, %v322
        %v421 = vpop.permute.xlu0 %420
        %422 = vset.pattern.permute.xlu0 0
        %423 = vperm.xlu0 %422, %v323
        %v424 = vpop.permute.xlu0 %423
        %425 = vset.pattern.permute.xlu0 0
        %426 = vperm.xlu0 %425, %v324
        %v427 = vpop.permute.xlu0 %426
        %vm428 = vcmp.eq.s32.totalorder %v334, %v330
        %vm429 = vcmp.eq.s32.totalorder %v334, %v331
        %vm430 = vcmp.eq.s32.totalorder %v337, %v330
        %vm431 = vcmp.eq.s32.totalorder %v337, %v331
        %vm432 = vcmp.eq.s32.totalorder %v340, %v330
        %vm433 = vcmp.eq.s32.totalorder %v340, %v331
        %vm434 = vcmp.eq.s32.totalorder %v343, %v330
        %vm435 = vcmp.eq.s32.totalorder %v343, %v331
        %vm436 = vcmp.eq.s32.totalorder %v346, %v330
        %vm437 = vcmp.eq.s32.totalorder %v346, %v331
        %vm438 = vcmp.eq.s32.totalorder %v349, %v330
        %vm439 = vcmp.eq.s32.totalorder %v349, %v331
        %vm440 = vcmp.eq.s32.totalorder %v352, %v330
        %vm441 = vcmp.eq.s32.totalorder %v352, %v331
        %vm442 = vcmp.eq.s32.totalorder %v355, %v330
        %vm443 = vcmp.eq.s32.totalorder %v355, %v331
        %vm444 = vcmp.eq.s32.totalorder %v358, %v330
        %vm445 = vcmp.eq.s32.totalorder %v358, %v331
        %vm446 = vcmp.eq.s32.totalorder %v361, %v330
        %vm447 = vcmp.eq.s32.totalorder %v361, %v331
        %vm448 = vcmp.eq.s32.totalorder %v364, %v330
        %vm449 = vcmp.eq.s32.totalorder %v364, %v331
        %vm450 = vcmp.eq.s32.totalorder %v367, %v330
        %vm451 = vcmp.eq.s32.totalorder %v367, %v331
        %vm452 = vcmp.eq.s32.totalorder %v370, %v330
        %vm453 = vcmp.eq.s32.totalorder %v370, %v331
        %vm454 = vcmp.eq.s32.totalorder %v373, %v330
        %vm455 = vcmp.eq.s32.totalorder %v373, %v331
        %vm456 = vcmp.eq.s32.totalorder %v376, %v330
        %vm457 = vcmp.eq.s32.totalorder %v376, %v331
        %vm458 = vcmp.eq.s32.totalorder %v379, %v330
        %vm459 = vcmp.eq.s32.totalorder %v379, %v331
        %vm460 = vcmp.eq.s32.totalorder %v382, %v330
        %vm461 = vcmp.eq.s32.totalorder %v382, %v331
        %vm462 = vcmp.eq.s32.totalorder %v385, %v330
        %vm463 = vcmp.eq.s32.totalorder %v385, %v331
        %vm464 = vcmp.eq.s32.totalorder %v388, %v330
        %vm465 = vcmp.eq.s32.totalorder %v388, %v331
        %vm466 = vcmp.eq.s32.totalorder %v391, %v330
        %vm467 = vcmp.eq.s32.totalorder %v391, %v331
        %vm468 = vcmp.eq.s32.totalorder %v394, %v330
        %vm469 = vcmp.eq.s32.totalorder %v394, %v331
        %vm470 = vcmp.eq.s32.totalorder %v397, %v330
        %vm471 = vcmp.eq.s32.totalorder %v397, %v331
        %vm472 = vcmp.eq.s32.totalorder %v400, %v330
        %vm473 = vcmp.eq.s32.totalorder %v400, %v331
        %vm474 = vcmp.eq.s32.totalorder %v403, %v330
        %vm475 = vcmp.eq.s32.totalorder %v403, %v331
        %vm476 = vcmp.eq.s32.totalorder %v406, %v330
        %vm477 = vcmp.eq.s32.totalorder %v406, %v331
        %vm478 = vcmp.eq.s32.totalorder %v409, %v330
        %vm479 = vcmp.eq.s32.totalorder %v409, %v331
        %vm480 = vcmp.eq.s32.totalorder %v412, %v330
        %vm481 = vcmp.eq.s32.totalorder %v412, %v331
        %vm482 = vcmp.eq.s32.totalorder %v415, %v330
        %vm483 = vcmp.eq.s32.totalorder %v415, %v331
        %vm484 = vcmp.eq.s32.totalorder %v418, %v330
        %vm485 = vcmp.eq.s32.totalorder %v418, %v331
        %vm486 = vcmp.eq.s32.totalorder %v421, %v330
        %vm487 = vcmp.eq.s32.totalorder %v421, %v331
        %vm488 = vcmp.eq.s32.totalorder %v424, %v330
        %vm489 = vcmp.eq.s32.totalorder %v424, %v331
        %vm490 = vcmp.eq.s32.totalorder %v427, %v330
        %vm491 = vcmp.eq.s32.totalorder %v427, %v331
        %v492 = vsel %vm428, 1, 0
        %v493 = vsel %vm429, 1, 0
        %v494 = vsel %vm430, 1, 0
        %v495 = vsel %vm431, 1, 0
        %v496 = vsel %vm432, 1, 0
        %v497 = vsel %vm433, 1, 0
        %v498 = vsel %vm434, 1, 0
        %v499 = vsel %vm435, 1, 0
        %v500 = vsel %vm436, 1, 0
        %v501 = vsel %vm437, 1, 0
        %v502 = vsel %vm438, 1, 0
        %v503 = vsel %vm439, 1, 0
        %v504 = vsel %vm440, 1, 0
        %v505 = vsel %vm441, 1, 0
        %v506 = vsel %vm442, 1, 0
        %v507 = vsel %vm443, 1, 0
        %v508 = vsel %vm444, 1, 0
        %v509 = vsel %vm445, 1, 0
        %v510 = vsel %vm446, 1, 0
        %v511 = vsel %vm447, 1, 0
        %v512 = vsel %vm448, 1, 0
        %v513 = vsel %vm449, 1, 0
        %v514 = vsel %vm450, 1, 0
        %v515 = vsel %vm451, 1, 0
        %v516 = vsel %vm452, 1, 0
        %v517 = vsel %vm453, 1, 0
        %v518 = vsel %vm454, 1, 0
        %v519 = vsel %vm455, 1, 0
        %v520 = vsel %vm456, 1, 0
        %v521 = vsel %vm457, 1, 0
        %v522 = vsel %vm458, 1, 0
        %v523 = vsel %vm459, 1, 0
        %v524 = vsel %vm460, 1, 0
        %v525 = vsel %vm461, 1, 0
        %v526 = vsel %vm462, 1, 0
        %v527 = vsel %vm463, 1, 0
        %v528 = vsel %vm464, 1, 0
        %v529 = vsel %vm465, 1, 0
        %v530 = vsel %vm466, 1, 0
        %v531 = vsel %vm467, 1, 0
        %v532 = vsel %vm468, 1, 0
        %v533 = vsel %vm469, 1, 0
        %v534 = vsel %vm470, 1, 0
        %v535 = vsel %vm471, 1, 0
        %v536 = vsel %vm472, 1, 0
        %v537 = vsel %vm473, 1, 0
        %v538 = vsel %vm474, 1, 0
        %v539 = vsel %vm475, 1, 0
        %v540 = vsel %vm476, 1, 0
        %v541 = vsel %vm477, 1, 0
        %v542 = vsel %vm478, 1, 0
        %v543 = vsel %vm479, 1, 0
        %v544 = vsel %vm480, 1, 0
        %v545 = vsel %vm481, 1, 0
        %v546 = vsel %vm482, 1, 0
        %v547 = vsel %vm483, 1, 0
        %v548 = vsel %vm484, 1, 0
        %v549 = vsel %vm485, 1, 0
        %v550 = vsel %vm486, 1, 0
        %v551 = vsel %vm487, 1, 0
        %v552 = vsel %vm488, 1, 0
        %v553 = vsel %vm489, 1, 0
        %v554 = vsel %vm490, 1, 0
        %v555 = vsel %vm491, 1, 0
        %v556 = vcvt.s32.f32 %v492
        %v557 = vcvt.s32.f32 %v493
        %v558 = vcvt.s32.f32 %v494
        %v559 = vcvt.s32.f32 %v495
        %v560 = vcvt.s32.f32 %v496
        %v561 = vcvt.s32.f32 %v497
        %v562 = vcvt.s32.f32 %v498
        %v563 = vcvt.s32.f32 %v499
        %v564 = vcvt.s32.f32 %v500
        %v565 = vcvt.s32.f32 %v501
        %v566 = vcvt.s32.f32 %v502
        %v567 = vcvt.s32.f32 %v503
        %v568 = vcvt.s32.f32 %v504
        %v569 = vcvt.s32.f32 %v505
        %v570 = vcvt.s32.f32 %v506
        %v571 = vcvt.s32.f32 %v507
        %v572 = vcvt.s32.f32 %v508
        %v573 = vcvt.s32.f32 %v509
        %v574 = vcvt.s32.f32 %v510
        %v575 = vcvt.s32.f32 %v511
        %v576 = vcvt.s32.f32 %v512
        %v577 = vcvt.s32.f32 %v513
        %v578 = vcvt.s32.f32 %v514
        %v579 = vcvt.s32.f32 %v515
        %v580 = vcvt.s32.f32 %v516
        %v581 = vcvt.s32.f32 %v517
        %v582 = vcvt.s32.f32 %v518
        %v583 = vcvt.s32.f32 %v519
        %v584 = vcvt.s32.f32 %v520
        %v585 = vcvt.s32.f32 %v521
        %v586 = vcvt.s32.f32 %v522
        %v587 = vcvt.s32.f32 %v523
        %v588 = vcvt.s32.f32 %v524
        %v589 = vcvt.s32.f32 %v525
        %v590 = vcvt.s32.f32 %v526
        %v591 = vcvt.s32.f32 %v527
        %v592 = vcvt.s32.f32 %v528
        %v593 = vcvt.s32.f32 %v529
        %v594 = vcvt.s32.f32 %v530
        %v595 = vcvt.s32.f32 %v531
        %v596 = vcvt.s32.f32 %v532
        %v597 = vcvt.s32.f32 %v533
        %v598 = vcvt.s32.f32 %v534
        %v599 = vcvt.s32.f32 %v535
        %v600 = vcvt.s32.f32 %v536
        %v601 = vcvt.s32.f32 %v537
        %v602 = vcvt.s32.f32 %v538
        %v603 = vcvt.s32.f32 %v539
        %v604 = vcvt.s32.f32 %v540
        %v605 = vcvt.s32.f32 %v541
        %v606 = vcvt.s32.f32 %v542
        %v607 = vcvt.s32.f32 %v543
        %v608 = vcvt.s32.f32 %v544
        %v609 = vcvt.s32.f32 %v545
        %v610 = vcvt.s32.f32 %v546
        %v611 = vcvt.s32.f32 %v547
        %v612 = vcvt.s32.f32 %v548
        %v613 = vcvt.s32.f32 %v549
        %v614 = vcvt.s32.f32 %v550
        %v615 = vcvt.s32.f32 %v551
        %v616 = vcvt.s32.f32 %v552
        %v617 = vcvt.s32.f32 %v553
        %v618 = vcvt.s32.f32 %v554
        %v619 = vcvt.s32.f32 %v555
        %v620 = vpack.c.bf16 %v558, %v556
        %v621 = vpack.c.bf16 %v559, %v557
        %v622 = vpack.c.bf16 %v562, %v560
        %v623 = vpack.c.bf16 %v563, %v561
        %v624 = vpack.c.bf16 %v566, %v564
        %v625 = vpack.c.bf16 %v567, %v565
        %v626 = vpack.c.bf16 %v570, %v568
        %v627 = vpack.c.bf16 %v571, %v569
        %v628 = vpack.c.bf16 %v574, %v572
        %v629 = vpack.c.bf16 %v575, %v573
        %v630 = vpack.c.bf16 %v578, %v576
        %v631 = vpack.c.bf16 %v579, %v577
        %v632 = vpack.c.bf16 %v582, %v580
        %v633 = vpack.c.bf16 %v583, %v581
        %v634 = vpack.c.bf16 %v586, %v584
        %v635 = vpack.c.bf16 %v587, %v585
        %v636 = vpack.c.bf16 %v590, %v588
        %v637 = vpack.c.bf16 %v591, %v589
        %v638 = vpack.c.bf16 %v594, %v592
        %v639 = vpack.c.bf16 %v595, %v593
        %v640 = vpack.c.bf16 %v598, %v596
        %v641 = vpack.c.bf16 %v599, %v597
        %v642 = vpack.c.bf16 %v602, %v600
        %v643 = vpack.c.bf16 %v603, %v601
        %v644 = vpack.c.bf16 %v606, %v604
        %v645 = vpack.c.bf16 %v607, %v605
        %v646 = vpack.c.bf16 %v610, %v608
        %v647 = vpack.c.bf16 %v611, %v609
        %v648 = vpack.c.bf16 %v614, %v612
        %v649 = vpack.c.bf16 %v615, %v613
        %v650 = vpack.c.bf16 %v618, %v616
        %v651 = vpack.c.bf16 %v619, %v617
        %v652 = vld [vmem:[%s172] sm:$0xff]
        %v653 = vld [vmem:[%s172 + $0x8] sm:$0xff]
        %v654 = vld [vmem:[%s172 + $0x10] sm:$0xff]
        %v655 = vld [vmem:[%s172 + $0x18] sm:$0xff]
        %v656 = vld [vmem:[#allocation2] sm:$0xff]
        %v657 = vld [vmem:[#allocation2 + $0x8] sm:$0xff]
        %v658 = vld [vmem:[#allocation2 + $0x10] sm:$0xff]
        %v659 = vld [vmem:[#allocation2 + $0x18] sm:$0xff]
        %v660 = vld [vmem:[#allocation2 + $0x20] sm:$0xff]
        %v661 = vld [vmem:[#allocation2 + $0x28] sm:$0xff]
        %v662 = vld [vmem:[#allocation2 + $0x30] sm:$0xff]
        %v663 = vld [vmem:[#allocation2 + $0x38] sm:$0xff]
        %v668 = vunpack.c.l.b16 %v652
        %v669 = vunpack.c.h.b16 %v652
        %v670 = vunpack.c.l.b16 %v653
        %v671 = vunpack.c.h.b16 %v653
        %v672 = vunpack.c.l.b16 %v654
        %v673 = vunpack.c.h.b16 %v654
        %v674 = vunpack.c.l.b16 %v655
        %v675 = vunpack.c.h.b16 %v655
        %v676 = vpack.c.b16 %v670, %v668
        %v677 = vpack.c.b16 %v671, %v669
        %v678 = vpack.c.b16 %v674, %v672
        %v679 = vpack.c.b16 %v675, %v673
        %684 = vmatprep.subr.bf16.mxu0 %v621
        %685 = vmatpush1.bf16.msra.mxu0 %v620
        %686 = vmatprep.subr.bf16.mxu0 %v623
        %687 = vmatpush1.bf16.msra.mxu0 %v622
        %688 = vmatprep.subr.bf16.mxu0 %v625
        %689 = vmatpush1.bf16.msra.mxu0 %v624
        %690 = vmatprep.subr.bf16.mxu0 %v627
        %691 = vmatpush1.bf16.msra.mxu0 %v626
        %692 = vmatprep.subr.bf16.mxu0 %v629
        %693 = vmatpush1.bf16.msra.mxu0 %v628
        %694 = vmatprep.subr.bf16.mxu0 %v631
        %695 = vmatpush1.bf16.msra.mxu0 %v630
        %696 = vmatprep.subr.bf16.mxu0 %v633
        %697 = vmatpush1.bf16.msra.mxu0 %v632
        %698 = vmatprep.subr.bf16.mxu0 %v635
        %699 = vmatpush1.bf16.msra.mxu0 %v634
        %700 = vmatprep.subr.bf16.mxu0 %v637
        %701 = vmatpush1.bf16.msra.mxu0 %v636
        %702 = vmatprep.subr.bf16.mxu0 %v639
        %703 = vmatpush1.bf16.msra.mxu0 %v638
        %704 = vmatprep.subr.bf16.mxu0 %v641
        %705 = vmatpush1.bf16.msra.mxu0 %v640
        %706 = vmatprep.subr.bf16.mxu0 %v643
        %707 = vmatpush1.bf16.msra.mxu0 %v642
        %708 = vmatprep.subr.bf16.mxu0 %v645
        %709 = vmatpush1.bf16.msra.mxu0 %v644
        %710 = vmatprep.subr.bf16.mxu0 %v647
        %711 = vmatpush1.bf16.msra.mxu0 %v646
        %712 = vmatprep.subr.bf16.mxu0 %v649
        %713 = vmatpush1.bf16.msra.mxu0 %v648
        %714 = vmatprep.subr.bf16.mxu0 %v651
        %715 = vmatpush1.bf16.msra.mxu0 %v650
        %716 = vmatprep.mubr.bf16.mxu0 %v677
        %717 = vmatmul.mubr.bf16.gmra.mrb[0].mxu0 %v676
        %v718 = vpop.f32.mrb[0].mxu0
        %v719 = vadd.f32 0.0, %v718
        %v720 = vpop.f32.mrb[0].mxu0
        %v721 = vadd.f32 0.0, %v720
        %v722 = vpop.f32.mrb[0].mxu0
        %v723 = vadd.f32 0.0, %v722
        %v724 = vpop.f32.mrb[0].mxu0
        %v725 = vadd.f32 0.0, %v724
        %726 = vmatprep.mubr.bf16.mxu0 %v679
        %727 = vmatmul.mubr.bf16.gmra.mrb[0].mxu0 %v678
        %v728 = vpop.f32.mrb[0].mxu0
        %v729 = vadd.f32 0.0, %v728
        %v730 = vpop.f32.mrb[0].mxu0
        %v731 = vadd.f32 0.0, %v730
        %v732 = vpop.f32.mrb[0].mxu0
        %v733 = vadd.f32 0.0, %v732
        %v734 = vpop.f32.mrb[0].mxu0
        %v735 = vadd.f32 0.0, %v734
        %736 = vdwg.mxu0
        %v737 = vadd.f32 %v656, %v719
        %v738 = vadd.f32 %v657, %v721
        %v739 = vadd.f32 %v658, %v723
        %v740 = vadd.f32 %v659, %v725
        %v741 = vadd.f32 %v660, %v729
        %v742 = vadd.f32 %v661, %v731
        %v743 = vadd.f32 %v662, %v733
        %v744 = vadd.f32 %v663, %v735
        %745 = vst [vmem:[#allocation2] sm:$0xff] %v737
        %746 = vst [vmem:[#allocation2 + $0x8] sm:$0xff] %v738
        %747 = vst [vmem:[#allocation2 + $0x10] sm:$0xff] %v739
        %748 = vst [vmem:[#allocation2 + $0x18] sm:$0xff] %v740
        %749 = vst [vmem:[#allocation2 + $0x20] sm:$0xff] %v741
        %750 = vst [vmem:[#allocation2 + $0x28] sm:$0xff] %v742
        %751 = vst [vmem:[#allocation2 + $0x30] sm:$0xff] %v743
        %752 = vst [vmem:[#allocation2 + $0x38] sm:$0xff] %v744
        %v753 = vld [vmem:[#allocation3] sm:$0x3]
        %754 = vmatprep.subr.bf16.mxu0 %v621
        %755 = vmatpush1.bf16.msra.mxu0 %v620
        %756 = vmatprep.subr.bf16.mxu0 %v623
        %757 = vmatpush1.bf16.msra.mxu0 %v622
        %758 = vmatprep.subr.bf16.mxu0 %v625
        %759 = vmatpush1.bf16.msra.mxu0 %v624
        %760 = vmatprep.subr.bf16.mxu0 %v627
        %761 = vmatpush1.bf16.msra.mxu0 %v626
        %762 = vmatprep.subr.bf16.mxu0 %v629
        %763 = vmatpush1.bf16.msra.mxu0 %v628
        %764 = vmatprep.subr.bf16.mxu0 %v631
        %765 = vmatpush1.bf16.msra.mxu0 %v630
        %766 = vmatprep.subr.bf16.mxu0 %v633
        %767 = vmatpush1.bf16.msra.mxu0 %v632
        %768 = vmatprep.subr.bf16.mxu0 %v635
        %769 = vmatpush1.bf16.msra.mxu0 %v634
        %770 = vmatprep.subr.bf16.mxu0 %v637
        %771 = vmatpush1.bf16.msra.mxu0 %v636
        %772 = vmatprep.subr.bf16.mxu0 %v639
        %773 = vmatpush1.bf16.msra.mxu0 %v638
        %774 = vmatprep.subr.bf16.mxu0 %v641
        %775 = vmatpush1.bf16.msra.mxu0 %v640
        %776 = vmatprep.subr.bf16.mxu0 %v643
        %777 = vmatpush1.bf16.msra.mxu0 %v642
        %778 = vmatprep.subr.bf16.mxu0 %v645
        %779 = vmatpush1.bf16.msra.mxu0 %v644
        %780 = vmatprep.subr.bf16.mxu0 %v647
        %781 = vmatpush1.bf16.msra.mxu0 %v646
        %782 = vmatprep.subr.bf16.mxu0 %v649
        %783 = vmatpush1.bf16.msra.mxu0 %v648
        %784 = vmatprep.subr.bf16.mxu0 %v651
        %785 = vmatpush1.bf16.msra.mxu0 %v650
        %786 = vmatprep.mubr.bf16.mxu0 1065369472
        %787 = vmatmul.mubr.bf16.gmra.mrb[0].mxu0 1065369472
        %v788 = vpop.f32.mrb[0].mxu0
        %v789 = vadd.f32 0.0, %v788
        %v790 = vpop.f32.mrb[0].mxu0
        %v791 = vadd.f32 0.0, %v790
        %v792 = vpop.f32.mrb[0].mxu0
        %v793 = vpop.f32.mrb[0].mxu0
        %794 = vdwg.mxu0
        %v797 = vcombine.low %v789, %v791
        %v799 = vunpack.c.l.s4 1966171168
        %v800 = vunpack.c.0.s8 %v799
        %v801 = vlaneseq
        %v802 = vshrl.u32 %v801, 7
        %v803 = vsub.s32 %v800, %v802
        %v804 = vrot.slane %v797, %v803
        %v806 = vunpack.c.l.s4 1966171168
        %v807 = vunpack.c.0.s8 %v806
        %v808 = vlaneseq
        %v809 = vshrl.u32 %v808, 7
        %v810 = vsub.s32 %v807, %v809
        %v811 = vrot.slane %v804, %v810
        %v813 = vadd.f32 %v753, %v811
        %v814 = vlaneseq
        %vm815 = vcmp.ge.s32.totalorder %v814, 0
        %vm816 = vcmp.lt.s32.totalorder %v814, 256
        %vm817 = vmand %vm815, %vm816
        %818 = vst.msk [vmem:[#allocation3] sm:$0x3] %vm817, %v813
        // Predicated region
        $region33: #{rpvnet_forward.12} parent=27 // pred_check
          %p819 = pneg %p176
        $region34: #{rpvnet_forward.12} parent=27 // pred_check_branch
          %821 = sbr.rel (%p819) target = $region36
        $region35: #{rpvnet_forward.12} parent=27 // pred_region
          %v822 = vld [vmem:[#allocation2] sm:$0xff]
          %v823 = vld [vmem:[#allocation2 + $0x8] sm:$0xff]
          %v824 = vld [vmem:[#allocation2 + $0x10] sm:$0xff]
          %v825 = vld [vmem:[#allocation2 + $0x18] sm:$0xff]
          %v826 = vld [vmem:[#allocation2 + $0x20] sm:$0xff]
          %v827 = vld [vmem:[#allocation2 + $0x28] sm:$0xff]
          %v828 = vld [vmem:[#allocation2 + $0x30] sm:$0xff]
          %v829 = vld [vmem:[#allocation2 + $0x38] sm:$0xff]
          %v830 = vld [vmem:[#allocation3] sm:$0x3]
          %v831 = vmax.f32 %v830, 1.0
          %v833 = vlaneseq
          %v834 = vshrl.u32 %v833, 7
          %v835 = vsub.s32 0, %v834
          %v836 = vrot.slane %v831, %v835
          %v837 = vlaneseq
          %v838 = vshrl.u32 %v837, 7
          %v839 = vsub.s32 1, %v838
          %v840 = vrot.slane %v831, %v839
          %v843 = vrcp.pop %v836
          %v844 = vmul.f32 %v822, %v843
          %v845 = vrcp.pop %v840
          %v846 = vmul.f32 %v823, %v845
          %v847 = vmul.f32 %v824, %v843
          %v848 = vmul.f32 %v825, %v845
          %v849 = vmul.f32 %v826, %v843
          %v850 = vmul.f32 %v827, %v845
          %v851 = vmul.f32 %v828, %v843
          %v852 = vmul.f32 %v829, %v845
          %v853 = vpack.c.bf16 %v847, %v844
          %v854 = vpack.c.bf16 %v848, %v846
          %v855 = vpack.c.bf16 %v851, %v849
          %v856 = vpack.c.bf16 %v852, %v850
          %v861 = vunpack.c.l.b16 %v853
          %v862 = vunpack.c.l.b16 %v854
          %v863 = vunpack.c.h.b16 %v853
          %v864 = vunpack.c.h.b16 %v854
          %v865 = vunpack.c.l.b16 %v855
          %v866 = vunpack.c.l.b16 %v856
          %v867 = vunpack.c.h.b16 %v855
          %v868 = vunpack.c.h.b16 %v856
          %v869 = vpack.c.b16 %v862, %v861
          %v870 = vpack.c.b16 %v864, %v863
          %v871 = vpack.c.b16 %v866, %v865
          %v872 = vpack.c.b16 %v868, %v867
          %877 = vst [vmem:[%s161] sm:$0xff] %v869
          %878 = vst [vmem:[%s161 + $0x8] sm:$0xff] %v870
          %879 = vst [vmem:[%s161 + $0x10] sm:$0xff] %v871
          %880 = vst [vmem:[%s161 + $0x18] sm:$0xff] %v872
        $region36: #{rpvnet_forward.12} parent=27 // pred_fallthru
          _
        %s881 = sand.u32 %s85, 1
        %s882 = sand.u32 %s85, 1
        %s883 = smul.addr %s882, 32
        %s884 = scalar_lea.vmem [#allocation4], %s883
        // Predicated region
        $region37: #{rpvnet_forward.12} parent=27 // pred_check
          %p885 = pneg %p95
        $region38: #{rpvnet_forward.12} parent=27 // pred_check_branch
          %887 = sbr.rel (%p885) target = $region40
        $region39: #{rpvnet_forward.12} parent=27 // pred_region
          %s888 = smul.u32 2, %s17
          %s889 = smul.addr %s888, 4
          %s890 = scalar_lea.vmem %s2, %s889
          // Predicated region
          $region41: #{rpvnet_forward.12} parent=39 // pred_check
            _
          $region42: #{rpvnet_forward.12} parent=39 // pred_check_branch
            %892 = sbr.rel (0) target = $region44
          $region43: #{rpvnet_forward.12} parent=39 // pred_region
            // Predicated region
            $region45: #{rpvnet_forward.12} parent=43 // pred_check
              _
            $region46: #{rpvnet_forward.12} parent=43 // pred_check_branch
              %894 = sbr.rel (0) target = $region48
            $region47: #{rpvnet_forward.12} parent=43 // pred_region
              // Predicated region
              $region60: #{rpvnet_forward.12} parent=47 // pred_check
                _
              $region61: #{rpvnet_forward.12} parent=47 // pred_check_branch
                %915 = sbr.rel (0) target = $region63
              $region62: #{rpvnet_forward.12} parent=47 // pred_region
                loop: start=0, step=1, limit=1
                $region64: #{rpvnet_forward.12} parent=62 // loop_pre_header
                  _
                $region65: #{rpvnet_forward.12} parent=62 // loop_header
                  %s917 = sphi 0, %s921
                  %p918 = scmp.ge.s32.totalorder %s917, 1
                  %s922 = sphi %s884, %s884
                  %s923 = sphi %s890, %s890
                $region66: #{rpvnet_forward.12} parent=62 // loop_header_branch
                  %920 = sbr.rel (%p918) target = $region70
                $region67: #{rpvnet_forward.12} parent=62 // loop_body
                  %v924 = vld [vmem:[%s922] sm:$0xff]
                  %925 = vst [vmem:[%s923] sm:$0xff] %v924
                  %v926 = vld [vmem:[%s922 + $0x8] sm:$0xff]
                  %927 = vst [vmem:[%s923 + $0x18] sm:$0xff] %v926
                  %v928 = vld [vmem:[%s922 + $0x10] sm:$0xff]
                  %929 = vst [vmem:[%s923 + $0x30] sm:$0xff] %v928
                  %v930 = vld [vmem:[%s922 + $0x18] sm:$0xff]
                  %931 = vst [vmem:[%s923 + $0x48] sm:$0xff] %v930
                $region68: #{rpvnet_forward.12} parent=62 // loop_footer
                  %s921 = sadd.s32 1, %s917
                $region69: #{rpvnet_forward.12} parent=62 // loop_footer_branch
                  %916 = sbr.rel target = $region65
                $region70: #{rpvnet_forward.12} parent=62 // loop_exit
                  _
              $region63: #{rpvnet_forward.12} parent=47 // pred_fallthru
                _
              // Predicated region
              $region71: #{rpvnet_forward.12} parent=47 // pred_check
                _
              $region72: #{rpvnet_forward.12} parent=47 // pred_check_branch
                %933 = sbr.rel target = $region74
              $region73: #{rpvnet_forward.12} parent=47 // pred_region
                _
              $region74: #{rpvnet_forward.12} parent=47 // pred_fallthru
                _
            $region48: #{rpvnet_forward.12} parent=43 // pred_fallthru
              _
            // Predicated region
            $region49: #{rpvnet_forward.12} parent=43 // pred_check
              _
            $region50: #{rpvnet_forward.12} parent=43 // pred_check_branch
              %896 = sbr.rel target = $region52
            $region51: #{rpvnet_forward.12} parent=43 // pred_region
              loop: start=0, step=1, limit=1
              $region53: #{rpvnet_forward.12} parent=51 // loop_pre_header
                _
              $region54: #{rpvnet_forward.12} parent=51 // loop_header
                %s899 = sphi 0, %s903
                %p900 = scmp.ge.s32.totalorder %s899, 1
                %s904 = sphi %s884, %s884
                %s905 = sphi %s890, %s890
              $region55: #{rpvnet_forward.12} parent=51 // loop_header_branch
                %902 = sbr.rel (%p900) target = $region59
              $region56: #{rpvnet_forward.12} parent=51 // loop_body
                %v906 = vld [vmem:[%s904] sm:$0xff]
                %907 = vst [vmem:[%s905] sm:$0xff] %v906
                %v908 = vld [vmem:[%s904 + $0x8] sm:$0xff]
                %909 = vst [vmem:[%s905 + $0x18] sm:$0xff] %v908
                %v910 = vld [vmem:[%s904 + $0x10] sm:$0xff]
                %911 = vst [vmem:[%s905 + $0x30] sm:$0xff] %v910
                %v912 = vld [vmem:[%s904 + $0x18] sm:$0xff]
                %913 = vst [vmem:[%s905 + $0x48] sm:$0xff] %v912
              $region57: #{rpvnet_forward.12} parent=51 // loop_footer
                %s903 = sadd.s32 1, %s899
              $region58: #{rpvnet_forward.12} parent=51 // loop_footer_branch
                %898 = sbr.rel target = $region54
              $region59: #{rpvnet_forward.12} parent=51 // loop_exit
                _
            $region52: #{rpvnet_forward.12} parent=43 // pred_fallthru
              _
          $region44: #{rpvnet_forward.12} parent=39 // pred_fallthru
            _
          %934 = vnop
        $region40: #{rpvnet_forward.12} parent=27 // pred_fallthru
          _
      $region28: #{rpvnet_forward.12} parent=5 // pred_fallthru
        _
      %p935 = scmp.le.s32.totalorder 2, %s8
      // Predicated region
      $region75: #{rpvnet_forward.12} parent=5 // pred_check
        %p936 = pneg %p935
      $region76: #{rpvnet_forward.12} parent=5 // pred_check_branch
        %938 = sbr.rel (%p936) target = $region78
      $region77: #{rpvnet_forward.12} parent=5 // pred_region
        %s939 = ssub.s32 %s8, 2
        // Predicated region
        $region79: #{rpvnet_forward.12} parent=77 // pred_check
          %p940 = pneg %p101
        $region80: #{rpvnet_forward.12} parent=77 // pred_check_branch
          %942 = sbr.rel (%p940) target = $region82
        $region81: #{rpvnet_forward.12} parent=77 // pred_region
          %s943 = sand.u32 %s86, 1
          %s944 = sand.u32 %s86, 1
          %s945 = smul.addr %s944, 32
          %s946 = scalar_lea.vmem [#allocation4], %s945
        $region82: #{rpvnet_forward.12} parent=77 // pred_fallthru
          _
      $region78: #{rpvnet_forward.12} parent=5 // pred_fallthru
        _
    $region6: #{rpvnet_forward.12} parent=1 // loop_footer
      %s12 = sadd.s32 1, %s8
    $region7: #{rpvnet_forward.12} parent=1 // loop_footer_branch
      %7 = sbr.rel target = $region3
    $region8: #{rpvnet_forward.12} parent=1 // loop_exit
      _

// kernel: rpvnet_forward.14
$region0: #{rpvnet_forward.14}
  #allocation0 [shape = 'u32[]', space=smem, size = 0x4, offset = 0x4, fixed_abs, tag = 'smem constant byte address 0x4 - core index']
  #allocation1 [shape = 'u32[144,128]{1,0:T(1,128)}', space=vmem, size = 0x12000, scoped, tag = 'internal scratch']
  #allocation2 [shape = 'f32[16,256]{1,0:T(8,128)}', space=vmem, size = 0x4000, scoped, tag = 'scratch operand']
  #allocation3 [shape = 'f32[1,256]{1,0:T(1,128)}', space=vmem, size = 0x400, scoped, tag = 'scratch operand']
  %s0 = inlined_call_operand.vmem [shape: s32[256,2], index: 0, kind: input, shape index: {}]
  %s1 = inlined_call_operand.vmem [shape: bf16[16,256], index: 1, kind: input, shape index: {}]
  %s2 = inlined_call_operand.vmem [shape: bf16[16,768], index: 2, kind: output, shape index: {}]
  %s3 = sld [smem:[#allocation0]]
  $region83: #{rpvnet_forward.14} parent=0
    _
  %s5 = ssub.s32 1, %s3
  %s6 = scalar_select 0, %s5, %s3
  $region1: #{rpvnet_forward.14} parent=0
    #allocation4 [shape = 'u8[16384]{0}', space=vmem, size = 0x4000, scoped, tag = 'output window, operand 0']
    loop: start=0, step=1, limit=5
    $region2: #{rpvnet_forward.14} parent=1 // loop_pre_header
      _
    $region3: #{rpvnet_forward.14} parent=1 // loop_header
      %s8 = sphi 0, %s12
      %p9 = scmp.ge.s32.totalorder %s8, 5
      %s15 = sphi 0, %s27
      %s16 = sphi 0, %s23
      %s17 = sphi 0, %s15
      %s18 = sphi 0, %s16
      %s19 = sphi 0, %s17
      %s20 = sphi 0, %s18
      %s30 = sphi 0, %s32
      %s33 = sphi 0, %s30
      %s34 = sphi 0, %s33
      %s50 = sphi 0, %s34
      %s56 = sphi 0, %s58
      %s59 = sphi 0, %s56
      %s60 = sphi 0, %s59
      %s76 = sphi 0, %s60
      %s82 = sphi 0, %s84
      %s85 = sphi 0, %s82
      %s86 = sphi 0, %s85
      %s102 = sphi 0, %s86
    $region4: #{rpvnet_forward.14} parent=1 // loop_header_branch
      %11 = sbr.rel (%p9) target = $region8
    $region5: #{rpvnet_forward.14} parent=1 // loop_body
      %s13 = ssub.s32 %s8, 1
      %s14 = ssub.s32 %s8, 2
      %s21 = sadd.s32 1, %s16
      %p22 = scmp.ge.s32.totalorder %s21, 1
      %s23 = scalar_select %p22, 0, %s21
      %s24 = sadd.s32 1, %s15
      %s25 = scalar_select %p22, %s24, %s15
      %p26 = scmp.ge.s32.totalorder %s25, 3
      %s27 = scalar_select %p26, 0, %s25
      %s28 = ssub.s32 %s16, %s23
      %p29 = scmp.eq.s32.totalorder %s28, 0
      %s31 = sadd.s32 %s30, 1
      %s32 = scalar_select %p29, %s30, %s31
      %p35 = pneg %p29
      %p36 = scmp.eq.s32.totalorder %s8, 2
      %p37 = por %p35, %p36
      %p38 = scmp.ne.s32.totalorder %s30, %s33
      %p39 = scmp.eq.s32.totalorder %s8, 0
      %p40 = por %p38, %p39
      %p41 = scmp.ne.s32.totalorder %s30, %s33
      %p42 = scmp.eq.s32.totalorder %s13, 2
      %p43 = por %p41, %p42
      %p44 = scmp.ne.s32.totalorder %s33, %s34
      %p45 = scmp.eq.s32.totalorder %s13, 0
      %p46 = por %p44, %p45
      %p47 = scmp.ne.s32.totalorder %s33, %s34
      %p48 = scmp.eq.s32.totalorder %s14, 2
      %p49 = por %p47, %p48
      %p51 = scmp.ne.s32.totalorder %s34, %s50
      %p52 = scmp.eq.s32.totalorder %s14, 0
      %p53 = por %p51, %p52
      %s54 = ssub.s32 %s16, %s23
      %p55 = scmp.eq.s32.totalorder %s54, 0
      %s57 = sadd.s32 %s56, 1
      %s58 = scalar_select %p55, %s56, %s57
      %p61 = pneg %p55
      %p62 = scmp.eq.s32.totalorder %s8, 2
      %p63 = por %p61, %p62
      %p64 = scmp.ne.s32.totalorder %s56, %s59
      %p65 = scmp.eq.s32.totalorder %s8, 0
      %p66 = por %p64, %p65
      %p67 = scmp.ne.s32.totalorder %s56, %s59
      %p68 = scmp.eq.s32.totalorder %s13, 2
      %p69 = por %p67, %p68
      %p70 = scmp.ne.s32.totalorder %s59, %s60
      %p71 = scmp.eq.s32.totalorder %s13, 0
      %p72 = por %p70, %p71
      %p73 = scmp.ne.s32.totalorder %s59, %s60
      %p74 = scmp.eq.s32.totalorder %s14, 2
      %p75 = por %p73, %p74
      %p77 = scmp.ne.s32.totalorder %s60, %s76
      %p78 = scmp.eq.s32.totalorder %s14, 0
      %p79 = por %p77, %p78
      %s80 = ssub.s32 %s15, %s27
      %p81 = scmp.eq.s32.totalorder %s80, 0
      %s83 = sadd.s32 %s82, 1
      %s84 = scalar_select %p81, %s82, %s83
      %p87 = pneg %p81
      %p88 = scmp.eq.s32.totalorder %s8, 2
      %p89 = por %p87, %p88
      %p90 = scmp.ne.s32.totalorder %s82, %s85
      %p91 = scmp.eq.s32.totalorder %s8, 0
      %p92 = por %p90, %p91
      %p93 = scmp.ne.s32.totalorder %s82, %s85
      %p94 = scmp.eq.s32.totalorder %s13, 2
      %p95 = por %p93, %p94
      %p96 = scmp.ne.s32.totalorder %s85, %s86
      %p97 = scmp.eq.s32.totalorder %s13, 0
      %p98 = por %p96, %p97
      %p99 = scmp.ne.s32.totalorder %s85, %s86
      %p100 = scmp.eq.s32.totalorder %s14, 2
      %p101 = por %p99, %p100
      %p103 = scmp.ne.s32.totalorder %s86, %s102
      %p104 = scmp.eq.s32.totalorder %s14, 0
      %p105 = por %p103, %p104
      %p106 = scmp.le.s32.totalorder 1, %s8
      %p107 = scmp.lt.s32.totalorder %s8, 4
      %p108 = pnand %p106, %p107
      %p109 = pneg %p108
      // Predicated region
      $region9: #{rpvnet_forward.14} parent=5 // pred_check
        _
      $region10: #{rpvnet_forward.14} parent=5 // pred_check_branch
        %111 = sbr.rel (%p108) target = $region12
      $region11: #{rpvnet_forward.14} parent=5 // pred_region
        %s112 = ssub.s32 %s8, 1
        // Predicated region
        $region13: #{rpvnet_forward.14} parent=11 // pred_check
          %p113 = pneg %p46
        $region14: #{rpvnet_forward.14} parent=11 // pred_check_branch
          %115 = sbr.rel (%p113) target = $region16
        $region15: #{rpvnet_forward.14} parent=11 // pred_region
          %s116 = smul.u32 32, %s18
          %p117 = scmp.lt.s32.totalorder %s116, 31
          %s118 = scalar_select %p117, %s116, 31
          %s119 = smul.addr %s118, 8
          %s120 = scalar_lea.vmem %s0, %s119
          %s121 = smul.u32 32, %s18
        $region16: #{rpvnet_forward.14} parent=11 // pred_fallthru
          _
        // Predicated region
        $region17: #{rpvnet_forward.14} parent=11 // pred_check
          %p122 = pneg %p72
        $region18: #{rpvnet_forward.14} parent=11 // pred_check_branch
          %124 = sbr.rel (%p122) target = $region20
        $region19: #{rpvnet_forward.14} parent=11 // pred_region
          %s125 = smul.u32 2, %s18
          %p126 = scmp.lt.s32.totalorder %s125, 1
          %s127 = scalar_select %p126, %s125, 1
          %s128 = smul.addr %s127, 4
          %s129 = scalar_lea.vmem %s1, %s128
          %s130 = smul.u32 2, %s18
        $region20: #{rpvnet_forward.14} parent=11 // pred_fallthru
          _
      $region12: #{rpvnet_forward.14} parent=5 // pred_fallthru
        _
      %p131 = scmp.lt.s32.totalorder %s8, 3
      // Predicated region
      $region21: #{rpvnet_forward.14} parent=5 // pred_check
        %p132 = pneg %p131
      $region22: #{rpvnet_forward.14} parent=5 // pred_check_branch
        %134 = sbr.rel (%p132) target = $region24
      $region23: #{rpvnet_forward.14} parent=5 // pred_region
        _
      $region24: #{rpvnet_forward.14} parent=5 // pred_fallthru
        _
      %p135 = scmp.le.s32.totalorder 1, %s8
      %p136 = scmp.lt.s32.totalorder %s8, 4
      %p137 = pnand %p135, %p136
      %p138 = pneg %p137
      // Predicated region
      $region25: #{rpvnet_forward.14} parent=5 // pred_check
        _
      $region26: #{rpvnet_forward.14} parent=5 // pred_check_branch
        %140 = sbr.rel (%p137) target = $region28
      $region27: #{rpvnet_forward.14} parent=5 // pred_region
        %s141 = ssub.s32 %s8, 1
        %s142 = smul.u32 32, %s18
        %p143 = scmp.lt.s32.totalorder %s142, 31
        %s144 = scalar_select %p143, %s142, 31
        %s145 = smul.addr %s144, 8
        %s146 = scalar_lea.vmem %s0, %s145
        %p147 = pneg %p46
        %p148 = pneg %p43
        %s149 = smul.u32 2, %s18
        %p150 = scmp.lt.s32.totalorder %s149, 1
        %s151 = scalar_select %p150, %s149, 1
        %s152 = smul.addr %s151, 4
        %s153 = scalar_lea.vmem %s1, %s152
        %p154 = pneg %p72
        %p155 = pneg %p69
        %p156 = pneg %p98
        %p157 = pneg %p95
        %s158 = sand.u32 %s85, 1
        %s159 = sand.u32 %s85, 1
        %s160 = smul.addr %s159, 16
        %s161 = scalar_lea.vmem [#allocation4], %s160
        %s162 = smul.u32 32, %s18
        %p163 = scmp.lt.s32.totalorder %s162, 31
        %s164 = scalar_select %p163, %s162, 31
        %s165 = smul.addr %s164, 8
        %s166 = scalar_lea.vmem %s0, %s165
        %s167 = smul.u32 32, %s18
        %s168 = smul.u32 2, %s18
        %p169 = scmp.lt.s32.totalorder %s168, 1
        %s170 = scalar_select %p169, %s168, 1
        %s171 = smul.addr %s170, 4
        %s172 = scalar_lea.vmem %s1, %s171
        %s173 = smul.u32 2, %s18
        %s174 = smul.u32 2, %s17
        %p176 = scmp.eq.s32.totalorder %s18, 0
        // Predicated region
        $region29: #{rpvnet_forward.14} parent=27 // pred_check
          %p177 = pneg %p176
        $region30: #{rpvnet_forward.14} parent=27 // pred_check_branch
          %179 = sbr.rel (%p177) target = $region32
        $region31: #{rpvnet_forward.14} parent=27 // pred_region
          %180 = vst [vmem:[#allocation2] sm:$0xff] 0.0
          %181 = vst [vmem:[#allocation2 + $0x8] sm:$0xff] 0.0
          %182 = vst [vmem:[#allocation2 + $0x10] sm:$0xff] 0.0
          %183 = vst [vmem:[#allocation2 + $0x18] sm:$0xff] 0.0
          %v184 = vlaneseq
          %vm185 = vcmp.ge.s32.totalorder %v184, 0
          %vm186 = vcmp.lt.s32.totalorder %v184, 256
          %vm187 = vmand %vm185, %vm186
          %188 = vst.msk [vmem:[#allocation3] sm:$0x3] %vm187, 0.0
        $region32: #{rpvnet_forward.14} parent=27 // pred_fallthru
          _
        %v189 = vld [vmem:[%s166] sm:$0xff]
        %v190 = vld [vmem:[%s166 + $0x8] sm:$0xff]
        %v191 = vld [vmem:[%s166 + $0x10] sm:$0xff]
        %v192 = vld [vmem:[%s166 + $0x18] sm:$0xff]
        %v193 = vld [vmem:[%s166 + $0x20] sm:$0xff]
        %v194 = vld [vmem:[%s166 + $0x28] sm:$0xff]
        %v195 = vld [vmem:[%s166 + $0x30] sm:$0xff]
        %v196 = vld [vmem:[%s166 + $0x38] sm:$0xff]
        %v197 = vld [vmem:[%s166 + $0x40] sm:$0xff]
        %v198 = vld [vmem:[%s166 + $0x48] sm:$0xff]
        %v199 = vld [vmem:[%s166 + $0x50] sm:$0xff]
        %v200 = vld [vmem:[%s166 + $0x58] sm:$0xff]
        %v201 = vld [vmem:[%s166 + $0x60] sm:$0xff]
        %v202 = vld [vmem:[%s166 + $0x68] sm:$0xff]
        %v203 = vld [vmem:[%s166 + $0x70] sm:$0xff]
        %v204 = vld [vmem:[%s166 + $0x78] sm:$0xff]
        %v205 = vld [vmem:[%s166 + $0x80] sm:$0xff]
        %v206 = vld [vmem:[%s166 + $0x88] sm:$0xff]
        %v207 = vld [vmem:[%s166 + $0x90] sm:$0xff]
        %v208 = vld [vmem:[%s166 + $0x98] sm:$0xff]
        %v209 = vld [vmem:[%s166 + $0xa0] sm:$0xff]
        %v210 = vld [vmem:[%s166 + $0xa8] sm:$0xff]
        %v211 = vld [vmem:[%s166 + $0xb0] sm:$0xff]
        %v212 = vld [vmem:[%s166 + $0xb8] sm:$0xff]
        %v213 = vld [vmem:[%s166 + $0xc0] sm:$0xff]
        %v214 = vld [vmem:[%s166 + $0xc8] sm:$0xff]
        %v215 = vld [vmem:[%s166 + $0xd0] sm:$0xff]
        %v216 = vld [vmem:[%s166 + $0xd8] sm:$0xff]
        %v217 = vld [vmem:[%s166 + $0xe0] sm:$0xff]
        %v218 = vld [vmem:[%s166 + $0xe8] sm:$0xff]
        %v219 = vld [vmem:[%s166 + $0xf0] sm:$0xff]
        %v220 = vld [vmem:[%s166 + $0xf8] sm:$0xff]
        %p221 = scmp.lt.s32.totalorder %s17, 2
        %s222 = scalar_select %p221, 1, 0
        %v223 = vstv %s222
        %vm224 = vcmp.eq.s32.totalorder %v223, 1
        %225 = vrot.lane.b32.xlu0 %v189, 127
        %v226 = vpop.permute.xlu0 %225
        %227 = vrot.lane.b32.xlu0 %v190, 127
        %v228 = vpop.permute.xlu0 %227
        %229 = vrot.lane.b32.xlu0 %v191, 127
        %v230 = vpop.permute.xlu0 %229
        %231 = vrot.lane.b32.xlu0 %v192, 127
        %v232 = vpop.permute.xlu0 %231
        %233 = vrot.lane.b32.xlu0 %v193, 127
        %v234 = vpop.permute.xlu0 %233
        %235 = vrot.lane.b32.xlu0 %v194, 127
        %v236 = vpop.permute.xlu0 %235
        %237 = vrot.lane.b32.xlu0 %v195, 127
        %v238 = vpop.permute.xlu0 %237
        %239 = vrot.lane.b32.xlu0 %v196, 127
        %v240 = vpop.permute.xlu0 %239
        %241 = vrot.lane.b32.xlu0 %v197, 127
        %v242 = vpop.permute.xlu0 %241
        %243 = vrot.lane.b32.xlu0 %v198, 127
        %v244 = vpop.permute.xlu0 %243
        %245 = vrot.lane.b32.xlu0 %v199, 127
        %v246 = vpop.permute.xlu0 %245
        %247 = vrot.lane.b32.xlu0 %v200, 127
        %v248 = vpop.permute.xlu0 %247
        %249 = vrot.lane.b32.xlu0 %v201, 127
        %v250 = vpop.permute.xlu0 %249
        %251 = vrot.lane.b32.xlu0 %v202, 127
        %v252 = vpop.permute.xlu0 %251
        %253 = vrot.lane.b32.xlu0 %v203, 127
        %v254 = vpop.permute.xlu0 %253
        %255 = vrot.lane.b32.xlu0 %v204, 127
        %v256 = vpop.permute.xlu0 %255
        %257 = vrot.lane.b32.xlu0 %v205, 127
        %v258 = vpop.permute.xlu0 %257
        %259 = vrot.lane.b32.xlu0 %v206, 127
        %v260 = vpop.permute.xlu0 %259
        %261 = vrot.lane.b32.xlu0 %v207, 127
        %v262 = vpop.permute.xlu0 %261
        %263 = vrot.lane.b32.xlu0 %v208, 127
        %v264 = vpop.permute.xlu0 %263
        %265 = vrot.lane.b32.xlu0 %v209, 127
        %v266 = vpop.permute.xlu0 %265
        %267 = vrot.lane.b32.xlu0 %v210, 127
        %v268 = vpop.permute.xlu0 %267
        %269 = vrot.lane.b32.xlu0 %v211, 127
        %v270 = vpop.permute.xlu0 %269
        %271 = vrot.lane.b32.xlu0 %v212, 127
        %v272 = vpop.permute.xlu0 %271
        %273 = vrot.lane.b32.xlu0 %v213, 127
        %v274 = vpop.permute.xlu0 %273
        %275 = vrot.lane.b32.xlu0 %v214, 127
        %v276 = vpop.permute.xlu0 %275
        %277 = vrot.lane.b32.xlu0 %v215, 127
        %v278 = vpop.permute.xlu0 %277
        %279 = vrot.lane.b32.xlu0 %v216, 127
        %v280 = vpop.permute.xlu0 %279
        %281 = vrot.lane.b32.xlu0 %v217, 127
        %v282 = vpop.permute.xlu0 %281
        %283 = vrot.lane.b32.xlu0 %v218, 127
        %v284 = vpop.permute.xlu0 %283
        %285 = vrot.lane.b32.xlu0 %v219, 127
        %v286 = vpop.permute.xlu0 %285
        %287 = vrot.lane.b32.xlu0 %v220, 127
        %v288 = vpop.permute.xlu0 %287
        %v289 = vsel %vm224, %v189, %v226
        %v290 = vsel %vm224, %v190, %v228
        %v291 = vsel %vm224, %v191, %v230
        %v292 = vsel %vm224, %v192, %v232
        %v293 = vsel %vm224, %v193, %v234
        %v294 = vsel %vm224, %v194, %v236
        %v295 = vsel %vm224, %v195, %v238
        %v296 = vsel %vm224, %v196, %v240
        %v297 = vsel %vm224, %v197, %v242
        %v298 = vsel %vm224, %v198, %v244
        %v299 = vsel %vm224, %v199, %v246
        %v300 = vsel %vm224, %v200, %v248
        %v301 = vsel %vm224, %v201, %v250
        %v302 = vsel %vm224, %v202, %v252
        %v303 = vsel %vm224, %v203, %v254
        %v304 = vsel %vm224, %v204, %v256
        %v305 = vsel %vm224, %v205, %v258
        %v306 = vsel %vm224, %v206, %v260
        %v307 = vsel %vm224, %v207, %v262
        %v308 = vsel %vm224, %v208, %v264
        %v309 = vsel %vm224, %v209, %v266
        %v310 = vsel %vm224, %v210, %v268
        %v311 = vsel %vm224, %v211, %v270
        %v312 = vsel %vm224, %v212, %v272
        %v313 = vsel %vm224, %v213, %v274
        %v314 = vsel %vm224, %v214, %v276
        %v315 = vsel %vm224, %v215, %v278
        %v316 = vsel %vm224, %v216, %v280
        %v317 = vsel %vm224, %v217, %v282
        %v318 = vsel %vm224, %v218, %v284
        %v319 = vsel %vm224, %v219, %v286
        %v320 = vsel %vm224, %v220, %v288
        %s321 = smul.u32 %s17, 256
        %v322 = vlaneseq
        %v323 = vand.u32 %v322, 127
        %v324 = vadd.s32 %v323, 128
        %v325 = vstv %s321
        %v326 = vadd.s32 %v325, %v323
        %v327 = vadd.s32 %v325, %v324
        %328 = vset.pattern.permute.xlu0 0
        %329 = vperm.xlu0 %328, %v289
        %v330 = vpop.permute.xlu0 %329
        %331 = vset.pattern.permute.xlu0 0
        %332 = vperm.xlu0 %331, %v290
        %v333 = vpop.permute.xlu0 %332
        %334 = vset.pattern.permute.xlu0 0
        %335 = vperm.xlu0 %334, %v291
        %v336 = vpop.permute.xlu0 %335
        %337 = vset.pattern.permute.xlu0 0
        %338 = vperm.xlu0 %337, %v292
        %v339 = vpop.permute.xlu0 %338
        %340 = vset.pattern.permute.xlu0 0
        %341 = vperm.xlu0 %340, %v293
        %v342 = vpop.permute.xlu0 %341
        %343 = vset.pattern.permute.xlu0 0
        %344 = vperm.xlu0 %343, %v294
        %v345 = vpop.permute.xlu0 %344
        %346 = vset.pattern.permute.xlu0 0
        %347 = vperm.xlu0 %346, %v295
        %v348 = vpop.permute.xlu0 %347
        %349 = vset.pattern.permute.xlu0 0
        %350 = vperm.xlu0 %349, %v296
        %v351 = vpop.permute.xlu0 %350
        %352 = vset.pattern.permute.xlu0 0
        %353 = vperm.xlu0 %352, %v297
        %v354 = vpop.permute.xlu0 %353
        %355 = vset.pattern.permute.xlu0 0
        %356 = vperm.xlu0 %355, %v298
        %v357 = vpop.permute.xlu0 %356
        %358 = vset.pattern.permute.xlu0 0
        %359 = vperm.xlu0 %358, %v299
        %v360 = vpop.permute.xlu0 %359
        %361 = vset.pattern.permute.xlu0 0
        %362 = vperm.xlu0 %361, %v300
        %v363 = vpop.permute.xlu0 %362
        %364 = vset.pattern.permute.xlu0 0
        %365 = vperm.xlu0 %364, %v301
        %v366 = vpop.permute.xlu0 %365
        %367 = vset.pattern.permute.xlu0 0
        %368 = vperm.xlu0 %367, %v302
        %v369 = vpop.permute.xlu0 %368
        %370 = vset.pattern.permute.xlu0 0
        %371 = vperm.xlu0 %370, %v303
        %v372 = vpop.permute.xlu0 %371
        %373 = vset.pattern.permute.xlu0 0
        %374 = vperm.xlu0 %373, %v304
        %v375 = vpop.permute.xlu0 %374
        %376 = vset.pattern.permute.xlu0 0
        %377 = vperm.xlu0 %376, %v305
        %v378 = vpop.permute.xlu0 %377
        %379 = vset.pattern.permute.xlu0 0
        %380 = vperm.xlu0 %379, %v306
        %v381 = vpop.permute.xlu0 %380
        %382 = vset.pattern.permute.xlu0 0
        %383 = vperm.xlu0 %382, %v307
        %v384 = vpop.permute.xlu0 %383
        %385 = vset.pattern.permute.xlu0 0
        %386 = vperm.xlu0 %385, %v308
        %v387 = vpop.permute.xlu0 %386
        %388 = vset.pattern.permute.xlu0 0
        %389 = vperm.xlu0 %388, %v309
        %v390 = vpop.permute.xlu0 %389
        %391 = vset.pattern.permute.xlu0 0
        %392 = vperm.xlu0 %391, %v310
        %v393 = vpop.permute.xlu0 %392
        %394 = vset.pattern.permute.xlu0 0
        %395 = vperm.xlu0 %394, %v311
        %v396 = vpop.permute.xlu0 %395
        %397 = vset.pattern.permute.xlu0 0
        %398 = vperm.xlu0 %397, %v312
        %v399 = vpop.permute.xlu0 %398
        %400 = vset.pattern.permute.xlu0 0
        %401 = vperm.xlu0 %400, %v313
        %v402 = vpop.permute.xlu0 %401
        %403 = vset.pattern.permute.xlu0 0
        %404 = vperm.xlu0 %403, %v314
        %v405 = vpop.permute.xlu0 %404
        %406 = vset.pattern.permute.xlu0 0
        %407 = vperm.xlu0 %406, %v315
        %v408 = vpop.permute.xlu0 %407
        %409 = vset.pattern.permute.xlu0 0
        %410 = vperm.xlu0 %409, %v316
        %v411 = vpop.permute.xlu0 %410
        %412 = vset.pattern.permute.xlu0 0
        %413 = vperm.xlu0 %412, %v317
        %v414 = vpop.permute.xlu0 %413
        %415 = vset.pattern.permute.xlu0 0
        %416 = vperm.xlu0 %415, %v318
        %v417 = vpop.permute.xlu0 %416
        %418 = vset.pattern.permute.xlu0 0
        %419 = vperm.xlu0 %418, %v319
        %v420 = vpop.permute.xlu0 %419
        %421 = vset.pattern.permute.xlu0 0
        %422 = vperm.xlu0 %421, %v320
        %v423 = vpop.permute.xlu0 %422
        %vm424 = vcmp.eq.s32.totalorder %v330, %v326
        %vm425 = vcmp.eq.s32.totalorder %v330, %v327
        %vm426 = vcmp.eq.s32.totalorder %v333, %v326
        %vm427 = vcmp.eq.s32.totalorder %v333, %v327
        %vm428 = vcmp.eq.s32.totalorder %v336, %v326
        %vm429 = vcmp.eq.s32.totalorder %v336, %v327
        %vm430 = vcmp.eq.s32.totalorder %v339, %v326
        %vm431 = vcmp.eq.s32.totalorder %v339, %v327
        %vm432 = vcmp.eq.s32.totalorder %v342, %v326
        %vm433 = vcmp.eq.s32.totalorder %v342, %v327
        %vm434 = vcmp.eq.s32.totalorder %v345, %v326
        %vm435 = vcmp.eq.s32.totalorder %v345, %v327
        %vm436 = vcmp.eq.s32.totalorder %v348, %v326
        %vm437 = vcmp.eq.s32.totalorder %v348, %v327
        %vm438 = vcmp.eq.s32.totalorder %v351, %v326
        %vm439 = vcmp.eq.s32.totalorder %v351, %v327
        %vm440 = vcmp.eq.s32.totalorder %v354, %v326
        %vm441 = vcmp.eq.s32.totalorder %v354, %v327
        %vm442 = vcmp.eq.s32.totalorder %v357, %v326
        %vm443 = vcmp.eq.s32.totalorder %v357, %v327
        %vm444 = vcmp.eq.s32.totalorder %v360, %v326
        %vm445 = vcmp.eq.s32.totalorder %v360, %v327
        %vm446 = vcmp.eq.s32.totalorder %v363, %v326
        %vm447 = vcmp.eq.s32.totalorder %v363, %v327
        %vm448 = vcmp.eq.s32.totalorder %v366, %v326
        %vm449 = vcmp.eq.s32.totalorder %v366, %v327
        %vm450 = vcmp.eq.s32.totalorder %v369, %v326
        %vm451 = vcmp.eq.s32.totalorder %v369, %v327
        %vm452 = vcmp.eq.s32.totalorder %v372, %v326
        %vm453 = vcmp.eq.s32.totalorder %v372, %v327
        %vm454 = vcmp.eq.s32.totalorder %v375, %v326
        %vm455 = vcmp.eq.s32.totalorder %v375, %v327
        %vm456 = vcmp.eq.s32.totalorder %v378, %v326
        %vm457 = vcmp.eq.s32.totalorder %v378, %v327
        %vm458 = vcmp.eq.s32.totalorder %v381, %v326
        %vm459 = vcmp.eq.s32.totalorder %v381, %v327
        %vm460 = vcmp.eq.s32.totalorder %v384, %v326
        %vm461 = vcmp.eq.s32.totalorder %v384, %v327
        %vm462 = vcmp.eq.s32.totalorder %v387, %v326
        %vm463 = vcmp.eq.s32.totalorder %v387, %v327
        %vm464 = vcmp.eq.s32.totalorder %v390, %v326
        %vm465 = vcmp.eq.s32.totalorder %v390, %v327
        %vm466 = vcmp.eq.s32.totalorder %v393, %v326
        %vm467 = vcmp.eq.s32.totalorder %v393, %v327
        %vm468 = vcmp.eq.s32.totalorder %v396, %v326
        %vm469 = vcmp.eq.s32.totalorder %v396, %v327
        %vm470 = vcmp.eq.s32.totalorder %v399, %v326
        %vm471 = vcmp.eq.s32.totalorder %v399, %v327
        %vm472 = vcmp.eq.s32.totalorder %v402, %v326
        %vm473 = vcmp.eq.s32.totalorder %v402, %v327
        %vm474 = vcmp.eq.s32.totalorder %v405, %v326
        %vm475 = vcmp.eq.s32.totalorder %v405, %v327
        %vm476 = vcmp.eq.s32.totalorder %v408, %v326
        %vm477 = vcmp.eq.s32.totalorder %v408, %v327
        %vm478 = vcmp.eq.s32.totalorder %v411, %v326
        %vm479 = vcmp.eq.s32.totalorder %v411, %v327
        %vm480 = vcmp.eq.s32.totalorder %v414, %v326
        %vm481 = vcmp.eq.s32.totalorder %v414, %v327
        %vm482 = vcmp.eq.s32.totalorder %v417, %v326
        %vm483 = vcmp.eq.s32.totalorder %v417, %v327
        %vm484 = vcmp.eq.s32.totalorder %v420, %v326
        %vm485 = vcmp.eq.s32.totalorder %v420, %v327
        %vm486 = vcmp.eq.s32.totalorder %v423, %v326
        %vm487 = vcmp.eq.s32.totalorder %v423, %v327
        %v488 = vsel %vm424, 1, 0
        %v489 = vsel %vm425, 1, 0
        %v490 = vsel %vm426, 1, 0
        %v491 = vsel %vm427, 1, 0
        %v492 = vsel %vm428, 1, 0
        %v493 = vsel %vm429, 1, 0
        %v494 = vsel %vm430, 1, 0
        %v495 = vsel %vm431, 1, 0
        %v496 = vsel %vm432, 1, 0
        %v497 = vsel %vm433, 1, 0
        %v498 = vsel %vm434, 1, 0
        %v499 = vsel %vm435, 1, 0
        %v500 = vsel %vm436, 1, 0
        %v501 = vsel %vm437, 1, 0
        %v502 = vsel %vm438, 1, 0
        %v503 = vsel %vm439, 1, 0
        %v504 = vsel %vm440, 1, 0
        %v505 = vsel %vm441, 1, 0
        %v506 = vsel %vm442, 1, 0
        %v507 = vsel %vm443, 1, 0
        %v508 = vsel %vm444, 1, 0
        %v509 = vsel %vm445, 1, 0
        %v510 = vsel %vm446, 1, 0
        %v511 = vsel %vm447, 1, 0
        %v512 = vsel %vm448, 1, 0
        %v513 = vsel %vm449, 1, 0
        %v514 = vsel %vm450, 1, 0
        %v515 = vsel %vm451, 1, 0
        %v516 = vsel %vm452, 1, 0
        %v517 = vsel %vm453, 1, 0
        %v518 = vsel %vm454, 1, 0
        %v519 = vsel %vm455, 1, 0
        %v520 = vsel %vm456, 1, 0
        %v521 = vsel %vm457, 1, 0
        %v522 = vsel %vm458, 1, 0
        %v523 = vsel %vm459, 1, 0
        %v524 = vsel %vm460, 1, 0
        %v525 = vsel %vm461, 1, 0
        %v526 = vsel %vm462, 1, 0
        %v527 = vsel %vm463, 1, 0
        %v528 = vsel %vm464, 1, 0
        %v529 = vsel %vm465, 1, 0
        %v530 = vsel %vm466, 1, 0
        %v531 = vsel %vm467, 1, 0
        %v532 = vsel %vm468, 1, 0
        %v533 = vsel %vm469, 1, 0
        %v534 = vsel %vm470, 1, 0
        %v535 = vsel %vm471, 1, 0
        %v536 = vsel %vm472, 1, 0
        %v537 = vsel %vm473, 1, 0
        %v538 = vsel %vm474, 1, 0
        %v539 = vsel %vm475, 1, 0
        %v540 = vsel %vm476, 1, 0
        %v541 = vsel %vm477, 1, 0
        %v542 = vsel %vm478, 1, 0
        %v543 = vsel %vm479, 1, 0
        %v544 = vsel %vm480, 1, 0
        %v545 = vsel %vm481, 1, 0
        %v546 = vsel %vm482, 1, 0
        %v547 = vsel %vm483, 1, 0
        %v548 = vsel %vm484, 1, 0
        %v549 = vsel %vm485, 1, 0
        %v550 = vsel %vm486, 1, 0
        %v551 = vsel %vm487, 1, 0
        %v552 = vcvt.s32.f32 %v488
        %v553 = vcvt.s32.f32 %v489
        %v554 = vcvt.s32.f32 %v490
        %v555 = vcvt.s32.f32 %v491
        %v556 = vcvt.s32.f32 %v492
        %v557 = vcvt.s32.f32 %v493
        %v558 = vcvt.s32.f32 %v494
        %v559 = vcvt.s32.f32 %v495
        %v560 = vcvt.s32.f32 %v496
        %v561 = vcvt.s32.f32 %v497
        %v562 = vcvt.s32.f32 %v498
        %v563 = vcvt.s32.f32 %v499
        %v564 = vcvt.s32.f32 %v500
        %v565 = vcvt.s32.f32 %v501
        %v566 = vcvt.s32.f32 %v502
        %v567 = vcvt.s32.f32 %v503
        %v568 = vcvt.s32.f32 %v504
        %v569 = vcvt.s32.f32 %v505
        %v570 = vcvt.s32.f32 %v506
        %v571 = vcvt.s32.f32 %v507
        %v572 = vcvt.s32.f32 %v508
        %v573 = vcvt.s32.f32 %v509
        %v574 = vcvt.s32.f32 %v510
        %v575 = vcvt.s32.f32 %v511
        %v576 = vcvt.s32.f32 %v512
        %v577 = vcvt.s32.f32 %v513
        %v578 = vcvt.s32.f32 %v514
        %v579 = vcvt.s32.f32 %v515
        %v580 = vcvt.s32.f32 %v516
        %v581 = vcvt.s32.f32 %v517
        %v582 = vcvt.s32.f32 %v518
        %v583 = vcvt.s32.f32 %v519
        %v584 = vcvt.s32.f32 %v520
        %v585 = vcvt.s32.f32 %v521
        %v586 = vcvt.s32.f32 %v522
        %v587 = vcvt.s32.f32 %v523
        %v588 = vcvt.s32.f32 %v524
        %v589 = vcvt.s32.f32 %v525
        %v590 = vcvt.s32.f32 %v526
        %v591 = vcvt.s32.f32 %v527
        %v592 = vcvt.s32.f32 %v528
        %v593 = vcvt.s32.f32 %v529
        %v594 = vcvt.s32.f32 %v530
        %v595 = vcvt.s32.f32 %v531
        %v596 = vcvt.s32.f32 %v532
        %v597 = vcvt.s32.f32 %v533
        %v598 = vcvt.s32.f32 %v534
        %v599 = vcvt.s32.f32 %v535
        %v600 = vcvt.s32.f32 %v536
        %v601 = vcvt.s32.f32 %v537
        %v602 = vcvt.s32.f32 %v538
        %v603 = vcvt.s32.f32 %v539
        %v604 = vcvt.s32.f32 %v540
        %v605 = vcvt.s32.f32 %v541
        %v606 = vcvt.s32.f32 %v542
        %v607 = vcvt.s32.f32 %v543
        %v608 = vcvt.s32.f32 %v544
        %v609 = vcvt.s32.f32 %v545
        %v610 = vcvt.s32.f32 %v546
        %v611 = vcvt.s32.f32 %v547
        %v612 = vcvt.s32.f32 %v548
        %v613 = vcvt.s32.f32 %v549
        %v614 = vcvt.s32.f32 %v550
        %v615 = vcvt.s32.f32 %v551
        %v616 = vpack.c.bf16 %v554, %v552
        %v617 = vpack.c.bf16 %v555, %v553
        %v618 = vpack.c.bf16 %v558, %v556
        %v619 = vpack.c.bf16 %v559, %v557
        %v620 = vpack.c.bf16 %v562, %v560
        %v621 = vpack.c.bf16 %v563, %v561
        %v622 = vpack.c.bf16 %v566, %v564
        %v623 = vpack.c.bf16 %v567, %v565
        %v624 = vpack.c.bf16 %v570, %v568
        %v625 = vpack.c.bf16 %v571, %v569
        %v626 = vpack.c.bf16 %v574, %v572
        %v627 = vpack.c.bf16 %v575, %v573
        %v628 = vpack.c.bf16 %v578, %v576
        %v629 = vpack.c.bf16 %v579, %v577
        %v630 = vpack.c.bf16 %v582, %v580
        %v631 = vpack.c.bf16 %v583, %v581
        %v632 = vpack.c.bf16 %v586, %v584
        %v633 = vpack.c.bf16 %v587, %v585
        %v634 = vpack.c.bf16 %v590, %v588
        %v635 = vpack.c.bf16 %v591, %v589
        %v636 = vpack.c.bf16 %v594, %v592
        %v637 = vpack.c.bf16 %v595, %v593
        %v638 = vpack.c.bf16 %v598, %v596
        %v639 = vpack.c.bf16 %v599, %v597
        %v640 = vpack.c.bf16 %v602, %v600
        %v641 = vpack.c.bf16 %v603, %v601
        %v642 = vpack.c.bf16 %v606, %v604
        %v643 = vpack.c.bf16 %v607, %v605
        %v644 = vpack.c.bf16 %v610, %v608
        %v645 = vpack.c.bf16 %v611, %v609
        %v646 = vpack.c.bf16 %v614, %v612
        %v647 = vpack.c.bf16 %v615, %v613
        %v648 = vld [vmem:[%s172] sm:$0xff]
        %v649 = vld [vmem:[%s172 + $0x8] sm:$0xff]
        %v650 = vld [vmem:[#allocation2] sm:$0xff]
        %v651 = vld [vmem:[#allocation2 + $0x8] sm:$0xff]
        %v652 = vld [vmem:[#allocation2 + $0x10] sm:$0xff]
        %v653 = vld [vmem:[#allocation2 + $0x18] sm:$0xff]
        %v656 = vunpack.c.l.b16 %v648
        %v657 = vunpack.c.h.b16 %v648
        %v658 = vunpack.c.l.b16 %v649
        %v659 = vunpack.c.h.b16 %v649
        %v660 = vpack.c.b16 %v658, %v656
        %v661 = vpack.c.b16 %v659, %v657
        %664 = vmatprep.subr.bf16.mxu0 %v617
        %665 = vmatpush1.bf16.msra.mxu0 %v616
        %666 = vmatprep.subr.bf16.mxu0 %v619
        %667 = vmatpush1.bf16.msra.mxu0 %v618
        %668 = vmatprep.subr.bf16.mxu0 %v621
        %669 = vmatpush1.bf16.msra.mxu0 %v620
        %670 = vmatprep.subr.bf16.mxu0 %v623
        %671 = vmatpush1.bf16.msra.mxu0 %v622
        %672 = vmatprep.subr.bf16.mxu0 %v625
        %673 = vmatpush1.bf16.msra.mxu0 %v624
        %674 = vmatprep.subr.bf16.mxu0 %v627
        %675 = vmatpush1.bf16.msra.mxu0 %v626
        %676 = vmatprep.subr.bf16.mxu0 %v629
        %677 = vmatpush1.bf16.msra.mxu0 %v628
        %678 = vmatprep.subr.bf16.mxu0 %v631
        %679 = vmatpush1.bf16.msra.mxu0 %v630
        %680 = vmatprep.subr.bf16.mxu0 %v633
        %681 = vmatpush1.bf16.msra.mxu0 %v632
        %682 = vmatprep.subr.bf16.mxu0 %v635
        %683 = vmatpush1.bf16.msra.mxu0 %v634
        %684 = vmatprep.subr.bf16.mxu0 %v637
        %685 = vmatpush1.bf16.msra.mxu0 %v636
        %686 = vmatprep.subr.bf16.mxu0 %v639
        %687 = vmatpush1.bf16.msra.mxu0 %v638
        %688 = vmatprep.subr.bf16.mxu0 %v641
        %689 = vmatpush1.bf16.msra.mxu0 %v640
        %690 = vmatprep.subr.bf16.mxu0 %v643
        %691 = vmatpush1.bf16.msra.mxu0 %v642
        %692 = vmatprep.subr.bf16.mxu0 %v645
        %693 = vmatpush1.bf16.msra.mxu0 %v644
        %694 = vmatprep.subr.bf16.mxu0 %v647
        %695 = vmatpush1.bf16.msra.mxu0 %v646
        %696 = vmatprep.mubr.bf16.mxu0 %v661
        %697 = vmatmul.mubr.bf16.gmra.mrb[0].mxu0 %v660
        %v698 = vpop.f32.mrb[0].mxu0
        %v699 = vadd.f32 0.0, %v698
        %v700 = vpop.f32.mrb[0].mxu0
        %v701 = vadd.f32 0.0, %v700
        %v702 = vpop.f32.mrb[0].mxu0
        %v703 = vadd.f32 0.0, %v702
        %v704 = vpop.f32.mrb[0].mxu0
        %v705 = vadd.f32 0.0, %v704
        %706 = vdwg.mxu0
        %v707 = vadd.f32 %v650, %v699
        %v708 = vadd.f32 %v651, %v701
        %v709 = vadd.f32 %v652, %v703
        %v710 = vadd.f32 %v653, %v705
        %711 = vst [vmem:[#allocation2] sm:$0xff] %v707
        %712 = vst [vmem:[#allocation2 + $0x8] sm:$0xff] %v708
        %713 = vst [vmem:[#allocation2 + $0x10] sm:$0xff] %v709
        %714 = vst [vmem:[#allocation2 + $0x18] sm:$0xff] %v710
        %v715 = vld [vmem:[#allocation3] sm:$0x3]
        %716 = vmatprep.subr.bf16.mxu0 %v617
        %717 = vmatpush1.bf16.msra.mxu0 %v616
        %718 = vmatprep.subr.bf16.mxu0 %v619
        %719 = vmatpush1.bf16.msra.mxu0 %v618
        %720 = vmatprep.subr.bf16.mxu0 %v621
        %721 = vmatpush1.bf16.msra.mxu0 %v620
        %722 = vmatprep.subr.bf16.mxu0 %v623
        %723 = vmatpush1.bf16.msra.mxu0 %v622
        %724 = vmatprep.subr.bf16.mxu0 %v625
        %725 = vmatpush1.bf16.msra.mxu0 %v624
        %726 = vmatprep.subr.bf16.mxu0 %v627
        %727 = vmatpush1.bf16.msra.mxu0 %v626
        %728 = vmatprep.subr.bf16.mxu0 %v629
        %729 = vmatpush1.bf16.msra.mxu0 %v628
        %730 = vmatprep.subr.bf16.mxu0 %v631
        %731 = vmatpush1.bf16.msra.mxu0 %v630
        %732 = vmatprep.subr.bf16.mxu0 %v633
        %733 = vmatpush1.bf16.msra.mxu0 %v632
        %734 = vmatprep.subr.bf16.mxu0 %v635
        %735 = vmatpush1.bf16.msra.mxu0 %v634
        %736 = vmatprep.subr.bf16.mxu0 %v637
        %737 = vmatpush1.bf16.msra.mxu0 %v636
        %738 = vmatprep.subr.bf16.mxu0 %v639
        %739 = vmatpush1.bf16.msra.mxu0 %v638
        %740 = vmatprep.subr.bf16.mxu0 %v641
        %741 = vmatpush1.bf16.msra.mxu0 %v640
        %742 = vmatprep.subr.bf16.mxu0 %v643
        %743 = vmatpush1.bf16.msra.mxu0 %v642
        %744 = vmatprep.subr.bf16.mxu0 %v645
        %745 = vmatpush1.bf16.msra.mxu0 %v644
        %746 = vmatprep.subr.bf16.mxu0 %v647
        %747 = vmatpush1.bf16.msra.mxu0 %v646
        %748 = vmatprep.mubr.bf16.mxu0 1065369472
        %749 = vmatmul.mubr.bf16.gmra.mrb[0].mxu0 1065369472
        %v750 = vpop.f32.mrb[0].mxu0
        %v751 = vadd.f32 0.0, %v750
        %v752 = vpop.f32.mrb[0].mxu0
        %v753 = vadd.f32 0.0, %v752
        %v754 = vpop.f32.mrb[0].mxu0
        %v755 = vpop.f32.mrb[0].mxu0
        %756 = vdwg.mxu0
        %v759 = vcombine.low %v751, %v753
        %v761 = vunpack.c.l.s4 1966171168
        %v762 = vunpack.c.0.s8 %v761
        %v763 = vlaneseq
        %v764 = vshrl.u32 %v763, 7
        %v765 = vsub.s32 %v762, %v764
        %v766 = vrot.slane %v759, %v765
        %v768 = vunpack.c.l.s4 1966171168
        %v769 = vunpack.c.0.s8 %v768
        %v770 = vlaneseq
        %v771 = vshrl.u32 %v770, 7
        %v772 = vsub.s32 %v769, %v771
        %v773 = vrot.slane %v766, %v772
        %v775 = vadd.f32 %v715, %v773
        %v776 = vlaneseq
        %vm777 = vcmp.ge.s32.totalorder %v776, 0
        %vm778 = vcmp.lt.s32.totalorder %v776, 256
        %vm779 = vmand %vm777, %vm778
        %780 = vst.msk [vmem:[#allocation3] sm:$0x3] %vm779, %v775
        // Predicated region
        $region33: #{rpvnet_forward.14} parent=27 // pred_check
          %p781 = pneg %p176
        $region34: #{rpvnet_forward.14} parent=27 // pred_check_branch
          %783 = sbr.rel (%p781) target = $region36
        $region35: #{rpvnet_forward.14} parent=27 // pred_region
          %v784 = vld [vmem:[#allocation2] sm:$0xff]
          %v785 = vld [vmem:[#allocation2 + $0x8] sm:$0xff]
          %v786 = vld [vmem:[#allocation2 + $0x10] sm:$0xff]
          %v787 = vld [vmem:[#allocation2 + $0x18] sm:$0xff]
          %v788 = vld [vmem:[#allocation3] sm:$0x3]
          %v789 = vmax.f32 %v788, 1.0
          %v791 = vlaneseq
          %v792 = vshrl.u32 %v791, 7
          %v793 = vsub.s32 0, %v792
          %v794 = vrot.slane %v789, %v793
          %v795 = vlaneseq
          %v796 = vshrl.u32 %v795, 7
          %v797 = vsub.s32 1, %v796
          %v798 = vrot.slane %v789, %v797
          %v801 = vrcp.pop %v794
          %v802 = vmul.f32 %v784, %v801
          %v803 = vrcp.pop %v798
          %v804 = vmul.f32 %v785, %v803
          %v805 = vmul.f32 %v786, %v801
          %v806 = vmul.f32 %v787, %v803
          %v807 = vpack.c.bf16 %v805, %v802
          %v808 = vpack.c.bf16 %v806, %v804
          %v811 = vunpack.c.l.b16 %v807
          %v812 = vunpack.c.l.b16 %v808
          %v813 = vunpack.c.h.b16 %v807
          %v814 = vunpack.c.h.b16 %v808
          %v815 = vpack.c.b16 %v812, %v811
          %v816 = vpack.c.b16 %v814, %v813
          %819 = vst [vmem:[%s161] sm:$0xff] %v815
          %820 = vst [vmem:[%s161 + $0x8] sm:$0xff] %v816
        $region36: #{rpvnet_forward.14} parent=27 // pred_fallthru
          _
        %s821 = sand.u32 %s85, 1
        %s822 = sand.u32 %s85, 1
        %s823 = smul.addr %s822, 16
        %s824 = scalar_lea.vmem [#allocation4], %s823
        // Predicated region
        $region37: #{rpvnet_forward.14} parent=27 // pred_check
          %p825 = pneg %p95
        $region38: #{rpvnet_forward.14} parent=27 // pred_check_branch
          %827 = sbr.rel (%p825) target = $region40
        $region39: #{rpvnet_forward.14} parent=27 // pred_region
          %s828 = smul.u32 2, %s17
          %s829 = smul.addr %s828, 4
          %s830 = scalar_lea.vmem %s2, %s829
          // Predicated region
          $region41: #{rpvnet_forward.14} parent=39 // pred_check
            _
          $region42: #{rpvnet_forward.14} parent=39 // pred_check_branch
            %832 = sbr.rel (0) target = $region44
          $region43: #{rpvnet_forward.14} parent=39 // pred_region
            // Predicated region
            $region45: #{rpvnet_forward.14} parent=43 // pred_check
              _
            $region46: #{rpvnet_forward.14} parent=43 // pred_check_branch
              %834 = sbr.rel (0) target = $region48
            $region47: #{rpvnet_forward.14} parent=43 // pred_region
              // Predicated region
              $region60: #{rpvnet_forward.14} parent=47 // pred_check
                _
              $region61: #{rpvnet_forward.14} parent=47 // pred_check_branch
                %851 = sbr.rel (0) target = $region63
              $region62: #{rpvnet_forward.14} parent=47 // pred_region
                loop: start=0, step=1, limit=1
                $region64: #{rpvnet_forward.14} parent=62 // loop_pre_header
                  _
                $region65: #{rpvnet_forward.14} parent=62 // loop_header
                  %s853 = sphi 0, %s857
                  %p854 = scmp.ge.s32.totalorder %s853, 1
                  %s858 = sphi %s824, %s824
                  %s859 = sphi %s830, %s830
                $region66: #{rpvnet_forward.14} parent=62 // loop_header_branch
                  %856 = sbr.rel (%p854) target = $region70
                $region67: #{rpvnet_forward.14} parent=62 // loop_body
                  %v860 = vld [vmem:[%s858] sm:$0xff]
                  %861 = vst [vmem:[%s859] sm:$0xff] %v860
                  %v862 = vld [vmem:[%s858 + $0x8] sm:$0xff]
                  %863 = vst [vmem:[%s859 + $0x18] sm:$0xff] %v862
                $region68: #{rpvnet_forward.14} parent=62 // loop_footer
                  %s857 = sadd.s32 1, %s853
                $region69: #{rpvnet_forward.14} parent=62 // loop_footer_branch
                  %852 = sbr.rel target = $region65
                $region70: #{rpvnet_forward.14} parent=62 // loop_exit
                  _
              $region63: #{rpvnet_forward.14} parent=47 // pred_fallthru
                _
              // Predicated region
              $region71: #{rpvnet_forward.14} parent=47 // pred_check
                _
              $region72: #{rpvnet_forward.14} parent=47 // pred_check_branch
                %865 = sbr.rel target = $region74
              $region73: #{rpvnet_forward.14} parent=47 // pred_region
                _
              $region74: #{rpvnet_forward.14} parent=47 // pred_fallthru
                _
            $region48: #{rpvnet_forward.14} parent=43 // pred_fallthru
              _
            // Predicated region
            $region49: #{rpvnet_forward.14} parent=43 // pred_check
              _
            $region50: #{rpvnet_forward.14} parent=43 // pred_check_branch
              %836 = sbr.rel target = $region52
            $region51: #{rpvnet_forward.14} parent=43 // pred_region
              loop: start=0, step=1, limit=1
              $region53: #{rpvnet_forward.14} parent=51 // loop_pre_header
                _
              $region54: #{rpvnet_forward.14} parent=51 // loop_header
                %s839 = sphi 0, %s843
                %p840 = scmp.ge.s32.totalorder %s839, 1
                %s844 = sphi %s824, %s824
                %s845 = sphi %s830, %s830
              $region55: #{rpvnet_forward.14} parent=51 // loop_header_branch
                %842 = sbr.rel (%p840) target = $region59
              $region56: #{rpvnet_forward.14} parent=51 // loop_body
                %v846 = vld [vmem:[%s844] sm:$0xff]
                %847 = vst [vmem:[%s845] sm:$0xff] %v846
                %v848 = vld [vmem:[%s844 + $0x8] sm:$0xff]
                %849 = vst [vmem:[%s845 + $0x18] sm:$0xff] %v848
              $region57: #{rpvnet_forward.14} parent=51 // loop_footer
                %s843 = sadd.s32 1, %s839
              $region58: #{rpvnet_forward.14} parent=51 // loop_footer_branch
                %838 = sbr.rel target = $region54
              $region59: #{rpvnet_forward.14} parent=51 // loop_exit
                _
            $region52: #{rpvnet_forward.14} parent=43 // pred_fallthru
              _
          $region44: #{rpvnet_forward.14} parent=39 // pred_fallthru
            _
          %866 = vnop
        $region40: #{rpvnet_forward.14} parent=27 // pred_fallthru
          _
      $region28: #{rpvnet_forward.14} parent=5 // pred_fallthru
        _
      %p867 = scmp.le.s32.totalorder 2, %s8
      // Predicated region
      $region75: #{rpvnet_forward.14} parent=5 // pred_check
        %p868 = pneg %p867
      $region76: #{rpvnet_forward.14} parent=5 // pred_check_branch
        %870 = sbr.rel (%p868) target = $region78
      $region77: #{rpvnet_forward.14} parent=5 // pred_region
        %s871 = ssub.s32 %s8, 2
        // Predicated region
        $region79: #{rpvnet_forward.14} parent=77 // pred_check
          %p872 = pneg %p101
        $region80: #{rpvnet_forward.14} parent=77 // pred_check_branch
          %874 = sbr.rel (%p872) target = $region82
        $region81: #{rpvnet_forward.14} parent=77 // pred_region
          %s875 = sand.u32 %s86, 1
          %s876 = sand.u32 %s86, 1
          %s877 = smul.addr %s876, 16
          %s878 = scalar_lea.vmem [#allocation4], %s877
        $region82: #{rpvnet_forward.14} parent=77 // pred_fallthru
          _
      $region78: #{rpvnet_forward.14} parent=5 // pred_fallthru
        _
    $region6: #{rpvnet_forward.14} parent=1 // loop_footer
      %s12 = sadd.s32 1, %s8
    $region7: #{rpvnet_forward.14} parent=1 // loop_footer_branch
      %7 = sbr.rel target = $region3
    $region8: #{rpvnet_forward.14} parent=1 // loop_exit
      _

// kernel: rpvnet_forward.13
$region0: #{rpvnet_forward.13}
  #allocation0 [shape = 'u32[]', space=smem, size = 0x4, offset = 0x4, fixed_abs, tag = 'smem constant byte address 0x4 - core index']
  #allocation1 [shape = 'u32[144,128]{1,0:T(1,128)}', space=vmem, size = 0x12000, scoped, tag = 'internal scratch']
  %s0 = inlined_call_operand.vmem [shape: bf16[32,256], index: 0, kind: input, shape index: {}]
  %s1 = inlined_call_operand.vmem [shape: bf16[32,256], index: 1, kind: input, shape index: {}]
  %s2 = inlined_call_operand.vmem [shape: bf16[32,256], index: 2, kind: input, shape index: {}]
  %s3 = inlined_call_operand.vmem [shape: bf16[16,32], index: 3, kind: input, shape index: {}]
  %s4 = inlined_call_operand.vmem [shape: bf16[16,32], index: 4, kind: input, shape index: {}]
  %s5 = inlined_call_operand.vmem [shape: bf16[16,32], index: 5, kind: input, shape index: {}]
  %s6 = inlined_call_operand.vmem [shape: f32[48,1], index: 6, kind: input, shape index: {}]
  %s7 = inlined_call_operand.vmem [shape: f32[3,16], index: 7, kind: input, shape index: {}]
  %s8 = inlined_call_operand.vmem [shape: f32[3,16], index: 8, kind: input, shape index: {}]
  %s9 = inlined_call_operand.vmem [shape: f32[3,16], index: 9, kind: input, shape index: {}]
  %s10 = inlined_call_operand.vmem [shape: f32[3,1], index: 10, kind: input, shape index: {}]
  %s11 = inlined_call_operand.vmem [shape: bf16[16,256], index: 11, kind: output, shape index: {}]
  %s12 = sld [smem:[#allocation0]]
  $region237: #{rpvnet_forward.13} parent=0
    _
  %s14 = ssub.s32 1, %s12
  %s15 = scalar_select 0, %s14, %s12
  $region1: #{rpvnet_forward.13} parent=0
    #allocation2 [shape = 'u8[16384]{0}', space=vmem, size = 0x4000, scoped, tag = 'input window, operand 0']
    #allocation3 [shape = 'u8[16384]{0}', space=vmem, size = 0x4000, scoped, tag = 'input window, operand 1']
    #allocation4 [shape = 'u8[16384]{0}', space=vmem, size = 0x4000, scoped, tag = 'input window, operand 2']
    #allocation5 [shape = 'u8[8192]{0}', space=vmem, size = 0x2000, scoped, tag = 'output window, operand 0']
    loop: start=0, step=1, limit=4
    $region2: #{rpvnet_forward.13} parent=1 // loop_pre_header
      _
    $region3: #{rpvnet_forward.13} parent=1 // loop_header
      %s17 = sphi 0, %s21
      %p18 = scmp.ge.s32.totalorder %s17, 4
      %s27 = sphi 0, %s29
      %s30 = sphi 0, %s27
      %s31 = sphi 0, %s30
      %s47 = sphi 0, %s31
      %s53 = sphi 0, %s55
      %s56 = sphi 0, %s53
      %s57 = sphi 0, %s56
      %s73 = sphi 0, %s57
      %s79 = sphi 0, %s81
      %s82 = sphi 0, %s79
      %s83 = sphi 0, %s82
      %s99 = sphi 0, %s83
      %s103 = sphi 0, %s103
      %s105 = sphi 0, %s103
      %s106 = sphi 0, %s105
      %s120 = sphi 0, %s106
      %s124 = sphi 0, %s124
      %s126 = sphi 0, %s124
      %s127 = sphi 0, %s126
      %s141 = sphi 0, %s127
      %s145 = sphi 0, %s145
      %s147 = sphi 0, %s145
      %s148 = sphi 0, %s147
      %s162 = sphi 0, %s148
      %s166 = sphi 0, %s166
      %s168 = sphi 0, %s166
      %s169 = sphi 0, %s168
      %s183 = sphi 0, %s169
      %s187 = sphi 0, %s187
      %s189 = sphi 0, %s187
      %s190 = sphi 0, %s189
      %s204 = sphi 0, %s190
      %s208 = sphi 0, %s208
      %s210 = sphi 0, %s208
      %s211 = sphi 0, %s210
      %s225 = sphi 0, %s211
      %s229 = sphi 0, %s229
      %s231 = sphi 0, %s229
      %s232 = sphi 0, %s231
      %s246 = sphi 0, %s232
      %s250 = sphi 0, %s250
      %s252 = sphi 0, %s250
      %s253 = sphi 0, %s252
      %s267 = sphi 0, %s253
      %s273 = sphi 0, %s275
      %s276 = sphi 0, %s273
      %s277 = sphi 0, %s276
      %s293 = sphi 0, %s277
    $region4: #{rpvnet_forward.13} parent=1 // loop_header_branch
      %20 = sbr.rel (%p18) target = $region8
    $region5: #{rpvnet_forward.13} parent=1 // loop_body
      %s22 = ssub.s32 %s17, 1
      %s23 = ssub.s32 %s17, 2
      %s24 = sadd.s32 %s17, 1
      %s25 = ssub.s32 %s17, %s24
      %p26 = scmp.eq.s32.totalorder %s25, 0
      %s28 = sadd.s32 %s27, 1
      %s29 = scalar_select %p26, %s27, %s28
      %p32 = pneg %p26
      %p33 = scmp.eq.s32.totalorder %s17, 1
      %p34 = por %p32, %p33
      %p35 = scmp.ne.s32.totalorder %s27, %s30
      %p36 = scmp.eq.s32.totalorder %s17, 0
      %p37 = por %p35, %p36
      %p38 = scmp.ne.s32.totalorder %s27, %s30
      %p39 = scmp.eq.s32.totalorder %s22, 1
      %p40 = por %p38, %p39
      %p41 = scmp.ne.s32.totalorder %s30, %s31
      %p42 = scmp.eq.s32.totalorder %s22, 0
      %p43 = por %p41, %p42
      %p44 = scmp.ne.s32.totalorder %s30, %s31
      %p45 = scmp.eq.s32.totalorder %s23, 1
      %p46 = por %p44, %p45
      %p48 = scmp.ne.s32.totalorder %s31, %s47
      %p49 = scmp.eq.s32.totalorder %s23, 0
      %p50 = por %p48, %p49
      %s51 = ssub.s32 %s17, %s24
      %p52 = scmp.eq.s32.totalorder %s51, 0
      %s54 = sadd.s32 %s53, 1
      %s55 = scalar_select %p52, %s53, %s54
      %p58 = pneg %p52
      %p59 = scmp.eq.s32.totalorder %s17, 1
      %p60 = por %p58, %p59
      %p61 = scmp.ne.s32.totalorder %s53, %s56
      %p62 = scmp.eq.s32.totalorder %s17, 0
      %p63 = por %p61, %p62
      %p64 = scmp.ne.s32.totalorder %s53, %s56
      %p65 = scmp.eq.s32.totalorder %s22, 1
      %p66 = por %p64, %p65
      %p67 = scmp.ne.s32.totalorder %s56, %s57
      %p68 = scmp.eq.s32.totalorder %s22, 0
      %p69 = por %p67, %p68
      %p70 = scmp.ne.s32.totalorder %s56, %s57
      %p71 = scmp.eq.s32.totalorder %s23, 1
      %p72 = por %p70, %p71
      %p74 = scmp.ne.s32.totalorder %s57, %s73
      %p75 = scmp.eq.s32.totalorder %s23, 0
      %p76 = por %p74, %p75
      %s77 = ssub.s32 %s17, %s24
      %p78 = scmp.eq.s32.totalorder %s77, 0
      %s80 = sadd.s32 %s79, 1
      %s81 = scalar_select %p78, %s79, %s80
      %p84 = pneg %p78
      %p85 = scmp.eq.s32.totalorder %s17, 1
      %p86 = por %p84, %p85
      %p87 = scmp.ne.s32.totalorder %s79, %s82
      %p88 = scmp.eq.s32.totalorder %s17, 0
      %p89 = por %p87, %p88
      %p90 = scmp.ne.s32.totalorder %s79, %s82
      %p91 = scmp.eq.s32.totalorder %s22, 1
      %p92 = por %p90, %p91
      %p93 = scmp.ne.s32.totalorder %s82, %s83
      %p94 = scmp.eq.s32.totalorder %s22, 0
      %p95 = por %p93, %p94
      %p96 = scmp.ne.s32.totalorder %s82, %s83
      %p97 = scmp.eq.s32.totalorder %s23, 1
      %p98 = por %p96, %p97
      %p100 = scmp.ne.s32.totalorder %s83, %s99
      %p101 = scmp.eq.s32.totalorder %s23, 0
      %p102 = por %p100, %p101
      %s104 = sadd.s32 %s103, 1
      %p107 = scmp.eq.s32.totalorder %s17, 1
      %p108 = scmp.ne.s32.totalorder %s103, %s105
      %p109 = scmp.eq.s32.totalorder %s17, 0
      %p110 = por %p108, %p109
      %p111 = scmp.ne.s32.totalorder %s103, %s105
      %p112 = scmp.eq.s32.totalorder %s22, 1
      %p113 = por %p111, %p112
      %p114 = scmp.ne.s32.totalorder %s105, %s106
      %p115 = scmp.eq.s32.totalorder %s22, 0
      %p116 = por %p114, %p115
      %p117 = scmp.ne.s32.totalorder %s105, %s106
      %p118 = scmp.eq.s32.totalorder %s23, 1
      %p119 = por %p117, %p118
      %p121 = scmp.ne.s32.totalorder %s106, %s120
      %p122 = scmp.eq.s32.totalorder %s23, 0
      %p123 = por %p121, %p122
      %s125 = sadd.s32 %s124, 1
      %p128 = scmp.eq.s32.totalorder %s17, 1
      %p129 = scmp.ne.s32.totalorder %s124, %s126
      %p130 = scmp.eq.s32.totalorder %s17, 0
      %p131 = por %p129, %p130
      %p132 = scmp.ne.s32.totalorder %s124, %s126
      %p133 = scmp.eq.s32.totalorder %s22, 1
      %p134 = por %p132, %p133
      %p135 = scmp.ne.s32.totalorder %s126, %s127
      %p136 = scmp.eq.s32.totalorder %s22, 0
      %p137 = por %p135, %p136
      %p138 = scmp.ne.s32.totalorder %s126, %s127
      %p139 = scmp.eq.s32.totalorder %s23, 1
      %p140 = por %p138, %p139
      %p142 = scmp.ne.s32.totalorder %s127, %s141
      %p143 = scmp.eq.s32.totalorder %s23, 0
      %p144 = por %p142, %p143
      %s146 = sadd.s32 %s145, 1
      %p149 = scmp.eq.s32.totalorder %s17, 1
      %p150 = scmp.ne.s32.totalorder %s145, %s147
      %p151 = scmp.eq.s32.totalorder %s17, 0
      %p152 = por %p150, %p151
      %p153 = scmp.ne.s32.totalorder %s145, %s147
      %p154 = scmp.eq.s32.totalorder %s22, 1
      %p155 = por %p153, %p154
      %p156 = scmp.ne.s32.totalorder %s147, %s148
      %p157 = scmp.eq.s32.totalorder %s22, 0
      %p158 = por %p156, %p157
      %p159 = scmp.ne.s32.totalorder %s147, %s148
      %p160 = scmp.eq.s32.totalorder %s23, 1
      %p161 = por %p159, %p160
      %p163 = scmp.ne.s32.totalorder %s148, %s162
      %p164 = scmp.eq.s32.totalorder %s23, 0
      %p165 = por %p163, %p164
      %s167 = sadd.s32 %s166, 1
      %p170 = scmp.eq.s32.totalorder %s17, 1
      %p171 = scmp.ne.s32.totalorder %s166, %s168
      %p172 = scmp.eq.s32.totalorder %s17, 0
      %p173 = por %p171, %p172
      %p174 = scmp.ne.s32.totalorder %s166, %s168
      %p175 = scmp.eq.s32.totalorder %s22, 1
      %p176 = por %p174, %p175
      %p177 = scmp.ne.s32.totalorder %s168, %s169
      %p178 = scmp.eq.s32.totalorder %s22, 0
      %p179 = por %p177, %p178
      %p180 = scmp.ne.s32.totalorder %s168, %s169
      %p181 = scmp.eq.s32.totalorder %s23, 1
      %p182 = por %p180, %p181
      %p184 = scmp.ne.s32.totalorder %s169, %s183
      %p185 = scmp.eq.s32.totalorder %s23, 0
      %p186 = por %p184, %p185
      %s188 = sadd.s32 %s187, 1
      %p191 = scmp.eq.s32.totalorder %s17, 1
      %p192 = scmp.ne.s32.totalorder %s187, %s189
      %p193 = scmp.eq.s32.totalorder %s17, 0
      %p194 = por %p192, %p193
      %p195 = scmp.ne.s32.totalorder %s187, %s189
      %p196 = scmp.eq.s32.totalorder %s22, 1
      %p197 = por %p195, %p196
      %p198 = scmp.ne.s32.totalorder %s189, %s190
      %p199 = scmp.eq.s32.totalorder %s22, 0
      %p200 = por %p198, %p199
      %p201 = scmp.ne.s32.totalorder %s189, %s190
      %p202 = scmp.eq.s32.totalorder %s23, 1
      %p203 = por %p201, %p202
      %p205 = scmp.ne.s32.totalorder %s190, %s204
      %p206 = scmp.eq.s32.totalorder %s23, 0
      %p207 = por %p205, %p206
      %s209 = sadd.s32 %s208, 1
      %p212 = scmp.eq.s32.totalorder %s17, 1
      %p213 = scmp.ne.s32.totalorder %s208, %s210
      %p214 = scmp.eq.s32.totalorder %s17, 0
      %p215 = por %p213, %p214
      %p216 = scmp.ne.s32.totalorder %s208, %s210
      %p217 = scmp.eq.s32.totalorder %s22, 1
      %p218 = por %p216, %p217
      %p219 = scmp.ne.s32.totalorder %s210, %s211
      %p220 = scmp.eq.s32.totalorder %s22, 0
      %p221 = por %p219, %p220
      %p222 = scmp.ne.s32.totalorder %s210, %s211
      %p223 = scmp.eq.s32.totalorder %s23, 1
      %p224 = por %p222, %p223
      %p226 = scmp.ne.s32.totalorder %s211, %s225
      %p227 = scmp.eq.s32.totalorder %s23, 0
      %p228 = por %p226, %p227
      %s230 = sadd.s32 %s229, 1
      %p233 = scmp.eq.s32.totalorder %s17, 1
      %p234 = scmp.ne.s32.totalorder %s229, %s231
      %p235 = scmp.eq.s32.totalorder %s17, 0
      %p236 = por %p234, %p235
      %p237 = scmp.ne.s32.totalorder %s229, %s231
      %p238 = scmp.eq.s32.totalorder %s22, 1
      %p239 = por %p237, %p238
      %p240 = scmp.ne.s32.totalorder %s231, %s232
      %p241 = scmp.eq.s32.totalorder %s22, 0
      %p242 = por %p240, %p241
      %p243 = scmp.ne.s32.totalorder %s231, %s232
      %p244 = scmp.eq.s32.totalorder %s23, 1
      %p245 = por %p243, %p244
      %p247 = scmp.ne.s32.totalorder %s232, %s246
      %p248 = scmp.eq.s32.totalorder %s23, 0
      %p249 = por %p247, %p248
      %s251 = sadd.s32 %s250, 1
      %p254 = scmp.eq.s32.totalorder %s17, 1
      %p255 = scmp.ne.s32.totalorder %s250, %s252
      %p256 = scmp.eq.s32.totalorder %s17, 0
      %p257 = por %p255, %p256
      %p258 = scmp.ne.s32.totalorder %s250, %s252
      %p259 = scmp.eq.s32.totalorder %s22, 1
      %p260 = por %p258, %p259
      %p261 = scmp.ne.s32.totalorder %s252, %s253
      %p262 = scmp.eq.s32.totalorder %s22, 0
      %p263 = por %p261, %p262
      %p264 = scmp.ne.s32.totalorder %s252, %s253
      %p265 = scmp.eq.s32.totalorder %s23, 1
      %p266 = por %p264, %p265
      %p268 = scmp.ne.s32.totalorder %s253, %s267
      %p269 = scmp.eq.s32.totalorder %s23, 0
      %p270 = por %p268, %p269
      %s271 = ssub.s32 %s17, %s24
      %p272 = scmp.eq.s32.totalorder %s271, 0
      %s274 = sadd.s32 %s273, 1
      %s275 = scalar_select %p272, %s273, %s274
      %p278 = pneg %p272
      %p279 = scmp.eq.s32.totalorder %s17, 1
      %p280 = por %p278, %p279
      %p281 = scmp.ne.s32.totalorder %s273, %s276
      %p282 = scmp.eq.s32.totalorder %s17, 0
      %p283 = por %p281, %p282
      %p284 = scmp.ne.s32.totalorder %s273, %s276
      %p285 = scmp.eq.s32.totalorder %s22, 1
      %p286 = por %p284, %p285
      %p287 = scmp.ne.s32.totalorder %s276, %s277
      %p288 = scmp.eq.s32.totalorder %s22, 0
      %p289 = por %p287, %p288
      %p290 = scmp.ne.s32.totalorder %s276, %s277
      %p291 = scmp.eq.s32.totalorder %s23, 1
      %p292 = por %p290, %p291
      %p294 = scmp.ne.s32.totalorder %s277, %s293
      %p295 = scmp.eq.s32.totalorder %s23, 0
      %p296 = por %p294, %p295
      %p297 = scmp.le.s32.totalorder 1, %s17
      %p298 = scmp.lt.s32.totalorder %s17, 3
      %p299 = pnand %p297, %p298
      %p300 = pneg %p299
      // Predicated region
      $region9: #{rpvnet_forward.13} parent=5 // pred_check
        _
      $region10: #{rpvnet_forward.13} parent=5 // pred_check_branch
        %302 = sbr.rel (%p299) target = $region12
      $region11: #{rpvnet_forward.13} parent=5 // pred_region
        %s303 = ssub.s32 %s17, 1
        // Predicated region
        $region13: #{rpvnet_forward.13} parent=11 // pred_check
          %p304 = pneg %p116
        $region14: #{rpvnet_forward.13} parent=11 // pred_check_branch
          %306 = sbr.rel (%p304) target = $region16
        $region15: #{rpvnet_forward.13} parent=11 // pred_region
          _
        $region16: #{rpvnet_forward.13} parent=11 // pred_fallthru
          _
        // Predicated region
        $region17: #{rpvnet_forward.13} parent=11 // pred_check
          %p307 = pneg %p137
        $region18: #{rpvnet_forward.13} parent=11 // pred_check_branch
          %309 = sbr.rel (%p307) target = $region20
        $region19: #{rpvnet_forward.13} parent=11 // pred_region
          _
        $region20: #{rpvnet_forward.13} parent=11 // pred_fallthru
          _
        // Predicated region
        $region21: #{rpvnet_forward.13} parent=11 // pred_check
          %p310 = pneg %p158
        $region22: #{rpvnet_forward.13} parent=11 // pred_check_branch
          %312 = sbr.rel (%p310) target = $region24
        $region23: #{rpvnet_forward.13} parent=11 // pred_region
          _
        $region24: #{rpvnet_forward.13} parent=11 // pred_fallthru
          _
        // Predicated region
        $region25: #{rpvnet_forward.13} parent=11 // pred_check
          %p313 = pneg %p179
        $region26: #{rpvnet_forward.13} parent=11 // pred_check_branch
          %315 = sbr.rel (%p313) target = $region28
        $region27: #{rpvnet_forward.13} parent=11 // pred_region
          _
        $region28: #{rpvnet_forward.13} parent=11 // pred_fallthru
          _
        // Predicated region
        $region29: #{rpvnet_forward.13} parent=11 // pred_check
          %p316 = pneg %p200
        $region30: #{rpvnet_forward.13} parent=11 // pred_check_branch
          %318 = sbr.rel (%p316) target = $region32
        $region31: #{rpvnet_forward.13} parent=11 // pred_region
          _
        $region32: #{rpvnet_forward.13} parent=11 // pred_fallthru
          _
        // Predicated region
        $region33: #{rpvnet_forward.13} parent=11 // pred_check
          %p319 = pneg %p221
        $region34: #{rpvnet_forward.13} parent=11 // pred_check_branch
          %321 = sbr.rel (%p319) target = $region36
        $region35: #{rpvnet_forward.13} parent=11 // pred_region
          _
        $region36: #{rpvnet_forward.13} parent=11 // pred_fallthru
          _
        // Predicated region
        $region37: #{rpvnet_forward.13} parent=11 // pred_check
          %p322 = pneg %p242
        $region38: #{rpvnet_forward.13} parent=11 // pred_check_branch
          %324 = sbr.rel (%p322) target = $region40
        $region39: #{rpvnet_forward.13} parent=11 // pred_region
          _
        $region40: #{rpvnet_forward.13} parent=11 // pred_fallthru
          _
        // Predicated region
        $region41: #{rpvnet_forward.13} parent=11 // pred_check
          %p325 = pneg %p263
        $region42: #{rpvnet_forward.13} parent=11 // pred_check_branch
          %327 = sbr.rel (%p325) target = $region44
        $region43: #{rpvnet_forward.13} parent=11 // pred_region
          _
        $region44: #{rpvnet_forward.13} parent=11 // pred_fallthru
          _
      $region12: #{rpvnet_forward.13} parent=5 // pred_fallthru
        _
      %p328 = scmp.lt.s32.totalorder %s17, 2
      // Predicated region
      $region45: #{rpvnet_forward.13} parent=5 // pred_check
        %p329 = pneg %p328
      $region46: #{rpvnet_forward.13} parent=5 // pred_check_branch
        %331 = sbr.rel (%p329) target = $region48
      $region47: #{rpvnet_forward.13} parent=5 // pred_region
        // Predicated region
        $region49: #{rpvnet_forward.13} parent=47 // pred_check
          %p332 = pneg %p37
        $region50: #{rpvnet_forward.13} parent=47 // pred_check_branch
          %334 = sbr.rel (%p332) target = $region52
        $region51: #{rpvnet_forward.13} parent=47 // pred_region
          %s335 = sand.u32 %s27, 1
          %s336 = sand.u32 %s27, 1
          %s337 = smul.addr %s336, 16
          %s338 = scalar_lea.vmem [#allocation2], %s337
          %s339 = smul.addr %s17, 4
          %s340 = scalar_lea.vmem %s0, %s339
          // Predicated region
          $region53: #{rpvnet_forward.13} parent=51 // pred_check
            _
          $region54: #{rpvnet_forward.13} parent=51 // pred_check_branch
            %342 = sbr.rel (0) target = $region56
          $region55: #{rpvnet_forward.13} parent=51 // pred_region
            // Predicated region
            $region57: #{rpvnet_forward.13} parent=55 // pred_check
              _
            $region58: #{rpvnet_forward.13} parent=55 // pred_check_branch
              %344 = sbr.rel target = $region60
            $region59: #{rpvnet_forward.13} parent=55 // pred_region
              // Predicated region
              $region72: #{rpvnet_forward.13} parent=59 // pred_check
                _
              $region73: #{rpvnet_forward.13} parent=59 // pred_check_branch
                %365 = sbr.rel (0) target = $region75
              $region74: #{rpvnet_forward.13} parent=59 // pred_region
                loop: start=0, step=1, limit=1
                $region76: #{rpvnet_forward.13} parent=74 // loop_pre_header
                  _
                $region77: #{rpvnet_forward.13} parent=74 // loop_header
                  %s367 = sphi 0, %s371
                  %p368 = scmp.ge.s32.totalorder %s367, 1
                  %s372 = sphi %s340, %s340
                  %s373 = sphi %s338, %s338
                $region78: #{rpvnet_forward.13} parent=74 // loop_header_branch
                  %370 = sbr.rel (%p368) target = $region82
                $region79: #{rpvnet_forward.13} parent=74 // loop_body
                  _
                $region80: #{rpvnet_forward.13} parent=74 // loop_footer
                  %s371 = sadd.s32 1, %s367
                $region81: #{rpvnet_forward.13} parent=74 // loop_footer_branch
                  %366 = sbr.rel target = $region77
                $region82: #{rpvnet_forward.13} parent=74 // loop_exit
                  _
                loop: start=0, step=1, limit=1
                $region83: #{rpvnet_forward.13} parent=74 // loop_pre_header
                  _
                $region84: #{rpvnet_forward.13} parent=74 // loop_header
                  %s376 = sphi 0, %s380
                  %p377 = scmp.ge.s32.totalorder %s376, 1
                  %s381 = sphi %s340, %s340
                  %s382 = sphi %s338, %s338
                $region85: #{rpvnet_forward.13} parent=74 // loop_header_branch
                  %379 = sbr.rel (%p377) target = $region89
                $region86: #{rpvnet_forward.13} parent=74 // loop_body
                  %v383 = vld [vmem:[%s381] sm:$0xf]
                  %384 = vst [vmem:[%s382] sm:$0xf] %v383
                  %v385 = vld [vmem:[%s381 + $0x8] sm:$0xf]
                  %386 = vst [vmem:[%s382 + $0x4] sm:$0xf] %v385
                  %v387 = vld [vmem:[%s381 + $0x10] sm:$0xf]
                  %388 = vst [vmem:[%s382 + $0x8] sm:$0xf] %v387
                  %v389 = vld [vmem:[%s381 + $0x18] sm:$0xf]
                  %390 = vst [vmem:[%s382 + $0xc] sm:$0xf] %v389
                $region87: #{rpvnet_forward.13} parent=74 // loop_footer
                  %s380 = sadd.s32 1, %s376
                $region88: #{rpvnet_forward.13} parent=74 // loop_footer_branch
                  %375 = sbr.rel target = $region84
                $region89: #{rpvnet_forward.13} parent=74 // loop_exit
                  _
              $region75: #{rpvnet_forward.13} parent=59 // pred_fallthru
                _
            $region60: #{rpvnet_forward.13} parent=55 // pred_fallthru
              _
            // Predicated region
            $region61: #{rpvnet_forward.13} parent=55 // pred_check
              _
            $region62: #{rpvnet_forward.13} parent=55 // pred_check_branch
              %346 = sbr.rel (0) target = $region64
            $region63: #{rpvnet_forward.13} parent=55 // pred_region
              loop: start=0, step=1, limit=1
              $region65: #{rpvnet_forward.13} parent=63 // loop_pre_header
                _
              $region66: #{rpvnet_forward.13} parent=63 // loop_header
                %s349 = sphi 0, %s353
                %p350 = scmp.ge.s32.totalorder %s349, 1
                %s354 = sphi %s340, %s340
                %s355 = sphi %s338, %s338
              $region67: #{rpvnet_forward.13} parent=63 // loop_header_branch
                %352 = sbr.rel (%p350) target = $region71
              $region68: #{rpvnet_forward.13} parent=63 // loop_body
                %v356 = vld [vmem:[%s354] sm:$0xf]
                %357 = vst [vmem:[%s355] sm:$0xf] %v356
                %v358 = vld [vmem:[%s354 + $0x8] sm:$0xf]
                %359 = vst [vmem:[%s355 + $0x4] sm:$0xf] %v358
                %v360 = vld [vmem:[%s354 + $0x10] sm:$0xf]
                %361 = vst [vmem:[%s355 + $0x8] sm:$0xf] %v360
                %v362 = vld [vmem:[%s354 + $0x18] sm:$0xf]
                %363 = vst [vmem:[%s355 + $0xc] sm:$0xf] %v362
              $region69: #{rpvnet_forward.13} parent=63 // loop_footer
                %s353 = sadd.s32 1, %s349
              $region70: #{rpvnet_forward.13} parent=63 // loop_footer_branch
                %348 = sbr.rel target = $region66
              $region71: #{rpvnet_forward.13} parent=63 // loop_exit
                _
            $region64: #{rpvnet_forward.13} parent=55 // pred_fallthru
              _
          $region56: #{rpvnet_forward.13} parent=51 // pred_fallthru
            _
          %391 = vnop
        $region52: #{rpvnet_forward.13} parent=47 // pred_fallthru
          _
        // Predicated region
        $region90: #{rpvnet_forward.13} parent=47 // pred_check
          %p392 = pneg %p63
        $region91: #{rpvnet_forward.13} parent=47 // pred_check_branch
          %394 = sbr.rel (%p392) target = $region93
        $region92: #{rpvnet_forward.13} parent=47 // pred_region
          %s395 = sand.u32 %s53, 1
          %s396 = sand.u32 %s53, 1
          %s397 = smul.addr %s396, 16
          %s398 = scalar_lea.vmem [#allocation3], %s397
          %s399 = smul.addr %s17, 4
          %s400 = scalar_lea.vmem %s1, %s399
          // Predicated region
          $region94: #{rpvnet_forward.13} parent=92 // pred_check
            _
          $region95: #{rpvnet_forward.13} parent=92 // pred_check_branch
            %402 = sbr.rel (0) target = $region97
          $region96: #{rpvnet_forward.13} parent=92 // pred_region
            // Predicated region
            $region98: #{rpvnet_forward.13} parent=96 // pred_check
              _
            $region99: #{rpvnet_forward.13} parent=96 // pred_check_branch
              %404 = sbr.rel target = $region101
            $region100: #{rpvnet_forward.13} parent=96 // pred_region
              // Predicated region
              $region113: #{rpvnet_forward.13} parent=100 // pred_check
                _
              $region114: #{rpvnet_forward.13} parent=100 // pred_check_branch
                %425 = sbr.rel (0) target = $region116
              $region115: #{rpvnet_forward.13} parent=100 // pred_region
                loop: start=0, step=1, limit=1
                $region117: #{rpvnet_forward.13} parent=115 // loop_pre_header
                  _
                $region118: #{rpvnet_forward.13} parent=115 // loop_header
                  %s427 = sphi 0, %s431
                  %p428 = scmp.ge.s32.totalorder %s427, 1
                  %s432 = sphi %s400, %s400
                  %s433 = sphi %s398, %s398
                $region119: #{rpvnet_forward.13} parent=115 // loop_header_branch
                  %430 = sbr.rel (%p428) target = $region123
                $region120: #{rpvnet_forward.13} parent=115 // loop_body
                  _
                $region121: #{rpvnet_forward.13} parent=115 // loop_footer
                  %s431 = sadd.s32 1, %s427
                $region122: #{rpvnet_forward.13} parent=115 // loop_footer_branch
                  %426 = sbr.rel target = $region118
                $region123: #{rpvnet_forward.13} parent=115 // loop_exit
                  _
                loop: start=0, step=1, limit=1
                $region124: #{rpvnet_forward.13} parent=115 // loop_pre_header
                  _
                $region125: #{rpvnet_forward.13} parent=115 // loop_header
                  %s436 = sphi 0, %s440
                  %p437 = scmp.ge.s32.totalorder %s436, 1
                  %s441 = sphi %s400, %s400
                  %s442 = sphi %s398, %s398
                $region126: #{rpvnet_forward.13} parent=115 // loop_header_branch
                  %439 = sbr.rel (%p437) target = $region130
                $region127: #{rpvnet_forward.13} parent=115 // loop_body
                  %v443 = vld [vmem:[%s441] sm:$0xf]
                  %444 = vst [vmem:[%s442] sm:$0xf] %v443
                  %v445 = vld [vmem:[%s441 + $0x8] sm:$0xf]
                  %446 = vst [vmem:[%s442 + $0x4] sm:$0xf] %v445
                  %v447 = vld [vmem:[%s441 + $0x10] sm:$0xf]
                  %448 = vst [vmem:[%s442 + $0x8] sm:$0xf] %v447
                  %v449 = vld [vmem:[%s441 + $0x18] sm:$0xf]
                  %450 = vst [vmem:[%s442 + $0xc] sm:$0xf] %v449
                $region128: #{rpvnet_forward.13} parent=115 // loop_footer
                  %s440 = sadd.s32 1, %s436
                $region129: #{rpvnet_forward.13} parent=115 // loop_footer_branch
                  %435 = sbr.rel target = $region125
                $region130: #{rpvnet_forward.13} parent=115 // loop_exit
                  _
              $region116: #{rpvnet_forward.13} parent=100 // pred_fallthru
                _
            $region101: #{rpvnet_forward.13} parent=96 // pred_fallthru
              _
            // Predicated region
            $region102: #{rpvnet_forward.13} parent=96 // pred_check
              _
            $region103: #{rpvnet_forward.13} parent=96 // pred_check_branch
              %406 = sbr.rel (0) target = $region105
            $region104: #{rpvnet_forward.13} parent=96 // pred_region
              loop: start=0, step=1, limit=1
              $region106: #{rpvnet_forward.13} parent=104 // loop_pre_header
                _
              $region107: #{rpvnet_forward.13} parent=104 // loop_header
                %s409 = sphi 0, %s413
                %p410 = scmp.ge.s32.totalorder %s409, 1
                %s414 = sphi %s400, %s400
                %s415 = sphi %s398, %s398
              $region108: #{rpvnet_forward.13} parent=104 // loop_header_branch
                %412 = sbr.rel (%p410) target = $region112
              $region109: #{rpvnet_forward.13} parent=104 // loop_body
                %v416 = vld [vmem:[%s414] sm:$0xf]
                %417 = vst [vmem:[%s415] sm:$0xf] %v416
                %v418 = vld [vmem:[%s414 + $0x8] sm:$0xf]
                %419 = vst [vmem:[%s415 + $0x4] sm:$0xf] %v418
                %v420 = vld [vmem:[%s414 + $0x10] sm:$0xf]
                %421 = vst [vmem:[%s415 + $0x8] sm:$0xf] %v420
                %v422 = vld [vmem:[%s414 + $0x18] sm:$0xf]
                %423 = vst [vmem:[%s415 + $0xc] sm:$0xf] %v422
              $region110: #{rpvnet_forward.13} parent=104 // loop_footer
                %s413 = sadd.s32 1, %s409
              $region111: #{rpvnet_forward.13} parent=104 // loop_footer_branch
                %408 = sbr.rel target = $region107
              $region112: #{rpvnet_forward.13} parent=104 // loop_exit
                _
            $region105: #{rpvnet_forward.13} parent=96 // pred_fallthru
              _
          $region97: #{rpvnet_forward.13} parent=92 // pred_fallthru
            _
          %451 = vnop
        $region93: #{rpvnet_forward.13} parent=47 // pred_fallthru
          _
        // Predicated region
        $region131: #{rpvnet_forward.13} parent=47 // pred_check
          %p452 = pneg %p89
        $region132: #{rpvnet_forward.13} parent=47 // pred_check_branch
          %454 = sbr.rel (%p452) target = $region134
        $region133: #{rpvnet_forward.13} parent=47 // pred_region
          %s455 = sand.u32 %s79, 1
          %s456 = sand.u32 %s79, 1
          %s457 = smul.addr %s456, 16
          %s458 = scalar_lea.vmem [#allocation4], %s457
          %s459 = smul.addr %s17, 4
          %s460 = scalar_lea.vmem %s2, %s459
          // Predicated region
          $region135: #{rpvnet_forward.13} parent=133 // pred_check
            _
          $region136: #{rpvnet_forward.13} parent=133 // pred_check_branch
            %462 = sbr.rel (0) target = $region138
          $region137: #{rpvnet_forward.13} parent=133 // pred_region
            // Predicated region
            $region139: #{rpvnet_forward.13} parent=137 // pred_check
              _
            $region140: #{rpvnet_forward.13} parent=137 // pred_check_branch
              %464 = sbr.rel target = $region142
            $region141: #{rpvnet_forward.13} parent=137 // pred_region
              // Predicated region
              $region154: #{rpvnet_forward.13} parent=141 // pred_check
                _
              $region155: #{rpvnet_forward.13} parent=141 // pred_check_branch
                %485 = sbr.rel (0) target = $region157
              $region156: #{rpvnet_forward.13} parent=141 // pred_region
                loop: start=0, step=1, limit=1
                $region158: #{rpvnet_forward.13} parent=156 // loop_pre_header
                  _
                $region159: #{rpvnet_forward.13} parent=156 // loop_header
                  %s487 = sphi 0, %s491
                  %p488 = scmp.ge.s32.totalorder %s487, 1
                  %s492 = sphi %s460, %s460
                  %s493 = sphi %s458, %s458
                $region160: #{rpvnet_forward.13} parent=156 // loop_header_branch
                  %490 = sbr.rel (%p488) target = $region164
                $region161: #{rpvnet_forward.13} parent=156 // loop_body
                  _
                $region162: #{rpvnet_forward.13} parent=156 // loop_footer
                  %s491 = sadd.s32 1, %s487
                $region163: #{rpvnet_forward.13} parent=156 // loop_footer_branch
                  %486 = sbr.rel target = $region159
                $region164: #{rpvnet_forward.13} parent=156 // loop_exit
                  _
                loop: start=0, step=1, limit=1
                $region165: #{rpvnet_forward.13} parent=156 // loop_pre_header
                  _
                $region166: #{rpvnet_forward.13} parent=156 // loop_header
                  %s496 = sphi 0, %s500
                  %p497 = scmp.ge.s32.totalorder %s496, 1
                  %s501 = sphi %s460, %s460
                  %s502 = sphi %s458, %s458
                $region167: #{rpvnet_forward.13} parent=156 // loop_header_branch
                  %499 = sbr.rel (%p497) target = $region171
                $region168: #{rpvnet_forward.13} parent=156 // loop_body
                  %v503 = vld [vmem:[%s501] sm:$0xf]
                  %504 = vst [vmem:[%s502] sm:$0xf] %v503
                  %v505 = vld [vmem:[%s501 + $0x8] sm:$0xf]
                  %506 = vst [vmem:[%s502 + $0x4] sm:$0xf] %v505
                  %v507 = vld [vmem:[%s501 + $0x10] sm:$0xf]
                  %508 = vst [vmem:[%s502 + $0x8] sm:$0xf] %v507
                  %v509 = vld [vmem:[%s501 + $0x18] sm:$0xf]
                  %510 = vst [vmem:[%s502 + $0xc] sm:$0xf] %v509
                $region169: #{rpvnet_forward.13} parent=156 // loop_footer
                  %s500 = sadd.s32 1, %s496
                $region170: #{rpvnet_forward.13} parent=156 // loop_footer_branch
                  %495 = sbr.rel target = $region166
                $region171: #{rpvnet_forward.13} parent=156 // loop_exit
                  _
              $region157: #{rpvnet_forward.13} parent=141 // pred_fallthru
                _
            $region142: #{rpvnet_forward.13} parent=137 // pred_fallthru
              _
            // Predicated region
            $region143: #{rpvnet_forward.13} parent=137 // pred_check
              _
            $region144: #{rpvnet_forward.13} parent=137 // pred_check_branch
              %466 = sbr.rel (0) target = $region146
            $region145: #{rpvnet_forward.13} parent=137 // pred_region
              loop: start=0, step=1, limit=1
              $region147: #{rpvnet_forward.13} parent=145 // loop_pre_header
                _
              $region148: #{rpvnet_forward.13} parent=145 // loop_header
                %s469 = sphi 0, %s473
                %p470 = scmp.ge.s32.totalorder %s469, 1
                %s474 = sphi %s460, %s460
                %s475 = sphi %s458, %s458
              $region149: #{rpvnet_forward.13} parent=145 // loop_header_branch
                %472 = sbr.rel (%p470) target = $region153
              $region150: #{rpvnet_forward.13} parent=145 // loop_body
                %v476 = vld [vmem:[%s474] sm:$0xf]
                %477 = vst [vmem:[%s475] sm:$0xf] %v476
                %v478 = vld [vmem:[%s474 + $0x8] sm:$0xf]
                %479 = vst [vmem:[%s475 + $0x4] sm:$0xf] %v478
                %v480 = vld [vmem:[%s474 + $0x10] sm:$0xf]
                %481 = vst [vmem:[%s475 + $0x8] sm:$0xf] %v480
                %v482 = vld [vmem:[%s474 + $0x18] sm:$0xf]
                %483 = vst [vmem:[%s475 + $0xc] sm:$0xf] %v482
              $region151: #{rpvnet_forward.13} parent=145 // loop_footer
                %s473 = sadd.s32 1, %s469
              $region152: #{rpvnet_forward.13} parent=145 // loop_footer_branch
                %468 = sbr.rel target = $region148
              $region153: #{rpvnet_forward.13} parent=145 // loop_exit
                _
            $region146: #{rpvnet_forward.13} parent=137 // pred_fallthru
              _
          $region138: #{rpvnet_forward.13} parent=133 // pred_fallthru
            _
          %511 = vnop
        $region134: #{rpvnet_forward.13} parent=47 // pred_fallthru
          _
      $region48: #{rpvnet_forward.13} parent=5 // pred_fallthru
        _
      %p512 = scmp.le.s32.totalorder 1, %s17
      %p513 = scmp.lt.s32.totalorder %s17, 3
      %p514 = pnand %p512, %p513
      %p515 = pneg %p514
      // Predicated region
      $region172: #{rpvnet_forward.13} parent=5 // pred_check
        _
      $region173: #{rpvnet_forward.13} parent=5 // pred_check_branch
        %517 = sbr.rel (%p514) target = $region175
      $region174: #{rpvnet_forward.13} parent=5 // pred_region
        %s518 = ssub.s32 %s17, 1
        %s519 = sand.u32 %s30, 1
        %s520 = sand.u32 %s30, 1
        %s521 = smul.addr %s520, 16
        %s522 = scalar_lea.vmem [#allocation2], %s521
        // Predicated region
        $region176: #{rpvnet_forward.13} parent=174 // pred_check
          %p523 = pneg %p43
        $region177: #{rpvnet_forward.13} parent=174 // pred_check_branch
          %525 = sbr.rel (%p523) target = $region179
        $region178: #{rpvnet_forward.13} parent=174 // pred_region
          _
        $region179: #{rpvnet_forward.13} parent=174 // pred_fallthru
          _
        %s526 = sand.u32 %s56, 1
        %s527 = sand.u32 %s56, 1
        %s528 = smul.addr %s527, 16
        %s529 = scalar_lea.vmem [#allocation3], %s528
        // Predicated region
        $region180: #{rpvnet_forward.13} parent=174 // pred_check
          %p530 = pneg %p69
        $region181: #{rpvnet_forward.13} parent=174 // pred_check_branch
          %532 = sbr.rel (%p530) target = $region183
        $region182: #{rpvnet_forward.13} parent=174 // pred_region
          _
        $region183: #{rpvnet_forward.13} parent=174 // pred_fallthru
          _
        %s533 = sand.u32 %s82, 1
        %s534 = sand.u32 %s82, 1
        %s535 = smul.addr %s534, 16
        %s536 = scalar_lea.vmem [#allocation4], %s535
        // Predicated region
        $region184: #{rpvnet_forward.13} parent=174 // pred_check
          %p537 = pneg %p95
        $region185: #{rpvnet_forward.13} parent=174 // pred_check_branch
          %539 = sbr.rel (%p537) target = $region187
        $region186: #{rpvnet_forward.13} parent=174 // pred_region
          _
        $region187: #{rpvnet_forward.13} parent=174 // pred_fallthru
          _
        %s540 = sand.u32 %s30, 1
        %s541 = sand.u32 %s30, 1
        %s542 = smul.addr %s541, 16
        %s543 = scalar_lea.vmem [#allocation2], %s542
        %p544 = pneg %p43
        %p545 = pneg %p40
        %s546 = sand.u32 %s56, 1
        %s547 = sand.u32 %s56, 1
        %s548 = smul.addr %s547, 16
        %s549 = scalar_lea.vmem [#allocation3], %s548
        %p550 = pneg %p69
        %p551 = pneg %p66
        %s552 = sand.u32 %s82, 1
        %s553 = sand.u32 %s82, 1
        %s554 = smul.addr %s553, 16
        %s555 = scalar_lea.vmem [#allocation4], %s554
        %p556 = pneg %p95
        %p557 = pneg %p92
        %p558 = pneg %p116
        %p559 = pneg %p113
        %p560 = pneg %p137
        %p561 = pneg %p134
        %p562 = pneg %p158
        %p563 = pneg %p155
        %p564 = pneg %p179
        %p565 = pneg %p176
        %p566 = pneg %p200
        %p567 = pneg %p197
        %p568 = pneg %p221
        %p569 = pneg %p218
        %p570 = pneg %p242
        %p571 = pneg %p239
        %p572 = pneg %p263
        %p573 = pneg %p260
        %p574 = pneg %p289
        %p575 = pneg %p286
        %s576 = sand.u32 %s276, 1
        %s577 = sand.u32 %s276, 1
        %s578 = smul.addr %s577, 8
        %s579 = scalar_lea.vmem [#allocation5], %s578
        %v581 = vld [vmem:[%s522] sm:$0xf]
        %v582 = vld [vmem:[%s522 + $0x4] sm:$0xf]
        %v583 = vld [vmem:[%s522 + $0x8] sm:$0xf]
        %v584 = vld [vmem:[%s522 + $0xc] sm:$0xf]
        %v585 = vld [vmem:[%s529] sm:$0xf]
        %v586 = vld [vmem:[%s529 + $0x4] sm:$0xf]
        %v587 = vld [vmem:[%s529 + $0x8] sm:$0xf]
        %v588 = vld [vmem:[%s529 + $0xc] sm:$0xf]
        %v589 = vld [vmem:[%s536] sm:$0xf]
        %v590 = vld [vmem:[%s536 + $0x4] sm:$0xf]
        %v591 = vld [vmem:[%s536 + $0x8] sm:$0xf]
        %v592 = vld [vmem:[%s536 + $0xc] sm:$0xf]
        %v593 = vld [vmem:[%s6] sm:$0xff]
        %v594 = vld [vmem:[%s6 + $0x8] sm:$0xff]
        %v595 = vld [vmem:[%s6 + $0x10] sm:$0xff]
        %v596 = vld [vmem:[%s6 + $0x18] sm:$0xff]
        %v597 = vld [vmem:[%s6 + $0x20] sm:$0xff]
        %v598 = vld [vmem:[%s6 + $0x28] sm:$0xff]
        %v599 = vld [vmem:[%s3] sm:$0xf]
        %v600 = vld [vmem:[%s3 + $0x4] sm:$0xf]
        %602 = vset.pattern.permute.xlu0 0
        %603 = vperm.xlu0 %602, %v593
        %v604 = vpop.permute.xlu0 %603
        %607 = vset.pattern.permute.xlu0 0
        %608 = vperm.xlu0 %607, %v594
        %v609 = vpop.permute.xlu0 %608
        %v613 = vunpack.c.l.b16 %v599
        %v614 = vunpack.c.l.b16 %v600
        %v615 = vpack.c.b16 %v614, %v613
        %v620 = vunpack.c.l.b16 %v581
        %v621 = vunpack.c.l.b16 %v582
        %v622 = vunpack.c.l.b16 %v583
        %v623 = vunpack.c.l.b16 %v584
        %v624 = vpack.c.b16 %v621, %v620
        %v625 = vpack.c.b16 %v623, %v622
        %vm628 = vcmask 261120
        %v630 = vsel %vm628, %v615, 0
        %632 = vmatprep.subr.bf16.mxu0 0
        %633 = vmatpush1.bf16.msra.mxu0 %v624
        %634 = vmatprep.subr.bf16.mxu0 0
        %635 = vmatpush1.bf16.msra.mxu0 %v625
        %636 = vmatprep.subr.bf16.mxu0 0
        %637 = vmatpush1.bf16.msra.mxu0 0
        %638 = vmatprep.subr.bf16.mxu0 0
        %639 = vmatpush1.bf16.msra.mxu0 0
        %640 = vmatprep.subr.bf16.mxu0 0
        %641 = vmatpush1.bf16.msra.mxu0 0
        %642 = vmatprep.subr.bf16.mxu0 0
        %643 = vmatpush1.bf16.msra.mxu0 0
        %644 = vmatprep.subr.bf16.mxu0 0
        %645 = vmatpush1.bf16.msra.mxu0 0
        %646 = vmatprep.subr.bf16.mxu0 0
        %647 = vmatpush1.bf16.msra.mxu0 0
        %648 = vmatprep.subr.bf16.mxu0 0
        %649 = vmatpush1.bf16.msra.mxu0 0
        %650 = vmatprep.subr.bf16.mxu0 0
        %651 = vmatpush1.bf16.msra.mxu0 0
        %652 = vmatprep.subr.bf16.mxu0 0
        %653 = vmatpush1.bf16.msra.mxu0 0
        %654 = vmatprep.subr.bf16.mxu0 0
        %655 = vmatpush1.bf16.msra.mxu0 0
        %656 = vmatprep.subr.bf16.mxu0 0
        %657 = vmatpush1.bf16.msra.mxu0 0
        %658 = vmatprep.subr.bf16.mxu0 0
        %659 = vmatpush1.bf16.msra.mxu0 0
        %660 = vmatprep.subr.bf16.mxu0 0
        %661 = vmatpush1.bf16.msra.mxu0 0
        %662 = vmatprep.subr.bf16.mxu0 0
        %663 = vmatpush1.bf16.msra.mxu0 0
        %664 = vmatprep.mubr.bf16.mxu0 0
        %665 = vmatmul.mubr.bf16.gmra.mrb[0].mxu0 %v630
        %v666 = vpop.f32.mrb[0].mxu0
        %v667 = vadd.f32 %v604, %v666
        %v668 = vpop.f32.mrb[0].mxu0
        %v669 = vpop.f32.mrb[0].mxu0
        %v670 = vadd.f32 %v609, %v669
        %v671 = vpop.f32.mrb[0].mxu0
        %672 = vdwg.mxu0
        %v673 = vmax.f32 %v667, 0.0
        %v674 = vmax.f32 %v670, 0.0
        %v675 = vld [vmem:[%s4] sm:$0xf]
        %v676 = vld [vmem:[%s4 + $0x4] sm:$0xf]
        %678 = vset.pattern.permute.xlu0 0
        %679 = vperm.xlu0 %678, %v595
        %v680 = vpop.permute.xlu0 %679
        %683 = vset.pattern.permute.xlu0 0
        %684 = vperm.xlu0 %683, %v596
        %v685 = vpop.permute.xlu0 %684
        %v689 = vunpack.c.l.b16 %v675
        %v690 = vunpack.c.l.b16 %v676
        %v691 = vpack.c.b16 %v690, %v689
        %v696 = vunpack.c.l.b16 %v585
        %v697 = vunpack.c.l.b16 %v586
        %v698 = vunpack.c.l.b16 %v587
        %v699 = vunpack.c.l.b16 %v588
        %v700 = vpack.c.b16 %v697, %v696
        %v701 = vpack.c.b16 %v699, %v698
        %v705 = vsel %vm628, %v691, 0
        %707 = vmatprep.subr.bf16.mxu0 0
        %708 = vmatpush1.bf16.msra.mxu0 %v700
        %709 = vmatprep.subr.bf16.mxu0 0
        %710 = vmatpush1.bf16.msra.mxu0 %v701
        %711 = vmatprep.subr.bf16.mxu0 0
        %712 = vmatpush1.bf16.msra.mxu0 0
        %713 = vmatprep.subr.bf16.mxu0 0
        %714 = vmatpush1.bf16.msra.mxu0 0
        %715 = vmatprep.subr.bf16.mxu0 0
        %716 = vmatpush1.bf16.msra.mxu0 0
        %717 = vmatprep.subr.bf16.mxu0 0
        %718 = vmatpush1.bf16.msra.mxu0 0
        %719 = vmatprep.subr.bf16.mxu0 0
        %720 = vmatpush1.bf16.msra.mxu0 0
        %721 = vmatprep.subr.bf16.mxu0 0
        %722 = vmatpush1.bf16.msra.mxu0 0
        %723 = vmatprep.subr.bf16.mxu0 0
        %724 = vmatpush1.bf16.msra.mxu0 0
        %725 = vmatprep.subr.bf16.mxu0 0
        %726 = vmatpush1.bf16.msra.mxu0 0
        %727 = vmatprep.subr.bf16.mxu0 0
        %728 = vmatpush1.bf16.msra.mxu0 0
        %729 = vmatprep.subr.bf16.mxu0 0
        %730 = vmatpush1.bf16.msra.mxu0 0
        %731 = vmatprep.subr.bf16.mxu0 0
        %732 = vmatpush1.bf16.msra.mxu0 0
        %733 = vmatprep.subr.bf16.mxu0 0
        %734 = vmatpush1.bf16.msra.mxu0 0
        %735 = vmatprep.subr.bf16.mxu0 0
        %736 = vmatpush1.bf16.msra.mxu0 0
        %737 = vmatprep.subr.bf16.mxu0 0
        %738 = vmatpush1.bf16.msra.mxu0 0
        %739 = vmatprep.mubr.bf16.mxu0 0
        %740 = vmatmul.mubr.bf16.gmra.mrb[0].mxu0 %v705
        %v741 = vpop.f32.mrb[0].mxu0
        %v742 = vadd.f32 %v680, %v741
        %v743 = vpop.f32.mrb[0].mxu0
        %v744 = vpop.f32.mrb[0].mxu0
        %v745 = vadd.f32 %v685, %v744
        %v746 = vpop.f32.mrb[0].mxu0
        %747 = vdwg.mxu0
        %v748 = vmax.f32 %v742, 0.0
        %v749 = vmax.f32 %v745, 0.0
        %v750 = vld [vmem:[%s5] sm:$0xf]
        %v751 = vld [vmem:[%s5 + $0x4] sm:$0xf]
        %753 = vset.pattern.permute.xlu0 0
        %754 = vperm.xlu0 %753, %v597
        %v755 = vpop.permute.xlu0 %754
        %758 = vset.pattern.permute.xlu0 0
        %759 = vperm.xlu0 %758, %v598
        %v760 = vpop.permute.xlu0 %759
        %v764 = vunpack.c.l.b16 %v750
        %v765 = vunpack.c.l.b16 %v751
        %v766 = vpack.c.b16 %v765, %v764
        %v771 = vunpack.c.l.b16 %v589
        %v772 = vunpack.c.l.b16 %v590
        %v773 = vunpack.c.l.b16 %v591
        %v774 = vunpack.c.l.b16 %v592
        %v775 = vpack.c.b16 %v772, %v771
        %v776 = vpack.c.b16 %v774, %v773
        %v780 = vsel %vm628, %v766, 0
        %782 = vmatprep.subr.bf16.mxu0 0
        %783 = vmatpush1.bf16.msra.mxu0 %v775
        %784 = vmatprep.subr.bf16.mxu0 0
        %785 = vmatpush1.bf16.msra.mxu0 %v776
        %786 = vmatprep.subr.bf16.mxu0 0
        %787 = vmatpush1.bf16.msra.mxu0 0
        %788 = vmatprep.subr.bf16.mxu0 0
        %789 = vmatpush1.bf16.msra.mxu0 0
        %790 = vmatprep.subr.bf16.mxu0 0
        %791 = vmatpush1.bf16.msra.mxu0 0
        %792 = vmatprep.subr.bf16.mxu0 0
        %793 = vmatpush1.bf16.msra.mxu0 0
        %794 = vmatprep.subr.bf16.mxu0 0
        %795 = vmatpush1.bf16.msra.mxu0 0
        %796 = vmatprep.subr.bf16.mxu0 0
        %797 = vmatpush1.bf16.msra.mxu0 0
        %798 = vmatprep.subr.bf16.mxu0 0
        %799 = vmatpush1.bf16.msra.mxu0 0
        %800 = vmatprep.subr.bf16.mxu0 0
        %801 = vmatpush1.bf16.msra.mxu0 0
        %802 = vmatprep.subr.bf16.mxu0 0
        %803 = vmatpush1.bf16.msra.mxu0 0
        %804 = vmatprep.subr.bf16.mxu0 0
        %805 = vmatpush1.bf16.msra.mxu0 0
        %806 = vmatprep.subr.bf16.mxu0 0
        %807 = vmatpush1.bf16.msra.mxu0 0
        %808 = vmatprep.subr.bf16.mxu0 0
        %809 = vmatpush1.bf16.msra.mxu0 0
        %810 = vmatprep.subr.bf16.mxu0 0
        %811 = vmatpush1.bf16.msra.mxu0 0
        %812 = vmatprep.subr.bf16.mxu0 0
        %813 = vmatpush1.bf16.msra.mxu0 0
        %814 = vmatprep.mubr.bf16.mxu0 0
        %815 = vmatmul.mubr.bf16.gmra.mrb[0].mxu0 %v780
        %v816 = vpop.f32.mrb[0].mxu0
        %v817 = vadd.f32 %v755, %v816
        %v818 = vpop.f32.mrb[0].mxu0
        %v819 = vpop.f32.mrb[0].mxu0
        %v820 = vadd.f32 %v760, %v819
        %v821 = vpop.f32.mrb[0].mxu0
        %822 = vdwg.mxu0
        %v823 = vmax.f32 %v817, 0.0
        %v824 = vmax.f32 %v820, 0.0
        %v825 = vld [vmem:[%s7] sm:$0x7]
        %v826 = vld [vmem:[%s8] sm:$0x7]
        %vm827 = vcmask 130048
        %v829 = vsel %vm827, %v826, 0
        %831 = vmatprep.subr.mxu0 0.0
        %832 = vmatpush1.msra.mxu0 %v748
        %833 = vmatprep.subr.mxu0 0.0
        %834 = vmatpush1.msra.mxu0 %v749
        %835 = vmatprep.subr.mxu0 0.0
        %836 = vmatpush1.msra.mxu0 0.0
        %837 = vmatprep.subr.mxu0 0.0
        %838 = vmatpush1.msra.mxu0 0.0
        %839 = vmatprep.subr.mxu0 0.0
        %840 = vmatpush1.msra.mxu0 0.0
        %841 = vmatprep.subr.mxu0 0.0
        %842 = vmatpush1.msra.mxu0 0.0
        %843 = vmatprep.subr.mxu0 0.0
        %844 = vmatpush1.msra.mxu0 0.0
        %845 = vmatprep.subr.mxu0 0.0
        %846 = vmatpush1.msra.mxu0 0.0
        %847 = vmatprep.subr.mxu0 0.0
        %848 = vmatpush1.msra.mxu0 0.0
        %849 = vmatprep.subr.mxu0 0.0
        %850 = vmatpush1.msra.mxu0 0.0
        %851 = vmatprep.subr.mxu0 0.0
        %852 = vmatpush1.msra.mxu0 0.0
        %853 = vmatprep.subr.mxu0 0.0
        %854 = vmatpush1.msra.mxu0 0.0
        %855 = vmatprep.subr.mxu0 0.0
        %856 = vmatpush1.msra.mxu0 0.0
        %857 = vmatprep.subr.mxu0 0.0
        %858 = vmatpush1.msra.mxu0 0.0
        %859 = vmatprep.subr.mxu0 0.0
        %860 = vmatpush1.msra.mxu0 0.0
        %861 = vmatprep.subr.mxu0 0.0
        %862 = vmatpush1.msra.mxu0 0.0
        %863 = vmatprep.subr.mxu0 0.0
        %864 = vmatpush1.msra.mxu0 0.0
        %865 = vmatprep.subr.mxu0 0.0
        %866 = vmatpush1.msra.mxu0 0.0
        %867 = vmatprep.subr.mxu0 0.0
        %868 = vmatpush1.msra.mxu0 0.0
        %869 = vmatprep.subr.mxu0 0.0
        %870 = vmatpush1.msra.mxu0 0.0
        %871 = vmatprep.subr.mxu0 0.0
        %872 = vmatpush1.msra.mxu0 0.0
        %873 = vmatprep.subr.mxu0 0.0
        %874 = vmatpush1.msra.mxu0 0.0
        %875 = vmatprep.subr.mxu0 0.0
        %876 = vmatpush1.msra.mxu0 0.0
        %877 = vmatprep.subr.mxu0 0.0
        %878 = vmatpush1.msra.mxu0 0.0
        %879 = vmatprep.subr.mxu0 0.0
        %880 = vmatpush1.msra.mxu0 0.0
        %881 = vmatprep.subr.mxu0 0.0
        %882 = vmatpush1.msra.mxu0 0.0
        %883 = vmatprep.subr.mxu0 0.0
        %884 = vmatpush1.msra.mxu0 0.0
        %885 = vmatprep.subr.mxu0 0.0
        %886 = vmatpush1.msra.mxu0 0.0
        %887 = vmatprep.subr.mxu0 0.0
        %888 = vmatpush1.msra.mxu0 0.0
        %889 = vmatprep.subr.mxu0 0.0
        %890 = vmatpush1.msra.mxu0 0.0
        %891 = vmatprep.subr.mxu0 0.0
        %892 = vmatpush1.msra.mxu0 0.0
        %893 = vmatprep.subr.mxu0 0.0
        %894 = vmatpush1.msra.mxu0 0.0
        %895 = vmatprep.mubr.f32.mxu0 0.0
        %896 = vmatmul.mubr.f32.gmra.mrb[0].mxu0 %v829
        %v897 = vpop.f32.mrb[0].mxu0
        %v898 = vadd.f32 0.0, %v897
        %v899 = vpop.f32.mrb[0].mxu0
        %900 = vdwg.mxu0
        %v902 = vsel %vm827, %v825, 0
        %904 = vmatprep.subr.mxu0 0.0
        %905 = vmatpush1.msra.mxu0 %v673
        %906 = vmatprep.subr.mxu0 0.0
        %907 = vmatpush1.msra.mxu0 %v674
        %908 = vmatprep.subr.mxu0 0.0
        %909 = vmatpush1.msra.mxu0 0.0
        %910 = vmatprep.subr.mxu0 0.0
        %911 = vmatpush1.msra.mxu0 0.0
        %912 = vmatprep.subr.mxu0 0.0
        %913 = vmatpush1.msra.mxu0 0.0
        %914 = vmatprep.subr.mxu0 0.0
        %915 = vmatpush1.msra.mxu0 0.0
        %916 = vmatprep.subr.mxu0 0.0
        %917 = vmatpush1.msra.mxu0 0.0
        %918 = vmatprep.subr.mxu0 0.0
        %919 = vmatpush1.msra.mxu0 0.0
        %920 = vmatprep.subr.mxu0 0.0
        %921 = vmatpush1.msra.mxu0 0.0
        %922 = vmatprep.subr.mxu0 0.0
        %923 = vmatpush1.msra.mxu0 0.0
        %924 = vmatprep.subr.mxu0 0.0
        %925 = vmatpush1.msra.mxu0 0.0
        %926 = vmatprep.subr.mxu0 0.0
        %927 = vmatpush1.msra.mxu0 0.0
        %928 = vmatprep.subr.mxu0 0.0
        %929 = vmatpush1.msra.mxu0 0.0
        %930 = vmatprep.subr.mxu0 0.0
        %931 = vmatpush1.msra.mxu0 0.0
        %932 = vmatprep.subr.mxu0 0.0
        %933 = vmatpush1.msra.mxu0 0.0
        %934 = vmatprep.subr.mxu0 0.0
        %935 = vmatpush1.msra.mxu0 0.0
        %936 = vmatprep.subr.mxu0 0.0
        %937 = vmatpush1.msra.mxu0 0.0
        %938 = vmatprep.subr.mxu0 0.0
        %939 = vmatpush1.msra.mxu0 0.0
        %940 = vmatprep.subr.mxu0 0.0
        %941 = vmatpush1.msra.mxu0 0.0
        %942 = vmatprep.subr.mxu0 0.0
        %943 = vmatpush1.msra.mxu0 0.0
        %944 = vmatprep.subr.mxu0 0.0
        %945 = vmatpush1.msra.mxu0 0.0
        %946 = vmatprep.subr.mxu0 0.0
        %947 = vmatpush1.msra.mxu0 0.0
        %948 = vmatprep.subr.mxu0 0.0
        %949 = vmatpush1.msra.mxu0 0.0
        %950 = vmatprep.subr.mxu0 0.0
        %951 = vmatpush1.msra.mxu0 0.0
        %952 = vmatprep.subr.mxu0 0.0
        %953 = vmatpush1.msra.mxu0 0.0
        %954 = vmatprep.subr.mxu0 0.0
        %955 = vmatpush1.msra.mxu0 0.0
        %956 = vmatprep.subr.mxu0 0.0
        %957 = vmatpush1.msra.mxu0 0.0
        %958 = vmatprep.subr.mxu0 0.0
        %959 = vmatpush1.msra.mxu0 0.0
        %960 = vmatprep.subr.mxu0 0.0
        %961 = vmatpush1.msra.mxu0 0.0
        %962 = vmatprep.subr.mxu0 0.0
        %963 = vmatpush1.msra.mxu0 0.0
        %964 = vmatprep.subr.mxu0 0.0
        %965 = vmatpush1.msra.mxu0 0.0
        %966 = vmatprep.subr.mxu0 0.0
        %967 = vmatpush1.msra.mxu0 0.0
        %968 = vmatprep.mubr.f32.mxu0 0.0
        %969 = vmatmul.mubr.f32.gmra.mrb[0].mxu0 %v902
        %v970 = vpop.f32.mrb[0].mxu0
        %v971 = vadd.f32 %v898, %v970
        %v972 = vpop.f32.mrb[0].mxu0
        %973 = vdwg.mxu0
        %v974 = vld [vmem:[%s9] sm:$0x7]
        %v976 = vsel %vm827, %v974, 0
        %978 = vmatprep.subr.mxu0 0.0
        %979 = vmatpush1.msra.mxu0 %v823
        %980 = vmatprep.subr.mxu0 0.0
        %981 = vmatpush1.msra.mxu0 %v824
        %982 = vmatprep.subr.mxu0 0.0
        %983 = vmatpush1.msra.mxu0 0.0
        %984 = vmatprep.subr.mxu0 0.0
        %985 = vmatpush1.msra.mxu0 0.0
        %986 = vmatprep.subr.mxu0 0.0
        %987 = vmatpush1.msra.mxu0 0.0
        %988 = vmatprep.subr.mxu0 0.0
        %989 = vmatpush1.msra.mxu0 0.0
        %990 = vmatprep.subr.mxu0 0.0
        %991 = vmatpush1.msra.mxu0 0.0
        %992 = vmatprep.subr.mxu0 0.0
        %993 = vmatpush1.msra.mxu0 0.0
        %994 = vmatprep.subr.mxu0 0.0
        %995 = vmatpush1.msra.mxu0 0.0
        %996 = vmatprep.subr.mxu0 0.0
        %997 = vmatpush1.msra.mxu0 0.0
        %998 = vmatprep.subr.mxu0 0.0
        %999 = vmatpush1.msra.mxu0 0.0
        %1000 = vmatprep.subr.mxu0 0.0
        %1001 = vmatpush1.msra.mxu0 0.0
        %1002 = vmatprep.subr.mxu0 0.0
        %1003 = vmatpush1.msra.mxu0 0.0
        %1004 = vmatprep.subr.mxu0 0.0
        %1005 = vmatpush1.msra.mxu0 0.0
        %1006 = vmatprep.subr.mxu0 0.0
        %1007 = vmatpush1.msra.mxu0 0.0
        %1008 = vmatprep.subr.mxu0 0.0
        %1009 = vmatpush1.msra.mxu0 0.0
        %1010 = vmatprep.subr.mxu0 0.0
        %1011 = vmatpush1.msra.mxu0 0.0
        %1012 = vmatprep.subr.mxu0 0.0
        %1013 = vmatpush1.msra.mxu0 0.0
        %1014 = vmatprep.subr.mxu0 0.0
        %1015 = vmatpush1.msra.mxu0 0.0
        %1016 = vmatprep.subr.mxu0 0.0
        %1017 = vmatpush1.msra.mxu0 0.0
        %1018 = vmatprep.subr.mxu0 0.0
        %1019 = vmatpush1.msra.mxu0 0.0
        %1020 = vmatprep.subr.mxu0 0.0
        %1021 = vmatpush1.msra.mxu0 0.0
        %1022 = vmatprep.subr.mxu0 0.0
        %1023 = vmatpush1.msra.mxu0 0.0
        %1024 = vmatprep.subr.mxu0 0.0
        %1025 = vmatpush1.msra.mxu0 0.0
        %1026 = vmatprep.subr.mxu0 0.0
        %1027 = vmatpush1.msra.mxu0 0.0
        %1028 = vmatprep.subr.mxu0 0.0
        %1029 = vmatpush1.msra.mxu0 0.0
        %1030 = vmatprep.subr.mxu0 0.0
        %1031 = vmatpush1.msra.mxu0 0.0
        %1032 = vmatprep.subr.mxu0 0.0
        %1033 = vmatpush1.msra.mxu0 0.0
        %1034 = vmatprep.subr.mxu0 0.0
        %1035 = vmatpush1.msra.mxu0 0.0
        %1036 = vmatprep.subr.mxu0 0.0
        %1037 = vmatpush1.msra.mxu0 0.0
        %1038 = vmatprep.subr.mxu0 0.0
        %1039 = vmatpush1.msra.mxu0 0.0
        %1040 = vmatprep.subr.mxu0 0.0
        %1041 = vmatpush1.msra.mxu0 0.0
        %1042 = vmatprep.mubr.f32.mxu0 0.0
        %1043 = vmatmul.mubr.f32.gmra.mrb[0].mxu0 %v976
        %v1044 = vpop.f32.mrb[0].mxu0
        %v1045 = vadd.f32 0.0, %v1044
        %v1046 = vpop.f32.mrb[0].mxu0
        %1047 = vdwg.mxu0
        %v1048 = vadd.f32 %v971, %v1045
        %v1049 = vld [vmem:[%s10] sm:$0x7]
        %1051 = vset.pattern.permute.xlu0 0
        %1052 = vperm.xlu0 %1051, %v1049
        %v1053 = vpop.permute.xlu0 %1052
        %v1055 = vadd.f32 %v1048, %v1053
        %vm1056 = vcmask 1042432
        %v1057 = vsel %vm1056, %v1055, -inf
        %v1058 = vrot.slane %v1057, 4
        %v1059 = vmax.f32 %v1057, %v1058
        %v1060 = vrot.slane %v1059, 2
        %v1061 = vmax.f32 %v1059, %v1060
        %v1062 = vrot.slane %v1061, 1
        %v1063 = vmax.f32 %v1061, %v1062
        %v1064 = vsub.f32 %v1055, %v1063
        %v1065 = vmul.f32 %v1064, 1.442695
        %v1066 = vpow.pop %v1065
        %v1067 = vsel %vm1056, %v1066, 0.0
        %v1068 = vrot.slane %v1067, 4
        %v1069 = vadd.f32 %v1067, %v1068
        %v1070 = vrot.slane %v1069, 2
        %v1071 = vadd.f32 %v1069, %v1070
        %v1072 = vrot.slane %v1071, 1
        %v1073 = vadd.f32 %v1071, %v1072
        %v1074 = vrcp.pop %v1073
        %v1075 = vmul.f32 %v1066, %v1074
        %v1076 = vlaneseq
        %v1077 = vshrl.u32 %v1076, 7
        %v1078 = vsub.s32 0, %v1077
        %v1079 = vrot.slane %v1075, %v1078
        %v1080 = vmul.f32 %v673, %v1079
        %v1081 = vmul.f32 %v674, %v1079
        %v1082 = vlaneseq
        %v1083 = vshrl.u32 %v1082, 7
        %v1084 = vsub.s32 1, %v1083
        %v1085 = vrot.slane %v1075, %v1084
        %v1086 = vmul.f32 %v748, %v1085
        %v1087 = vmul.f32 %v749, %v1085
        %v1088 = vadd.f32 %v1080, %v1086
        %v1089 = vadd.f32 %v1081, %v1087
        %v1090 = vlaneseq
        %v1091 = vshrl.u32 %v1090, 7
        %v1092 = vsub.s32 2, %v1091
        %v1093 = vrot.slane %v1075, %v1092
        %v1094 = vmul.f32 %v823, %v1093
        %v1095 = vmul.f32 %v824, %v1093
        %v1096 = vadd.f32 %v1088, %v1094
        %v1097 = vadd.f32 %v1089, %v1095
        %v1098 = vpack.c.bf16 %v1097, %v1096
        %v1100 = vunpack.c.l.b16 %v1098
        %v1101 = vunpack.c.h.b16 %v1098
        %v1102 = vpack.c.b16 %v1100, %v1100
        %v1103 = vpack.c.b16 %v1101, %v1101
        %1106 = vst [vmem:[%s579] sm:$0xf] %v1102
        %1107 = vst [vmem:[%s579 + $0x4] sm:$0xf] %v1103
        %s1108 = sand.u32 %s276, 1
        %s1109 = sand.u32 %s276, 1
        %s1110 = smul.addr %s1109, 8
        %s1111 = scalar_lea.vmem [#allocation5], %s1110
        // Predicated region
        $region188: #{rpvnet_forward.13} parent=174 // pred_check
          %p1112 = pneg %p286
        $region189: #{rpvnet_forward.13} parent=174 // pred_check_branch
          %1114 = sbr.rel (%p1112) target = $region191
        $region190: #{rpvnet_forward.13} parent=174 // pred_region
          %s1115 = smul.addr %s22, 4
          %s1116 = scalar_lea.vmem %s11, %s1115
          // Predicated region
          $region192: #{rpvnet_forward.13} parent=190 // pred_check
            _
          $region193: #{rpvnet_forward.13} parent=190 // pred_check_branch
            %1118 = sbr.rel (0) target = $region195
          $region194: #{rpvnet_forward.13} parent=190 // pred_region
            // Predicated region
            $region196: #{rpvnet_forward.13} parent=194 // pred_check
              _
            $region197: #{rpvnet_forward.13} parent=194 // pred_check_branch
              %1120 = sbr.rel target = $region199
            $region198: #{rpvnet_forward.13} parent=194 // pred_region
              // Predicated region
              $region211: #{rpvnet_forward.13} parent=198 // pred_check
                _
              $region212: #{rpvnet_forward.13} parent=198 // pred_check_branch
                %1137 = sbr.rel (0) target = $region214
              $region213: #{rpvnet_forward.13} parent=198 // pred_region
                loop: start=0, step=1, limit=1
                $region215: #{rpvnet_forward.13} parent=213 // loop_pre_header
                  _
                $region216: #{rpvnet_forward.13} parent=213 // loop_header
                  %s1139 = sphi 0, %s1143
                  %p1140 = scmp.ge.s32.totalorder %s1139, 1
                  %s1144 = sphi %s1111, %s1111
                  %s1145 = sphi %s1116, %s1116
                $region217: #{rpvnet_forward.13} parent=213 // loop_header_branch
                  %1142 = sbr.rel (%p1140) target = $region221
                $region218: #{rpvnet_forward.13} parent=213 // loop_body
                  _
                $region219: #{rpvnet_forward.13} parent=213 // loop_footer
                  %s1143 = sadd.s32 1, %s1139
                $region220: #{rpvnet_forward.13} parent=213 // loop_footer_branch
                  %1138 = sbr.rel target = $region216
                $region221: #{rpvnet_forward.13} parent=213 // loop_exit
                  _
                loop: start=0, step=1, limit=1
                $region222: #{rpvnet_forward.13} parent=213 // loop_pre_header
                  _
                $region223: #{rpvnet_forward.13} parent=213 // loop_header
                  %s1148 = sphi 0, %s1152
                  %p1149 = scmp.ge.s32.totalorder %s1148, 1
                  %s1153 = sphi %s1111, %s1111
                  %s1154 = sphi %s1116, %s1116
                $region224: #{rpvnet_forward.13} parent=213 // loop_header_branch
                  %1151 = sbr.rel (%p1149) target = $region228
                $region225: #{rpvnet_forward.13} parent=213 // loop_body
                  %v1155 = vld [vmem:[%s1153] sm:$0xf]
                  %1156 = vst [vmem:[%s1154] sm:$0xf] %v1155
                  %v1157 = vld [vmem:[%s1153 + $0x4] sm:$0xf]
                  %1158 = vst [vmem:[%s1154 + $0x8] sm:$0xf] %v1157
                $region226: #{rpvnet_forward.13} parent=213 // loop_footer
                  %s1152 = sadd.s32 1, %s1148
                $region227: #{rpvnet_forward.13} parent=213 // loop_footer_branch
                  %1147 = sbr.rel target = $region223
                $region228: #{rpvnet_forward.13} parent=213 // loop_exit
                  _
              $region214: #{rpvnet_forward.13} parent=198 // pred_fallthru
                _
            $region199: #{rpvnet_forward.13} parent=194 // pred_fallthru
              _
            // Predicated region
            $region200: #{rpvnet_forward.13} parent=194 // pred_check
              _
            $region201: #{rpvnet_forward.13} parent=194 // pred_check_branch
              %1122 = sbr.rel (0) target = $region203
            $region202: #{rpvnet_forward.13} parent=194 // pred_region
              loop: start=0, step=1, limit=1
              $region204: #{rpvnet_forward.13} parent=202 // loop_pre_header
                _
              $region205: #{rpvnet_forward.13} parent=202 // loop_header
                %s1125 = sphi 0, %s1129
                %p1126 = scmp.ge.s32.totalorder %s1125, 1
                %s1130 = sphi %s1111, %s1111
                %s1131 = sphi %s1116, %s1116
              $region206: #{rpvnet_forward.13} parent=202 // loop_header_branch
                %1128 = sbr.rel (%p1126) target = $region210
              $region207: #{rpvnet_forward.13} parent=202 // loop_body
                %v1132 = vld [vmem:[%s1130] sm:$0xf]
                %1133 = vst [vmem:[%s1131] sm:$0xf] %v1132
                %v1134 = vld [vmem:[%s1130 + $0x4] sm:$0xf]
                %1135 = vst [vmem:[%s1131 + $0x8] sm:$0xf] %v1134
              $region208: #{rpvnet_forward.13} parent=202 // loop_footer
                %s1129 = sadd.s32 1, %s1125
              $region209: #{rpvnet_forward.13} parent=202 // loop_footer_branch
                %1124 = sbr.rel target = $region205
              $region210: #{rpvnet_forward.13} parent=202 // loop_exit
                _
            $region203: #{rpvnet_forward.13} parent=194 // pred_fallthru
              _
          $region195: #{rpvnet_forward.13} parent=190 // pred_fallthru
            _
          %1159 = vnop
        $region191: #{rpvnet_forward.13} parent=174 // pred_fallthru
          _
      $region175: #{rpvnet_forward.13} parent=5 // pred_fallthru
        _
      %p1160 = scmp.le.s32.totalorder 2, %s17
      // Predicated region
      $region229: #{rpvnet_forward.13} parent=5 // pred_check
        %p1161 = pneg %p1160
      $region230: #{rpvnet_forward.13} parent=5 // pred_check_branch
        %1163 = sbr.rel (%p1161) target = $region232
      $region231: #{rpvnet_forward.13} parent=5 // pred_region
        %s1164 = ssub.s32 %s17, 2
        // Predicated region
        $region233: #{rpvnet_forward.13} parent=231 // pred_check
          %p1165 = pneg %p292
        $region234: #{rpvnet_forward.13} parent=231 // pred_check_branch
          %1167 = sbr.rel (%p1165) target = $region236
        $region235: #{rpvnet_forward.13} parent=231 // pred_region
          %s1168 = sand.u32 %s277, 1
          %s1169 = sand.u32 %s277, 1
          %s1170 = smul.addr %s1169, 8
          %s1171 = scalar_lea.vmem [#allocation5], %s1170
        $region236: #{rpvnet_forward.13} parent=231 // pred_fallthru
          _
      $region232: #{rpvnet_forward.13} parent=5 // pred_fallthru
        _
    $region6: #{rpvnet_forward.13} parent=1 // loop_footer
      %s21 = sadd.s32 1, %s17
    $region7: #{rpvnet_forward.13} parent=1 // loop_footer_branch
      %16 = sbr.rel target = $region3
    $region8: #{rpvnet_forward.13} parent=1 // loop_exit
      _

// kernel: rpvnet_forward.15
$region0: #{rpvnet_forward.15}
  #allocation0 [shape = 'u32[]', space=smem, size = 0x4, offset = 0x4, fixed_abs, tag = 'smem constant byte address 0x4 - core index']
  #allocation1 [shape = 'u32[144,128]{1,0:T(1,128)}', space=vmem, size = 0x12000, scoped, tag = 'internal scratch']
  %s0 = inlined_call_operand.vmem [shape: bf16[16,256], index: 0, kind: input, shape index: {}]
  %s1 = inlined_call_operand.vmem [shape: bf16[16,256], index: 1, kind: input, shape index: {}]
  %s2 = inlined_call_operand.vmem [shape: bf16[16,256], index: 2, kind: input, shape index: {}]
  %s3 = inlined_call_operand.vmem [shape: bf16[8,16], index: 3, kind: input, shape index: {}]
  %s4 = inlined_call_operand.vmem [shape: bf16[8,16], index: 4, kind: input, shape index: {}]
  %s5 = inlined_call_operand.vmem [shape: bf16[8,16], index: 5, kind: input, shape index: {}]
  %s6 = inlined_call_operand.vmem [shape: f32[24,1], index: 6, kind: input, shape index: {}]
  %s7 = inlined_call_operand.vmem [shape: f32[3,8], index: 7, kind: input, shape index: {}]
  %s8 = inlined_call_operand.vmem [shape: f32[3,8], index: 8, kind: input, shape index: {}]
  %s9 = inlined_call_operand.vmem [shape: f32[3,8], index: 9, kind: input, shape index: {}]
  %s10 = inlined_call_operand.vmem [shape: f32[3,1], index: 10, kind: input, shape index: {}]
  %s11 = inlined_call_operand.vmem [shape: f32[8,8], index: 11, kind: input, shape index: {}]
  %s12 = inlined_call_operand.vmem [shape: f32[8,1], index: 12, kind: input, shape index: {}]
  %s13 = inlined_call_operand.vmem [shape: f32[8,256], index: 13, kind: output, shape index: {}]
  %s14 = sld [smem:[#allocation0]]
  $region208: #{rpvnet_forward.15} parent=0
    _
  %s16 = ssub.s32 1, %s14
  %s17 = scalar_select 0, %s16, %s14
  $region1: #{rpvnet_forward.15} parent=0
    #allocation2 [shape = 'u8[8192]{0}', space=vmem, size = 0x2000, scoped, tag = 'input window, operand 0']
    #allocation3 [shape = 'u8[8192]{0}', space=vmem, size = 0x2000, scoped, tag = 'input window, operand 1']
    #allocation4 [shape = 'u8[8192]{0}', space=vmem, size = 0x2000, scoped, tag = 'input window, operand 2']
    loop: start=0, step=1, limit=4
    $region2: #{rpvnet_forward.15} parent=1 // loop_pre_header
      _
    $region3: #{rpvnet_forward.15} parent=1 // loop_header
      %s19 = sphi 0, %s23
      %p20 = scmp.ge.s32.totalorder %s19, 4
      %s29 = sphi 0, %s31
      %s32 = sphi 0, %s29
      %s33 = sphi 0, %s32
      %s49 = sphi 0, %s33
      %s55 = sphi 0, %s57
      %s58 = sphi 0, %s55
      %s59 = sphi 0, %s58
      %s75 = sphi 0, %s59
      %s81 = sphi 0, %s83
      %s84 = sphi 0, %s81
      %s85 = sphi 0, %s84
      %s101 = sphi 0, %s85
      %s105 = sphi 0, %s105
      %s107 = sphi 0, %s105
      %s108 = sphi 0, %s107
      %s122 = sphi 0, %s108
      %s126 = sphi 0, %s126
      %s128 = sphi 0, %s126
      %s129 = sphi 0, %s128
      %s143 = sphi 0, %s129
      %s147 = sphi 0, %s147
      %s149 = sphi 0, %s147
      %s150 = sphi 0, %s149
      %s164 = sphi 0, %s150
      %s168 = sphi 0, %s168
      %s170 = sphi 0, %s168
      %s171 = sphi 0, %s170
      %s185 = sphi 0, %s171
      %s189 = sphi 0, %s189
      %s191 = sphi 0, %s189
      %s192 = sphi 0, %s191
      %s206 = sphi 0, %s192
      %s210 = sphi 0, %s210
      %s212 = sphi 0, %s210
      %s213 = sphi 0, %s212
      %s227 = sphi 0, %s213
      %s231 = sphi 0, %s231
      %s233 = sphi 0, %s231
      %s234 = sphi 0, %s233
      %s248 = sphi 0, %s234
      %s252 = sphi 0, %s252
      %s254 = sphi 0, %s252
      %s255 = sphi 0, %s254
      %s269 = sphi 0, %s255
      %s273 = sphi 0, %s273
      %s275 = sphi 0, %s273
      %s276 = sphi 0, %s275
      %s290 = sphi 0, %s276
      %s294 = sphi 0, %s294
      %s296 = sphi 0, %s294
      %s297 = sphi 0, %s296
      %s311 = sphi 0, %s297
      %s317 = sphi 0, %s319
      %s320 = sphi 0, %s317
      %s321 = sphi 0, %s320
      %s337 = sphi 0, %s321
    $region4: #{rpvnet_forward.15} parent=1 // loop_header_branch
      %22 = sbr.rel (%p20) target = $region8
    $region5: #{rpvnet_forward.15} parent=1 // loop_body
      %s24 = ssub.s32 %s19, 1
      %s25 = ssub.s32 %s19, 2
      %s26 = sadd.s32 %s19, 1
      %s27 = ssub.s32 %s19, %s26
      %p28 = scmp.eq.s32.totalorder %s27, 0
      %s30 = sadd.s32 %s29, 1
      %s31 = scalar_select %p28, %s29, %s30
      %p34 = pneg %p28
      %p35 = scmp.eq.s32.totalorder %s19, 1
      %p36 = por %p34, %p35
      %p37 = scmp.ne.s32.totalorder %s29, %s32
      %p38 = scmp.eq.s32.totalorder %s19, 0
      %p39 = por %p37, %p38
      %p40 = scmp.ne.s32.totalorder %s29, %s32
      %p41 = scmp.eq.s32.totalorder %s24, 1
      %p42 = por %p40, %p41
      %p43 = scmp.ne.s32.totalorder %s32, %s33
      %p44 = scmp.eq.s32.totalorder %s24, 0
      %p45 = por %p43, %p44
      %p46 = scmp.ne.s32.totalorder %s32, %s33
      %p47 = scmp.eq.s32.totalorder %s25, 1
      %p48 = por %p46, %p47
      %p50 = scmp.ne.s32.totalorder %s33, %s49
      %p51 = scmp.eq.s32.totalorder %s25, 0
      %p52 = por %p50, %p51
      %s53 = ssub.s32 %s19, %s26
      %p54 = scmp.eq.s32.totalorder %s53, 0
      %s56 = sadd.s32 %s55, 1
      %s57 = scalar_select %p54, %s55, %s56
      %p60 = pneg %p54
      %p61 = scmp.eq.s32.totalorder %s19, 1
      %p62 = por %p60, %p61
      %p63 = scmp.ne.s32.totalorder %s55, %s58
      %p64 = scmp.eq.s32.totalorder %s19, 0
      %p65 = por %p63, %p64
      %p66 = scmp.ne.s32.totalorder %s55, %s58
      %p67 = scmp.eq.s32.totalorder %s24, 1
      %p68 = por %p66, %p67
      %p69 = scmp.ne.s32.totalorder %s58, %s59
      %p70 = scmp.eq.s32.totalorder %s24, 0
      %p71 = por %p69, %p70
      %p72 = scmp.ne.s32.totalorder %s58, %s59
      %p73 = scmp.eq.s32.totalorder %s25, 1
      %p74 = por %p72, %p73
      %p76 = scmp.ne.s32.totalorder %s59, %s75
      %p77 = scmp.eq.s32.totalorder %s25, 0
      %p78 = por %p76, %p77
      %s79 = ssub.s32 %s19, %s26
      %p80 = scmp.eq.s32.totalorder %s79, 0
      %s82 = sadd.s32 %s81, 1
      %s83 = scalar_select %p80, %s81, %s82
      %p86 = pneg %p80
      %p87 = scmp.eq.s32.totalorder %s19, 1
      %p88 = por %p86, %p87
      %p89 = scmp.ne.s32.totalorder %s81, %s84
      %p90 = scmp.eq.s32.totalorder %s19, 0
      %p91 = por %p89, %p90
      %p92 = scmp.ne.s32.totalorder %s81, %s84
      %p93 = scmp.eq.s32.totalorder %s24, 1
      %p94 = por %p92, %p93
      %p95 = scmp.ne.s32.totalorder %s84, %s85
      %p96 = scmp.eq.s32.totalorder %s24, 0
      %p97 = por %p95, %p96
      %p98 = scmp.ne.s32.totalorder %s84, %s85
      %p99 = scmp.eq.s32.totalorder %s25, 1
      %p100 = por %p98, %p99
      %p102 = scmp.ne.s32.totalorder %s85, %s101
      %p103 = scmp.eq.s32.totalorder %s25, 0
      %p104 = por %p102, %p103
      %s106 = sadd.s32 %s105, 1
      %p109 = scmp.eq.s32.totalorder %s19, 1
      %p110 = scmp.ne.s32.totalorder %s105, %s107
      %p111 = scmp.eq.s32.totalorder %s19, 0
      %p112 = por %p110, %p111
      %p113 = scmp.ne.s32.totalorder %s105, %s107
      %p114 = scmp.eq.s32.totalorder %s24, 1
      %p115 = por %p113, %p114
      %p116 = scmp.ne.s32.totalorder %s107, %s108
      %p117 = scmp.eq.s32.totalorder %s24, 0
      %p118 = por %p116, %p117
      %p119 = scmp.ne.s32.totalorder %s107, %s108
      %p120 = scmp.eq.s32.totalorder %s25, 1
      %p121 = por %p119, %p120
      %p123 = scmp.ne.s32.totalorder %s108, %s122
      %p124 = scmp.eq.s32.totalorder %s25, 0
      %p125 = por %p123, %p124
      %s127 = sadd.s32 %s126, 1
      %p130 = scmp.eq.s32.totalorder %s19, 1
      %p131 = scmp.ne.s32.totalorder %s126, %s128
      %p132 = scmp.eq.s32.totalorder %s19, 0
      %p133 = por %p131, %p132
      %p134 = scmp.ne.s32.totalorder %s126, %s128
      %p135 = scmp.eq.s32.totalorder %s24, 1
      %p136 = por %p134, %p135
      %p137 = scmp.ne.s32.totalorder %s128, %s129
      %p138 = scmp.eq.s32.totalorder %s24, 0
      %p139 = por %p137, %p138
      %p140 = scmp.ne.s32.totalorder %s128, %s129
      %p141 = scmp.eq.s32.totalorder %s25, 1
      %p142 = por %p140, %p141
      %p144 = scmp.ne.s32.totalorder %s129, %s143
      %p145 = scmp.eq.s32.totalorder %s25, 0
      %p146 = por %p144, %p145
      %s148 = sadd.s32 %s147, 1
      %p151 = scmp.eq.s32.totalorder %s19, 1
      %p152 = scmp.ne.s32.totalorder %s147, %s149
      %p153 = scmp.eq.s32.totalorder %s19, 0
      %p154 = por %p152, %p153
      %p155 = scmp.ne.s32.totalorder %s147, %s149
      %p156 = scmp.eq.s32.totalorder %s24, 1
      %p157 = por %p155, %p156
      %p158 = scmp.ne.s32.totalorder %s149, %s150
      %p159 = scmp.eq.s32.totalorder %s24, 0
      %p160 = por %p158, %p159
      %p161 = scmp.ne.s32.totalorder %s149, %s150
      %p162 = scmp.eq.s32.totalorder %s25, 1
      %p163 = por %p161, %p162
      %p165 = scmp.ne.s32.totalorder %s150, %s164
      %p166 = scmp.eq.s32.totalorder %s25, 0
      %p167 = por %p165, %p166
      %s169 = sadd.s32 %s168, 1
      %p172 = scmp.eq.s32.totalorder %s19, 1
      %p173 = scmp.ne.s32.totalorder %s168, %s170
      %p174 = scmp.eq.s32.totalorder %s19, 0
      %p175 = por %p173, %p174
      %p176 = scmp.ne.s32.totalorder %s168, %s170
      %p177 = scmp.eq.s32.totalorder %s24, 1
      %p178 = por %p176, %p177
      %p179 = scmp.ne.s32.totalorder %s170, %s171
      %p180 = scmp.eq.s32.totalorder %s24, 0
      %p181 = por %p179, %p180
      %p182 = scmp.ne.s32.totalorder %s170, %s171
      %p183 = scmp.eq.s32.totalorder %s25, 1
      %p184 = por %p182, %p183
      %p186 = scmp.ne.s32.totalorder %s171, %s185
      %p187 = scmp.eq.s32.totalorder %s25, 0
      %p188 = por %p186, %p187
      %s190 = sadd.s32 %s189, 1
      %p193 = scmp.eq.s32.totalorder %s19, 1
      %p194 = scmp.ne.s32.totalorder %s189, %s191
      %p195 = scmp.eq.s32.totalorder %s19, 0
      %p196 = por %p194, %p195
      %p197 = scmp.ne.s32.totalorder %s189, %s191
      %p198 = scmp.eq.s32.totalorder %s24, 1
      %p199 = por %p197, %p198
      %p200 = scmp.ne.s32.totalorder %s191, %s192
      %p201 = scmp.eq.s32.totalorder %s24, 0
      %p202 = por %p200, %p201
      %p203 = scmp.ne.s32.totalorder %s191, %s192
      %p204 = scmp.eq.s32.totalorder %s25, 1
      %p205 = por %p203, %p204
      %p207 = scmp.ne.s32.totalorder %s192, %s206
      %p208 = scmp.eq.s32.totalorder %s25, 0
      %p209 = por %p207, %p208
      %s211 = sadd.s32 %s210, 1
      %p214 = scmp.eq.s32.totalorder %s19, 1
      %p215 = scmp.ne.s32.totalorder %s210, %s212
      %p216 = scmp.eq.s32.totalorder %s19, 0
      %p217 = por %p215, %p216
      %p218 = scmp.ne.s32.totalorder %s210, %s212
      %p219 = scmp.eq.s32.totalorder %s24, 1
      %p220 = por %p218, %p219
      %p221 = scmp.ne.s32.totalorder %s212, %s213
      %p222 = scmp.eq.s32.totalorder %s24, 0
      %p223 = por %p221, %p222
      %p224 = scmp.ne.s32.totalorder %s212, %s213
      %p225 = scmp.eq.s32.totalorder %s25, 1
      %p226 = por %p224, %p225
      %p228 = scmp.ne.s32.totalorder %s213, %s227
      %p229 = scmp.eq.s32.totalorder %s25, 0
      %p230 = por %p228, %p229
      %s232 = sadd.s32 %s231, 1
      %p235 = scmp.eq.s32.totalorder %s19, 1
      %p236 = scmp.ne.s32.totalorder %s231, %s233
      %p237 = scmp.eq.s32.totalorder %s19, 0
      %p238 = por %p236, %p237
      %p239 = scmp.ne.s32.totalorder %s231, %s233
      %p240 = scmp.eq.s32.totalorder %s24, 1
      %p241 = por %p239, %p240
      %p242 = scmp.ne.s32.totalorder %s233, %s234
      %p243 = scmp.eq.s32.totalorder %s24, 0
      %p244 = por %p242, %p243
      %p245 = scmp.ne.s32.totalorder %s233, %s234
      %p246 = scmp.eq.s32.totalorder %s25, 1
      %p247 = por %p245, %p246
      %p249 = scmp.ne.s32.totalorder %s234, %s248
      %p250 = scmp.eq.s32.totalorder %s25, 0
      %p251 = por %p249, %p250
      %s253 = sadd.s32 %s252, 1
      %p256 = scmp.eq.s32.totalorder %s19, 1
      %p257 = scmp.ne.s32.totalorder %s252, %s254
      %p258 = scmp.eq.s32.totalorder %s19, 0
      %p259 = por %p257, %p258
      %p260 = scmp.ne.s32.totalorder %s252, %s254
      %p261 = scmp.eq.s32.totalorder %s24, 1
      %p262 = por %p260, %p261
      %p263 = scmp.ne.s32.totalorder %s254, %s255
      %p264 = scmp.eq.s32.totalorder %s24, 0
      %p265 = por %p263, %p264
      %p266 = scmp.ne.s32.totalorder %s254, %s255
      %p267 = scmp.eq.s32.totalorder %s25, 1
      %p268 = por %p266, %p267
      %p270 = scmp.ne.s32.totalorder %s255, %s269
      %p271 = scmp.eq.s32.totalorder %s25, 0
      %p272 = por %p270, %p271
      %s274 = sadd.s32 %s273, 1
      %p277 = scmp.eq.s32.totalorder %s19, 1
      %p278 = scmp.ne.s32.totalorder %s273, %s275
      %p279 = scmp.eq.s32.totalorder %s19, 0
      %p280 = por %p278, %p279
      %p281 = scmp.ne.s32.totalorder %s273, %s275
      %p282 = scmp.eq.s32.totalorder %s24, 1
      %p283 = por %p281, %p282
      %p284 = scmp.ne.s32.totalorder %s275, %s276
      %p285 = scmp.eq.s32.totalorder %s24, 0
      %p286 = por %p284, %p285
      %p287 = scmp.ne.s32.totalorder %s275, %s276
      %p288 = scmp.eq.s32.totalorder %s25, 1
      %p289 = por %p287, %p288
      %p291 = scmp.ne.s32.totalorder %s276, %s290
      %p292 = scmp.eq.s32.totalorder %s25, 0
      %p293 = por %p291, %p292
      %s295 = sadd.s32 %s294, 1
      %p298 = scmp.eq.s32.totalorder %s19, 1
      %p299 = scmp.ne.s32.totalorder %s294, %s296
      %p300 = scmp.eq.s32.totalorder %s19, 0
      %p301 = por %p299, %p300
      %p302 = scmp.ne.s32.totalorder %s294, %s296
      %p303 = scmp.eq.s32.totalorder %s24, 1
      %p304 = por %p302, %p303
      %p305 = scmp.ne.s32.totalorder %s296, %s297
      %p306 = scmp.eq.s32.totalorder %s24, 0
      %p307 = por %p305, %p306
      %p308 = scmp.ne.s32.totalorder %s296, %s297
      %p309 = scmp.eq.s32.totalorder %s25, 1
      %p310 = por %p308, %p309
      %p312 = scmp.ne.s32.totalorder %s297, %s311
      %p313 = scmp.eq.s32.totalorder %s25, 0
      %p314 = por %p312, %p313
      %s315 = ssub.s32 %s19, %s26
      %p316 = scmp.eq.s32.totalorder %s315, 0
      %s318 = sadd.s32 %s317, 1
      %s319 = scalar_select %p316, %s317, %s318
      %p322 = pneg %p316
      %p323 = scmp.eq.s32.totalorder %s19, 1
      %p324 = por %p322, %p323
      %p325 = scmp.ne.s32.totalorder %s317, %s320
      %p326 = scmp.eq.s32.totalorder %s19, 0
      %p327 = por %p325, %p326
      %p328 = scmp.ne.s32.totalorder %s317, %s320
      %p329 = scmp.eq.s32.totalorder %s24, 1
      %p330 = por %p328, %p329
      %p331 = scmp.ne.s32.totalorder %s320, %s321
      %p332 = scmp.eq.s32.totalorder %s24, 0
      %p333 = por %p331, %p332
      %p334 = scmp.ne.s32.totalorder %s320, %s321
      %p335 = scmp.eq.s32.totalorder %s25, 1
      %p336 = por %p334, %p335
      %p338 = scmp.ne.s32.totalorder %s321, %s337
      %p339 = scmp.eq.s32.totalorder %s25, 0
      %p340 = por %p338, %p339
      %p341 = scmp.le.s32.totalorder 1, %s19
      %p342 = scmp.lt.s32.totalorder %s19, 3
      %p343 = pnand %p341, %p342
      %p344 = pneg %p343
      // Predicated region
      $region9: #{rpvnet_forward.15} parent=5 // pred_check
        _
      $region10: #{rpvnet_forward.15} parent=5 // pred_check_branch
        %346 = sbr.rel (%p343) target = $region12
      $region11: #{rpvnet_forward.15} parent=5 // pred_region
        %s347 = ssub.s32 %s19, 1
        // Predicated region
        $region13: #{rpvnet_forward.15} parent=11 // pred_check
          %p348 = pneg %p118
        $region14: #{rpvnet_forward.15} parent=11 // pred_check_branch
          %350 = sbr.rel (%p348) target = $region16
        $region15: #{rpvnet_forward.15} parent=11 // pred_region
          _
        $region16: #{rpvnet_forward.15} parent=11 // pred_fallthru
          _
        // Predicated region
        $region17: #{rpvnet_forward.15} parent=11 // pred_check
          %p351 = pneg %p139
        $region18: #{rpvnet_forward.15} parent=11 // pred_check_branch
          %353 = sbr.rel (%p351) target = $region20
        $region19: #{rpvnet_forward.15} parent=11 // pred_region
          _
        $region20: #{rpvnet_forward.15} parent=11 // pred_fallthru
          _
        // Predicated region
        $region21: #{rpvnet_forward.15} parent=11 // pred_check
          %p354 = pneg %p160
        $region22: #{rpvnet_forward.15} parent=11 // pred_check_branch
          %356 = sbr.rel (%p354) target = $region24
        $region23: #{rpvnet_forward.15} parent=11 // pred_region
          _
        $region24: #{rpvnet_forward.15} parent=11 // pred_fallthru
          _
        // Predicated region
        $region25: #{rpvnet_forward.15} parent=11 // pred_check
          %p357 = pneg %p181
        $region26: #{rpvnet_forward.15} parent=11 // pred_check_branch
          %359 = sbr.rel (%p357) target = $region28
        $region27: #{rpvnet_forward.15} parent=11 // pred_region
          _
        $region28: #{rpvnet_forward.15} parent=11 // pred_fallthru
          _
        // Predicated region
        $region29: #{rpvnet_forward.15} parent=11 // pred_check
          %p360 = pneg %p202
        $region30: #{rpvnet_forward.15} parent=11 // pred_check_branch
          %362 = sbr.rel (%p360) target = $region32
        $region31: #{rpvnet_forward.15} parent=11 // pred_region
          _
        $region32: #{rpvnet_forward.15} parent=11 // pred_fallthru
          _
        // Predicated region
        $region33: #{rpvnet_forward.15} parent=11 // pred_check
          %p363 = pneg %p223
        $region34: #{rpvnet_forward.15} parent=11 // pred_check_branch
          %365 = sbr.rel (%p363) target = $region36
        $region35: #{rpvnet_forward.15} parent=11 // pred_region
          _
        $region36: #{rpvnet_forward.15} parent=11 // pred_fallthru
          _
        // Predicated region
        $region37: #{rpvnet_forward.15} parent=11 // pred_check
          %p366 = pneg %p244
        $region38: #{rpvnet_forward.15} parent=11 // pred_check_branch
          %368 = sbr.rel (%p366) target = $region40
        $region39: #{rpvnet_forward.15} parent=11 // pred_region
          _
        $region40: #{rpvnet_forward.15} parent=11 // pred_fallthru
          _
        // Predicated region
        $region41: #{rpvnet_forward.15} parent=11 // pred_check
          %p369 = pneg %p265
        $region42: #{rpvnet_forward.15} parent=11 // pred_check_branch
          %371 = sbr.rel (%p369) target = $region44
        $region43: #{rpvnet_forward.15} parent=11 // pred_region
          _
        $region44: #{rpvnet_forward.15} parent=11 // pred_fallthru
          _
        // Predicated region
        $region45: #{rpvnet_forward.15} parent=11 // pred_check
          %p372 = pneg %p286
        $region46: #{rpvnet_forward.15} parent=11 // pred_check_branch
          %374 = sbr.rel (%p372) target = $region48
        $region47: #{rpvnet_forward.15} parent=11 // pred_region
          _
        $region48: #{rpvnet_forward.15} parent=11 // pred_fallthru
          _
        // Predicated region
        $region49: #{rpvnet_forward.15} parent=11 // pred_check
          %p375 = pneg %p307
        $region50: #{rpvnet_forward.15} parent=11 // pred_check_branch
          %377 = sbr.rel (%p375) target = $region52
        $region51: #{rpvnet_forward.15} parent=11 // pred_region
          _
        $region52: #{rpvnet_forward.15} parent=11 // pred_fallthru
          _
      $region12: #{rpvnet_forward.15} parent=5 // pred_fallthru
        _
      %p378 = scmp.lt.s32.totalorder %s19, 2
      // Predicated region
      $region53: #{rpvnet_forward.15} parent=5 // pred_check
        %p379 = pneg %p378
      $region54: #{rpvnet_forward.15} parent=5 // pred_check_branch
        %381 = sbr.rel (%p379) target = $region56
      $region55: #{rpvnet_forward.15} parent=5 // pred_region
        // Predicated region
        $region57: #{rpvnet_forward.15} parent=55 // pred_check
          %p382 = pneg %p39
        $region58: #{rpvnet_forward.15} parent=55 // pred_check_branch
          %384 = sbr.rel (%p382) target = $region60
        $region59: #{rpvnet_forward.15} parent=55 // pred_region
          %s385 = sand.u32 %s29, 1
          %s386 = sand.u32 %s29, 1
          %s387 = smul.addr %s386, 8
          %s388 = scalar_lea.vmem [#allocation2], %s387
          %s389 = smul.addr %s19, 4
          %s390 = scalar_lea.vmem %s0, %s389
          // Predicated region
          $region61: #{rpvnet_forward.15} parent=59 // pred_check
            _
          $region62: #{rpvnet_forward.15} parent=59 // pred_check_branch
            %392 = sbr.rel (0) target = $region64
          $region63: #{rpvnet_forward.15} parent=59 // pred_region
            // Predicated region
            $region65: #{rpvnet_forward.15} parent=63 // pred_check
              _
            $region66: #{rpvnet_forward.15} parent=63 // pred_check_branch
              %394 = sbr.rel target = $region68
            $region67: #{rpvnet_forward.15} parent=63 // pred_region
              // Predicated region
              $region80: #{rpvnet_forward.15} parent=67 // pred_check
                _
              $region81: #{rpvnet_forward.15} parent=67 // pred_check_branch
                %411 = sbr.rel (0) target = $region83
              $region82: #{rpvnet_forward.15} parent=67 // pred_region
                loop: start=0, step=1, limit=1
                $region84: #{rpvnet_forward.15} parent=82 // loop_pre_header
                  _
                $region85: #{rpvnet_forward.15} parent=82 // loop_header
                  %s413 = sphi 0, %s417
                  %p414 = scmp.ge.s32.totalorder %s413, 1
                  %s418 = sphi %s390, %s390
                  %s419 = sphi %s388, %s388
                $region86: #{rpvnet_forward.15} parent=82 // loop_header_branch
                  %416 = sbr.rel (%p414) target = $region90
                $region87: #{rpvnet_forward.15} parent=82 // loop_body
                  _
                $region88: #{rpvnet_forward.15} parent=82 // loop_footer
                  %s417 = sadd.s32 1, %s413
                $region89: #{rpvnet_forward.15} parent=82 // loop_footer_branch
                  %412 = sbr.rel target = $region85
                $region90: #{rpvnet_forward.15} parent=82 // loop_exit
                  _
                loop: start=0, step=1, limit=1
                $region91: #{rpvnet_forward.15} parent=82 // loop_pre_header
                  _
                $region92: #{rpvnet_forward.15} parent=82 // loop_header
                  %s422 = sphi 0, %s426
                  %p423 = scmp.ge.s32.totalorder %s422, 1
                  %s427 = sphi %s390, %s390
                  %s428 = sphi %s388, %s388
                $region93: #{rpvnet_forward.15} parent=82 // loop_header_branch
                  %425 = sbr.rel (%p423) target = $region97
                $region94: #{rpvnet_forward.15} parent=82 // loop_body
                  %v429 = vld [vmem:[%s427] sm:$0xf]
                  %430 = vst [vmem:[%s428] sm:$0xf] %v429
                  %v431 = vld [vmem:[%s427 + $0x8] sm:$0xf]
                  %432 = vst [vmem:[%s428 + $0x4] sm:$0xf] %v431
                $region95: #{rpvnet_forward.15} parent=82 // loop_footer
                  %s426 = sadd.s32 1, %s422
                $region96: #{rpvnet_forward.15} parent=82 // loop_footer_branch
                  %421 = sbr.rel target = $region92
                $region97: #{rpvnet_forward.15} parent=82 // loop_exit
                  _
              $region83: #{rpvnet_forward.15} parent=67 // pred_fallthru
                _
            $region68: #{rpvnet_forward.15} parent=63 // pred_fallthru
              _
            // Predicated region
            $region69: #{rpvnet_forward.15} parent=63 // pred_check
              _
            $region70: #{rpvnet_forward.15} parent=63 // pred_check_branch
              %396 = sbr.rel (0) target = $region72
            $region71: #{rpvnet_forward.15} parent=63 // pred_region
              loop: start=0, step=1, limit=1
              $region73: #{rpvnet_forward.15} parent=71 // loop_pre_header
                _
              $region74: #{rpvnet_forward.15} parent=71 // loop_header
                %s399 = sphi 0, %s403
                %p400 = scmp.ge.s32.totalorder %s399, 1
                %s404 = sphi %s390, %s390
                %s405 = sphi %s388, %s388
              $region75: #{rpvnet_forward.15} parent=71 // loop_header_branch
                %402 = sbr.rel (%p400) target = $region79
              $region76: #{rpvnet_forward.15} parent=71 // loop_body
                %v406 = vld [vmem:[%s404] sm:$0xf]
                %407 = vst [vmem:[%s405] sm:$0xf] %v406
                %v408 = vld [vmem:[%s404 + $0x8] sm:$0xf]
                %409 = vst [vmem:[%s405 + $0x4] sm:$0xf] %v408
              $region77: #{rpvnet_forward.15} parent=71 // loop_footer
                %s403 = sadd.s32 1, %s399
              $region78: #{rpvnet_forward.15} parent=71 // loop_footer_branch
                %398 = sbr.rel target = $region74
              $region79: #{rpvnet_forward.15} parent=71 // loop_exit
                _
            $region72: #{rpvnet_forward.15} parent=63 // pred_fallthru
              _
          $region64: #{rpvnet_forward.15} parent=59 // pred_fallthru
            _
          %433 = vnop
        $region60: #{rpvnet_forward.15} parent=55 // pred_fallthru
          _
        // Predicated region
        $region98: #{rpvnet_forward.15} parent=55 // pred_check
          %p434 = pneg %p65
        $region99: #{rpvnet_forward.15} parent=55 // pred_check_branch
          %436 = sbr.rel (%p434) target = $region101
        $region100: #{rpvnet_forward.15} parent=55 // pred_region
          %s437 = sand.u32 %s55, 1
          %s438 = sand.u32 %s55, 1
          %s439 = smul.addr %s438, 8
          %s440 = scalar_lea.vmem [#allocation3], %s439
          %s441 = smul.addr %s19, 4
          %s442 = scalar_lea.vmem %s1, %s441
          // Predicated region
          $region102: #{rpvnet_forward.15} parent=100 // pred_check
            _
          $region103: #{rpvnet_forward.15} parent=100 // pred_check_branch
            %444 = sbr.rel (0) target = $region105
          $region104: #{rpvnet_forward.15} parent=100 // pred_region
            // Predicated region
            $region106: #{rpvnet_forward.15} parent=104 // pred_check
              _
            $region107: #{rpvnet_forward.15} parent=104 // pred_check_branch
              %446 = sbr.rel target = $region109
            $region108: #{rpvnet_forward.15} parent=104 // pred_region
              // Predicated region
              $region121: #{rpvnet_forward.15} parent=108 // pred_check
                _
              $region122: #{rpvnet_forward.15} parent=108 // pred_check_branch
                %463 = sbr.rel (0) target = $region124
              $region123: #{rpvnet_forward.15} parent=108 // pred_region
                loop: start=0, step=1, limit=1
                $region125: #{rpvnet_forward.15} parent=123 // loop_pre_header
                  _
                $region126: #{rpvnet_forward.15} parent=123 // loop_header
                  %s465 = sphi 0, %s469
                  %p466 = scmp.ge.s32.totalorder %s465, 1
                  %s470 = sphi %s442, %s442
                  %s471 = sphi %s440, %s440
                $region127: #{rpvnet_forward.15} parent=123 // loop_header_branch
                  %468 = sbr.rel (%p466) target = $region131
                $region128: #{rpvnet_forward.15} parent=123 // loop_body
                  _
                $region129: #{rpvnet_forward.15} parent=123 // loop_footer
                  %s469 = sadd.s32 1, %s465
                $region130: #{rpvnet_forward.15} parent=123 // loop_footer_branch
                  %464 = sbr.rel target = $region126
                $region131: #{rpvnet_forward.15} parent=123 // loop_exit
                  _
                loop: start=0, step=1, limit=1
                $region132: #{rpvnet_forward.15} parent=123 // loop_pre_header
                  _
                $region133: #{rpvnet_forward.15} parent=123 // loop_header
                  %s474 = sphi 0, %s478
                  %p475 = scmp.ge.s32.totalorder %s474, 1
                  %s479 = sphi %s442, %s442
                  %s480 = sphi %s440, %s440
                $region134: #{rpvnet_forward.15} parent=123 // loop_header_branch
                  %477 = sbr.rel (%p475) target = $region138
                $region135: #{rpvnet_forward.15} parent=123 // loop_body
                  %v481 = vld [vmem:[%s479] sm:$0xf]
                  %482 = vst [vmem:[%s480] sm:$0xf] %v481
                  %v483 = vld [vmem:[%s479 + $0x8] sm:$0xf]
                  %484 = vst [vmem:[%s480 + $0x4] sm:$0xf] %v483
                $region136: #{rpvnet_forward.15} parent=123 // loop_footer
                  %s478 = sadd.s32 1, %s474
                $region137: #{rpvnet_forward.15} parent=123 // loop_footer_branch
                  %473 = sbr.rel target = $region133
                $region138: #{rpvnet_forward.15} parent=123 // loop_exit
                  _
              $region124: #{rpvnet_forward.15} parent=108 // pred_fallthru
                _
            $region109: #{rpvnet_forward.15} parent=104 // pred_fallthru
              _
            // Predicated region
            $region110: #{rpvnet_forward.15} parent=104 // pred_check
              _
            $region111: #{rpvnet_forward.15} parent=104 // pred_check_branch
              %448 = sbr.rel (0) target = $region113
            $region112: #{rpvnet_forward.15} parent=104 // pred_region
              loop: start=0, step=1, limit=1
              $region114: #{rpvnet_forward.15} parent=112 // loop_pre_header
                _
              $region115: #{rpvnet_forward.15} parent=112 // loop_header
                %s451 = sphi 0, %s455
                %p452 = scmp.ge.s32.totalorder %s451, 1
                %s456 = sphi %s442, %s442
                %s457 = sphi %s440, %s440
              $region116: #{rpvnet_forward.15} parent=112 // loop_header_branch
                %454 = sbr.rel (%p452) target = $region120
              $region117: #{rpvnet_forward.15} parent=112 // loop_body
                %v458 = vld [vmem:[%s456] sm:$0xf]
                %459 = vst [vmem:[%s457] sm:$0xf] %v458
                %v460 = vld [vmem:[%s456 + $0x8] sm:$0xf]
                %461 = vst [vmem:[%s457 + $0x4] sm:$0xf] %v460
              $region118: #{rpvnet_forward.15} parent=112 // loop_footer
                %s455 = sadd.s32 1, %s451
              $region119: #{rpvnet_forward.15} parent=112 // loop_footer_branch
                %450 = sbr.rel target = $region115
              $region120: #{rpvnet_forward.15} parent=112 // loop_exit
                _
            $region113: #{rpvnet_forward.15} parent=104 // pred_fallthru
              _
          $region105: #{rpvnet_forward.15} parent=100 // pred_fallthru
            _
          %485 = vnop
        $region101: #{rpvnet_forward.15} parent=55 // pred_fallthru
          _
        // Predicated region
        $region139: #{rpvnet_forward.15} parent=55 // pred_check
          %p486 = pneg %p91
        $region140: #{rpvnet_forward.15} parent=55 // pred_check_branch
          %488 = sbr.rel (%p486) target = $region142
        $region141: #{rpvnet_forward.15} parent=55 // pred_region
          %s489 = sand.u32 %s81, 1
          %s490 = sand.u32 %s81, 1
          %s491 = smul.addr %s490, 8
          %s492 = scalar_lea.vmem [#allocation4], %s491
          %s493 = smul.addr %s19, 4
          %s494 = scalar_lea.vmem %s2, %s493
          // Predicated region
          $region143: #{rpvnet_forward.15} parent=141 // pred_check
            _
          $region144: #{rpvnet_forward.15} parent=141 // pred_check_branch
            %496 = sbr.rel (0) target = $region146
          $region145: #{rpvnet_forward.15} parent=141 // pred_region
            // Predicated region
            $region147: #{rpvnet_forward.15} parent=145 // pred_check
              _
            $region148: #{rpvnet_forward.15} parent=145 // pred_check_branch
              %498 = sbr.rel target = $region150
            $region149: #{rpvnet_forward.15} parent=145 // pred_region
              // Predicated region
              $region162: #{rpvnet_forward.15} parent=149 // pred_check
                _
              $region163: #{rpvnet_forward.15} parent=149 // pred_check_branch
                %515 = sbr.rel (0) target = $region165
              $region164: #{rpvnet_forward.15} parent=149 // pred_region
                loop: start=0, step=1, limit=1
                $region166: #{rpvnet_forward.15} parent=164 // loop_pre_header
                  _
                $region167: #{rpvnet_forward.15} parent=164 // loop_header
                  %s517 = sphi 0, %s521
                  %p518 = scmp.ge.s32.totalorder %s517, 1
                  %s522 = sphi %s494, %s494
                  %s523 = sphi %s492, %s492
                $region168: #{rpvnet_forward.15} parent=164 // loop_header_branch
                  %520 = sbr.rel (%p518) target = $region172
                $region169: #{rpvnet_forward.15} parent=164 // loop_body
                  _
                $region170: #{rpvnet_forward.15} parent=164 // loop_footer
                  %s521 = sadd.s32 1, %s517
                $region171: #{rpvnet_forward.15} parent=164 // loop_footer_branch
                  %516 = sbr.rel target = $region167
                $region172: #{rpvnet_forward.15} parent=164 // loop_exit
                  _
                loop: start=0, step=1, limit=1
                $region173: #{rpvnet_forward.15} parent=164 // loop_pre_header
                  _
                $region174: #{rpvnet_forward.15} parent=164 // loop_header
                  %s526 = sphi 0, %s530
                  %p527 = scmp.ge.s32.totalorder %s526, 1
                  %s531 = sphi %s494, %s494
                  %s532 = sphi %s492, %s492
                $region175: #{rpvnet_forward.15} parent=164 // loop_header_branch
                  %529 = sbr.rel (%p527) target = $region179
                $region176: #{rpvnet_forward.15} parent=164 // loop_body
                  %v533 = vld [vmem:[%s531] sm:$0xf]
                  %534 = vst [vmem:[%s532] sm:$0xf] %v533
                  %v535 = vld [vmem:[%s531 + $0x8] sm:$0xf]
                  %536 = vst [vmem:[%s532 + $0x4] sm:$0xf] %v535
                $region177: #{rpvnet_forward.15} parent=164 // loop_footer
                  %s530 = sadd.s32 1, %s526
                $region178: #{rpvnet_forward.15} parent=164 // loop_footer_branch
                  %525 = sbr.rel target = $region174
                $region179: #{rpvnet_forward.15} parent=164 // loop_exit
                  _
              $region165: #{rpvnet_forward.15} parent=149 // pred_fallthru
                _
            $region150: #{rpvnet_forward.15} parent=145 // pred_fallthru
              _
            // Predicated region
            $region151: #{rpvnet_forward.15} parent=145 // pred_check
              _
            $region152: #{rpvnet_forward.15} parent=145 // pred_check_branch
              %500 = sbr.rel (0) target = $region154
            $region153: #{rpvnet_forward.15} parent=145 // pred_region
              loop: start=0, step=1, limit=1
              $region155: #{rpvnet_forward.15} parent=153 // loop_pre_header
                _
              $region156: #{rpvnet_forward.15} parent=153 // loop_header
                %s503 = sphi 0, %s507
                %p504 = scmp.ge.s32.totalorder %s503, 1
                %s508 = sphi %s494, %s494
                %s509 = sphi %s492, %s492
              $region157: #{rpvnet_forward.15} parent=153 // loop_header_branch
                %506 = sbr.rel (%p504) target = $region161
              $region158: #{rpvnet_forward.15} parent=153 // loop_body
                %v510 = vld [vmem:[%s508] sm:$0xf]
                %511 = vst [vmem:[%s509] sm:$0xf] %v510
                %v512 = vld [vmem:[%s508 + $0x8] sm:$0xf]
                %513 = vst [vmem:[%s509 + $0x4] sm:$0xf] %v512
              $region159: #{rpvnet_forward.15} parent=153 // loop_footer
                %s507 = sadd.s32 1, %s503
              $region160: #{rpvnet_forward.15} parent=153 // loop_footer_branch
                %502 = sbr.rel target = $region156
              $region161: #{rpvnet_forward.15} parent=153 // loop_exit
                _
            $region154: #{rpvnet_forward.15} parent=145 // pred_fallthru
              _
          $region146: #{rpvnet_forward.15} parent=141 // pred_fallthru
            _
          %537 = vnop
        $region142: #{rpvnet_forward.15} parent=55 // pred_fallthru
          _
      $region56: #{rpvnet_forward.15} parent=5 // pred_fallthru
        _
      %p538 = scmp.le.s32.totalorder 1, %s19
      %p539 = scmp.lt.s32.totalorder %s19, 3
      %p540 = pnand %p538, %p539
      %p541 = pneg %p540
      // Predicated region
      $region180: #{rpvnet_forward.15} parent=5 // pred_check
        _
      $region181: #{rpvnet_forward.15} parent=5 // pred_check_branch
        %543 = sbr.rel (%p540) target = $region183
      $region182: #{rpvnet_forward.15} parent=5 // pred_region
        %s544 = ssub.s32 %s19, 1
        %s545 = sand.u32 %s32, 1
        %s546 = sand.u32 %s32, 1
        %s547 = smul.addr %s546, 8
        %s548 = scalar_lea.vmem [#allocation2], %s547
        // Predicated region
        $region184: #{rpvnet_forward.15} parent=182 // pred_check
          %p549 = pneg %p45
        $region185: #{rpvnet_forward.15} parent=182 // pred_check_branch
          %551 = sbr.rel (%p549) target = $region187
        $region186: #{rpvnet_forward.15} parent=182 // pred_region
          _
        $region187: #{rpvnet_forward.15} parent=182 // pred_fallthru
          _
        %s552 = sand.u32 %s58, 1
        %s553 = sand.u32 %s58, 1
        %s554 = smul.addr %s553, 8
        %s555 = scalar_lea.vmem [#allocation3], %s554
        // Predicated region
        $region188: #{rpvnet_forward.15} parent=182 // pred_check
          %p556 = pneg %p71
        $region189: #{rpvnet_forward.15} parent=182 // pred_check_branch
          %558 = sbr.rel (%p556) target = $region191
        $region190: #{rpvnet_forward.15} parent=182 // pred_region
          _
        $region191: #{rpvnet_forward.15} parent=182 // pred_fallthru
          _
        %s559 = sand.u32 %s84, 1
        %s560 = sand.u32 %s84, 1
        %s561 = smul.addr %s560, 8
        %s562 = scalar_lea.vmem [#allocation4], %s561
        // Predicated region
        $region192: #{rpvnet_forward.15} parent=182 // pred_check
          %p563 = pneg %p97
        $region193: #{rpvnet_forward.15} parent=182 // pred_check_branch
          %565 = sbr.rel (%p563) target = $region195
        $region194: #{rpvnet_forward.15} parent=182 // pred_region
          _
        $region195: #{rpvnet_forward.15} parent=182 // pred_fallthru
          _
        %s566 = sand.u32 %s32, 1
        %s567 = sand.u32 %s32, 1
        %s568 = smul.addr %s567, 8
        %s569 = scalar_lea.vmem [#allocation2], %s568
        %p570 = pneg %p45
        %p571 = pneg %p42
        %s572 = sand.u32 %s58, 1
        %s573 = sand.u32 %s58, 1
        %s574 = smul.addr %s573, 8
        %s575 = scalar_lea.vmem [#allocation3], %s574
        %p576 = pneg %p71
        %p577 = pneg %p68
        %s578 = sand.u32 %s84, 1
        %s579 = sand.u32 %s84, 1
        %s580 = smul.addr %s579, 8
        %s581 = scalar_lea.vmem [#allocation4], %s580
        %p582 = pneg %p97
        %p583 = pneg %p94
        %p584 = pneg %p118
        %p585 = pneg %p115
        %p586 = pneg %p139
        %p587 = pneg %p136
        %p588 = pneg %p160
        %p589 = pneg %p157
        %p590 = pneg %p181
        %p591 = pneg %p178
        %p592 = pneg %p202
        %p593 = pneg %p199
        %p594 = pneg %p223
        %p595 = pneg %p220
        %p596 = pneg %p244
        %p597 = pneg %p241
        %p598 = pneg %p265
        %p599 = pneg %p262
        %p600 = pneg %p286
        %p601 = pneg %p283
        %p602 = pneg %p307
        %p603 = pneg %p304
        %p604 = pneg %p333
        %p605 = pneg %p330
        %p606 = scmp.lt.s32.totalorder %s24, 1
        %s607 = scalar_select %p606, %s24, 1
        %s608 = smul.addr %s607, 8
        %s609 = scalar_lea.vmem %s13, %s608
        %p610 = scmp.lt.s32.totalorder %s24, 1
        %s611 = scalar_select %p610, %s24, 1
        %s612 = smul.addr %s611, 8
        %s613 = scalar_lea.vmem %s13, %s612
        %v615 = vld [vmem:[%s548] sm:$0xf]
        %v616 = vld [vmem:[%s548 + $0x4] sm:$0xf]
        %v617 = vld [vmem:[%s555] sm:$0xf]
        %v618 = vld [vmem:[%s555 + $0x4] sm:$0xf]
        %v619 = vld [vmem:[%s562] sm:$0xf]
        %v620 = vld [vmem:[%s562 + $0x4] sm:$0xf]
        %v621 = vld [vmem:[%s6] sm:$0xff]
        %v622 = vld [vmem:[%s6 + $0x8] sm:$0xff]
        %v623 = vld [vmem:[%s6 + $0x10] sm:$0xff]
        %v624 = vld [vmem:[%s3] sm:$0xf]
        %626 = vset.pattern.permute.xlu0 0
        %627 = vperm.xlu0 %626, %v621
        %v628 = vpop.permute.xlu0 %627
        %v632 = vunpack.c.l.b16 %v615
        %v633 = vunpack.c.l.b16 %v616
        %v634 = vpack.c.b16 %v633, %v632
        %vm636 = vcmask 130048
        %v638 = vsel %vm636, %v624, 0
        %640 = vmatprep.subr.bf16.mxu0 0
        %641 = vmatpush1.bf16.msra.mxu0 %v634
        %642 = vmatprep.subr.bf16.mxu0 0
        %643 = vmatpush1.bf16.msra.mxu0 0
        %644 = vmatprep.subr.bf16.mxu0 0
        %645 = vmatpush1.bf16.msra.mxu0 0
        %646 = vmatprep.subr.bf16.mxu0 0
        %647 = vmatpush1.bf16.msra.mxu0 0
        %648 = vmatprep.subr.bf16.mxu0 0
        %649 = vmatpush1.bf16.msra.mxu0 0
        %650 = vmatprep.subr.bf16.mxu0 0
        %651 = vmatpush1.bf16.msra.mxu0 0
        %652 = vmatprep.subr.bf16.mxu0 0
        %653 = vmatpush1.bf16.msra.mxu0 0
        %654 = vmatprep.subr.bf16.mxu0 0
        %655 = vmatpush1.bf16.msra.mxu0 0
        %656 = vmatprep.subr.bf16.mxu0 0
        %657 = vmatpush1.bf16.msra.mxu0 0
        %658 = vmatprep.subr.bf16.mxu0 0
        %659 = vmatpush1.bf16.msra.mxu0 0
        %660 = vmatprep.subr.bf16.mxu0 0
        %661 = vmatpush1.bf16.msra.mxu0 0
        %662 = vmatprep.subr.bf16.mxu0 0
        %663 = vmatpush1.bf16.msra.mxu0 0
        %664 = vmatprep.subr.bf16.mxu0 0
        %665 = vmatpush1.bf16.msra.mxu0 0
        %666 = vmatprep.subr.bf16.mxu0 0
        %667 = vmatpush1.bf16.msra.mxu0 0
        %668 = vmatprep.subr.bf16.mxu0 0
        %669 = vmatpush1.bf16.msra.mxu0 0
        %670 = vmatprep.subr.bf16.mxu0 0
        %671 = vmatpush1.bf16.msra.mxu0 0
        %672 = vmatprep.mubr.bf16.mxu0 0
        %673 = vmatmul.mubr.bf16.gmra.mrb[0].mxu0 %v638
        %v674 = vpop.f32.mrb[0].mxu0
        %v675 = vadd.f32 %v628, %v674
        %v676 = vpop.f32.mrb[0].mxu0
        %v677 = vpop.f32.mrb[0].mxu0
        %v678 = vpop.f32.mrb[0].mxu0
        %679 = vdwg.mxu0
        %v680 = vmax.f32 %v675, 0.0
        %v681 = vld [vmem:[%s4] sm:$0xf]
        %683 = vset.pattern.permute.xlu0 0
        %684 = vperm.xlu0 %683, %v622
        %v685 = vpop.permute.xlu0 %684
        %v689 = vunpack.c.l.b16 %v617
        %v690 = vunpack.c.l.b16 %v618
        %v691 = vpack.c.b16 %v690, %v689
        %v694 = vsel %vm636, %v681, 0
        %696 = vmatprep.subr.bf16.mxu0 0
        %697 = vmatpush1.bf16.msra.mxu0 %v691
        %698 = vmatprep.subr.bf16.mxu0 0
        %699 = vmatpush1.bf16.msra.mxu0 0
        %700 = vmatprep.subr.bf16.mxu0 0
        %701 = vmatpush1.bf16.msra.mxu0 0
        %702 = vmatprep.subr.bf16.mxu0 0
        %703 = vmatpush1.bf16.msra.mxu0 0
        %704 = vmatprep.subr.bf16.mxu0 0
        %705 = vmatpush1.bf16.msra.mxu0 0
        %706 = vmatprep.subr.bf16.mxu0 0
        %707 = vmatpush1.bf16.msra.mxu0 0
        %708 = vmatprep.subr.bf16.mxu0 0
        %709 = vmatpush1.bf16.msra.mxu0 0
        %710 = vmatprep.subr.bf16.mxu0 0
        %711 = vmatpush1.bf16.msra.mxu0 0
        %712 = vmatprep.subr.bf16.mxu0 0
        %713 = vmatpush1.bf16.msra.mxu0 0
        %714 = vmatprep.subr.bf16.mxu0 0
        %715 = vmatpush1.bf16.msra.mxu0 0
        %716 = vmatprep.subr.bf16.mxu0 0
        %717 = vmatpush1.bf16.msra.mxu0 0
        %718 = vmatprep.subr.bf16.mxu0 0
        %719 = vmatpush1.bf16.msra.mxu0 0
        %720 = vmatprep.subr.bf16.mxu0 0
        %721 = vmatpush1.bf16.msra.mxu0 0
        %722 = vmatprep.subr.bf16.mxu0 0
        %723 = vmatpush1.bf16.msra.mxu0 0
        %724 = vmatprep.subr.bf16.mxu0 0
        %725 = vmatpush1.bf16.msra.mxu0 0
        %726 = vmatprep.subr.bf16.mxu0 0
        %727 = vmatpush1.bf16.msra.mxu0 0
        %728 = vmatprep.mubr.bf16.mxu0 0
        %729 = vmatmul.mubr.bf16.gmra.mrb[0].mxu0 %v694
        %v730 = vpop.f32.mrb[0].mxu0
        %v731 = vadd.f32 %v685, %v730
        %v732 = vpop.f32.mrb[0].mxu0
        %v733 = vpop.f32.mrb[0].mxu0
        %v734 = vpop.f32.mrb[0].mxu0
        %735 = vdwg.mxu0
        %v736 = vmax.f32 %v731, 0.0
        %v737 = vld [vmem:[%s5] sm:$0xf]
        %739 = vset.pattern.permute.xlu0 0
        %740 = vperm.xlu0 %739, %v623
        %v741 = vpop.permute.xlu0 %740
        %v745 = vunpack.c.l.b16 %v619
        %v746 = vunpack.c.l.b16 %v620
        %v747 = vpack.c.b16 %v746, %v745
        %v750 = vsel %vm636, %v737, 0
        %752 = vmatprep.subr.bf16.mxu0 0
        %753 = vmatpush1.bf16.msra.mxu0 %v747
        %754 = vmatprep.subr.bf16.mxu0 0
        %755 = vmatpush1.bf16.msra.mxu0 0
        %756 = vmatprep.subr.bf16.mxu0 0
        %757 = vmatpush1.bf16.msra.mxu0 0
        %758 = vmatprep.subr.bf16.mxu0 0
        %759 = vmatpush1.bf16.msra.mxu0 0
        %760 = vmatprep.subr.bf16.mxu0 0
        %761 = vmatpush1.bf16.msra.mxu0 0
        %762 = vmatprep.subr.bf16.mxu0 0
        %763 = vmatpush1.bf16.msra.mxu0 0
        %764 = vmatprep.subr.bf16.mxu0 0
        %765 = vmatpush1.bf16.msra.mxu0 0
        %766 = vmatprep.subr.bf16.mxu0 0
        %767 = vmatpush1.bf16.msra.mxu0 0
        %768 = vmatprep.subr.bf16.mxu0 0
        %769 = vmatpush1.bf16.msra.mxu0 0
        %770 = vmatprep.subr.bf16.mxu0 0
        %771 = vmatpush1.bf16.msra.mxu0 0
        %772 = vmatprep.subr.bf16.mxu0 0
        %773 = vmatpush1.bf16.msra.mxu0 0
        %774 = vmatprep.subr.bf16.mxu0 0
        %775 = vmatpush1.bf16.msra.mxu0 0
        %776 = vmatprep.subr.bf16.mxu0 0
        %777 = vmatpush1.bf16.msra.mxu0 0
        %778 = vmatprep.subr.bf16.mxu0 0
        %779 = vmatpush1.bf16.msra.mxu0 0
        %780 = vmatprep.subr.bf16.mxu0 0
        %781 = vmatpush1.bf16.msra.mxu0 0
        %782 = vmatprep.subr.bf16.mxu0 0
        %783 = vmatpush1.bf16.msra.mxu0 0
        %784 = vmatprep.mubr.bf16.mxu0 0
        %785 = vmatmul.mubr.bf16.gmra.mrb[0].mxu0 %v750
        %v786 = vpop.f32.mrb[0].mxu0
        %v787 = vadd.f32 %v741, %v786
        %v788 = vpop.f32.mrb[0].mxu0
        %v789 = vpop.f32.mrb[0].mxu0
        %v790 = vpop.f32.mrb[0].mxu0
        %791 = vdwg.mxu0
        %v792 = vmax.f32 %v787, 0.0
        %v793 = vld [vmem:[%s7] sm:$0x7]
        %v794 = vld [vmem:[%s8] sm:$0x7]
        %vm795 = vcmask 64512
        %v797 = vsel %vm795, %v794, 0
        %799 = vmatprep.subr.mxu0 0.0
        %800 = vmatpush1.msra.mxu0 %v736
        %801 = vmatprep.subr.mxu0 0.0
        %802 = vmatpush1.msra.mxu0 0.0
        %803 = vmatprep.subr.mxu0 0.0
        %804 = vmatpush1.msra.mxu0 0.0
        %805 = vmatprep.subr.mxu0 0.0
        %806 = vmatpush1.msra.mxu0 0.0
        %807 = vmatprep.subr.mxu0 0.0
        %808 = vmatpush1.msra.mxu0 0.0
        %809 = vmatprep.subr.mxu0 0.0
        %810 = vmatpush1.msra.mxu0 0.0
        %811 = vmatprep.subr.mxu0 0.0
        %812 = vmatpush1.msra.mxu0 0.0
        %813 = vmatprep.subr.mxu0 0.0
        %814 = vmatpush1.msra.mxu0 0.0
        %815 = vmatprep.subr.mxu0 0.0
        %816 = vmatpush1.msra.mxu0 0.0
        %817 = vmatprep.subr.mxu0 0.0
        %818 = vmatpush1.msra.mxu0 0.0
        %819 = vmatprep.subr.mxu0 0.0
        %820 = vmatpush1.msra.mxu0 0.0
        %821 = vmatprep.subr.mxu0 0.0
        %822 = vmatpush1.msra.mxu0 0.0
        %823 = vmatprep.subr.mxu0 0.0
        %824 = vmatpush1.msra.mxu0 0.0
        %825 = vmatprep.subr.mxu0 0.0
        %826 = vmatpush1.msra.mxu0 0.0
        %827 = vmatprep.subr.mxu0 0.0
        %828 = vmatpush1.msra.mxu0 0.0
        %829 = vmatprep.subr.mxu0 0.0
        %830 = vmatpush1.msra.mxu0 0.0
        %831 = vmatprep.subr.mxu0 0.0
        %832 = vmatpush1.msra.mxu0 0.0
        %833 = vmatprep.subr.mxu0 0.0
        %834 = vmatpush1.msra.mxu0 0.0
        %835 = vmatprep.subr.mxu0 0.0
        %836 = vmatpush1.msra.mxu0 0.0
        %837 = vmatprep.subr.mxu0 0.0
        %838 = vmatpush1.msra.mxu0 0.0
        %839 = vmatprep.subr.mxu0 0.0
        %840 = vmatpush1.msra.mxu0 0.0
        %841 = vmatprep.subr.mxu0 0.0
        %842 = vmatpush1.msra.mxu0 0.0
        %843 = vmatprep.subr.mxu0 0.0
        %844 = vmatpush1.msra.mxu0 0.0
        %845 = vmatprep.subr.mxu0 0.0
        %846 = vmatpush1.msra.mxu0 0.0
        %847 = vmatprep.subr.mxu0 0.0
        %848 = vmatpush1.msra.mxu0 0.0
        %849 = vmatprep.subr.mxu0 0.0
        %850 = vmatpush1.msra.mxu0 0.0
        %851 = vmatprep.subr.mxu0 0.0
        %852 = vmatpush1.msra.mxu0 0.0
        %853 = vmatprep.subr.mxu0 0.0
        %854 = vmatpush1.msra.mxu0 0.0
        %855 = vmatprep.subr.mxu0 0.0
        %856 = vmatpush1.msra.mxu0 0.0
        %857 = vmatprep.subr.mxu0 0.0
        %858 = vmatpush1.msra.mxu0 0.0
        %859 = vmatprep.subr.mxu0 0.0
        %860 = vmatpush1.msra.mxu0 0.0
        %861 = vmatprep.subr.mxu0 0.0
        %862 = vmatpush1.msra.mxu0 0.0
        %863 = vmatprep.mubr.f32.mxu0 0.0
        %864 = vmatmul.mubr.f32.gmra.mrb[0].mxu0 %v797
        %v865 = vpop.f32.mrb[0].mxu0
        %v866 = vadd.f32 0.0, %v865
        %v867 = vpop.f32.mrb[0].mxu0
        %868 = vdwg.mxu0
        %v870 = vsel %vm795, %v793, 0
        %872 = vmatprep.subr.mxu0 0.0
        %873 = vmatpush1.msra.mxu0 %v680
        %874 = vmatprep.subr.mxu0 0.0
        %875 = vmatpush1.msra.mxu0 0.0
        %876 = vmatprep.subr.mxu0 0.0
        %877 = vmatpush1.msra.mxu0 0.0
        %878 = vmatprep.subr.mxu0 0.0
        %879 = vmatpush1.msra.mxu0 0.0
        %880 = vmatprep.subr.mxu0 0.0
        %881 = vmatpush1.msra.mxu0 0.0
        %882 = vmatprep.subr.mxu0 0.0
        %883 = vmatpush1.msra.mxu0 0.0
        %884 = vmatprep.subr.mxu0 0.0
        %885 = vmatpush1.msra.mxu0 0.0
        %886 = vmatprep.subr.mxu0 0.0
        %887 = vmatpush1.msra.mxu0 0.0
        %888 = vmatprep.subr.mxu0 0.0
        %889 = vmatpush1.msra.mxu0 0.0
        %890 = vmatprep.subr.mxu0 0.0
        %891 = vmatpush1.msra.mxu0 0.0
        %892 = vmatprep.subr.mxu0 0.0
        %893 = vmatpush1.msra.mxu0 0.0
        %894 = vmatprep.subr.mxu0 0.0
        %895 = vmatpush1.msra.mxu0 0.0
        %896 = vmatprep.subr.mxu0 0.0
        %897 = vmatpush1.msra.mxu0 0.0
        %898 = vmatprep.subr.mxu0 0.0
        %899 = vmatpush1.msra.mxu0 0.0
        %900 = vmatprep.subr.mxu0 0.0
        %901 = vmatpush1.msra.mxu0 0.0
        %902 = vmatprep.subr.mxu0 0.0
        %903 = vmatpush1.msra.mxu0 0.0
        %904 = vmatprep.subr.mxu0 0.0
        %905 = vmatpush1.msra.mxu0 0.0
        %906 = vmatprep.subr.mxu0 0.0
        %907 = vmatpush1.msra.mxu0 0.0
        %908 = vmatprep.subr.mxu0 0.0
        %909 = vmatpush1.msra.mxu0 0.0
        %910 = vmatprep.subr.mxu0 0.0
        %911 = vmatpush1.msra.mxu0 0.0
        %912 = vmatprep.subr.mxu0 0.0
        %913 = vmatpush1.msra.mxu0 0.0
        %914 = vmatprep.subr.mxu0 0.0
        %915 = vmatpush1.msra.mxu0 0.0
        %916 = vmatprep.subr.mxu0 0.0
        %917 = vmatpush1.msra.mxu0 0.0
        %918 = vmatprep.subr.mxu0 0.0
        %919 = vmatpush1.msra.mxu0 0.0
        %920 = vmatprep.subr.mxu0 0.0
        %921 = vmatpush1.msra.mxu0 0.0
        %922 = vmatprep.subr.mxu0 0.0
        %923 = vmatpush1.msra.mxu0 0.0
        %924 = vmatprep.subr.mxu0 0.0
        %925 = vmatpush1.msra.mxu0 0.0
        %926 = vmatprep.subr.mxu0 0.0
        %927 = vmatpush1.msra.mxu0 0.0
        %928 = vmatprep.subr.mxu0 0.0
        %929 = vmatpush1.msra.mxu0 0.0
        %930 = vmatprep.subr.mxu0 0.0
        %931 = vmatpush1.msra.mxu0 0.0
        %932 = vmatprep.subr.mxu0 0.0
        %933 = vmatpush1.msra.mxu0 0.0
        %934 = vmatprep.subr.mxu0 0.0
        %935 = vmatpush1.msra.mxu0 0.0
        %936 = vmatprep.mubr.f32.mxu0 0.0
        %937 = vmatmul.mubr.f32.gmra.mrb[0].mxu0 %v870
        %v938 = vpop.f32.mrb[0].mxu0
        %v939 = vadd.f32 %v866, %v938
        %v940 = vpop.f32.mrb[0].mxu0
        %941 = vdwg.mxu0
        %v942 = vld [vmem:[%s9] sm:$0x7]
        %v944 = vsel %vm795, %v942, 0
        %946 = vmatprep.subr.mxu0 0.0
        %947 = vmatpush1.msra.mxu0 %v792
        %948 = vmatprep.subr.mxu0 0.0
        %949 = vmatpush1.msra.mxu0 0.0
        %950 = vmatprep.subr.mxu0 0.0
        %951 = vmatpush1.msra.mxu0 0.0
        %952 = vmatprep.subr.mxu0 0.0
        %953 = vmatpush1.msra.mxu0 0.0
        %954 = vmatprep.subr.mxu0 0.0
        %955 = vmatpush1.msra.mxu0 0.0
        %956 = vmatprep.subr.mxu0 0.0
        %957 = vmatpush1.msra.mxu0 0.0
        %958 = vmatprep.subr.mxu0 0.0
        %959 = vmatpush1.msra.mxu0 0.0
        %960 = vmatprep.subr.mxu0 0.0
        %961 = vmatpush1.msra.mxu0 0.0
        %962 = vmatprep.subr.mxu0 0.0
        %963 = vmatpush1.msra.mxu0 0.0
        %964 = vmatprep.subr.mxu0 0.0
        %965 = vmatpush1.msra.mxu0 0.0
        %966 = vmatprep.subr.mxu0 0.0
        %967 = vmatpush1.msra.mxu0 0.0
        %968 = vmatprep.subr.mxu0 0.0
        %969 = vmatpush1.msra.mxu0 0.0
        %970 = vmatprep.subr.mxu0 0.0
        %971 = vmatpush1.msra.mxu0 0.0
        %972 = vmatprep.subr.mxu0 0.0
        %973 = vmatpush1.msra.mxu0 0.0
        %974 = vmatprep.subr.mxu0 0.0
        %975 = vmatpush1.msra.mxu0 0.0
        %976 = vmatprep.subr.mxu0 0.0
        %977 = vmatpush1.msra.mxu0 0.0
        %978 = vmatprep.subr.mxu0 0.0
        %979 = vmatpush1.msra.mxu0 0.0
        %980 = vmatprep.subr.mxu0 0.0
        %981 = vmatpush1.msra.mxu0 0.0
        %982 = vmatprep.subr.mxu0 0.0
        %983 = vmatpush1.msra.mxu0 0.0
        %984 = vmatprep.subr.mxu0 0.0
        %985 = vmatpush1.msra.mxu0 0.0
        %986 = vmatprep.subr.mxu0 0.0
        %987 = vmatpush1.msra.mxu0 0.0
        %988 = vmatprep.subr.mxu0 0.0
        %989 = vmatpush1.msra.mxu0 0.0
        %990 = vmatprep.subr.mxu0 0.0
        %991 = vmatpush1.msra.mxu0 0.0
        %992 = vmatprep.subr.mxu0 0.0
        %993 = vmatpush1.msra.mxu0 0.0
        %994 = vmatprep.subr.mxu0 0.0
        %995 = vmatpush1.msra.mxu0 0.0
        %996 = vmatprep.subr.mxu0 0.0
        %997 = vmatpush1.msra.mxu0 0.0
        %998 = vmatprep.subr.mxu0 0.0
        %999 = vmatpush1.msra.mxu0 0.0
        %1000 = vmatprep.subr.mxu0 0.0
        %1001 = vmatpush1.msra.mxu0 0.0
        %1002 = vmatprep.subr.mxu0 0.0
        %1003 = vmatpush1.msra.mxu0 0.0
        %1004 = vmatprep.subr.mxu0 0.0
        %1005 = vmatpush1.msra.mxu0 0.0
        %1006 = vmatprep.subr.mxu0 0.0
        %1007 = vmatpush1.msra.mxu0 0.0
        %1008 = vmatprep.subr.mxu0 0.0
        %1009 = vmatpush1.msra.mxu0 0.0
        %1010 = vmatprep.mubr.f32.mxu0 0.0
        %1011 = vmatmul.mubr.f32.gmra.mrb[0].mxu0 %v944
        %v1012 = vpop.f32.mrb[0].mxu0
        %v1013 = vadd.f32 0.0, %v1012
        %v1014 = vpop.f32.mrb[0].mxu0
        %1015 = vdwg.mxu0
        %v1016 = vadd.f32 %v939, %v1013
        %v1017 = vld [vmem:[%s10] sm:$0x7]
        %1019 = vset.pattern.permute.xlu0 0
        %1020 = vperm.xlu0 %1019, %v1017
        %v1021 = vpop.permute.xlu0 %1020
        %v1023 = vadd.f32 %v1016, %v1021
        %vm1024 = vcmask 1042432
        %v1025 = vsel %vm1024, %v1023, -inf
        %v1026 = vrot.slane %v1025, 4
        %v1027 = vmax.f32 %v1025, %v1026
        %v1028 = vrot.slane %v1027, 2
        %v1029 = vmax.f32 %v1027, %v1028
        %v1030 = vrot.slane %v1029, 1
        %v1031 = vmax.f32 %v1029, %v1030
        %v1032 = vsub.f32 %v1023, %v1031
        %v1033 = vmul.f32 %v1032, 1.442695
        %v1034 = vpow.pop %v1033
        %v1035 = vsel %vm1024, %v1034, 0.0
        %v1036 = vrot.slane %v1035, 4
        %v1037 = vadd.f32 %v1035, %v1036
        %v1038 = vrot.slane %v1037, 2
        %v1039 = vadd.f32 %v1037, %v1038
        %v1040 = vrot.slane %v1039, 1
        %v1041 = vadd.f32 %v1039, %v1040
        %v1042 = vrcp.pop %v1041
        %v1043 = vmul.f32 %v1034, %v1042
        %v1044 = vlaneseq
        %v1045 = vshrl.u32 %v1044, 7
        %v1046 = vsub.s32 0, %v1045
        %v1047 = vrot.slane %v1043, %v1046
        %v1048 = vmul.f32 %v680, %v1047
        %v1049 = vlaneseq
        %v1050 = vshrl.u32 %v1049, 7
        %v1051 = vsub.s32 1, %v1050
        %v1052 = vrot.slane %v1043, %v1051
        %v1053 = vmul.f32 %v736, %v1052
        %v1054 = vadd.f32 %v1048, %v1053
        %v1055 = vlaneseq
        %v1056 = vshrl.u32 %v1055, 7
        %v1057 = vsub.s32 2, %v1056
        %v1058 = vrot.slane %v1043, %v1057
        %v1059 = vmul.f32 %v792, %v1058
        %v1060 = vadd.f32 %v1054, %v1059
        %v1061 = vld [vmem:[%s11] sm:$0xff]
        %v1062 = vld [vmem:[%s12] sm:$0xff]
        %1064 = vset.pattern.permute.xlu0 0
        %1065 = vperm.xlu0 %1064, %v1062
        %v1066 = vpop.permute.xlu0 %1065
        %v1069 = vsel %vm795, %v1061, 0
        %1071 = vmatprep.subr.mxu0 0.0
        %1072 = vmatpush1.msra.mxu0 %v1060
        %1073 = vmatprep.subr.mxu0 0.0
        %1074 = vmatpush1.msra.mxu0 0.0
        %1075 = vmatprep.subr.mxu0 0.0
        %1076 = vmatpush1.msra.mxu0 0.0
        %1077 = vmatprep.subr.mxu0 0.0
        %1078 = vmatpush1.msra.mxu0 0.0
        %1079 = vmatprep.subr.mxu0 0.0
        %1080 = vmatpush1.msra.mxu0 0.0
        %1081 = vmatprep.subr.mxu0 0.0
        %1082 = vmatpush1.msra.mxu0 0.0
        %1083 = vmatprep.subr.mxu0 0.0
        %1084 = vmatpush1.msra.mxu0 0.0
        %1085 = vmatprep.subr.mxu0 0.0
        %1086 = vmatpush1.msra.mxu0 0.0
        %1087 = vmatprep.subr.mxu0 0.0
        %1088 = vmatpush1.msra.mxu0 0.0
        %1089 = vmatprep.subr.mxu0 0.0
        %1090 = vmatpush1.msra.mxu0 0.0
        %1091 = vmatprep.subr.mxu0 0.0
        %1092 = vmatpush1.msra.mxu0 0.0
        %1093 = vmatprep.subr.mxu0 0.0
        %1094 = vmatpush1.msra.mxu0 0.0
        %1095 = vmatprep.subr.mxu0 0.0
        %1096 = vmatpush1.msra.mxu0 0.0
        %1097 = vmatprep.subr.mxu0 0.0
        %1098 = vmatpush1.msra.mxu0 0.0
        %1099 = vmatprep.subr.mxu0 0.0
        %1100 = vmatpush1.msra.mxu0 0.0
        %1101 = vmatprep.subr.mxu0 0.0
        %1102 = vmatpush1.msra.mxu0 0.0
        %1103 = vmatprep.subr.mxu0 0.0
        %1104 = vmatpush1.msra.mxu0 0.0
        %1105 = vmatprep.subr.mxu0 0.0
        %1106 = vmatpush1.msra.mxu0 0.0
        %1107 = vmatprep.subr.mxu0 0.0
        %1108 = vmatpush1.msra.mxu0 0.0
        %1109 = vmatprep.subr.mxu0 0.0
        %1110 = vmatpush1.msra.mxu0 0.0
        %1111 = vmatprep.subr.mxu0 0.0
        %1112 = vmatpush1.msra.mxu0 0.0
        %1113 = vmatprep.subr.mxu0 0.0
        %1114 = vmatpush1.msra.mxu0 0.0
        %1115 = vmatprep.subr.mxu0 0.0
        %1116 = vmatpush1.msra.mxu0 0.0
        %1117 = vmatprep.subr.mxu0 0.0
        %1118 = vmatpush1.msra.mxu0 0.0
        %1119 = vmatprep.subr.mxu0 0.0
        %1120 = vmatpush1.msra.mxu0 0.0
        %1121 = vmatprep.subr.mxu0 0.0
        %1122 = vmatpush1.msra.mxu0 0.0
        %1123 = vmatprep.subr.mxu0 0.0
        %1124 = vmatpush1.msra.mxu0 0.0
        %1125 = vmatprep.subr.mxu0 0.0
        %1126 = vmatpush1.msra.mxu0 0.0
        %1127 = vmatprep.subr.mxu0 0.0
        %1128 = vmatpush1.msra.mxu0 0.0
        %1129 = vmatprep.subr.mxu0 0.0
        %1130 = vmatpush1.msra.mxu0 0.0
        %1131 = vmatprep.subr.mxu0 0.0
        %1132 = vmatpush1.msra.mxu0 0.0
        %1133 = vmatprep.subr.mxu0 0.0
        %1134 = vmatpush1.msra.mxu0 0.0
        %1135 = vmatprep.mubr.f32.mxu0 0.0
        %1136 = vmatmul.mubr.f32.gmra.mrb[0].mxu0 %v1069
        %v1137 = vpop.f32.mrb[0].mxu0
        %v1138 = vadd.f32 %v1066, %v1137
        %v1139 = vpop.f32.mrb[0].mxu0
        %1140 = vdwg.mxu0
        %1141 = vst [vmem:[%s613] sm:$0xff] %v1138
        %p1142 = scmp.lt.s32.totalorder %s24, 1
        %s1143 = scalar_select %p1142, %s24, 1
        %s1144 = smul.addr %s1143, 8
        %s1145 = scalar_lea.vmem %s13, %s1144
        // Predicated region
        $region196: #{rpvnet_forward.15} parent=182 // pred_check
          %p1146 = pneg %p330
        $region197: #{rpvnet_forward.15} parent=182 // pred_check_branch
          %1148 = sbr.rel (%p1146) target = $region199
        $region198: #{rpvnet_forward.15} parent=182 // pred_region
          _
        $region199: #{rpvnet_forward.15} parent=182 // pred_fallthru
          _
      $region183: #{rpvnet_forward.15} parent=5 // pred_fallthru
        _
      %p1149 = scmp.le.s32.totalorder 2, %s19
      // Predicated region
      $region200: #{rpvnet_forward.15} parent=5 // pred_check
        %p1150 = pneg %p1149
      $region201: #{rpvnet_forward.15} parent=5 // pred_check_branch
        %1152 = sbr.rel (%p1150) target = $region203
      $region202: #{rpvnet_forward.15} parent=5 // pred_region
        %s1153 = ssub.s32 %s19, 2
        // Predicated region
        $region204: #{rpvnet_forward.15} parent=202 // pred_check
          %p1154 = pneg %p336
        $region205: #{rpvnet_forward.15} parent=202 // pred_check_branch
          %1156 = sbr.rel (%p1154) target = $region207
        $region206: #{rpvnet_forward.15} parent=202 // pred_region
          %p1157 = scmp.lt.s32.totalorder %s25, 1
          %s1158 = scalar_select %p1157, %s25, 1
          %s1159 = smul.addr %s1158, 8
          %s1160 = scalar_lea.vmem %s13, %s1159
        $region207: #{rpvnet_forward.15} parent=202 // pred_fallthru
          _
      $region203: #{rpvnet_forward.15} parent=5 // pred_fallthru
        _
    $region6: #{rpvnet_forward.15} parent=1 // loop_footer
      %s23 = sadd.s32 1, %s19
    $region7: #{rpvnet_forward.15} parent=1 // loop_footer_branch
      %18 = sbr.rel target = $region3
    $region8: #{rpvnet_forward.15} parent=1 // loop_exit
      _

</llo_original>
